<compile_context>
chip_gen: v6e
topology: v6e:2x2x1
jax: 0.10.0
libtpu: 0.0.40
codegen_flags: <defaults>
</compile_context>

<pallas_src>
import functools
import math

import jax
import jax.numpy as jnp
from jax.experimental import pallas as pl
from jax.experimental.pallas import tpu as pltpu  # noqa: F401  (TPU backend)


CFG = dict(
    vocab=64,
    hidden=32,
    heads=4,
    layers=2,
    intermediate=64,
    max_pos=16,
    type_vocab=2,
)

LN_EPS = 1e-12


# ------------------------------ fused kernel ------------------------------- #

def _layer_norm(z, g, b, eps):
    mu = jnp.mean(z, axis=-1, keepdims=True)
    zc = z - mu
    var = jnp.mean(zc * zc, axis=-1, keepdims=True)
    return zc * jax.lax.rsqrt(var + eps) * g + b


def _gelu_tanh(y):
    # tanh approximation (EUP tanh slot); small deviation vs PyTorch's erf GELU.
    c = math.sqrt(2.0 / math.pi)
    return 0.5 * y * (1.0 + jnp.tanh(c * (y + 0.044715 * (y * y * y))))


def _encoder_kernel(
    emb_ref, bias_ref, emb_ln_g_ref, emb_ln_b_ref,
    wqkv_ref, bqkv_ref, wo_ref, bo_ref,
    ln1_g_ref, ln1_b_ref, w1_ref, b1_ref, w2_ref, b2_ref,
    ln2_g_ref, ln2_b_ref, pool_w_ref, pool_b_ref,
    out_ref,
    *, num_layers, n_seq, seq, heads, head_dim, hidden, eps):
    """Both twins folded into the batch; full BERT encoder + pooler in VMEM.

    emb_ref  : (n_seq*seq, H) f32     n_seq = twins * batch
    bias_ref : (n_seq, 1, seq) f32    additive attention mask
    wqkv_ref : (L, 3*NH, H, D) bf16   per-head Q (0..NH-1), K (NH..), V (2NH..)
    wo_ref   : (L, NH, D, H)  bf16    per-head rows of the output projection
    """
    emb = emb_ref[...]                      # (N, H)
    bias = bias_ref[...]                    # (n_seq, 1, S)
    scale = 1.0 / math.sqrt(head_dim)
    n_rows = n_seq * seq

    # Embedding LayerNorm (f32).
    x = _layer_norm(emb, emb_ln_g_ref[...], emb_ln_b_ref[...], eps)

    for l in range(num_layers):             # static unroll (num_layers small)
        xb = x.astype(jnp.bfloat16)         # bf16 matmul inputs, f32 accum
        attn_out = jnp.zeros_like(x)        # (N, H) f32 accumulator

        for h in range(heads):              # per-head weights are pre-split:
            # projections are plain 2-D (N,H)x(H,D) dots — no lane slicing.
            q = jnp.dot(xb, wqkv_ref[l, h],
                        preferred_element_type=jnp.float32) + bqkv_ref[l, h]
            k = jnp.dot(xb, wqkv_ref[l, heads + h],
                        preferred_element_type=jnp.float32) + bqkv_ref[l, heads + h]
            v = jnp.dot(xb, wqkv_ref[l, 2 * heads + h],
                        preferred_element_type=jnp.float32) + bqkv_ref[l, 2 * heads + h]

            # leading-dim reshapes only (last dim unchanged -> no relayout).
            q = q.reshape(n_seq, seq, head_dim)
            k = k.reshape(n_seq, seq, head_dim)
            v = v.reshape(n_seq, seq, head_dim)

            s = jnp.einsum("bqd,bkd->bqk",
                           q.astype(jnp.bfloat16), k.astype(jnp.bfloat16),
                           preferred_element_type=jnp.float32)
            s = s * scale + bias
            s = s - jnp.max(s, axis=-1, keepdims=True)
            p = jnp.exp(s)
            p = p * pl.reciprocal(jnp.sum(p, axis=-1, keepdims=True),
                                  approx=True)
            c = jnp.einsum("bqk,bkd->bqd",
                           p.astype(jnp.bfloat16), v.astype(jnp.bfloat16),
                           preferred_element_type=jnp.float32)
            c = c.reshape(n_rows, head_dim).astype(jnp.bfloat16)

            # per-head slice of the output projection -> accumulate (no concat).
            attn_out = attn_out + jnp.dot(c, wo_ref[l, h],
                                          preferred_element_type=jnp.float32)

        attn_out = attn_out + bo_ref[l]
        x = _layer_norm(x + attn_out, ln1_g_ref[l], ln1_b_ref[l], eps)

        # --- feed-forward (tanh GELU) + residual + LayerNorm ---
        hmid = jnp.dot(x.astype(jnp.bfloat16), w1_ref[l],
                       preferred_element_type=jnp.float32) + b1_ref[l]
        hmid = _gelu_tanh(hmid)
        ff = jnp.dot(hmid.astype(jnp.bfloat16), w2_ref[l],
                     preferred_element_type=jnp.float32) + b2_ref[l]
        x = _layer_norm(x + ff, ln2_g_ref[l], ln2_b_ref[l], eps)

    # --- pooler: tanh(W_pool @ hidden[:, 0] + b_pool) ---
    # reshape keeps the last dim (no lane relayout); [:, 0, :] is a small
    # sublane select of the CLS rows on the epilogue path.
    cls = x.reshape(n_seq, seq, hidden)[:, 0, :]            # (n_seq, H)
    pooled = jnp.tanh(jnp.dot(cls.astype(jnp.bfloat16), pool_w_ref[...],
                              preferred_element_type=jnp.float32)
                      + pool_b_ref[...])
    out_ref[...] = pooled


# ------------------------------ parameters --------------------------------- #

def init_params(key, cfg):
    H, I = cfg["hidden"], cfg["intermediate"]

    def nrm(k, shape):
        return 0.02 * jax.random.normal(k, shape, jnp.float32)

    keys = iter(jax.random.split(key, 8 + 16 * cfg["layers"]))
    p = {
        "word_emb": nrm(next(keys), (cfg["vocab"], H)),
        "pos_emb": nrm(next(keys), (cfg["max_pos"], H)),
        "type_emb": nrm(next(keys), (cfg["type_vocab"], H)),
        "emb_ln_g": jnp.ones((H,), jnp.float32),
        "emb_ln_b": jnp.zeros((H,), jnp.float32),
        "pool_w": nrm(next(keys), (H, H)),
        "pool_b": jnp.zeros((H,), jnp.float32),
        "layers": [],
    }
    for _ in range(cfg["layers"]):
        layer = {
            "wq": nrm(next(keys), (H, H)), "bq": jnp.zeros((H,), jnp.float32),
            "wk": nrm(next(keys), (H, H)), "bk": jnp.zeros((H,), jnp.float32),
            "wv": nrm(next(keys), (H, H)), "bv": jnp.zeros((H,), jnp.float32),
            "wo": nrm(next(keys), (H, H)), "bo": jnp.zeros((H,), jnp.float32),
            "ln1_g": jnp.ones((H,), jnp.float32),
            "ln1_b": jnp.zeros((H,), jnp.float32),
            "w1": nrm(next(keys), (H, I)), "b1": jnp.zeros((I,), jnp.float32),
            "w2": nrm(next(keys), (I, H)), "b2": jnp.zeros((H,), jnp.float32),
            "ln2_g": jnp.ones((H,), jnp.float32),
            "ln2_b": jnp.zeros((H,), jnp.float32),
        }
        p["layers"].append(layer)
    return p


def pack_params(params, cfg):
    """One-time weight packing (hoisted out of the forward pass).

    Per-head Q/K/V column slices and per-head output-projection row slices are
    materialized here, so the kernel never lane-slices.  Weight matrices are
    pre-cast to bf16 (MXU-native); biases / LN params stay f32.
    """
    H, I, L = cfg["hidden"], cfg["intermediate"], cfg["layers"]
    NH = cfg["heads"]
    D = H // NH

    def stack(name):
        return jnp.stack([lyr[name] for lyr in params["layers"]])

    def head_cols(w):       # (L,H,H) -> (L,NH,H,D); [l,h] == w[l][:, h*D:(h+1)*D]
        return jnp.transpose(w.reshape(L, H, NH, D), (0, 2, 1, 3))

    def head_bias(b):       # (L,H) -> (L,NH,1,D)
        return b.reshape(L, NH, 1, D)

    wqkv_h = jnp.concatenate(
        [head_cols(stack("wq")), head_cols(stack("wk")), head_cols(stack("wv"))],
        axis=1).astype(jnp.bfloat16)                            # (L, 3NH, H, D)
    bqkv_h = jnp.concatenate(
        [head_bias(stack("bq")), head_bias(stack("bk")), head_bias(stack("bv"))],
        axis=1)                                                 # (L, 3NH, 1, D)

    return dict(
        word_emb=params["word_emb"],
        pos_emb=params["pos_emb"],
        type_emb=params["type_emb"],
        emb_ln_g=params["emb_ln_g"].reshape(1, H),
        emb_ln_b=params["emb_ln_b"].reshape(1, H),
        wqkv_h=wqkv_h,
        bqkv_h=bqkv_h,
        wo_h=stack("wo").reshape(L, NH, D, H).astype(jnp.bfloat16),
        bo=stack("bo").reshape(L, 1, H),
        ln1_g=stack("ln1_g").reshape(L, 1, H),
        ln1_b=stack("ln1_b").reshape(L, 1, H),
        w1=stack("w1").astype(jnp.bfloat16),
        b1=stack("b1").reshape(L, 1, I),
        w2=stack("w2").astype(jnp.bfloat16),
        b2=stack("b2").reshape(L, 1, H),
        ln2_g=stack("ln2_g").reshape(L, 1, H),
        ln2_b=stack("ln2_b").reshape(L, 1, H),
        pool_w=params["pool_w"].astype(jnp.bfloat16),
        pool_b=params["pool_b"].reshape(1, H),
    )


# ------------------------------ forward pass ------------------------------- #

def twin_bert_forward(packed, ids, mask, token_type_ids, cfg):
    """TwinBert.forward: both twins folded into the batch, one fused pallas_call."""
    T, B, S = ids.shape                      # T = 2 (twin axis)
    H = cfg["hidden"]
    NH = cfg["heads"]
    D = H // NH
    L = cfg["layers"]
    n_seq = T * B

    # Embedding gathers stay in plain JAX (data-dependent table lookups).
    word = packed["word_emb"][ids]                          # (T, B, S, H)
    pos = packed["pos_emb"][jnp.arange(S)]                  # (S, H)
    tok = packed["type_emb"][token_type_ids]                # (T, B, S, H)
    emb = (word + pos[None, None, :, :] + tok).reshape(n_seq * S, H)

    # Extended additive attention mask: (1 - mask) * -10000, per sequence.
    attn_bias = ((1.0 - mask.astype(jnp.float32)) * -10000.0
                 ).reshape(n_seq, 1, S)

    kernel = functools.partial(
        _encoder_kernel, num_layers=L, n_seq=n_seq, seq=S,
        heads=NH, head_dim=D, hidden=H, eps=LN_EPS)

    # No grid: single invocation, every operand lives whole in VMEM (tiny
    # config).  On v7x a 2-way "parallel" twin grid could use the 2nd
    # TensorCore, but at this size the per-core fixed overhead dominates.
    pooled = pl.pallas_call(
        kernel,
        out_shape=jax.ShapeDtypeStruct((n_seq, H), jnp.float32),
    )(emb, attn_bias,
      packed["emb_ln_g"], packed["emb_ln_b"],
      packed["wqkv_h"], packed["bqkv_h"], packed["wo_h"], packed["bo"],
      packed["ln1_g"], packed["ln1_b"], packed["w1"], packed["b1"],
      packed["w2"], packed["b2"], packed["ln2_g"], packed["ln2_b"],
      packed["pool_w"], packed["pool_b"])

    pooled = pooled.reshape(T, B, H)
    return pooled[0], pooled[1]


# ---------------------------------- main ----------------------------------- #

if __name__ == "__main__":
    B, S = 2, 8
    key = jax.random.PRNGKey(0)
    k_param, k_ids = jax.random.split(key)

    params = init_params(k_param, CFG)
    packed = pack_params(params, CFG)        # one-time packing (not per forward)

    # Inputs: two sentences per pair -> leading axis of size 2 (the twin axis).
    ids = jax.random.randint(k_ids, (2, B, S), 0, CFG["vocab"], dtype=jnp.int32)
    # Attention mask: last 2 tokens of each sequence are padding.
    mask = jnp.broadcast_to((jnp.arange(S) < 6).astype(jnp.int32), (2, B, S))
    # Token type ids: first half segment 0, second half segment 1.
    token_type_ids = jnp.broadcast_to(
        (jnp.arange(S) >= S // 2).astype(jnp.int32), (2, B, S))

    fwd = jax.jit(functools.partial(twin_bert_forward, cfg=CFG))
    out1, out2 = fwd(packed, ids, mask, token_type_ids)
    jax.block_until_ready((out1, out2))

    assert out1.shape == (B, CFG["hidden"]) and out2.shape == (B, CFG["hidden"])
    assert jnp.all(jnp.isfinite(out1)) and jnp.all(jnp.isfinite(out2))
    print("KERNEL_OK")
</pallas_src>

<mosaic_0001>
module attributes {stable_mosaic.version = 11 : i64} {
  func.func @_encoder_kernel(%arg0: memref<32x32xf32, #tpu.memory_space<vmem>>, %arg1: memref<4x1x8xf32, #tpu.memory_space<vmem>>, %arg2: memref<1x32xf32, #tpu.memory_space<vmem>>, %arg3: memref<1x32xf32, #tpu.memory_space<vmem>>, %arg4: memref<2x12x32x8xbf16, #tpu.memory_space<vmem>>, %arg5: memref<2x12x1x8xf32, #tpu.memory_space<vmem>>, %arg6: memref<2x4x8x32xbf16, #tpu.memory_space<vmem>>, %arg7: memref<2x1x32xf32, #tpu.memory_space<vmem>>, %arg8: memref<2x1x32xf32, #tpu.memory_space<vmem>>, %arg9: memref<2x1x32xf32, #tpu.memory_space<vmem>>, %arg10: memref<2x32x64xbf16, #tpu.memory_space<vmem>>, %arg11: memref<2x1x64xf32, #tpu.memory_space<vmem>>, %arg12: memref<2x64x32xbf16, #tpu.memory_space<vmem>>, %arg13: memref<2x1x32xf32, #tpu.memory_space<vmem>>, %arg14: memref<2x1x32xf32, #tpu.memory_space<vmem>>, %arg15: memref<2x1x32xf32, #tpu.memory_space<vmem>>, %arg16: memref<32x32xbf16, #tpu.memory_space<vmem>>, %arg17: memref<1x32xf32, #tpu.memory_space<vmem>>, %arg18: memref<4x32xf32, #tpu.memory_space<vmem>>) attributes {dimension_semantics = [], scalar_prefetch = 0 : i64, scratch_operands = 0 : i64, tpu.core_type = #tpu.core_type<tc>} {
    %c0 = arith.constant 0 : index
    %c0_0 = arith.constant 0 : index
    %0 = vector.load %arg0[%c0, %c0_0] : memref<32x32xf32, #tpu.memory_space<vmem>>, vector<32x32xf32>
    %c0_1 = arith.constant 0 : index
    %c0_2 = arith.constant 0 : index
    %c0_3 = arith.constant 0 : index
    %1 = vector.load %arg1[%c0_1, %c0_2, %c0_3] : memref<4x1x8xf32, #tpu.memory_space<vmem>>, vector<4x1x8xf32>
    %c0_4 = arith.constant 0 : index
    %c0_5 = arith.constant 0 : index
    %2 = vector.load %arg2[%c0_4, %c0_5] : memref<1x32xf32, #tpu.memory_space<vmem>>, vector<1x32xf32>
    %c0_6 = arith.constant 0 : index
    %c0_7 = arith.constant 0 : index
    %3 = vector.load %arg3[%c0_6, %c0_7] : memref<1x32xf32, #tpu.memory_space<vmem>>, vector<1x32xf32>
    %cst = arith.constant dense<0.000000e+00> : vector<32xf32>
    %4 = vector.multi_reduction <add>, %0, %cst [1] : vector<32x32xf32> to vector<32xf32>
    %5 = vector.shape_cast %4 : vector<32xf32> to vector<32x1xf32>
    %cst_8 = arith.constant 3.200000e+01 : f32
    %6 = vector.broadcast %cst_8 : f32 to vector<32x1xf32>
    %7 = arith.divf %5, %6 : vector<32x1xf32>
    %8 = vector.broadcast %7 : vector<32x1xf32> to vector<32x32xf32>
    %9 = arith.subf %0, %8 : vector<32x32xf32>
    %10 = arith.mulf %9, %9 : vector<32x32xf32>
    %cst_9 = arith.constant dense<0.000000e+00> : vector<32xf32>
    %11 = vector.multi_reduction <add>, %10, %cst_9 [1] : vector<32x32xf32> to vector<32xf32>
    %12 = vector.shape_cast %11 : vector<32xf32> to vector<32x1xf32>
    %cst_10 = arith.constant 3.200000e+01 : f32
    %13 = vector.broadcast %cst_10 : f32 to vector<32x1xf32>
    %14 = arith.divf %12, %13 : vector<32x1xf32>
    %cst_11 = arith.constant 9.99999996E-13 : f32
    %15 = vector.broadcast %cst_11 : f32 to vector<32x1xf32>
    %16 = arith.addf %14, %15 : vector<32x1xf32>
    %17 = math.rsqrt %16 : vector<32x1xf32>
    %18 = vector.broadcast %17 : vector<32x1xf32> to vector<32x32xf32>
    %19 = arith.mulf %9, %18 : vector<32x32xf32>
    %20 = vector.broadcast %2 : vector<1x32xf32> to vector<32x32xf32>
    %21 = arith.mulf %19, %20 : vector<32x32xf32>
    %22 = vector.broadcast %3 : vector<1x32xf32> to vector<32x32xf32>
    %23 = arith.addf %21, %22 : vector<32x32xf32>
    %24 = arith.truncf %23 : vector<32x32xf32> to vector<32x32xbf16>
    %cst_12 = arith.constant 0.000000e+00 : f32
    %25 = vector.broadcast %cst_12 : f32 to vector<32x32xf32>
    %c0_13 = arith.constant 0 : index
    %c0_14 = arith.constant 0 : index
    %c0_15 = arith.constant 0 : index
    %c0_16 = arith.constant 0 : index
    %26 = vector.load %arg4[%c0_13, %c0_14, %c0_15, %c0_16] : memref<2x12x32x8xbf16, #tpu.memory_space<vmem>>, vector<1x1x32x8xbf16>
    %27 = vector.shape_cast %26 : vector<1x1x32x8xbf16> to vector<32x8xbf16>
    %cst_17 = arith.constant dense<0.000000e+00> : vector<32x8xf32>
    %28 = tpu.matmul %24, %27, %cst_17 {dimension_numbers = #tpu.dot_dimension_numbers<[1], [0], [0], [1], [0, 0, 1, 1], [], []>} : vector<32x32xbf16>, vector<32x8xbf16>, vector<32x8xf32> -> vector<32x8xf32>
    %c0_18 = arith.constant 0 : index
    %c0_19 = arith.constant 0 : index
    %c0_20 = arith.constant 0 : index
    %c0_21 = arith.constant 0 : index
    %29 = vector.load %arg5[%c0_18, %c0_19, %c0_20, %c0_21] : memref<2x12x1x8xf32, #tpu.memory_space<vmem>>, vector<1x1x1x8xf32>
    %30 = vector.shape_cast %29 : vector<1x1x1x8xf32> to vector<1x8xf32>
    %31 = vector.broadcast %30 : vector<1x8xf32> to vector<32x8xf32>
    %32 = arith.addf %28, %31 : vector<32x8xf32>
    %c0_22 = arith.constant 0 : index
    %c4 = arith.constant 4 : index
    %c0_23 = arith.constant 0 : index
    %c0_24 = arith.constant 0 : index
    %33 = vector.load %arg4[%c0_22, %c4, %c0_23, %c0_24] : memref<2x12x32x8xbf16, #tpu.memory_space<vmem>>, vector<1x1x32x8xbf16>
    %34 = vector.shape_cast %33 : vector<1x1x32x8xbf16> to vector<32x8xbf16>
    %cst_25 = arith.constant dense<0.000000e+00> : vector<32x8xf32>
    %35 = tpu.matmul %24, %34, %cst_25 {dimension_numbers = #tpu.dot_dimension_numbers<[1], [0], [0], [1], [0, 0, 1, 1], [], []>} : vector<32x32xbf16>, vector<32x8xbf16>, vector<32x8xf32> -> vector<32x8xf32>
    %c0_26 = arith.constant 0 : index
    %c4_27 = arith.constant 4 : index
    %c0_28 = arith.constant 0 : index
    %c0_29 = arith.constant 0 : index
    %36 = vector.load %arg5[%c0_26, %c4_27, %c0_28, %c0_29] : memref<2x12x1x8xf32, #tpu.memory_space<vmem>>, vector<1x1x1x8xf32>
    %37 = vector.shape_cast %36 : vector<1x1x1x8xf32> to vector<1x8xf32>
    %38 = vector.broadcast %37 : vector<1x8xf32> to vector<32x8xf32>
    %39 = arith.addf %35, %38 : vector<32x8xf32>
    %c0_30 = arith.constant 0 : index
    %c8 = arith.constant 8 : index
    %c0_31 = arith.constant 0 : index
    %c0_32 = arith.constant 0 : index
    %40 = vector.load %arg4[%c0_30, %c8, %c0_31, %c0_32] : memref<2x12x32x8xbf16, #tpu.memory_space<vmem>>, vector<1x1x32x8xbf16>
    %41 = vector.shape_cast %40 : vector<1x1x32x8xbf16> to vector<32x8xbf16>
    %cst_33 = arith.constant dense<0.000000e+00> : vector<32x8xf32>
    %42 = tpu.matmul %24, %41, %cst_33 {dimension_numbers = #tpu.dot_dimension_numbers<[1], [0], [0], [1], [0, 0, 1, 1], [], []>} : vector<32x32xbf16>, vector<32x8xbf16>, vector<32x8xf32> -> vector<32x8xf32>
    %c0_34 = arith.constant 0 : index
    %c8_35 = arith.constant 8 : index
    %c0_36 = arith.constant 0 : index
    %c0_37 = arith.constant 0 : index
    %43 = vector.load %arg5[%c0_34, %c8_35, %c0_36, %c0_37] : memref<2x12x1x8xf32, #tpu.memory_space<vmem>>, vector<1x1x1x8xf32>
    %44 = vector.shape_cast %43 : vector<1x1x1x8xf32> to vector<1x8xf32>
    %45 = vector.broadcast %44 : vector<1x8xf32> to vector<32x8xf32>
    %46 = arith.addf %42, %45 : vector<32x8xf32>
    %47 = vector.shape_cast %32 : vector<32x8xf32> to vector<4x8x8xf32>
    %48 = vector.shape_cast %39 : vector<32x8xf32> to vector<4x8x8xf32>
    %49 = vector.shape_cast %46 : vector<32x8xf32> to vector<4x8x8xf32>
    %50 = arith.truncf %47 : vector<4x8x8xf32> to vector<4x8x8xbf16>
    %51 = arith.truncf %48 : vector<4x8x8xf32> to vector<4x8x8xbf16>
    "tpu.trace_start"() <{level = 10 : i32, message = "bqd,bkd->bqk"}> : () -> ()
    %cst_38 = arith.constant dense<0.000000e+00> : vector<4x8x8xf32>
    %52 = tpu.matmul %50, %51, %cst_38 {dimension_numbers = #tpu.dot_dimension_numbers<[2], [2], [1], [1], [0, 0, 0, 1, 1, 1], [0], [0]>} : vector<4x8x8xbf16>, vector<4x8x8xbf16>, vector<4x8x8xf32> -> vector<4x8x8xf32>
    "tpu.trace_stop"() : () -> ()
    %cst_39 = arith.constant 0.353553385 : f32
    %53 = vector.broadcast %cst_39 : f32 to vector<4x8x8xf32>
    %54 = arith.mulf %52, %53 : vector<4x8x8xf32>
    %55 = vector.broadcast %1 : vector<4x1x8xf32> to vector<4x8x8xf32>
    %56 = arith.addf %54, %55 : vector<4x8x8xf32>
    %cst_40 = arith.constant dense<0xFF800000> : vector<4x8xf32>
    %57 = vector.multi_reduction <maximumf>, %56, %cst_40 [2] : vector<4x8x8xf32> to vector<4x8xf32>
    %58 = vector.shape_cast %57 : vector<4x8xf32> to vector<4x8x1xf32>
    %59 = vector.broadcast %58 : vector<4x8x1xf32> to vector<4x8x8xf32>
    %60 = arith.subf %56, %59 : vector<4x8x8xf32>
    %61 = math.exp %60 : vector<4x8x8xf32>
    %cst_41 = arith.constant dense<0.000000e+00> : vector<4x8xf32>
    %62 = vector.multi_reduction <add>, %61, %cst_41 [2] : vector<4x8x8xf32> to vector<4x8xf32>
    %63 = vector.shape_cast %62 : vector<4x8xf32> to vector<4x8x1xf32>
    %64 = tpu.reciprocal %63 {approx = true} : vector<4x8x1xf32> -> vector<4x8x1xf32>
    %65 = vector.broadcast %64 : vector<4x8x1xf32> to vector<4x8x8xf32>
    %66 = arith.mulf %61, %65 : vector<4x8x8xf32>
    %67 = arith.truncf %66 : vector<4x8x8xf32> to vector<4x8x8xbf16>
    %68 = arith.truncf %49 : vector<4x8x8xf32> to vector<4x8x8xbf16>
    "tpu.trace_start"() <{level = 10 : i32, message = "bqk,bkd->bqd"}> : () -> ()
    %cst_42 = arith.constant dense<0.000000e+00> : vector<4x8x8xf32>
    %69 = tpu.matmul %67, %68, %cst_42 {dimension_numbers = #tpu.dot_dimension_numbers<[2], [1], [1], [2], [0, 0, 0, 1, 1, 2], [0], [0]>} : vector<4x8x8xbf16>, vector<4x8x8xbf16>, vector<4x8x8xf32> -> vector<4x8x8xf32>
    "tpu.trace_stop"() : () -> ()
    %70 = vector.shape_cast %69 : vector<4x8x8xf32> to vector<32x8xf32>
    %71 = arith.truncf %70 : vector<32x8xf32> to vector<32x8xbf16>
    %c0_43 = arith.constant 0 : index
    %c0_44 = arith.constant 0 : index
    %c0_45 = arith.constant 0 : index
    %c0_46 = arith.constant 0 : index
    %72 = vector.load %arg6[%c0_43, %c0_44, %c0_45, %c0_46] : memref<2x4x8x32xbf16, #tpu.memory_space<vmem>>, vector<1x1x8x32xbf16>
    %73 = vector.shape_cast %72 : vector<1x1x8x32xbf16> to vector<8x32xbf16>
    %cst_47 = arith.constant dense<0.000000e+00> : vector<32x32xf32>
    %74 = tpu.matmul %71, %73, %cst_47 {dimension_numbers = #tpu.dot_dimension_numbers<[1], [0], [0], [1], [0, 0, 1, 1], [], []>} : vector<32x8xbf16>, vector<8x32xbf16>, vector<32x32xf32> -> vector<32x32xf32>
    %75 = arith.addf %25, %74 : vector<32x32xf32>
    %c0_48 = arith.constant 0 : index
    %c1 = arith.constant 1 : index
    %c0_49 = arith.constant 0 : index
    %c0_50 = arith.constant 0 : index
    %76 = vector.load %arg4[%c0_48, %c1, %c0_49, %c0_50] : memref<2x12x32x8xbf16, #tpu.memory_space<vmem>>, vector<1x1x32x8xbf16>
    %77 = vector.shape_cast %76 : vector<1x1x32x8xbf16> to vector<32x8xbf16>
    %cst_51 = arith.constant dense<0.000000e+00> : vector<32x8xf32>
    %78 = tpu.matmul %24, %77, %cst_51 {dimension_numbers = #tpu.dot_dimension_numbers<[1], [0], [0], [1], [0, 0, 1, 1], [], []>} : vector<32x32xbf16>, vector<32x8xbf16>, vector<32x8xf32> -> vector<32x8xf32>
    %c0_52 = arith.constant 0 : index
    %c1_53 = arith.constant 1 : index
    %c0_54 = arith.constant 0 : index
    %c0_55 = arith.constant 0 : index
    %79 = vector.load %arg5[%c0_52, %c1_53, %c0_54, %c0_55] : memref<2x12x1x8xf32, #tpu.memory_space<vmem>>, vector<1x1x1x8xf32>
    %80 = vector.shape_cast %79 : vector<1x1x1x8xf32> to vector<1x8xf32>
    %81 = vector.broadcast %80 : vector<1x8xf32> to vector<32x8xf32>
    %82 = arith.addf %78, %81 : vector<32x8xf32>
    %c0_56 = arith.constant 0 : index
    %c5 = arith.constant 5 : index
    %c0_57 = arith.constant 0 : index
    %c0_58 = arith.constant 0 : index
    %83 = vector.load %arg4[%c0_56, %c5, %c0_57, %c0_58] : memref<2x12x32x8xbf16, #tpu.memory_space<vmem>>, vector<1x1x32x8xbf16>
    %84 = vector.shape_cast %83 : vector<1x1x32x8xbf16> to vector<32x8xbf16>
    %cst_59 = arith.constant dense<0.000000e+00> : vector<32x8xf32>
    %85 = tpu.matmul %24, %84, %cst_59 {dimension_numbers = #tpu.dot_dimension_numbers<[1], [0], [0], [1], [0, 0, 1, 1], [], []>} : vector<32x32xbf16>, vector<32x8xbf16>, vector<32x8xf32> -> vector<32x8xf32>
    %c0_60 = arith.constant 0 : index
    %c5_61 = arith.constant 5 : index
    %c0_62 = arith.constant 0 : index
    %c0_63 = arith.constant 0 : index
    %86 = vector.load %arg5[%c0_60, %c5_61, %c0_62, %c0_63] : memref<2x12x1x8xf32, #tpu.memory_space<vmem>>, vector<1x1x1x8xf32>
    %87 = vector.shape_cast %86 : vector<1x1x1x8xf32> to vector<1x8xf32>
    %88 = vector.broadcast %87 : vector<1x8xf32> to vector<32x8xf32>
    %89 = arith.addf %85, %88 : vector<32x8xf32>
    %c0_64 = arith.constant 0 : index
    %c9 = arith.constant 9 : index
    %c0_65 = arith.constant 0 : index
    %c0_66 = arith.constant 0 : index
    %90 = vector.load %arg4[%c0_64, %c9, %c0_65, %c0_66] : memref<2x12x32x8xbf16, #tpu.memory_space<vmem>>, vector<1x1x32x8xbf16>
    %91 = vector.shape_cast %90 : vector<1x1x32x8xbf16> to vector<32x8xbf16>
    %cst_67 = arith.constant dense<0.000000e+00> : vector<32x8xf32>
    %92 = tpu.matmul %24, %91, %cst_67 {dimension_numbers = #tpu.dot_dimension_numbers<[1], [0], [0], [1], [0, 0, 1, 1], [], []>} : vector<32x32xbf16>, vector<32x8xbf16>, vector<32x8xf32> -> vector<32x8xf32>
    %c0_68 = arith.constant 0 : index
    %c9_69 = arith.constant 9 : index
    %c0_70 = arith.constant 0 : index
    %c0_71 = arith.constant 0 : index
    %93 = vector.load %arg5[%c0_68, %c9_69, %c0_70, %c0_71] : memref<2x12x1x8xf32, #tpu.memory_space<vmem>>, vector<1x1x1x8xf32>
    %94 = vector.shape_cast %93 : vector<1x1x1x8xf32> to vector<1x8xf32>
    %95 = vector.broadcast %94 : vector<1x8xf32> to vector<32x8xf32>
    %96 = arith.addf %92, %95 : vector<32x8xf32>
    %97 = vector.shape_cast %82 : vector<32x8xf32> to vector<4x8x8xf32>
    %98 = vector.shape_cast %89 : vector<32x8xf32> to vector<4x8x8xf32>
    %99 = vector.shape_cast %96 : vector<32x8xf32> to vector<4x8x8xf32>
    %100 = arith.truncf %97 : vector<4x8x8xf32> to vector<4x8x8xbf16>
    %101 = arith.truncf %98 : vector<4x8x8xf32> to vector<4x8x8xbf16>
    "tpu.trace_start"() <{level = 10 : i32, message = "bqd,bkd->bqk"}> : () -> ()
    %cst_72 = arith.constant dense<0.000000e+00> : vector<4x8x8xf32>
    %102 = tpu.matmul %100, %101, %cst_72 {dimension_numbers = #tpu.dot_dimension_numbers<[2], [2], [1], [1], [0, 0, 0, 1, 1, 1], [0], [0]>} : vector<4x8x8xbf16>, vector<4x8x8xbf16>, vector<4x8x8xf32> -> vector<4x8x8xf32>
    "tpu.trace_stop"() : () -> ()
    %cst_73 = arith.constant 0.353553385 : f32
    %103 = vector.broadcast %cst_73 : f32 to vector<4x8x8xf32>
    %104 = arith.mulf %102, %103 : vector<4x8x8xf32>
    %105 = vector.broadcast %1 : vector<4x1x8xf32> to vector<4x8x8xf32>
    %106 = arith.addf %104, %105 : vector<4x8x8xf32>
    %cst_74 = arith.constant dense<0xFF800000> : vector<4x8xf32>
    %107 = vector.multi_reduction <maximumf>, %106, %cst_74 [2] : vector<4x8x8xf32> to vector<4x8xf32>
    %108 = vector.shape_cast %107 : vector<4x8xf32> to vector<4x8x1xf32>
    %109 = vector.broadcast %108 : vector<4x8x1xf32> to vector<4x8x8xf32>
    %110 = arith.subf %106, %109 : vector<4x8x8xf32>
    %111 = math.exp %110 : vector<4x8x8xf32>
    %cst_75 = arith.constant dense<0.000000e+00> : vector<4x8xf32>
    %112 = vector.multi_reduction <add>, %111, %cst_75 [2] : vector<4x8x8xf32> to vector<4x8xf32>
    %113 = vector.shape_cast %112 : vector<4x8xf32> to vector<4x8x1xf32>
    %114 = tpu.reciprocal %113 {approx = true} : vector<4x8x1xf32> -> vector<4x8x1xf32>
    %115 = vector.broadcast %114 : vector<4x8x1xf32> to vector<4x8x8xf32>
    %116 = arith.mulf %111, %115 : vector<4x8x8xf32>
    %117 = arith.truncf %116 : vector<4x8x8xf32> to vector<4x8x8xbf16>
    %118 = arith.truncf %99 : vector<4x8x8xf32> to vector<4x8x8xbf16>
    "tpu.trace_start"() <{level = 10 : i32, message = "bqk,bkd->bqd"}> : () -> ()
    %cst_76 = arith.constant dense<0.000000e+00> : vector<4x8x8xf32>
    %119 = tpu.matmul %117, %118, %cst_76 {dimension_numbers = #tpu.dot_dimension_numbers<[2], [1], [1], [2], [0, 0, 0, 1, 1, 2], [0], [0]>} : vector<4x8x8xbf16>, vector<4x8x8xbf16>, vector<4x8x8xf32> -> vector<4x8x8xf32>
    "tpu.trace_stop"() : () -> ()
    %120 = vector.shape_cast %119 : vector<4x8x8xf32> to vector<32x8xf32>
    %121 = arith.truncf %120 : vector<32x8xf32> to vector<32x8xbf16>
    %c0_77 = arith.constant 0 : index
    %c1_78 = arith.constant 1 : index
    %c0_79 = arith.constant 0 : index
    %c0_80 = arith.constant 0 : index
    %122 = vector.load %arg6[%c0_77, %c1_78, %c0_79, %c0_80] : memref<2x4x8x32xbf16, #tpu.memory_space<vmem>>, vector<1x1x8x32xbf16>
    %123 = vector.shape_cast %122 : vector<1x1x8x32xbf16> to vector<8x32xbf16>
    %cst_81 = arith.constant dense<0.000000e+00> : vector<32x32xf32>
    %124 = tpu.matmul %121, %123, %cst_81 {dimension_numbers = #tpu.dot_dimension_numbers<[1], [0], [0], [1], [0, 0, 1, 1], [], []>} : vector<32x8xbf16>, vector<8x32xbf16>, vector<32x32xf32> -> vector<32x32xf32>
    %125 = arith.addf %75, %124 : vector<32x32xf32>
    %c0_82 = arith.constant 0 : index
    %c2 = arith.constant 2 : index
    %c0_83 = arith.constant 0 : index
    %c0_84 = arith.constant 0 : index
    %126 = vector.load %arg4[%c0_82, %c2, %c0_83, %c0_84] : memref<2x12x32x8xbf16, #tpu.memory_space<vmem>>, vector<1x1x32x8xbf16>
    %127 = vector.shape_cast %126 : vector<1x1x32x8xbf16> to vector<32x8xbf16>
    %cst_85 = arith.constant dense<0.000000e+00> : vector<32x8xf32>
    %128 = tpu.matmul %24, %127, %cst_85 {dimension_numbers = #tpu.dot_dimension_numbers<[1], [0], [0], [1], [0, 0, 1, 1], [], []>} : vector<32x32xbf16>, vector<32x8xbf16>, vector<32x8xf32> -> vector<32x8xf32>
    %c0_86 = arith.constant 0 : index
    %c2_87 = arith.constant 2 : index
    %c0_88 = arith.constant 0 : index
    %c0_89 = arith.constant 0 : index
    %129 = vector.load %arg5[%c0_86, %c2_87, %c0_88, %c0_89] : memref<2x12x1x8xf32, #tpu.memory_space<vmem>>, vector<1x1x1x8xf32>
    %130 = vector.shape_cast %129 : vector<1x1x1x8xf32> to vector<1x8xf32>
    %131 = vector.broadcast %130 : vector<1x8xf32> to vector<32x8xf32>
    %132 = arith.addf %128, %131 : vector<32x8xf32>
    %c0_90 = arith.constant 0 : index
    %c6 = arith.constant 6 : index
    %c0_91 = arith.constant 0 : index
    %c0_92 = arith.constant 0 : index
    %133 = vector.load %arg4[%c0_90, %c6, %c0_91, %c0_92] : memref<2x12x32x8xbf16, #tpu.memory_space<vmem>>, vector<1x1x32x8xbf16>
    %134 = vector.shape_cast %133 : vector<1x1x32x8xbf16> to vector<32x8xbf16>
    %cst_93 = arith.constant dense<0.000000e+00> : vector<32x8xf32>
    %135 = tpu.matmul %24, %134, %cst_93 {dimension_numbers = #tpu.dot_dimension_numbers<[1], [0], [0], [1], [0, 0, 1, 1], [], []>} : vector<32x32xbf16>, vector<32x8xbf16>, vector<32x8xf32> -> vector<32x8xf32>
    %c0_94 = arith.constant 0 : index
    %c6_95 = arith.constant 6 : index
    %c0_96 = arith.constant 0 : index
    %c0_97 = arith.constant 0 : index
    %136 = vector.load %arg5[%c0_94, %c6_95, %c0_96, %c0_97] : memref<2x12x1x8xf32, #tpu.memory_space<vmem>>, vector<1x1x1x8xf32>
    %137 = vector.shape_cast %136 : vector<1x1x1x8xf32> to vector<1x8xf32>
    %138 = vector.broadcast %137 : vector<1x8xf32> to vector<32x8xf32>
    %139 = arith.addf %135, %138 : vector<32x8xf32>
    %c0_98 = arith.constant 0 : index
    %c10 = arith.constant 10 : index
    %c0_99 = arith.constant 0 : index
    %c0_100 = arith.constant 0 : index
    %140 = vector.load %arg4[%c0_98, %c10, %c0_99, %c0_100] : memref<2x12x32x8xbf16, #tpu.memory_space<vmem>>, vector<1x1x32x8xbf16>
    %141 = vector.shape_cast %140 : vector<1x1x32x8xbf16> to vector<32x8xbf16>
    %cst_101 = arith.constant dense<0.000000e+00> : vector<32x8xf32>
    %142 = tpu.matmul %24, %141, %cst_101 {dimension_numbers = #tpu.dot_dimension_numbers<[1], [0], [0], [1], [0, 0, 1, 1], [], []>} : vector<32x32xbf16>, vector<32x8xbf16>, vector<32x8xf32> -> vector<32x8xf32>
    %c0_102 = arith.constant 0 : index
    %c10_103 = arith.constant 10 : index
    %c0_104 = arith.constant 0 : index
    %c0_105 = arith.constant 0 : index
    %143 = vector.load %arg5[%c0_102, %c10_103, %c0_104, %c0_105] : memref<2x12x1x8xf32, #tpu.memory_space<vmem>>, vector<1x1x1x8xf32>
    %144 = vector.shape_cast %143 : vector<1x1x1x8xf32> to vector<1x8xf32>
    %145 = vector.broadcast %144 : vector<1x8xf32> to vector<32x8xf32>
    %146 = arith.addf %142, %145 : vector<32x8xf32>
    %147 = vector.shape_cast %132 : vector<32x8xf32> to vector<4x8x8xf32>
    %148 = vector.shape_cast %139 : vector<32x8xf32> to vector<4x8x8xf32>
    %149 = vector.shape_cast %146 : vector<32x8xf32> to vector<4x8x8xf32>
    %150 = arith.truncf %147 : vector<4x8x8xf32> to vector<4x8x8xbf16>
    %151 = arith.truncf %148 : vector<4x8x8xf32> to vector<4x8x8xbf16>
    "tpu.trace_start"() <{level = 10 : i32, message = "bqd,bkd->bqk"}> : () -> ()
    %cst_106 = arith.constant dense<0.000000e+00> : vector<4x8x8xf32>
    %152 = tpu.matmul %150, %151, %cst_106 {dimension_numbers = #tpu.dot_dimension_numbers<[2], [2], [1], [1], [0, 0, 0, 1, 1, 1], [0], [0]>} : vector<4x8x8xbf16>, vector<4x8x8xbf16>, vector<4x8x8xf32> -> vector<4x8x8xf32>
    "tpu.trace_stop"() : () -> ()
    %cst_107 = arith.constant 0.353553385 : f32
    %153 = vector.broadcast %cst_107 : f32 to vector<4x8x8xf32>
    %154 = arith.mulf %152, %153 : vector<4x8x8xf32>
    %155 = vector.broadcast %1 : vector<4x1x8xf32> to vector<4x8x8xf32>
    %156 = arith.addf %154, %155 : vector<4x8x8xf32>
    %cst_108 = arith.constant dense<0xFF800000> : vector<4x8xf32>
    %157 = vector.multi_reduction <maximumf>, %156, %cst_108 [2] : vector<4x8x8xf32> to vector<4x8xf32>
    %158 = vector.shape_cast %157 : vector<4x8xf32> to vector<4x8x1xf32>
    %159 = vector.broadcast %158 : vector<4x8x1xf32> to vector<4x8x8xf32>
    %160 = arith.subf %156, %159 : vector<4x8x8xf32>
    %161 = math.exp %160 : vector<4x8x8xf32>
    %cst_109 = arith.constant dense<0.000000e+00> : vector<4x8xf32>
    %162 = vector.multi_reduction <add>, %161, %cst_109 [2] : vector<4x8x8xf32> to vector<4x8xf32>
    %163 = vector.shape_cast %162 : vector<4x8xf32> to vector<4x8x1xf32>
    %164 = tpu.reciprocal %163 {approx = true} : vector<4x8x1xf32> -> vector<4x8x1xf32>
    %165 = vector.broadcast %164 : vector<4x8x1xf32> to vector<4x8x8xf32>
    %166 = arith.mulf %161, %165 : vector<4x8x8xf32>
    %167 = arith.truncf %166 : vector<4x8x8xf32> to vector<4x8x8xbf16>
    %168 = arith.truncf %149 : vector<4x8x8xf32> to vector<4x8x8xbf16>
    "tpu.trace_start"() <{level = 10 : i32, message = "bqk,bkd->bqd"}> : () -> ()
    %cst_110 = arith.constant dense<0.000000e+00> : vector<4x8x8xf32>
    %169 = tpu.matmul %167, %168, %cst_110 {dimension_numbers = #tpu.dot_dimension_numbers<[2], [1], [1], [2], [0, 0, 0, 1, 1, 2], [0], [0]>} : vector<4x8x8xbf16>, vector<4x8x8xbf16>, vector<4x8x8xf32> -> vector<4x8x8xf32>
    "tpu.trace_stop"() : () -> ()
    %170 = vector.shape_cast %169 : vector<4x8x8xf32> to vector<32x8xf32>
    %171 = arith.truncf %170 : vector<32x8xf32> to vector<32x8xbf16>
    %c0_111 = arith.constant 0 : index
    %c2_112 = arith.constant 2 : index
    %c0_113 = arith.constant 0 : index
    %c0_114 = arith.constant 0 : index
    %172 = vector.load %arg6[%c0_111, %c2_112, %c0_113, %c0_114] : memref<2x4x8x32xbf16, #tpu.memory_space<vmem>>, vector<1x1x8x32xbf16>
    %173 = vector.shape_cast %172 : vector<1x1x8x32xbf16> to vector<8x32xbf16>
    %cst_115 = arith.constant dense<0.000000e+00> : vector<32x32xf32>
    %174 = tpu.matmul %171, %173, %cst_115 {dimension_numbers = #tpu.dot_dimension_numbers<[1], [0], [0], [1], [0, 0, 1, 1], [], []>} : vector<32x8xbf16>, vector<8x32xbf16>, vector<32x32xf32> -> vector<32x32xf32>
    %175 = arith.addf %125, %174 : vector<32x32xf32>
    %c0_116 = arith.constant 0 : index
    %c3 = arith.constant 3 : index
    %c0_117 = arith.constant 0 : index
    %c0_118 = arith.constant 0 : index
    %176 = vector.load %arg4[%c0_116, %c3, %c0_117, %c0_118] : memref<2x12x32x8xbf16, #tpu.memory_space<vmem>>, vector<1x1x32x8xbf16>
    %177 = vector.shape_cast %176 : vector<1x1x32x8xbf16> to vector<32x8xbf16>
    %cst_119 = arith.constant dense<0.000000e+00> : vector<32x8xf32>
    %178 = tpu.matmul %24, %177, %cst_119 {dimension_numbers = #tpu.dot_dimension_numbers<[1], [0], [0], [1], [0, 0, 1, 1], [], []>} : vector<32x32xbf16>, vector<32x8xbf16>, vector<32x8xf32> -> vector<32x8xf32>
    %c0_120 = arith.constant 0 : index
    %c3_121 = arith.constant 3 : index
    %c0_122 = arith.constant 0 : index
    %c0_123 = arith.constant 0 : index
    %179 = vector.load %arg5[%c0_120, %c3_121, %c0_122, %c0_123] : memref<2x12x1x8xf32, #tpu.memory_space<vmem>>, vector<1x1x1x8xf32>
    %180 = vector.shape_cast %179 : vector<1x1x1x8xf32> to vector<1x8xf32>
    %181 = vector.broadcast %180 : vector<1x8xf32> to vector<32x8xf32>
    %182 = arith.addf %178, %181 : vector<32x8xf32>
    %c0_124 = arith.constant 0 : index
    %c7 = arith.constant 7 : index
    %c0_125 = arith.constant 0 : index
    %c0_126 = arith.constant 0 : index
    %183 = vector.load %arg4[%c0_124, %c7, %c0_125, %c0_126] : memref<2x12x32x8xbf16, #tpu.memory_space<vmem>>, vector<1x1x32x8xbf16>
    %184 = vector.shape_cast %183 : vector<1x1x32x8xbf16> to vector<32x8xbf16>
    %cst_127 = arith.constant dense<0.000000e+00> : vector<32x8xf32>
    %185 = tpu.matmul %24, %184, %cst_127 {dimension_numbers = #tpu.dot_dimension_numbers<[1], [0], [0], [1], [0, 0, 1, 1], [], []>} : vector<32x32xbf16>, vector<32x8xbf16>, vector<32x8xf32> -> vector<32x8xf32>
    %c0_128 = arith.constant 0 : index
    %c7_129 = arith.constant 7 : index
    %c0_130 = arith.constant 0 : index
    %c0_131 = arith.constant 0 : index
    %186 = vector.load %arg5[%c0_128, %c7_129, %c0_130, %c0_131] : memref<2x12x1x8xf32, #tpu.memory_space<vmem>>, vector<1x1x1x8xf32>
    %187 = vector.shape_cast %186 : vector<1x1x1x8xf32> to vector<1x8xf32>
    %188 = vector.broadcast %187 : vector<1x8xf32> to vector<32x8xf32>
    %189 = arith.addf %185, %188 : vector<32x8xf32>
    %c0_132 = arith.constant 0 : index
    %c11 = arith.constant 11 : index
    %c0_133 = arith.constant 0 : index
    %c0_134 = arith.constant 0 : index
    %190 = vector.load %arg4[%c0_132, %c11, %c0_133, %c0_134] : memref<2x12x32x8xbf16, #tpu.memory_space<vmem>>, vector<1x1x32x8xbf16>
    %191 = vector.shape_cast %190 : vector<1x1x32x8xbf16> to vector<32x8xbf16>
    %cst_135 = arith.constant dense<0.000000e+00> : vector<32x8xf32>
    %192 = tpu.matmul %24, %191, %cst_135 {dimension_numbers = #tpu.dot_dimension_numbers<[1], [0], [0], [1], [0, 0, 1, 1], [], []>} : vector<32x32xbf16>, vector<32x8xbf16>, vector<32x8xf32> -> vector<32x8xf32>
    %c0_136 = arith.constant 0 : index
    %c11_137 = arith.constant 11 : index
    %c0_138 = arith.constant 0 : index
    %c0_139 = arith.constant 0 : index
    %193 = vector.load %arg5[%c0_136, %c11_137, %c0_138, %c0_139] : memref<2x12x1x8xf32, #tpu.memory_space<vmem>>, vector<1x1x1x8xf32>
    %194 = vector.shape_cast %193 : vector<1x1x1x8xf32> to vector<1x8xf32>
    %195 = vector.broadcast %194 : vector<1x8xf32> to vector<32x8xf32>
    %196 = arith.addf %192, %195 : vector<32x8xf32>
    %197 = vector.shape_cast %182 : vector<32x8xf32> to vector<4x8x8xf32>
    %198 = vector.shape_cast %189 : vector<32x8xf32> to vector<4x8x8xf32>
    %199 = vector.shape_cast %196 : vector<32x8xf32> to vector<4x8x8xf32>
    %200 = arith.truncf %197 : vector<4x8x8xf32> to vector<4x8x8xbf16>
    %201 = arith.truncf %198 : vector<4x8x8xf32> to vector<4x8x8xbf16>
    "tpu.trace_start"() <{level = 10 : i32, message = "bqd,bkd->bqk"}> : () -> ()
    %cst_140 = arith.constant dense<0.000000e+00> : vector<4x8x8xf32>
    %202 = tpu.matmul %200, %201, %cst_140 {dimension_numbers = #tpu.dot_dimension_numbers<[2], [2], [1], [1], [0, 0, 0, 1, 1, 1], [0], [0]>} : vector<4x8x8xbf16>, vector<4x8x8xbf16>, vector<4x8x8xf32> -> vector<4x8x8xf32>
    "tpu.trace_stop"() : () -> ()
    %cst_141 = arith.constant 0.353553385 : f32
    %203 = vector.broadcast %cst_141 : f32 to vector<4x8x8xf32>
    %204 = arith.mulf %202, %203 : vector<4x8x8xf32>
    %205 = vector.broadcast %1 : vector<4x1x8xf32> to vector<4x8x8xf32>
    %206 = arith.addf %204, %205 : vector<4x8x8xf32>
    %cst_142 = arith.constant dense<0xFF800000> : vector<4x8xf32>
    %207 = vector.multi_reduction <maximumf>, %206, %cst_142 [2] : vector<4x8x8xf32> to vector<4x8xf32>
    %208 = vector.shape_cast %207 : vector<4x8xf32> to vector<4x8x1xf32>
    %209 = vector.broadcast %208 : vector<4x8x1xf32> to vector<4x8x8xf32>
    %210 = arith.subf %206, %209 : vector<4x8x8xf32>
    %211 = math.exp %210 : vector<4x8x8xf32>
    %cst_143 = arith.constant dense<0.000000e+00> : vector<4x8xf32>
    %212 = vector.multi_reduction <add>, %211, %cst_143 [2] : vector<4x8x8xf32> to vector<4x8xf32>
    %213 = vector.shape_cast %212 : vector<4x8xf32> to vector<4x8x1xf32>
    %214 = tpu.reciprocal %213 {approx = true} : vector<4x8x1xf32> -> vector<4x8x1xf32>
    %215 = vector.broadcast %214 : vector<4x8x1xf32> to vector<4x8x8xf32>
    %216 = arith.mulf %211, %215 : vector<4x8x8xf32>
    %217 = arith.truncf %216 : vector<4x8x8xf32> to vector<4x8x8xbf16>
    %218 = arith.truncf %199 : vector<4x8x8xf32> to vector<4x8x8xbf16>
    "tpu.trace_start"() <{level = 10 : i32, message = "bqk,bkd->bqd"}> : () -> ()
    %cst_144 = arith.constant dense<0.000000e+00> : vector<4x8x8xf32>
    %219 = tpu.matmul %217, %218, %cst_144 {dimension_numbers = #tpu.dot_dimension_numbers<[2], [1], [1], [2], [0, 0, 0, 1, 1, 2], [0], [0]>} : vector<4x8x8xbf16>, vector<4x8x8xbf16>, vector<4x8x8xf32> -> vector<4x8x8xf32>
    "tpu.trace_stop"() : () -> ()
    %220 = vector.shape_cast %219 : vector<4x8x8xf32> to vector<32x8xf32>
    %221 = arith.truncf %220 : vector<32x8xf32> to vector<32x8xbf16>
    %c0_145 = arith.constant 0 : index
    %c3_146 = arith.constant 3 : index
    %c0_147 = arith.constant 0 : index
    %c0_148 = arith.constant 0 : index
    %222 = vector.load %arg6[%c0_145, %c3_146, %c0_147, %c0_148] : memref<2x4x8x32xbf16, #tpu.memory_space<vmem>>, vector<1x1x8x32xbf16>
    %223 = vector.shape_cast %222 : vector<1x1x8x32xbf16> to vector<8x32xbf16>
    %cst_149 = arith.constant dense<0.000000e+00> : vector<32x32xf32>
    %224 = tpu.matmul %221, %223, %cst_149 {dimension_numbers = #tpu.dot_dimension_numbers<[1], [0], [0], [1], [0, 0, 1, 1], [], []>} : vector<32x8xbf16>, vector<8x32xbf16>, vector<32x32xf32> -> vector<32x32xf32>
    %225 = arith.addf %175, %224 : vector<32x32xf32>
    %c0_150 = arith.constant 0 : index
    %c0_151 = arith.constant 0 : index
    %c0_152 = arith.constant 0 : index
    %226 = vector.load %arg7[%c0_150, %c0_151, %c0_152] : memref<2x1x32xf32, #tpu.memory_space<vmem>>, vector<1x1x32xf32>
    %227 = vector.shape_cast %226 : vector<1x1x32xf32> to vector<1x32xf32>
    %228 = vector.broadcast %227 : vector<1x32xf32> to vector<32x32xf32>
    %229 = arith.addf %225, %228 : vector<32x32xf32>
    %230 = arith.addf %23, %229 : vector<32x32xf32>
    %c0_153 = arith.constant 0 : index
    %c0_154 = arith.constant 0 : index
    %c0_155 = arith.constant 0 : index
    %231 = vector.load %arg8[%c0_153, %c0_154, %c0_155] : memref<2x1x32xf32, #tpu.memory_space<vmem>>, vector<1x1x32xf32>
    %232 = vector.shape_cast %231 : vector<1x1x32xf32> to vector<1x32xf32>
    %c0_156 = arith.constant 0 : index
    %c0_157 = arith.constant 0 : index
    %c0_158 = arith.constant 0 : index
    %233 = vector.load %arg9[%c0_156, %c0_157, %c0_158] : memref<2x1x32xf32, #tpu.memory_space<vmem>>, vector<1x1x32xf32>
    %234 = vector.shape_cast %233 : vector<1x1x32xf32> to vector<1x32xf32>
    %cst_159 = arith.constant dense<0.000000e+00> : vector<32xf32>
    %235 = vector.multi_reduction <add>, %230, %cst_159 [1] : vector<32x32xf32> to vector<32xf32>
    %236 = vector.shape_cast %235 : vector<32xf32> to vector<32x1xf32>
    %cst_160 = arith.constant 3.200000e+01 : f32
    %237 = vector.broadcast %cst_160 : f32 to vector<32x1xf32>
    %238 = arith.divf %236, %237 : vector<32x1xf32>
    %239 = vector.broadcast %238 : vector<32x1xf32> to vector<32x32xf32>
    %240 = arith.subf %230, %239 : vector<32x32xf32>
    %241 = arith.mulf %240, %240 : vector<32x32xf32>
    %cst_161 = arith.constant dense<0.000000e+00> : vector<32xf32>
    %242 = vector.multi_reduction <add>, %241, %cst_161 [1] : vector<32x32xf32> to vector<32xf32>
    %243 = vector.shape_cast %242 : vector<32xf32> to vector<32x1xf32>
    %cst_162 = arith.constant 3.200000e+01 : f32
    %244 = vector.broadcast %cst_162 : f32 to vector<32x1xf32>
    %245 = arith.divf %243, %244 : vector<32x1xf32>
    %cst_163 = arith.constant 9.99999996E-13 : f32
    %246 = vector.broadcast %cst_163 : f32 to vector<32x1xf32>
    %247 = arith.addf %245, %246 : vector<32x1xf32>
    %248 = math.rsqrt %247 : vector<32x1xf32>
    %249 = vector.broadcast %248 : vector<32x1xf32> to vector<32x32xf32>
    %250 = arith.mulf %240, %249 : vector<32x32xf32>
    %251 = vector.broadcast %232 : vector<1x32xf32> to vector<32x32xf32>
    %252 = arith.mulf %250, %251 : vector<32x32xf32>
    %253 = vector.broadcast %234 : vector<1x32xf32> to vector<32x32xf32>
    %254 = arith.addf %252, %253 : vector<32x32xf32>
    %255 = arith.truncf %254 : vector<32x32xf32> to vector<32x32xbf16>
    %c0_164 = arith.constant 0 : index
    %c0_165 = arith.constant 0 : index
    %c0_166 = arith.constant 0 : index
    %256 = vector.load %arg10[%c0_164, %c0_165, %c0_166] : memref<2x32x64xbf16, #tpu.memory_space<vmem>>, vector<1x32x64xbf16>
    %257 = vector.shape_cast %256 : vector<1x32x64xbf16> to vector<32x64xbf16>
    %cst_167 = arith.constant dense<0.000000e+00> : vector<32x64xf32>
    %258 = tpu.matmul %255, %257, %cst_167 {dimension_numbers = #tpu.dot_dimension_numbers<[1], [0], [0], [1], [0, 0, 1, 1], [], []>} : vector<32x32xbf16>, vector<32x64xbf16>, vector<32x64xf32> -> vector<32x64xf32>
    %c0_168 = arith.constant 0 : index
    %c0_169 = arith.constant 0 : index
    %c0_170 = arith.constant 0 : index
    %259 = vector.load %arg11[%c0_168, %c0_169, %c0_170] : memref<2x1x64xf32, #tpu.memory_space<vmem>>, vector<1x1x64xf32>
    %260 = vector.shape_cast %259 : vector<1x1x64xf32> to vector<1x64xf32>
    %261 = vector.broadcast %260 : vector<1x64xf32> to vector<32x64xf32>
    %262 = arith.addf %258, %261 : vector<32x64xf32>
    %cst_171 = arith.constant 5.000000e-01 : f32
    %263 = vector.broadcast %cst_171 : f32 to vector<32x64xf32>
    %264 = arith.mulf %263, %262 : vector<32x64xf32>
    %265 = arith.mulf %262, %262 : vector<32x64xf32>
    %266 = arith.mulf %265, %262 : vector<32x64xf32>
    %cst_172 = arith.constant 4.471500e-02 : f32
    %267 = vector.broadcast %cst_172 : f32 to vector<32x64xf32>
    %268 = arith.mulf %267, %266 : vector<32x64xf32>
    %269 = arith.addf %262, %268 : vector<32x64xf32>
    %cst_173 = arith.constant 0.797884583 : f32
    %270 = vector.broadcast %cst_173 : f32 to vector<32x64xf32>
    %271 = arith.mulf %270, %269 : vector<32x64xf32>
    %272 = math.tanh %271 : vector<32x64xf32>
    %cst_174 = arith.constant 1.000000e+00 : f32
    %273 = vector.broadcast %cst_174 : f32 to vector<32x64xf32>
    %274 = arith.addf %273, %272 : vector<32x64xf32>
    %275 = arith.mulf %264, %274 : vector<32x64xf32>
    %276 = arith.truncf %275 : vector<32x64xf32> to vector<32x64xbf16>
    %c0_175 = arith.constant 0 : index
    %c0_176 = arith.constant 0 : index
    %c0_177 = arith.constant 0 : index
    %277 = vector.load %arg12[%c0_175, %c0_176, %c0_177] : memref<2x64x32xbf16, #tpu.memory_space<vmem>>, vector<1x64x32xbf16>
    %278 = vector.shape_cast %277 : vector<1x64x32xbf16> to vector<64x32xbf16>
    %cst_178 = arith.constant dense<0.000000e+00> : vector<32x32xf32>
    %279 = tpu.matmul %276, %278, %cst_178 {dimension_numbers = #tpu.dot_dimension_numbers<[1], [0], [0], [1], [0, 0, 1, 1], [], []>} : vector<32x64xbf16>, vector<64x32xbf16>, vector<32x32xf32> -> vector<32x32xf32>
    %c0_179 = arith.constant 0 : index
    %c0_180 = arith.constant 0 : index
    %c0_181 = arith.constant 0 : index
    %280 = vector.load %arg13[%c0_179, %c0_180, %c0_181] : memref<2x1x32xf32, #tpu.memory_space<vmem>>, vector<1x1x32xf32>
    %281 = vector.shape_cast %280 : vector<1x1x32xf32> to vector<1x32xf32>
    %282 = vector.broadcast %281 : vector<1x32xf32> to vector<32x32xf32>
    %283 = arith.addf %279, %282 : vector<32x32xf32>
    %284 = arith.addf %254, %283 : vector<32x32xf32>
    %c0_182 = arith.constant 0 : index
    %c0_183 = arith.constant 0 : index
    %c0_184 = arith.constant 0 : index
    %285 = vector.load %arg14[%c0_182, %c0_183, %c0_184] : memref<2x1x32xf32, #tpu.memory_space<vmem>>, vector<1x1x32xf32>
    %286 = vector.shape_cast %285 : vector<1x1x32xf32> to vector<1x32xf32>
    %c0_185 = arith.constant 0 : index
    %c0_186 = arith.constant 0 : index
    %c0_187 = arith.constant 0 : index
    %287 = vector.load %arg15[%c0_185, %c0_186, %c0_187] : memref<2x1x32xf32, #tpu.memory_space<vmem>>, vector<1x1x32xf32>
    %288 = vector.shape_cast %287 : vector<1x1x32xf32> to vector<1x32xf32>
    %cst_188 = arith.constant dense<0.000000e+00> : vector<32xf32>
    %289 = vector.multi_reduction <add>, %284, %cst_188 [1] : vector<32x32xf32> to vector<32xf32>
    %290 = vector.shape_cast %289 : vector<32xf32> to vector<32x1xf32>
    %cst_189 = arith.constant 3.200000e+01 : f32
    %291 = vector.broadcast %cst_189 : f32 to vector<32x1xf32>
    %292 = arith.divf %290, %291 : vector<32x1xf32>
    %293 = vector.broadcast %292 : vector<32x1xf32> to vector<32x32xf32>
    %294 = arith.subf %284, %293 : vector<32x32xf32>
    %295 = arith.mulf %294, %294 : vector<32x32xf32>
    %cst_190 = arith.constant dense<0.000000e+00> : vector<32xf32>
    %296 = vector.multi_reduction <add>, %295, %cst_190 [1] : vector<32x32xf32> to vector<32xf32>
    %297 = vector.shape_cast %296 : vector<32xf32> to vector<32x1xf32>
    %cst_191 = arith.constant 3.200000e+01 : f32
    %298 = vector.broadcast %cst_191 : f32 to vector<32x1xf32>
    %299 = arith.divf %297, %298 : vector<32x1xf32>
    %cst_192 = arith.constant 9.99999996E-13 : f32
    %300 = vector.broadcast %cst_192 : f32 to vector<32x1xf32>
    %301 = arith.addf %299, %300 : vector<32x1xf32>
    %302 = math.rsqrt %301 : vector<32x1xf32>
    %303 = vector.broadcast %302 : vector<32x1xf32> to vector<32x32xf32>
    %304 = arith.mulf %294, %303 : vector<32x32xf32>
    %305 = vector.broadcast %286 : vector<1x32xf32> to vector<32x32xf32>
    %306 = arith.mulf %304, %305 : vector<32x32xf32>
    %307 = vector.broadcast %288 : vector<1x32xf32> to vector<32x32xf32>
    %308 = arith.addf %306, %307 : vector<32x32xf32>
    %309 = arith.truncf %308 : vector<32x32xf32> to vector<32x32xbf16>
    %cst_193 = arith.constant 0.000000e+00 : f32
    %310 = vector.broadcast %cst_193 : f32 to vector<32x32xf32>
    %c1_194 = arith.constant 1 : index
    %c0_195 = arith.constant 0 : index
    %c0_196 = arith.constant 0 : index
    %c0_197 = arith.constant 0 : index
    %311 = vector.load %arg4[%c1_194, %c0_195, %c0_196, %c0_197] : memref<2x12x32x8xbf16, #tpu.memory_space<vmem>>, vector<1x1x32x8xbf16>
    %312 = vector.shape_cast %311 : vector<1x1x32x8xbf16> to vector<32x8xbf16>
    %cst_198 = arith.constant dense<0.000000e+00> : vector<32x8xf32>
    %313 = tpu.matmul %309, %312, %cst_198 {dimension_numbers = #tpu.dot_dimension_numbers<[1], [0], [0], [1], [0, 0, 1, 1], [], []>} : vector<32x32xbf16>, vector<32x8xbf16>, vector<32x8xf32> -> vector<32x8xf32>
    %c1_199 = arith.constant 1 : index
    %c0_200 = arith.constant 0 : index
    %c0_201 = arith.constant 0 : index
    %c0_202 = arith.constant 0 : index
    %314 = vector.load %arg5[%c1_199, %c0_200, %c0_201, %c0_202] : memref<2x12x1x8xf32, #tpu.memory_space<vmem>>, vector<1x1x1x8xf32>
    %315 = vector.shape_cast %314 : vector<1x1x1x8xf32> to vector<1x8xf32>
    %316 = vector.broadcast %315 : vector<1x8xf32> to vector<32x8xf32>
    %317 = arith.addf %313, %316 : vector<32x8xf32>
    %c1_203 = arith.constant 1 : index
    %c4_204 = arith.constant 4 : index
    %c0_205 = arith.constant 0 : index
    %c0_206 = arith.constant 0 : index
    %318 = vector.load %arg4[%c1_203, %c4_204, %c0_205, %c0_206] : memref<2x12x32x8xbf16, #tpu.memory_space<vmem>>, vector<1x1x32x8xbf16>
    %319 = vector.shape_cast %318 : vector<1x1x32x8xbf16> to vector<32x8xbf16>
    %cst_207 = arith.constant dense<0.000000e+00> : vector<32x8xf32>
    %320 = tpu.matmul %309, %319, %cst_207 {dimension_numbers = #tpu.dot_dimension_numbers<[1], [0], [0], [1], [0, 0, 1, 1], [], []>} : vector<32x32xbf16>, vector<32x8xbf16>, vector<32x8xf32> -> vector<32x8xf32>
    %c1_208 = arith.constant 1 : index
    %c4_209 = arith.constant 4 : index
    %c0_210 = arith.constant 0 : index
    %c0_211 = arith.constant 0 : index
    %321 = vector.load %arg5[%c1_208, %c4_209, %c0_210, %c0_211] : memref<2x12x1x8xf32, #tpu.memory_space<vmem>>, vector<1x1x1x8xf32>
    %322 = vector.shape_cast %321 : vector<1x1x1x8xf32> to vector<1x8xf32>
    %323 = vector.broadcast %322 : vector<1x8xf32> to vector<32x8xf32>
    %324 = arith.addf %320, %323 : vector<32x8xf32>
    %c1_212 = arith.constant 1 : index
    %c8_213 = arith.constant 8 : index
    %c0_214 = arith.constant 0 : index
    %c0_215 = arith.constant 0 : index
    %325 = vector.load %arg4[%c1_212, %c8_213, %c0_214, %c0_215] : memref<2x12x32x8xbf16, #tpu.memory_space<vmem>>, vector<1x1x32x8xbf16>
    %326 = vector.shape_cast %325 : vector<1x1x32x8xbf16> to vector<32x8xbf16>
    %cst_216 = arith.constant dense<0.000000e+00> : vector<32x8xf32>
    %327 = tpu.matmul %309, %326, %cst_216 {dimension_numbers = #tpu.dot_dimension_numbers<[1], [0], [0], [1], [0, 0, 1, 1], [], []>} : vector<32x32xbf16>, vector<32x8xbf16>, vector<32x8xf32> -> vector<32x8xf32>
    %c1_217 = arith.constant 1 : index
    %c8_218 = arith.constant 8 : index
    %c0_219 = arith.constant 0 : index
    %c0_220 = arith.constant 0 : index
    %328 = vector.load %arg5[%c1_217, %c8_218, %c0_219, %c0_220] : memref<2x12x1x8xf32, #tpu.memory_space<vmem>>, vector<1x1x1x8xf32>
    %329 = vector.shape_cast %328 : vector<1x1x1x8xf32> to vector<1x8xf32>
    %330 = vector.broadcast %329 : vector<1x8xf32> to vector<32x8xf32>
    %331 = arith.addf %327, %330 : vector<32x8xf32>
    %332 = vector.shape_cast %317 : vector<32x8xf32> to vector<4x8x8xf32>
    %333 = vector.shape_cast %324 : vector<32x8xf32> to vector<4x8x8xf32>
    %334 = vector.shape_cast %331 : vector<32x8xf32> to vector<4x8x8xf32>
    %335 = arith.truncf %332 : vector<4x8x8xf32> to vector<4x8x8xbf16>
    %336 = arith.truncf %333 : vector<4x8x8xf32> to vector<4x8x8xbf16>
    "tpu.trace_start"() <{level = 10 : i32, message = "bqd,bkd->bqk"}> : () -> ()
    %cst_221 = arith.constant dense<0.000000e+00> : vector<4x8x8xf32>
    %337 = tpu.matmul %335, %336, %cst_221 {dimension_numbers = #tpu.dot_dimension_numbers<[2], [2], [1], [1], [0, 0, 0, 1, 1, 1], [0], [0]>} : vector<4x8x8xbf16>, vector<4x8x8xbf16>, vector<4x8x8xf32> -> vector<4x8x8xf32>
    "tpu.trace_stop"() : () -> ()
    %cst_222 = arith.constant 0.353553385 : f32
    %338 = vector.broadcast %cst_222 : f32 to vector<4x8x8xf32>
    %339 = arith.mulf %337, %338 : vector<4x8x8xf32>
    %340 = vector.broadcast %1 : vector<4x1x8xf32> to vector<4x8x8xf32>
    %341 = arith.addf %339, %340 : vector<4x8x8xf32>
    %cst_223 = arith.constant dense<0xFF800000> : vector<4x8xf32>
    %342 = vector.multi_reduction <maximumf>, %341, %cst_223 [2] : vector<4x8x8xf32> to vector<4x8xf32>
    %343 = vector.shape_cast %342 : vector<4x8xf32> to vector<4x8x1xf32>
    %344 = vector.broadcast %343 : vector<4x8x1xf32> to vector<4x8x8xf32>
    %345 = arith.subf %341, %344 : vector<4x8x8xf32>
    %346 = math.exp %345 : vector<4x8x8xf32>
    %cst_224 = arith.constant dense<0.000000e+00> : vector<4x8xf32>
    %347 = vector.multi_reduction <add>, %346, %cst_224 [2] : vector<4x8x8xf32> to vector<4x8xf32>
    %348 = vector.shape_cast %347 : vector<4x8xf32> to vector<4x8x1xf32>
    %349 = tpu.reciprocal %348 {approx = true} : vector<4x8x1xf32> -> vector<4x8x1xf32>
    %350 = vector.broadcast %349 : vector<4x8x1xf32> to vector<4x8x8xf32>
    %351 = arith.mulf %346, %350 : vector<4x8x8xf32>
    %352 = arith.truncf %351 : vector<4x8x8xf32> to vector<4x8x8xbf16>
    %353 = arith.truncf %334 : vector<4x8x8xf32> to vector<4x8x8xbf16>
    "tpu.trace_start"() <{level = 10 : i32, message = "bqk,bkd->bqd"}> : () -> ()
    %cst_225 = arith.constant dense<0.000000e+00> : vector<4x8x8xf32>
    %354 = tpu.matmul %352, %353, %cst_225 {dimension_numbers = #tpu.dot_dimension_numbers<[2], [1], [1], [2], [0, 0, 0, 1, 1, 2], [0], [0]>} : vector<4x8x8xbf16>, vector<4x8x8xbf16>, vector<4x8x8xf32> -> vector<4x8x8xf32>
    "tpu.trace_stop"() : () -> ()
    %355 = vector.shape_cast %354 : vector<4x8x8xf32> to vector<32x8xf32>
    %356 = arith.truncf %355 : vector<32x8xf32> to vector<32x8xbf16>
    %c1_226 = arith.constant 1 : index
    %c0_227 = arith.constant 0 : index
    %c0_228 = arith.constant 0 : index
    %c0_229 = arith.constant 0 : index
    %357 = vector.load %arg6[%c1_226, %c0_227, %c0_228, %c0_229] : memref<2x4x8x32xbf16, #tpu.memory_space<vmem>>, vector<1x1x8x32xbf16>
    %358 = vector.shape_cast %357 : vector<1x1x8x32xbf16> to vector<8x32xbf16>
    %cst_230 = arith.constant dense<0.000000e+00> : vector<32x32xf32>
    %359 = tpu.matmul %356, %358, %cst_230 {dimension_numbers = #tpu.dot_dimension_numbers<[1], [0], [0], [1], [0, 0, 1, 1], [], []>} : vector<32x8xbf16>, vector<8x32xbf16>, vector<32x32xf32> -> vector<32x32xf32>
    %360 = arith.addf %310, %359 : vector<32x32xf32>
    %c1_231 = arith.constant 1 : index
    %c1_232 = arith.constant 1 : index
    %c0_233 = arith.constant 0 : index
    %c0_234 = arith.constant 0 : index
    %361 = vector.load %arg4[%c1_231, %c1_232, %c0_233, %c0_234] : memref<2x12x32x8xbf16, #tpu.memory_space<vmem>>, vector<1x1x32x8xbf16>
    %362 = vector.shape_cast %361 : vector<1x1x32x8xbf16> to vector<32x8xbf16>
    %cst_235 = arith.constant dense<0.000000e+00> : vector<32x8xf32>
    %363 = tpu.matmul %309, %362, %cst_235 {dimension_numbers = #tpu.dot_dimension_numbers<[1], [0], [0], [1], [0, 0, 1, 1], [], []>} : vector<32x32xbf16>, vector<32x8xbf16>, vector<32x8xf32> -> vector<32x8xf32>
    %c1_236 = arith.constant 1 : index
    %c1_237 = arith.constant 1 : index
    %c0_238 = arith.constant 0 : index
    %c0_239 = arith.constant 0 : index
    %364 = vector.load %arg5[%c1_236, %c1_237, %c0_238, %c0_239] : memref<2x12x1x8xf32, #tpu.memory_space<vmem>>, vector<1x1x1x8xf32>
    %365 = vector.shape_cast %364 : vector<1x1x1x8xf32> to vector<1x8xf32>
    %366 = vector.broadcast %365 : vector<1x8xf32> to vector<32x8xf32>
    %367 = arith.addf %363, %366 : vector<32x8xf32>
    %c1_240 = arith.constant 1 : index
    %c5_241 = arith.constant 5 : index
    %c0_242 = arith.constant 0 : index
    %c0_243 = arith.constant 0 : index
    %368 = vector.load %arg4[%c1_240, %c5_241, %c0_242, %c0_243] : memref<2x12x32x8xbf16, #tpu.memory_space<vmem>>, vector<1x1x32x8xbf16>
    %369 = vector.shape_cast %368 : vector<1x1x32x8xbf16> to vector<32x8xbf16>
    %cst_244 = arith.constant dense<0.000000e+00> : vector<32x8xf32>
    %370 = tpu.matmul %309, %369, %cst_244 {dimension_numbers = #tpu.dot_dimension_numbers<[1], [0], [0], [1], [0, 0, 1, 1], [], []>} : vector<32x32xbf16>, vector<32x8xbf16>, vector<32x8xf32> -> vector<32x8xf32>
    %c1_245 = arith.constant 1 : index
    %c5_246 = arith.constant 5 : index
    %c0_247 = arith.constant 0 : index
    %c0_248 = arith.constant 0 : index
    %371 = vector.load %arg5[%c1_245, %c5_246, %c0_247, %c0_248] : memref<2x12x1x8xf32, #tpu.memory_space<vmem>>, vector<1x1x1x8xf32>
    %372 = vector.shape_cast %371 : vector<1x1x1x8xf32> to vector<1x8xf32>
    %373 = vector.broadcast %372 : vector<1x8xf32> to vector<32x8xf32>
    %374 = arith.addf %370, %373 : vector<32x8xf32>
    %c1_249 = arith.constant 1 : index
    %c9_250 = arith.constant 9 : index
    %c0_251 = arith.constant 0 : index
    %c0_252 = arith.constant 0 : index
    %375 = vector.load %arg4[%c1_249, %c9_250, %c0_251, %c0_252] : memref<2x12x32x8xbf16, #tpu.memory_space<vmem>>, vector<1x1x32x8xbf16>
    %376 = vector.shape_cast %375 : vector<1x1x32x8xbf16> to vector<32x8xbf16>
    %cst_253 = arith.constant dense<0.000000e+00> : vector<32x8xf32>
    %377 = tpu.matmul %309, %376, %cst_253 {dimension_numbers = #tpu.dot_dimension_numbers<[1], [0], [0], [1], [0, 0, 1, 1], [], []>} : vector<32x32xbf16>, vector<32x8xbf16>, vector<32x8xf32> -> vector<32x8xf32>
    %c1_254 = arith.constant 1 : index
    %c9_255 = arith.constant 9 : index
    %c0_256 = arith.constant 0 : index
    %c0_257 = arith.constant 0 : index
    %378 = vector.load %arg5[%c1_254, %c9_255, %c0_256, %c0_257] : memref<2x12x1x8xf32, #tpu.memory_space<vmem>>, vector<1x1x1x8xf32>
    %379 = vector.shape_cast %378 : vector<1x1x1x8xf32> to vector<1x8xf32>
    %380 = vector.broadcast %379 : vector<1x8xf32> to vector<32x8xf32>
    %381 = arith.addf %377, %380 : vector<32x8xf32>
    %382 = vector.shape_cast %367 : vector<32x8xf32> to vector<4x8x8xf32>
    %383 = vector.shape_cast %374 : vector<32x8xf32> to vector<4x8x8xf32>
    %384 = vector.shape_cast %381 : vector<32x8xf32> to vector<4x8x8xf32>
    %385 = arith.truncf %382 : vector<4x8x8xf32> to vector<4x8x8xbf16>
    %386 = arith.truncf %383 : vector<4x8x8xf32> to vector<4x8x8xbf16>
    "tpu.trace_start"() <{level = 10 : i32, message = "bqd,bkd->bqk"}> : () -> ()
    %cst_258 = arith.constant dense<0.000000e+00> : vector<4x8x8xf32>
    %387 = tpu.matmul %385, %386, %cst_258 {dimension_numbers = #tpu.dot_dimension_numbers<[2], [2], [1], [1], [0, 0, 0, 1, 1, 1], [0], [0]>} : vector<4x8x8xbf16>, vector<4x8x8xbf16>, vector<4x8x8xf32> -> vector<4x8x8xf32>
    "tpu.trace_stop"() : () -> ()
    %cst_259 = arith.constant 0.353553385 : f32
    %388 = vector.broadcast %cst_259 : f32 to vector<4x8x8xf32>
    %389 = arith.mulf %387, %388 : vector<4x8x8xf32>
    %390 = vector.broadcast %1 : vector<4x1x8xf32> to vector<4x8x8xf32>
    %391 = arith.addf %389, %390 : vector<4x8x8xf32>
    %cst_260 = arith.constant dense<0xFF800000> : vector<4x8xf32>
    %392 = vector.multi_reduction <maximumf>, %391, %cst_260 [2] : vector<4x8x8xf32> to vector<4x8xf32>
    %393 = vector.shape_cast %392 : vector<4x8xf32> to vector<4x8x1xf32>
    %394 = vector.broadcast %393 : vector<4x8x1xf32> to vector<4x8x8xf32>
    %395 = arith.subf %391, %394 : vector<4x8x8xf32>
    %396 = math.exp %395 : vector<4x8x8xf32>
    %cst_261 = arith.constant dense<0.000000e+00> : vector<4x8xf32>
    %397 = vector.multi_reduction <add>, %396, %cst_261 [2] : vector<4x8x8xf32> to vector<4x8xf32>
    %398 = vector.shape_cast %397 : vector<4x8xf32> to vector<4x8x1xf32>
    %399 = tpu.reciprocal %398 {approx = true} : vector<4x8x1xf32> -> vector<4x8x1xf32>
    %400 = vector.broadcast %399 : vector<4x8x1xf32> to vector<4x8x8xf32>
    %401 = arith.mulf %396, %400 : vector<4x8x8xf32>
    %402 = arith.truncf %401 : vector<4x8x8xf32> to vector<4x8x8xbf16>
    %403 = arith.truncf %384 : vector<4x8x8xf32> to vector<4x8x8xbf16>
    "tpu.trace_start"() <{level = 10 : i32, message = "bqk,bkd->bqd"}> : () -> ()
    %cst_262 = arith.constant dense<0.000000e+00> : vector<4x8x8xf32>
    %404 = tpu.matmul %402, %403, %cst_262 {dimension_numbers = #tpu.dot_dimension_numbers<[2], [1], [1], [2], [0, 0, 0, 1, 1, 2], [0], [0]>} : vector<4x8x8xbf16>, vector<4x8x8xbf16>, vector<4x8x8xf32> -> vector<4x8x8xf32>
    "tpu.trace_stop"() : () -> ()
    %405 = vector.shape_cast %404 : vector<4x8x8xf32> to vector<32x8xf32>
    %406 = arith.truncf %405 : vector<32x8xf32> to vector<32x8xbf16>
    %c1_263 = arith.constant 1 : index
    %c1_264 = arith.constant 1 : index
    %c0_265 = arith.constant 0 : index
    %c0_266 = arith.constant 0 : index
    %407 = vector.load %arg6[%c1_263, %c1_264, %c0_265, %c0_266] : memref<2x4x8x32xbf16, #tpu.memory_space<vmem>>, vector<1x1x8x32xbf16>
    %408 = vector.shape_cast %407 : vector<1x1x8x32xbf16> to vector<8x32xbf16>
    %cst_267 = arith.constant dense<0.000000e+00> : vector<32x32xf32>
    %409 = tpu.matmul %406, %408, %cst_267 {dimension_numbers = #tpu.dot_dimension_numbers<[1], [0], [0], [1], [0, 0, 1, 1], [], []>} : vector<32x8xbf16>, vector<8x32xbf16>, vector<32x32xf32> -> vector<32x32xf32>
    %410 = arith.addf %360, %409 : vector<32x32xf32>
    %c1_268 = arith.constant 1 : index
    %c2_269 = arith.constant 2 : index
    %c0_270 = arith.constant 0 : index
    %c0_271 = arith.constant 0 : index
    %411 = vector.load %arg4[%c1_268, %c2_269, %c0_270, %c0_271] : memref<2x12x32x8xbf16, #tpu.memory_space<vmem>>, vector<1x1x32x8xbf16>
    %412 = vector.shape_cast %411 : vector<1x1x32x8xbf16> to vector<32x8xbf16>
    %cst_272 = arith.constant dense<0.000000e+00> : vector<32x8xf32>
    %413 = tpu.matmul %309, %412, %cst_272 {dimension_numbers = #tpu.dot_dimension_numbers<[1], [0], [0], [1], [0, 0, 1, 1], [], []>} : vector<32x32xbf16>, vector<32x8xbf16>, vector<32x8xf32> -> vector<32x8xf32>
    %c1_273 = arith.constant 1 : index
    %c2_274 = arith.constant 2 : index
    %c0_275 = arith.constant 0 : index
    %c0_276 = arith.constant 0 : index
    %414 = vector.load %arg5[%c1_273, %c2_274, %c0_275, %c0_276] : memref<2x12x1x8xf32, #tpu.memory_space<vmem>>, vector<1x1x1x8xf32>
    %415 = vector.shape_cast %414 : vector<1x1x1x8xf32> to vector<1x8xf32>
    %416 = vector.broadcast %415 : vector<1x8xf32> to vector<32x8xf32>
    %417 = arith.addf %413, %416 : vector<32x8xf32>
    %c1_277 = arith.constant 1 : index
    %c6_278 = arith.constant 6 : index
    %c0_279 = arith.constant 0 : index
    %c0_280 = arith.constant 0 : index
    %418 = vector.load %arg4[%c1_277, %c6_278, %c0_279, %c0_280] : memref<2x12x32x8xbf16, #tpu.memory_space<vmem>>, vector<1x1x32x8xbf16>
    %419 = vector.shape_cast %418 : vector<1x1x32x8xbf16> to vector<32x8xbf16>
    %cst_281 = arith.constant dense<0.000000e+00> : vector<32x8xf32>
    %420 = tpu.matmul %309, %419, %cst_281 {dimension_numbers = #tpu.dot_dimension_numbers<[1], [0], [0], [1], [0, 0, 1, 1], [], []>} : vector<32x32xbf16>, vector<32x8xbf16>, vector<32x8xf32> -> vector<32x8xf32>
    %c1_282 = arith.constant 1 : index
    %c6_283 = arith.constant 6 : index
    %c0_284 = arith.constant 0 : index
    %c0_285 = arith.constant 0 : index
    %421 = vector.load %arg5[%c1_282, %c6_283, %c0_284, %c0_285] : memref<2x12x1x8xf32, #tpu.memory_space<vmem>>, vector<1x1x1x8xf32>
    %422 = vector.shape_cast %421 : vector<1x1x1x8xf32> to vector<1x8xf32>
    %423 = vector.broadcast %422 : vector<1x8xf32> to vector<32x8xf32>
    %424 = arith.addf %420, %423 : vector<32x8xf32>
    %c1_286 = arith.constant 1 : index
    %c10_287 = arith.constant 10 : index
    %c0_288 = arith.constant 0 : index
    %c0_289 = arith.constant 0 : index
    %425 = vector.load %arg4[%c1_286, %c10_287, %c0_288, %c0_289] : memref<2x12x32x8xbf16, #tpu.memory_space<vmem>>, vector<1x1x32x8xbf16>
    %426 = vector.shape_cast %425 : vector<1x1x32x8xbf16> to vector<32x8xbf16>
    %cst_290 = arith.constant dense<0.000000e+00> : vector<32x8xf32>
    %427 = tpu.matmul %309, %426, %cst_290 {dimension_numbers = #tpu.dot_dimension_numbers<[1], [0], [0], [1], [0, 0, 1, 1], [], []>} : vector<32x32xbf16>, vector<32x8xbf16>, vector<32x8xf32> -> vector<32x8xf32>
    %c1_291 = arith.constant 1 : index
    %c10_292 = arith.constant 10 : index
    %c0_293 = arith.constant 0 : index
    %c0_294 = arith.constant 0 : index
    %428 = vector.load %arg5[%c1_291, %c10_292, %c0_293, %c0_294] : memref<2x12x1x8xf32, #tpu.memory_space<vmem>>, vector<1x1x1x8xf32>
    %429 = vector.shape_cast %428 : vector<1x1x1x8xf32> to vector<1x8xf32>
    %430 = vector.broadcast %429 : vector<1x8xf32> to vector<32x8xf32>
    %431 = arith.addf %427, %430 : vector<32x8xf32>
    %432 = vector.shape_cast %417 : vector<32x8xf32> to vector<4x8x8xf32>
    %433 = vector.shape_cast %424 : vector<32x8xf32> to vector<4x8x8xf32>
    %434 = vector.shape_cast %431 : vector<32x8xf32> to vector<4x8x8xf32>
    %435 = arith.truncf %432 : vector<4x8x8xf32> to vector<4x8x8xbf16>
    %436 = arith.truncf %433 : vector<4x8x8xf32> to vector<4x8x8xbf16>
    "tpu.trace_start"() <{level = 10 : i32, message = "bqd,bkd->bqk"}> : () -> ()
    %cst_295 = arith.constant dense<0.000000e+00> : vector<4x8x8xf32>
    %437 = tpu.matmul %435, %436, %cst_295 {dimension_numbers = #tpu.dot_dimension_numbers<[2], [2], [1], [1], [0, 0, 0, 1, 1, 1], [0], [0]>} : vector<4x8x8xbf16>, vector<4x8x8xbf16>, vector<4x8x8xf32> -> vector<4x8x8xf32>
    "tpu.trace_stop"() : () -> ()
    %cst_296 = arith.constant 0.353553385 : f32
    %438 = vector.broadcast %cst_296 : f32 to vector<4x8x8xf32>
    %439 = arith.mulf %437, %438 : vector<4x8x8xf32>
    %440 = vector.broadcast %1 : vector<4x1x8xf32> to vector<4x8x8xf32>
    %441 = arith.addf %439, %440 : vector<4x8x8xf32>
    %cst_297 = arith.constant dense<0xFF800000> : vector<4x8xf32>
    %442 = vector.multi_reduction <maximumf>, %441, %cst_297 [2] : vector<4x8x8xf32> to vector<4x8xf32>
    %443 = vector.shape_cast %442 : vector<4x8xf32> to vector<4x8x1xf32>
    %444 = vector.broadcast %443 : vector<4x8x1xf32> to vector<4x8x8xf32>
    %445 = arith.subf %441, %444 : vector<4x8x8xf32>
    %446 = math.exp %445 : vector<4x8x8xf32>
    %cst_298 = arith.constant dense<0.000000e+00> : vector<4x8xf32>
    %447 = vector.multi_reduction <add>, %446, %cst_298 [2] : vector<4x8x8xf32> to vector<4x8xf32>
    %448 = vector.shape_cast %447 : vector<4x8xf32> to vector<4x8x1xf32>
    %449 = tpu.reciprocal %448 {approx = true} : vector<4x8x1xf32> -> vector<4x8x1xf32>
    %450 = vector.broadcast %449 : vector<4x8x1xf32> to vector<4x8x8xf32>
    %451 = arith.mulf %446, %450 : vector<4x8x8xf32>
    %452 = arith.truncf %451 : vector<4x8x8xf32> to vector<4x8x8xbf16>
    %453 = arith.truncf %434 : vector<4x8x8xf32> to vector<4x8x8xbf16>
    "tpu.trace_start"() <{level = 10 : i32, message = "bqk,bkd->bqd"}> : () -> ()
    %cst_299 = arith.constant dense<0.000000e+00> : vector<4x8x8xf32>
    %454 = tpu.matmul %452, %453, %cst_299 {dimension_numbers = #tpu.dot_dimension_numbers<[2], [1], [1], [2], [0, 0, 0, 1, 1, 2], [0], [0]>} : vector<4x8x8xbf16>, vector<4x8x8xbf16>, vector<4x8x8xf32> -> vector<4x8x8xf32>
    "tpu.trace_stop"() : () -> ()
    %455 = vector.shape_cast %454 : vector<4x8x8xf32> to vector<32x8xf32>
    %456 = arith.truncf %455 : vector<32x8xf32> to vector<32x8xbf16>
    %c1_300 = arith.constant 1 : index
    %c2_301 = arith.constant 2 : index
    %c0_302 = arith.constant 0 : index
    %c0_303 = arith.constant 0 : index
    %457 = vector.load %arg6[%c1_300, %c2_301, %c0_302, %c0_303] : memref<2x4x8x32xbf16, #tpu.memory_space<vmem>>, vector<1x1x8x32xbf16>
    %458 = vector.shape_cast %457 : vector<1x1x8x32xbf16> to vector<8x32xbf16>
    %cst_304 = arith.constant dense<0.000000e+00> : vector<32x32xf32>
    %459 = tpu.matmul %456, %458, %cst_304 {dimension_numbers = #tpu.dot_dimension_numbers<[1], [0], [0], [1], [0, 0, 1, 1], [], []>} : vector<32x8xbf16>, vector<8x32xbf16>, vector<32x32xf32> -> vector<32x32xf32>
    %460 = arith.addf %410, %459 : vector<32x32xf32>
    %c1_305 = arith.constant 1 : index
    %c3_306 = arith.constant 3 : index
    %c0_307 = arith.constant 0 : index
    %c0_308 = arith.constant 0 : index
    %461 = vector.load %arg4[%c1_305, %c3_306, %c0_307, %c0_308] : memref<2x12x32x8xbf16, #tpu.memory_space<vmem>>, vector<1x1x32x8xbf16>
    %462 = vector.shape_cast %461 : vector<1x1x32x8xbf16> to vector<32x8xbf16>
    %cst_309 = arith.constant dense<0.000000e+00> : vector<32x8xf32>
    %463 = tpu.matmul %309, %462, %cst_309 {dimension_numbers = #tpu.dot_dimension_numbers<[1], [0], [0], [1], [0, 0, 1, 1], [], []>} : vector<32x32xbf16>, vector<32x8xbf16>, vector<32x8xf32> -> vector<32x8xf32>
    %c1_310 = arith.constant 1 : index
    %c3_311 = arith.constant 3 : index
    %c0_312 = arith.constant 0 : index
    %c0_313 = arith.constant 0 : index
    %464 = vector.load %arg5[%c1_310, %c3_311, %c0_312, %c0_313] : memref<2x12x1x8xf32, #tpu.memory_space<vmem>>, vector<1x1x1x8xf32>
    %465 = vector.shape_cast %464 : vector<1x1x1x8xf32> to vector<1x8xf32>
    %466 = vector.broadcast %465 : vector<1x8xf32> to vector<32x8xf32>
    %467 = arith.addf %463, %466 : vector<32x8xf32>
    %c1_314 = arith.constant 1 : index
    %c7_315 = arith.constant 7 : index
    %c0_316 = arith.constant 0 : index
    %c0_317 = arith.constant 0 : index
    %468 = vector.load %arg4[%c1_314, %c7_315, %c0_316, %c0_317] : memref<2x12x32x8xbf16, #tpu.memory_space<vmem>>, vector<1x1x32x8xbf16>
    %469 = vector.shape_cast %468 : vector<1x1x32x8xbf16> to vector<32x8xbf16>
    %cst_318 = arith.constant dense<0.000000e+00> : vector<32x8xf32>
    %470 = tpu.matmul %309, %469, %cst_318 {dimension_numbers = #tpu.dot_dimension_numbers<[1], [0], [0], [1], [0, 0, 1, 1], [], []>} : vector<32x32xbf16>, vector<32x8xbf16>, vector<32x8xf32> -> vector<32x8xf32>
    %c1_319 = arith.constant 1 : index
    %c7_320 = arith.constant 7 : index
    %c0_321 = arith.constant 0 : index
    %c0_322 = arith.constant 0 : index
    %471 = vector.load %arg5[%c1_319, %c7_320, %c0_321, %c0_322] : memref<2x12x1x8xf32, #tpu.memory_space<vmem>>, vector<1x1x1x8xf32>
    %472 = vector.shape_cast %471 : vector<1x1x1x8xf32> to vector<1x8xf32>
    %473 = vector.broadcast %472 : vector<1x8xf32> to vector<32x8xf32>
    %474 = arith.addf %470, %473 : vector<32x8xf32>
    %c1_323 = arith.constant 1 : index
    %c11_324 = arith.constant 11 : index
    %c0_325 = arith.constant 0 : index
    %c0_326 = arith.constant 0 : index
    %475 = vector.load %arg4[%c1_323, %c11_324, %c0_325, %c0_326] : memref<2x12x32x8xbf16, #tpu.memory_space<vmem>>, vector<1x1x32x8xbf16>
    %476 = vector.shape_cast %475 : vector<1x1x32x8xbf16> to vector<32x8xbf16>
    %cst_327 = arith.constant dense<0.000000e+00> : vector<32x8xf32>
    %477 = tpu.matmul %309, %476, %cst_327 {dimension_numbers = #tpu.dot_dimension_numbers<[1], [0], [0], [1], [0, 0, 1, 1], [], []>} : vector<32x32xbf16>, vector<32x8xbf16>, vector<32x8xf32> -> vector<32x8xf32>
    %c1_328 = arith.constant 1 : index
    %c11_329 = arith.constant 11 : index
    %c0_330 = arith.constant 0 : index
    %c0_331 = arith.constant 0 : index
    %478 = vector.load %arg5[%c1_328, %c11_329, %c0_330, %c0_331] : memref<2x12x1x8xf32, #tpu.memory_space<vmem>>, vector<1x1x1x8xf32>
    %479 = vector.shape_cast %478 : vector<1x1x1x8xf32> to vector<1x8xf32>
    %480 = vector.broadcast %479 : vector<1x8xf32> to vector<32x8xf32>
    %481 = arith.addf %477, %480 : vector<32x8xf32>
    %482 = vector.shape_cast %467 : vector<32x8xf32> to vector<4x8x8xf32>
    %483 = vector.shape_cast %474 : vector<32x8xf32> to vector<4x8x8xf32>
    %484 = vector.shape_cast %481 : vector<32x8xf32> to vector<4x8x8xf32>
    %485 = arith.truncf %482 : vector<4x8x8xf32> to vector<4x8x8xbf16>
    %486 = arith.truncf %483 : vector<4x8x8xf32> to vector<4x8x8xbf16>
    "tpu.trace_start"() <{level = 10 : i32, message = "bqd,bkd->bqk"}> : () -> ()
    %cst_332 = arith.constant dense<0.000000e+00> : vector<4x8x8xf32>
    %487 = tpu.matmul %485, %486, %cst_332 {dimension_numbers = #tpu.dot_dimension_numbers<[2], [2], [1], [1], [0, 0, 0, 1, 1, 1], [0], [0]>} : vector<4x8x8xbf16>, vector<4x8x8xbf16>, vector<4x8x8xf32> -> vector<4x8x8xf32>
    "tpu.trace_stop"() : () -> ()
    %cst_333 = arith.constant 0.353553385 : f32
    %488 = vector.broadcast %cst_333 : f32 to vector<4x8x8xf32>
    %489 = arith.mulf %487, %488 : vector<4x8x8xf32>
    %490 = vector.broadcast %1 : vector<4x1x8xf32> to vector<4x8x8xf32>
    %491 = arith.addf %489, %490 : vector<4x8x8xf32>
    %cst_334 = arith.constant dense<0xFF800000> : vector<4x8xf32>
    %492 = vector.multi_reduction <maximumf>, %491, %cst_334 [2] : vector<4x8x8xf32> to vector<4x8xf32>
    %493 = vector.shape_cast %492 : vector<4x8xf32> to vector<4x8x1xf32>
    %494 = vector.broadcast %493 : vector<4x8x1xf32> to vector<4x8x8xf32>
    %495 = arith.subf %491, %494 : vector<4x8x8xf32>
    %496 = math.exp %495 : vector<4x8x8xf32>
    %cst_335 = arith.constant dense<0.000000e+00> : vector<4x8xf32>
    %497 = vector.multi_reduction <add>, %496, %cst_335 [2] : vector<4x8x8xf32> to vector<4x8xf32>
    %498 = vector.shape_cast %497 : vector<4x8xf32> to vector<4x8x1xf32>
    %499 = tpu.reciprocal %498 {approx = true} : vector<4x8x1xf32> -> vector<4x8x1xf32>
    %500 = vector.broadcast %499 : vector<4x8x1xf32> to vector<4x8x8xf32>
    %501 = arith.mulf %496, %500 : vector<4x8x8xf32>
    %502 = arith.truncf %501 : vector<4x8x8xf32> to vector<4x8x8xbf16>
    %503 = arith.truncf %484 : vector<4x8x8xf32> to vector<4x8x8xbf16>
    "tpu.trace_start"() <{level = 10 : i32, message = "bqk,bkd->bqd"}> : () -> ()
    %cst_336 = arith.constant dense<0.000000e+00> : vector<4x8x8xf32>
    %504 = tpu.matmul %502, %503, %cst_336 {dimension_numbers = #tpu.dot_dimension_numbers<[2], [1], [1], [2], [0, 0, 0, 1, 1, 2], [0], [0]>} : vector<4x8x8xbf16>, vector<4x8x8xbf16>, vector<4x8x8xf32> -> vector<4x8x8xf32>
    "tpu.trace_stop"() : () -> ()
    %505 = vector.shape_cast %504 : vector<4x8x8xf32> to vector<32x8xf32>
    %506 = arith.truncf %505 : vector<32x8xf32> to vector<32x8xbf16>
    %c1_337 = arith.constant 1 : index
    %c3_338 = arith.constant 3 : index
    %c0_339 = arith.constant 0 : index
    %c0_340 = arith.constant 0 : index
    %507 = vector.load %arg6[%c1_337, %c3_338, %c0_339, %c0_340] : memref<2x4x8x32xbf16, #tpu.memory_space<vmem>>, vector<1x1x8x32xbf16>
    %508 = vector.shape_cast %507 : vector<1x1x8x32xbf16> to vector<8x32xbf16>
    %cst_341 = arith.constant dense<0.000000e+00> : vector<32x32xf32>
    %509 = tpu.matmul %506, %508, %cst_341 {dimension_numbers = #tpu.dot_dimension_numbers<[1], [0], [0], [1], [0, 0, 1, 1], [], []>} : vector<32x8xbf16>, vector<8x32xbf16>, vector<32x32xf32> -> vector<32x32xf32>
    %510 = arith.addf %460, %509 : vector<32x32xf32>
    %c1_342 = arith.constant 1 : index
    %c0_343 = arith.constant 0 : index
    %c0_344 = arith.constant 0 : index
    %511 = vector.load %arg7[%c1_342, %c0_343, %c0_344] : memref<2x1x32xf32, #tpu.memory_space<vmem>>, vector<1x1x32xf32>
    %512 = vector.shape_cast %511 : vector<1x1x32xf32> to vector<1x32xf32>
    %513 = vector.broadcast %512 : vector<1x32xf32> to vector<32x32xf32>
    %514 = arith.addf %510, %513 : vector<32x32xf32>
    %515 = arith.addf %308, %514 : vector<32x32xf32>
    %c1_345 = arith.constant 1 : index
    %c0_346 = arith.constant 0 : index
    %c0_347 = arith.constant 0 : index
    %516 = vector.load %arg8[%c1_345, %c0_346, %c0_347] : memref<2x1x32xf32, #tpu.memory_space<vmem>>, vector<1x1x32xf32>
    %517 = vector.shape_cast %516 : vector<1x1x32xf32> to vector<1x32xf32>
    %c1_348 = arith.constant 1 : index
    %c0_349 = arith.constant 0 : index
    %c0_350 = arith.constant 0 : index
    %518 = vector.load %arg9[%c1_348, %c0_349, %c0_350] : memref<2x1x32xf32, #tpu.memory_space<vmem>>, vector<1x1x32xf32>
    %519 = vector.shape_cast %518 : vector<1x1x32xf32> to vector<1x32xf32>
    %cst_351 = arith.constant dense<0.000000e+00> : vector<32xf32>
    %520 = vector.multi_reduction <add>, %515, %cst_351 [1] : vector<32x32xf32> to vector<32xf32>
    %521 = vector.shape_cast %520 : vector<32xf32> to vector<32x1xf32>
    %cst_352 = arith.constant 3.200000e+01 : f32
    %522 = vector.broadcast %cst_352 : f32 to vector<32x1xf32>
    %523 = arith.divf %521, %522 : vector<32x1xf32>
    %524 = vector.broadcast %523 : vector<32x1xf32> to vector<32x32xf32>
    %525 = arith.subf %515, %524 : vector<32x32xf32>
    %526 = arith.mulf %525, %525 : vector<32x32xf32>
    %cst_353 = arith.constant dense<0.000000e+00> : vector<32xf32>
    %527 = vector.multi_reduction <add>, %526, %cst_353 [1] : vector<32x32xf32> to vector<32xf32>
    %528 = vector.shape_cast %527 : vector<32xf32> to vector<32x1xf32>
    %cst_354 = arith.constant 3.200000e+01 : f32
    %529 = vector.broadcast %cst_354 : f32 to vector<32x1xf32>
    %530 = arith.divf %528, %529 : vector<32x1xf32>
    %cst_355 = arith.constant 9.99999996E-13 : f32
    %531 = vector.broadcast %cst_355 : f32 to vector<32x1xf32>
    %532 = arith.addf %530, %531 : vector<32x1xf32>
    %533 = math.rsqrt %532 : vector<32x1xf32>
    %534 = vector.broadcast %533 : vector<32x1xf32> to vector<32x32xf32>
    %535 = arith.mulf %525, %534 : vector<32x32xf32>
    %536 = vector.broadcast %517 : vector<1x32xf32> to vector<32x32xf32>
    %537 = arith.mulf %535, %536 : vector<32x32xf32>
    %538 = vector.broadcast %519 : vector<1x32xf32> to vector<32x32xf32>
    %539 = arith.addf %537, %538 : vector<32x32xf32>
    %540 = arith.truncf %539 : vector<32x32xf32> to vector<32x32xbf16>
    %c1_356 = arith.constant 1 : index
    %c0_357 = arith.constant 0 : index
    %c0_358 = arith.constant 0 : index
    %541 = vector.load %arg10[%c1_356, %c0_357, %c0_358] : memref<2x32x64xbf16, #tpu.memory_space<vmem>>, vector<1x32x64xbf16>
    %542 = vector.shape_cast %541 : vector<1x32x64xbf16> to vector<32x64xbf16>
    %cst_359 = arith.constant dense<0.000000e+00> : vector<32x64xf32>
    %543 = tpu.matmul %540, %542, %cst_359 {dimension_numbers = #tpu.dot_dimension_numbers<[1], [0], [0], [1], [0, 0, 1, 1], [], []>} : vector<32x32xbf16>, vector<32x64xbf16>, vector<32x64xf32> -> vector<32x64xf32>
    %c1_360 = arith.constant 1 : index
    %c0_361 = arith.constant 0 : index
    %c0_362 = arith.constant 0 : index
    %544 = vector.load %arg11[%c1_360, %c0_361, %c0_362] : memref<2x1x64xf32, #tpu.memory_space<vmem>>, vector<1x1x64xf32>
    %545 = vector.shape_cast %544 : vector<1x1x64xf32> to vector<1x64xf32>
    %546 = vector.broadcast %545 : vector<1x64xf32> to vector<32x64xf32>
    %547 = arith.addf %543, %546 : vector<32x64xf32>
    %cst_363 = arith.constant 5.000000e-01 : f32
    %548 = vector.broadcast %cst_363 : f32 to vector<32x64xf32>
    %549 = arith.mulf %548, %547 : vector<32x64xf32>
    %550 = arith.mulf %547, %547 : vector<32x64xf32>
    %551 = arith.mulf %550, %547 : vector<32x64xf32>
    %cst_364 = arith.constant 4.471500e-02 : f32
    %552 = vector.broadcast %cst_364 : f32 to vector<32x64xf32>
    %553 = arith.mulf %552, %551 : vector<32x64xf32>
    %554 = arith.addf %547, %553 : vector<32x64xf32>
    %cst_365 = arith.constant 0.797884583 : f32
    %555 = vector.broadcast %cst_365 : f32 to vector<32x64xf32>
    %556 = arith.mulf %555, %554 : vector<32x64xf32>
    %557 = math.tanh %556 : vector<32x64xf32>
    %cst_366 = arith.constant 1.000000e+00 : f32
    %558 = vector.broadcast %cst_366 : f32 to vector<32x64xf32>
    %559 = arith.addf %558, %557 : vector<32x64xf32>
    %560 = arith.mulf %549, %559 : vector<32x64xf32>
    %561 = arith.truncf %560 : vector<32x64xf32> to vector<32x64xbf16>
    %c1_367 = arith.constant 1 : index
    %c0_368 = arith.constant 0 : index
    %c0_369 = arith.constant 0 : index
    %562 = vector.load %arg12[%c1_367, %c0_368, %c0_369] : memref<2x64x32xbf16, #tpu.memory_space<vmem>>, vector<1x64x32xbf16>
    %563 = vector.shape_cast %562 : vector<1x64x32xbf16> to vector<64x32xbf16>
    %cst_370 = arith.constant dense<0.000000e+00> : vector<32x32xf32>
    %564 = tpu.matmul %561, %563, %cst_370 {dimension_numbers = #tpu.dot_dimension_numbers<[1], [0], [0], [1], [0, 0, 1, 1], [], []>} : vector<32x64xbf16>, vector<64x32xbf16>, vector<32x32xf32> -> vector<32x32xf32>
    %c1_371 = arith.constant 1 : index
    %c0_372 = arith.constant 0 : index
    %c0_373 = arith.constant 0 : index
    %565 = vector.load %arg13[%c1_371, %c0_372, %c0_373] : memref<2x1x32xf32, #tpu.memory_space<vmem>>, vector<1x1x32xf32>
    %566 = vector.shape_cast %565 : vector<1x1x32xf32> to vector<1x32xf32>
    %567 = vector.broadcast %566 : vector<1x32xf32> to vector<32x32xf32>
    %568 = arith.addf %564, %567 : vector<32x32xf32>
    %569 = arith.addf %539, %568 : vector<32x32xf32>
    %c1_374 = arith.constant 1 : index
    %c0_375 = arith.constant 0 : index
    %c0_376 = arith.constant 0 : index
    %570 = vector.load %arg14[%c1_374, %c0_375, %c0_376] : memref<2x1x32xf32, #tpu.memory_space<vmem>>, vector<1x1x32xf32>
    %571 = vector.shape_cast %570 : vector<1x1x32xf32> to vector<1x32xf32>
    %c1_377 = arith.constant 1 : index
    %c0_378 = arith.constant 0 : index
    %c0_379 = arith.constant 0 : index
    %572 = vector.load %arg15[%c1_377, %c0_378, %c0_379] : memref<2x1x32xf32, #tpu.memory_space<vmem>>, vector<1x1x32xf32>
    %573 = vector.shape_cast %572 : vector<1x1x32xf32> to vector<1x32xf32>
    %cst_380 = arith.constant dense<0.000000e+00> : vector<32xf32>
    %574 = vector.multi_reduction <add>, %569, %cst_380 [1] : vector<32x32xf32> to vector<32xf32>
    %575 = vector.shape_cast %574 : vector<32xf32> to vector<32x1xf32>
    %cst_381 = arith.constant 3.200000e+01 : f32
    %576 = vector.broadcast %cst_381 : f32 to vector<32x1xf32>
    %577 = arith.divf %575, %576 : vector<32x1xf32>
    %578 = vector.broadcast %577 : vector<32x1xf32> to vector<32x32xf32>
    %579 = arith.subf %569, %578 : vector<32x32xf32>
    %580 = arith.mulf %579, %579 : vector<32x32xf32>
    %cst_382 = arith.constant dense<0.000000e+00> : vector<32xf32>
    %581 = vector.multi_reduction <add>, %580, %cst_382 [1] : vector<32x32xf32> to vector<32xf32>
    %582 = vector.shape_cast %581 : vector<32xf32> to vector<32x1xf32>
    %cst_383 = arith.constant 3.200000e+01 : f32
    %583 = vector.broadcast %cst_383 : f32 to vector<32x1xf32>
    %584 = arith.divf %582, %583 : vector<32x1xf32>
    %cst_384 = arith.constant 9.99999996E-13 : f32
    %585 = vector.broadcast %cst_384 : f32 to vector<32x1xf32>
    %586 = arith.addf %584, %585 : vector<32x1xf32>
    %587 = math.rsqrt %586 : vector<32x1xf32>
    %588 = vector.broadcast %587 : vector<32x1xf32> to vector<32x32xf32>
    %589 = arith.mulf %579, %588 : vector<32x32xf32>
    %590 = vector.broadcast %571 : vector<1x32xf32> to vector<32x32xf32>
    %591 = arith.mulf %589, %590 : vector<32x32xf32>
    %592 = vector.broadcast %573 : vector<1x32xf32> to vector<32x32xf32>
    %593 = arith.addf %591, %592 : vector<32x32xf32>
    %594 = vector.shape_cast %593 : vector<32x32xf32> to vector<4x8x32xf32>
    %595 = vector.extract_strided_slice %594 {offsets = [0, 0, 0], sizes = [4, 1, 32], strides = [1, 1, 1]} : vector<4x8x32xf32> to vector<4x1x32xf32>
    %596 = vector.shape_cast %595 : vector<4x1x32xf32> to vector<4x32xf32>
    %597 = arith.truncf %596 : vector<4x32xf32> to vector<4x32xbf16>
    %c0_385 = arith.constant 0 : index
    %c0_386 = arith.constant 0 : index
    %598 = vector.load %arg16[%c0_385, %c0_386] : memref<32x32xbf16, #tpu.memory_space<vmem>>, vector<32x32xbf16>
    %cst_387 = arith.constant dense<0.000000e+00> : vector<4x32xf32>
    %599 = tpu.matmul %597, %598, %cst_387 {dimension_numbers = #tpu.dot_dimension_numbers<[1], [0], [0], [1], [0, 0, 1, 1], [], []>} : vector<4x32xbf16>, vector<32x32xbf16>, vector<4x32xf32> -> vector<4x32xf32>
    %c0_388 = arith.constant 0 : index
    %c0_389 = arith.constant 0 : index
    %600 = vector.load %arg17[%c0_388, %c0_389] : memref<1x32xf32, #tpu.memory_space<vmem>>, vector<1x32xf32>
    %601 = vector.broadcast %600 : vector<1x32xf32> to vector<4x32xf32>
    %602 = arith.addf %599, %601 : vector<4x32xf32>
    %603 = math.tanh %602 : vector<4x32xf32>
    %c0_390 = arith.constant 0 : index
    %c0_391 = arith.constant 0 : index
    %604 = vector.load %arg18[%c0_390, %c0_391] : memref<4x32xf32, #tpu.memory_space<vmem>>, vector<4x32xf32>
    tpu.vector_store %arg18[%c0_390, %c0_391], %603 {strides = array<i32>} : memref<4x32xf32, #tpu.memory_space<vmem>>, vector<4x32xf32>,
    return
  }
}

</mosaic_0001>

<llo_original>
// kernel: twin_bert_forward.1
$region0: #{twin_bert_forward.1}
  #allocation0 [shape = 'u32[]', space=smem, size = 0x4, offset = 0x4, fixed_abs, tag = 'smem constant byte address 0x4 - core index']
  #allocation1 [shape = 'u32[144,128]{1,0:T(1,128)}', space=vmem, size = 0x12000, scoped, tag = 'internal scratch']
  %s0 = inlined_call_operand.vmem [shape: f32[32,32], index: 0, kind: input, shape index: {}]
  %s1 = inlined_call_operand.vmem [shape: f32[4,1,8], index: 1, kind: input, shape index: {}]
  %s2 = inlined_call_operand.vmem [shape: f32[1,32], index: 2, kind: input, shape index: {}]
  %s3 = inlined_call_operand.vmem [shape: f32[1,32], index: 3, kind: input, shape index: {}]
  %s4 = inlined_call_operand.vmem [shape: bf16[2,12,32,8], index: 4, kind: input, shape index: {}]
  %s5 = inlined_call_operand.vmem [shape: f32[2,12,1,8], index: 5, kind: input, shape index: {}]
  %s6 = inlined_call_operand.vmem [shape: bf16[2,4,8,32], index: 6, kind: input, shape index: {}]
  %s7 = inlined_call_operand.vmem [shape: f32[2,1,32], index: 7, kind: input, shape index: {}]
  %s8 = inlined_call_operand.vmem [shape: f32[2,1,32], index: 8, kind: input, shape index: {}]
  %s9 = inlined_call_operand.vmem [shape: f32[2,1,32], index: 9, kind: input, shape index: {}]
  %s10 = inlined_call_operand.vmem [shape: bf16[2,32,64], index: 10, kind: input, shape index: {}]
  %s11 = inlined_call_operand.vmem [shape: f32[2,1,64], index: 11, kind: input, shape index: {}]
  %s12 = inlined_call_operand.vmem [shape: bf16[2,64,32], index: 12, kind: input, shape index: {}]
  %s13 = inlined_call_operand.vmem [shape: f32[2,1,32], index: 13, kind: input, shape index: {}]
  %s14 = inlined_call_operand.vmem [shape: f32[2,1,32], index: 14, kind: input, shape index: {}]
  %s15 = inlined_call_operand.vmem [shape: f32[2,1,32], index: 15, kind: input, shape index: {}]
  %s16 = inlined_call_operand.vmem [shape: bf16[32,32], index: 16, kind: input, shape index: {}]
  %s17 = inlined_call_operand.vmem [shape: f32[1,32], index: 17, kind: input, shape index: {}]
  %s18 = inlined_call_operand.vmem [shape: f32[4,32], index: 18, kind: output, shape index: {}]
  %s19 = sld [smem:[#allocation0]]
  $region82: #{twin_bert_forward.1} parent=0
    _
  %s21 = ssub.s32 1, %s19
  %s22 = scalar_select 0, %s21, %s19
  // Predicated region
  $region2: #{twin_bert_forward.1} parent=0 // pred_check
    _
  $region3: #{twin_bert_forward.1} parent=0 // pred_check_branch
    %24 = sbr.rel (0) target = $region5
  $region4: #{twin_bert_forward.1} parent=0 // pred_region
    _
  $region5: #{twin_bert_forward.1} parent=0 // pred_fallthru
    _
  // Predicated region
  $region6: #{twin_bert_forward.1} parent=0 // pred_check
    _
  $region7: #{twin_bert_forward.1} parent=0 // pred_check_branch
    %26 = sbr.rel (0) target = $region9
  $region8: #{twin_bert_forward.1} parent=0 // pred_region
    _
  $region9: #{twin_bert_forward.1} parent=0 // pred_fallthru
    _
  // Predicated region
  $region10: #{twin_bert_forward.1} parent=0 // pred_check
    _
  $region11: #{twin_bert_forward.1} parent=0 // pred_check_branch
    %28 = sbr.rel (0) target = $region13
  $region12: #{twin_bert_forward.1} parent=0 // pred_region
    _
  $region13: #{twin_bert_forward.1} parent=0 // pred_fallthru
    _
  // Predicated region
  $region14: #{twin_bert_forward.1} parent=0 // pred_check
    _
  $region15: #{twin_bert_forward.1} parent=0 // pred_check_branch
    %30 = sbr.rel (0) target = $region17
  $region16: #{twin_bert_forward.1} parent=0 // pred_region
    _
  $region17: #{twin_bert_forward.1} parent=0 // pred_fallthru
    _
  // Predicated region
  $region18: #{twin_bert_forward.1} parent=0 // pred_check
    _
  $region19: #{twin_bert_forward.1} parent=0 // pred_check_branch
    %32 = sbr.rel (0) target = $region21
  $region20: #{twin_bert_forward.1} parent=0 // pred_region
    _
  $region21: #{twin_bert_forward.1} parent=0 // pred_fallthru
    _
  // Predicated region
  $region22: #{twin_bert_forward.1} parent=0 // pred_check
    _
  $region23: #{twin_bert_forward.1} parent=0 // pred_check_branch
    %34 = sbr.rel (0) target = $region25
  $region24: #{twin_bert_forward.1} parent=0 // pred_region
    _
  $region25: #{twin_bert_forward.1} parent=0 // pred_fallthru
    _
  // Predicated region
  $region26: #{twin_bert_forward.1} parent=0 // pred_check
    _
  $region27: #{twin_bert_forward.1} parent=0 // pred_check_branch
    %36 = sbr.rel (0) target = $region29
  $region28: #{twin_bert_forward.1} parent=0 // pred_region
    _
  $region29: #{twin_bert_forward.1} parent=0 // pred_fallthru
    _
  // Predicated region
  $region30: #{twin_bert_forward.1} parent=0 // pred_check
    _
  $region31: #{twin_bert_forward.1} parent=0 // pred_check_branch
    %38 = sbr.rel (0) target = $region33
  $region32: #{twin_bert_forward.1} parent=0 // pred_region
    _
  $region33: #{twin_bert_forward.1} parent=0 // pred_fallthru
    _
  // Predicated region
  $region34: #{twin_bert_forward.1} parent=0 // pred_check
    _
  $region35: #{twin_bert_forward.1} parent=0 // pred_check_branch
    %40 = sbr.rel (0) target = $region37
  $region36: #{twin_bert_forward.1} parent=0 // pred_region
    _
  $region37: #{twin_bert_forward.1} parent=0 // pred_fallthru
    _
  // Predicated region
  $region38: #{twin_bert_forward.1} parent=0 // pred_check
    _
  $region39: #{twin_bert_forward.1} parent=0 // pred_check_branch
    %42 = sbr.rel (0) target = $region41
  $region40: #{twin_bert_forward.1} parent=0 // pred_region
    _
  $region41: #{twin_bert_forward.1} parent=0 // pred_fallthru
    _
  // Predicated region
  $region42: #{twin_bert_forward.1} parent=0 // pred_check
    _
  $region43: #{twin_bert_forward.1} parent=0 // pred_check_branch
    %44 = sbr.rel (0) target = $region45
  $region44: #{twin_bert_forward.1} parent=0 // pred_region
    _
  $region45: #{twin_bert_forward.1} parent=0 // pred_fallthru
    _
  // Predicated region
  $region46: #{twin_bert_forward.1} parent=0 // pred_check
    _
  $region47: #{twin_bert_forward.1} parent=0 // pred_check_branch
    %46 = sbr.rel (0) target = $region49
  $region48: #{twin_bert_forward.1} parent=0 // pred_region
    _
  $region49: #{twin_bert_forward.1} parent=0 // pred_fallthru
    _
  // Predicated region
  $region50: #{twin_bert_forward.1} parent=0 // pred_check
    _
  $region51: #{twin_bert_forward.1} parent=0 // pred_check_branch
    %48 = sbr.rel (0) target = $region53
  $region52: #{twin_bert_forward.1} parent=0 // pred_region
    _
  $region53: #{twin_bert_forward.1} parent=0 // pred_fallthru
    _
  // Predicated region
  $region54: #{twin_bert_forward.1} parent=0 // pred_check
    _
  $region55: #{twin_bert_forward.1} parent=0 // pred_check_branch
    %50 = sbr.rel (0) target = $region57
  $region56: #{twin_bert_forward.1} parent=0 // pred_region
    _
  $region57: #{twin_bert_forward.1} parent=0 // pred_fallthru
    _
  // Predicated region
  $region58: #{twin_bert_forward.1} parent=0 // pred_check
    _
  $region59: #{twin_bert_forward.1} parent=0 // pred_check_branch
    %52 = sbr.rel (0) target = $region61
  $region60: #{twin_bert_forward.1} parent=0 // pred_region
    _
  $region61: #{twin_bert_forward.1} parent=0 // pred_fallthru
    _
  // Predicated region
  $region62: #{twin_bert_forward.1} parent=0 // pred_check
    _
  $region63: #{twin_bert_forward.1} parent=0 // pred_check_branch
    %54 = sbr.rel (0) target = $region65
  $region64: #{twin_bert_forward.1} parent=0 // pred_region
    _
  $region65: #{twin_bert_forward.1} parent=0 // pred_fallthru
    _
  // Predicated region
  $region66: #{twin_bert_forward.1} parent=0 // pred_check
    _
  $region67: #{twin_bert_forward.1} parent=0 // pred_check_branch
    %56 = sbr.rel (0) target = $region69
  $region68: #{twin_bert_forward.1} parent=0 // pred_region
    _
  $region69: #{twin_bert_forward.1} parent=0 // pred_fallthru
    _
  // Predicated region
  $region70: #{twin_bert_forward.1} parent=0 // pred_check
    _
  $region71: #{twin_bert_forward.1} parent=0 // pred_check_branch
    %58 = sbr.rel (0) target = $region73
  $region72: #{twin_bert_forward.1} parent=0 // pred_region
    _
  $region73: #{twin_bert_forward.1} parent=0 // pred_fallthru
    _
  %v60 = vld [vmem:[%s0] sm:$0xff]
  %v61 = vld [vmem:[%s0 + $0x8] sm:$0xff]
  %v62 = vld [vmem:[%s0 + $0x10] sm:$0xff]
  %v63 = vld [vmem:[%s0 + $0x18] sm:$0xff]
  %v64 = vld [vmem:[%s1] sm:$0x1]
  %v65 = vld [vmem:[%s1 + $0x1] sm:$0x1]
  %v66 = vld [vmem:[%s1 + $0x2] sm:$0x1]
  %v67 = vld [vmem:[%s1 + $0x3] sm:$0x1]
  %v68 = vld [vmem:[%s2] sm:$0x1]
  %v69 = vld [vmem:[%s3] sm:$0x1]
  %vm70 = vcmask 261120
  %v71 = vsel %vm70, %v60, 0.0
  %72 = vadd.xlane.f32.xlu0 %v71
  %v73 = vpop.xlane.xlu0 %72
  %v74 = vsel %vm70, %v61, 0.0
  %75 = vadd.xlane.f32.xlu0 %v74
  %v76 = vpop.xlane.xlu0 %75
  %v77 = vsel %vm70, %v62, 0.0
  %78 = vadd.xlane.f32.xlu0 %v77
  %v79 = vpop.xlane.xlu0 %78
  %v80 = vsel %vm70, %v63, 0.0
  %81 = vadd.xlane.f32.xlu0 %v80
  %v82 = vpop.xlane.xlu0 %81
  %v83 = vrcp.pop 32.0
  %v84 = vmul.f32 %v73, %v83
  %v85 = vmul.f32 %v76, %v83
  %v86 = vmul.f32 %v79, %v83
  %v87 = vmul.f32 %v82, %v83
  %v88 = vsub.f32 %v60, %v84
  %v89 = vsub.f32 %v61, %v85
  %v90 = vsub.f32 %v62, %v86
  %v91 = vsub.f32 %v63, %v87
  %v92 = vmul.f32 %v88, %v88
  %v93 = vmul.f32 %v89, %v89
  %v94 = vmul.f32 %v90, %v90
  %v95 = vmul.f32 %v91, %v91
  %v96 = vsel %vm70, %v92, 0.0
  %97 = vadd.xlane.f32.xlu0 %v96
  %v98 = vpop.xlane.xlu0 %97
  %v99 = vsel %vm70, %v93, 0.0
  %100 = vadd.xlane.f32.xlu0 %v99
  %v101 = vpop.xlane.xlu0 %100
  %v102 = vsel %vm70, %v94, 0.0
  %103 = vadd.xlane.f32.xlu0 %v102
  %v104 = vpop.xlane.xlu0 %103
  %v105 = vsel %vm70, %v95, 0.0
  %106 = vadd.xlane.f32.xlu0 %v105
  %v107 = vpop.xlane.xlu0 %106
  %v108 = vmul.f32 %v98, %v83
  %v109 = vmul.f32 %v101, %v83
  %v110 = vmul.f32 %v104, %v83
  %v111 = vmul.f32 %v107, %v83
  %v112 = vadd.f32 %v108, 1e-12
  %v113 = vadd.f32 %v109, 1e-12
  %v114 = vadd.f32 %v110, 1e-12
  %v115 = vadd.f32 %v111, 1e-12
  %v116 = vrsqrt.pop %v112
  %v117 = vrsqrt.pop %v113
  %v118 = vrsqrt.pop %v114
  %v119 = vrsqrt.pop %v115
  %v120 = vmul.f32 %v88, %v116
  %v121 = vmul.f32 %v89, %v117
  %v122 = vmul.f32 %v90, %v118
  %v123 = vmul.f32 %v91, %v119
  %v125 = vlaneseq
  %v126 = vshrl.u32 %v125, 7
  %v127 = vsub.s32 0, %v126
  %v128 = vrot.slane %v68, %v127
  %v130 = vmul.f32 %v120, %v128
  %v131 = vmul.f32 %v121, %v128
  %v132 = vmul.f32 %v122, %v128
  %v133 = vmul.f32 %v123, %v128
  %v135 = vlaneseq
  %v136 = vshrl.u32 %v135, 7
  %v137 = vsub.s32 0, %v136
  %v138 = vrot.slane %v69, %v137
  %v140 = vadd.f32 %v130, %v138
  %v141 = vadd.f32 %v131, %v138
  %v142 = vadd.f32 %v132, %v138
  %v143 = vadd.f32 %v133, %v138
  %v144 = vpack.c.bf16 %v141, %v140
  %v145 = vpack.c.bf16 %v143, %v142
  %v146 = vld [vmem:[%s4] sm:$0xf]
  %v147 = vld [vmem:[%s4 + $0x4] sm:$0xf]
  %v148 = vld [vmem:[%s4 + $0x8] sm:$0xf]
  %v149 = vld [vmem:[%s4 + $0xc] sm:$0xf]
  %v150 = vld [vmem:[%s5] sm:$0x1]
  %v152 = vlaneseq
  %v153 = vshrl.u32 %v152, 7
  %v154 = vsub.s32 0, %v153
  %v155 = vrot.slane %v150, %v154
  %v161 = vunpack.c.l.b16 %v146
  %v162 = vunpack.c.l.b16 %v147
  %v163 = vunpack.c.l.b16 %v148
  %v164 = vunpack.c.l.b16 %v149
  %v165 = vpack.c.b16 %v162, %v161
  %v166 = vpack.c.b16 %v164, %v163
  %v170 = vsel %vm70, %v144, 0
  %v173 = vsel %vm70, %v145, 0
  %175 = vmatprep.subr.bf16.mxu0 0
  %176 = vmatpush1.bf16.msra.mxu0 0
  %177 = vmatprep.subr.bf16.mxu0 0
  %178 = vmatpush1.bf16.msra.mxu0 0
  %179 = vmatprep.subr.bf16.mxu0 0
  %180 = vmatpush1.bf16.msra.mxu0 0
  %181 = vmatprep.subr.bf16.mxu0 0
  %182 = vmatpush1.bf16.msra.mxu0 0
  %183 = vmatprep.subr.bf16.mxu0 0
  %184 = vmatpush1.bf16.msra.mxu0 0
  %185 = vmatprep.subr.bf16.mxu0 0
  %186 = vmatpush1.bf16.msra.mxu0 0
  %187 = vmatprep.subr.bf16.mxu0 0
  %188 = vmatpush1.bf16.msra.mxu0 %v166
  %189 = vmatprep.subr.bf16.mxu0 0
  %190 = vmatpush1.bf16.msra.mxu0 %v165
  %191 = vmatprep.subr.bf16.mxu0 0
  %192 = vmatpush2.bf16.msra.mxu0 0
  %193 = vmatprep.subr.bf16.mxu0 0
  %194 = vmatpush2.bf16.msra.mxu0 0
  %195 = vmatprep.subr.bf16.mxu0 0
  %196 = vmatpush2.bf16.msra.mxu0 0
  %197 = vmatprep.subr.bf16.mxu0 0
  %198 = vmatpush2.bf16.msra.mxu0 0
  %199 = vmatprep.subr.bf16.mxu0 0
  %200 = vmatpush2.bf16.msra.mxu0 0
  %201 = vmatprep.subr.bf16.mxu0 0
  %202 = vmatpush2.bf16.msra.mxu0 0
  %203 = vmatprep.subr.bf16.mxu0 0
  %204 = vmatpush2.bf16.msra.mxu0 0
  %205 = vmatprep.subr.bf16.mxu0 0
  %206 = vmatpush2.bf16.msra.mxu0 0
  %207 = vmatprep.mubr.bf16.mxu0 0
  %208 = vmatmul.mubr.bf16.gmra.mxu0 %v170
  %v209 = vpop.f32.mrf.mxu0
  %v210 = vadd.f32 %v155, %v209
  %v211 = vpop.f32.mrf.mxu0
  %v212 = vpop.f32.mrf.mxu0
  %v213 = vadd.f32 %v155, %v212
  %v214 = vpop.f32.mrf.mxu0
  %215 = vmatprep.mubr.bf16.mxu0 0
  %216 = vmatmul.mubr.bf16.gmra.mxu0 %v173
  %v217 = vpop.f32.mrf.mxu0
  %v218 = vadd.f32 %v155, %v217
  %v219 = vpop.f32.mrf.mxu0
  %v220 = vpop.f32.mrf.mxu0
  %v221 = vadd.f32 %v155, %v220
  %v222 = vpop.f32.mrf.mxu0
  %223 = vdwg.mxu0
  %s224 = scalar_lea.vmem %s4, 64
  %v225 = vld [vmem:[%s224] sm:$0xf]
  %v226 = vld [vmem:[%s224 + $0x4] sm:$0xf]
  %v227 = vld [vmem:[%s224 + $0x8] sm:$0xf]
  %v228 = vld [vmem:[%s224 + $0xc] sm:$0xf]
  %s229 = scalar_lea.vmem %s5, 4
  %v230 = vld [vmem:[%s229] sm:$0x1]
  %v232 = vlaneseq
  %v233 = vshrl.u32 %v232, 7
  %v234 = vsub.s32 0, %v233
  %v235 = vrot.slane %v230, %v234
  %v241 = vunpack.c.l.b16 %v225
  %v242 = vunpack.c.l.b16 %v226
  %v243 = vunpack.c.l.b16 %v227
  %v244 = vunpack.c.l.b16 %v228
  %v245 = vpack.c.b16 %v242, %v241
  %v246 = vpack.c.b16 %v244, %v243
  %249 = vmatprep.subr.bf16.mxu0 0
  %250 = vmatpush1.bf16.msra.mxu0 0
  %251 = vmatprep.subr.bf16.mxu0 0
  %252 = vmatpush1.bf16.msra.mxu0 0
  %253 = vmatprep.subr.bf16.mxu0 0
  %254 = vmatpush1.bf16.msra.mxu0 0
  %255 = vmatprep.subr.bf16.mxu0 0
  %256 = vmatpush1.bf16.msra.mxu0 0
  %257 = vmatprep.subr.bf16.mxu0 0
  %258 = vmatpush1.bf16.msra.mxu0 0
  %259 = vmatprep.subr.bf16.mxu0 0
  %260 = vmatpush1.bf16.msra.mxu0 0
  %261 = vmatprep.subr.bf16.mxu0 0
  %262 = vmatpush1.bf16.msra.mxu0 %v246
  %263 = vmatprep.subr.bf16.mxu0 0
  %264 = vmatpush1.bf16.msra.mxu0 %v245
  %265 = vmatprep.subr.bf16.mxu0 0
  %266 = vmatpush2.bf16.msra.mxu0 0
  %267 = vmatprep.subr.bf16.mxu0 0
  %268 = vmatpush2.bf16.msra.mxu0 0
  %269 = vmatprep.subr.bf16.mxu0 0
  %270 = vmatpush2.bf16.msra.mxu0 0
  %271 = vmatprep.subr.bf16.mxu0 0
  %272 = vmatpush2.bf16.msra.mxu0 0
  %273 = vmatprep.subr.bf16.mxu0 0
  %274 = vmatpush2.bf16.msra.mxu0 0
  %275 = vmatprep.subr.bf16.mxu0 0
  %276 = vmatpush2.bf16.msra.mxu0 0
  %277 = vmatprep.subr.bf16.mxu0 0
  %278 = vmatpush2.bf16.msra.mxu0 0
  %279 = vmatprep.subr.bf16.mxu0 0
  %280 = vmatpush2.bf16.msra.mxu0 0
  %281 = vmatprep.mubr.bf16.mxu0 0
  %282 = vmatmul.mubr.bf16.gmra.mxu0 %v170
  %v283 = vpop.f32.mrf.mxu0
  %v284 = vadd.f32 %v235, %v283
  %v285 = vpop.f32.mrf.mxu0
  %v286 = vpop.f32.mrf.mxu0
  %v287 = vadd.f32 %v235, %v286
  %v288 = vpop.f32.mrf.mxu0
  %289 = vmatprep.mubr.bf16.mxu0 0
  %290 = vmatmul.mubr.bf16.gmra.mxu0 %v173
  %v291 = vpop.f32.mrf.mxu0
  %v292 = vadd.f32 %v235, %v291
  %v293 = vpop.f32.mrf.mxu0
  %v294 = vpop.f32.mrf.mxu0
  %v295 = vadd.f32 %v235, %v294
  %v296 = vpop.f32.mrf.mxu0
  %297 = vdwg.mxu0
  %s298 = scalar_lea.vmem %s4, 128
  %v299 = vld [vmem:[%s298] sm:$0xf]
  %v300 = vld [vmem:[%s298 + $0x4] sm:$0xf]
  %v301 = vld [vmem:[%s298 + $0x8] sm:$0xf]
  %v302 = vld [vmem:[%s298 + $0xc] sm:$0xf]
  %s303 = scalar_lea.vmem %s5, 8
  %v304 = vld [vmem:[%s303] sm:$0x1]
  %v306 = vlaneseq
  %v307 = vshrl.u32 %v306, 7
  %v308 = vsub.s32 0, %v307
  %v309 = vrot.slane %v304, %v308
  %v315 = vunpack.c.l.b16 %v299
  %v316 = vunpack.c.l.b16 %v300
  %v317 = vunpack.c.l.b16 %v301
  %v318 = vunpack.c.l.b16 %v302
  %v319 = vpack.c.b16 %v316, %v315
  %v320 = vpack.c.b16 %v318, %v317
  %323 = vmatprep.subr.bf16.mxu0 0
  %324 = vmatpush1.bf16.msra.mxu0 0
  %325 = vmatprep.subr.bf16.mxu0 0
  %326 = vmatpush1.bf16.msra.mxu0 0
  %327 = vmatprep.subr.bf16.mxu0 0
  %328 = vmatpush1.bf16.msra.mxu0 0
  %329 = vmatprep.subr.bf16.mxu0 0
  %330 = vmatpush1.bf16.msra.mxu0 0
  %331 = vmatprep.subr.bf16.mxu0 0
  %332 = vmatpush1.bf16.msra.mxu0 0
  %333 = vmatprep.subr.bf16.mxu0 0
  %334 = vmatpush1.bf16.msra.mxu0 0
  %335 = vmatprep.subr.bf16.mxu0 0
  %336 = vmatpush1.bf16.msra.mxu0 %v320
  %337 = vmatprep.subr.bf16.mxu0 0
  %338 = vmatpush1.bf16.msra.mxu0 %v319
  %339 = vmatprep.subr.bf16.mxu0 0
  %340 = vmatpush2.bf16.msra.mxu0 0
  %341 = vmatprep.subr.bf16.mxu0 0
  %342 = vmatpush2.bf16.msra.mxu0 0
  %343 = vmatprep.subr.bf16.mxu0 0
  %344 = vmatpush2.bf16.msra.mxu0 0
  %345 = vmatprep.subr.bf16.mxu0 0
  %346 = vmatpush2.bf16.msra.mxu0 0
  %347 = vmatprep.subr.bf16.mxu0 0
  %348 = vmatpush2.bf16.msra.mxu0 0
  %349 = vmatprep.subr.bf16.mxu0 0
  %350 = vmatpush2.bf16.msra.mxu0 0
  %351 = vmatprep.subr.bf16.mxu0 0
  %352 = vmatpush2.bf16.msra.mxu0 0
  %353 = vmatprep.subr.bf16.mxu0 0
  %354 = vmatpush2.bf16.msra.mxu0 0
  %355 = vmatprep.mubr.bf16.mxu0 0
  %356 = vmatmul.mubr.bf16.gmra.mxu0 %v170
  %v357 = vpop.f32.mrf.mxu0
  %v358 = vadd.f32 %v309, %v357
  %v359 = vpop.f32.mrf.mxu0
  %v360 = vpop.f32.mrf.mxu0
  %v361 = vadd.f32 %v309, %v360
  %v362 = vpop.f32.mrf.mxu0
  %363 = vmatprep.mubr.bf16.mxu0 0
  %364 = vmatmul.mubr.bf16.gmra.mxu0 %v173
  %v365 = vpop.f32.mrf.mxu0
  %v366 = vadd.f32 %v309, %v365
  %v367 = vpop.f32.mrf.mxu0
  %v368 = vpop.f32.mrf.mxu0
  %v369 = vadd.f32 %v309, %v368
  %v370 = vpop.f32.mrf.mxu0
  %371 = vdwg.mxu0
  %v372 = vpack.c.bf16 %v210, %v210
  %v373 = vpack.c.bf16 %v213, %v213
  %v374 = vpack.c.bf16 %v218, %v218
  %v375 = vpack.c.bf16 %v221, %v221
  %v376 = vpack.c.bf16 %v284, %v284
  %v377 = vpack.c.bf16 %v287, %v287
  %v378 = vpack.c.bf16 %v292, %v292
  %v379 = vpack.c.bf16 %v295, %v295
  %vm380 = vcmask 64512
  %v382 = vsel %vm380, %v372, 0
  %v385 = vsel %vm380, %v376, 0
  %387 = vmatprep.subr.bf16.mxu0 0
  %388 = vmatpush1.bf16.xpose.msra.mxu0 0
  %389 = vmatprep.subr.bf16.mxu0 0
  %390 = vmatpush1.bf16.xpose.msra.mxu0 0
  %391 = vmatprep.subr.bf16.mxu0 0
  %392 = vmatpush1.bf16.xpose.msra.mxu0 0
  %393 = vmatprep.subr.bf16.mxu0 0
  %394 = vmatpush1.bf16.xpose.msra.mxu0 0
  %395 = vmatprep.subr.bf16.mxu0 0
  %396 = vmatpush1.bf16.xpose.msra.mxu0 0
  %397 = vmatprep.subr.bf16.mxu0 0
  %398 = vmatpush1.bf16.xpose.msra.mxu0 0
  %399 = vmatprep.subr.bf16.mxu0 0
  %400 = vmatpush1.bf16.xpose.msra.mxu0 0
  %401 = vmatprep.subr.bf16.mxu0 0
  %402 = vmatpush1.bf16.xpose.msra.mxu0 %v385
  %403 = vmatprep.subr.bf16.mxu0 0
  %404 = vmatpush2.bf16.xpose.msra.mxu0 0
  %405 = vmatprep.subr.bf16.mxu0 0
  %406 = vmatpush2.bf16.xpose.msra.mxu0 0
  %407 = vmatprep.subr.bf16.mxu0 0
  %408 = vmatpush2.bf16.xpose.msra.mxu0 0
  %409 = vmatprep.subr.bf16.mxu0 0
  %410 = vmatpush2.bf16.xpose.msra.mxu0 0
  %411 = vmatprep.subr.bf16.mxu0 0
  %412 = vmatpush2.bf16.xpose.msra.mxu0 0
  %413 = vmatprep.subr.bf16.mxu0 0
  %414 = vmatpush2.bf16.xpose.msra.mxu0 0
  %415 = vmatprep.subr.bf16.mxu0 0
  %416 = vmatpush2.bf16.xpose.msra.mxu0 0
  %417 = vmatprep.subr.bf16.mxu0 0
  %418 = vmatpush2.bf16.xpose.msra.mxu0 0
  %419 = vmatprep.mubr.bf16.mxu0 0
  %420 = vmatmul.mubr.bf16.gmra.mxu0 %v382
  %v421 = vpop.f32.mrf.mxu0
  %v422 = vadd.f32 0.0, %v421
  %v423 = vpop.f32.mrf.mxu0
  %v424 = vpop.f32.mrf.mxu0
  %v425 = vpop.f32.mrf.mxu0
  %426 = vdwg.mxu0
  %v428 = vsel %vm380, %v373, 0
  %v431 = vsel %vm380, %v377, 0
  %433 = vmatprep.subr.bf16.mxu0 0
  %434 = vmatpush1.bf16.xpose.msra.mxu0 0
  %435 = vmatprep.subr.bf16.mxu0 0
  %436 = vmatpush1.bf16.xpose.msra.mxu0 0
  %437 = vmatprep.subr.bf16.mxu0 0
  %438 = vmatpush1.bf16.xpose.msra.mxu0 0
  %439 = vmatprep.subr.bf16.mxu0 0
  %440 = vmatpush1.bf16.xpose.msra.mxu0 0
  %441 = vmatprep.subr.bf16.mxu0 0
  %442 = vmatpush1.bf16.xpose.msra.mxu0 0
  %443 = vmatprep.subr.bf16.mxu0 0
  %444 = vmatpush1.bf16.xpose.msra.mxu0 0
  %445 = vmatprep.subr.bf16.mxu0 0
  %446 = vmatpush1.bf16.xpose.msra.mxu0 0
  %447 = vmatprep.subr.bf16.mxu0 0
  %448 = vmatpush1.bf16.xpose.msra.mxu0 %v431
  %449 = vmatprep.subr.bf16.mxu0 0
  %450 = vmatpush2.bf16.xpose.msra.mxu0 0
  %451 = vmatprep.subr.bf16.mxu0 0
  %452 = vmatpush2.bf16.xpose.msra.mxu0 0
  %453 = vmatprep.subr.bf16.mxu0 0
  %454 = vmatpush2.bf16.xpose.msra.mxu0 0
  %455 = vmatprep.subr.bf16.mxu0 0
  %456 = vmatpush2.bf16.xpose.msra.mxu0 0
  %457 = vmatprep.subr.bf16.mxu0 0
  %458 = vmatpush2.bf16.xpose.msra.mxu0 0
  %459 = vmatprep.subr.bf16.mxu0 0
  %460 = vmatpush2.bf16.xpose.msra.mxu0 0
  %461 = vmatprep.subr.bf16.mxu0 0
  %462 = vmatpush2.bf16.xpose.msra.mxu0 0
  %463 = vmatprep.subr.bf16.mxu0 0
  %464 = vmatpush2.bf16.xpose.msra.mxu0 0
  %465 = vmatprep.mubr.bf16.mxu0 0
  %466 = vmatmul.mubr.bf16.gmra.mxu0 %v428
  %v467 = vpop.f32.mrf.mxu0
  %v468 = vadd.f32 0.0, %v467
  %v469 = vpop.f32.mrf.mxu0
  %v470 = vpop.f32.mrf.mxu0
  %v471 = vpop.f32.mrf.mxu0
  %472 = vdwg.mxu0
  %v474 = vsel %vm380, %v374, 0
  %v477 = vsel %vm380, %v378, 0
  %479 = vmatprep.subr.bf16.mxu0 0
  %480 = vmatpush1.bf16.xpose.msra.mxu0 0
  %481 = vmatprep.subr.bf16.mxu0 0
  %482 = vmatpush1.bf16.xpose.msra.mxu0 0
  %483 = vmatprep.subr.bf16.mxu0 0
  %484 = vmatpush1.bf16.xpose.msra.mxu0 0
  %485 = vmatprep.subr.bf16.mxu0 0
  %486 = vmatpush1.bf16.xpose.msra.mxu0 0
  %487 = vmatprep.subr.bf16.mxu0 0
  %488 = vmatpush1.bf16.xpose.msra.mxu0 0
  %489 = vmatprep.subr.bf16.mxu0 0
  %490 = vmatpush1.bf16.xpose.msra.mxu0 0
  %491 = vmatprep.subr.bf16.mxu0 0
  %492 = vmatpush1.bf16.xpose.msra.mxu0 0
  %493 = vmatprep.subr.bf16.mxu0 0
  %494 = vmatpush1.bf16.xpose.msra.mxu0 %v477
  %495 = vmatprep.subr.bf16.mxu0 0
  %496 = vmatpush2.bf16.xpose.msra.mxu0 0
  %497 = vmatprep.subr.bf16.mxu0 0
  %498 = vmatpush2.bf16.xpose.msra.mxu0 0
  %499 = vmatprep.subr.bf16.mxu0 0
  %500 = vmatpush2.bf16.xpose.msra.mxu0 0
  %501 = vmatprep.subr.bf16.mxu0 0
  %502 = vmatpush2.bf16.xpose.msra.mxu0 0
  %503 = vmatprep.subr.bf16.mxu0 0
  %504 = vmatpush2.bf16.xpose.msra.mxu0 0
  %505 = vmatprep.subr.bf16.mxu0 0
  %506 = vmatpush2.bf16.xpose.msra.mxu0 0
  %507 = vmatprep.subr.bf16.mxu0 0
  %508 = vmatpush2.bf16.xpose.msra.mxu0 0
  %509 = vmatprep.subr.bf16.mxu0 0
  %510 = vmatpush2.bf16.xpose.msra.mxu0 0
  %511 = vmatprep.mubr.bf16.mxu0 0
  %512 = vmatmul.mubr.bf16.gmra.mxu0 %v474
  %v513 = vpop.f32.mrf.mxu0
  %v514 = vadd.f32 0.0, %v513
  %v515 = vpop.f32.mrf.mxu0
  %v516 = vpop.f32.mrf.mxu0
  %v517 = vpop.f32.mrf.mxu0
  %518 = vdwg.mxu0
  %v520 = vsel %vm380, %v375, 0
  %v523 = vsel %vm380, %v379, 0
  %525 = vmatprep.subr.bf16.mxu0 0
  %526 = vmatpush1.bf16.xpose.msra.mxu0 0
  %527 = vmatprep.subr.bf16.mxu0 0
  %528 = vmatpush1.bf16.xpose.msra.mxu0 0
  %529 = vmatprep.subr.bf16.mxu0 0
  %530 = vmatpush1.bf16.xpose.msra.mxu0 0
  %531 = vmatprep.subr.bf16.mxu0 0
  %532 = vmatpush1.bf16.xpose.msra.mxu0 0
  %533 = vmatprep.subr.bf16.mxu0 0
  %534 = vmatpush1.bf16.xpose.msra.mxu0 0
  %535 = vmatprep.subr.bf16.mxu0 0
  %536 = vmatpush1.bf16.xpose.msra.mxu0 0
  %537 = vmatprep.subr.bf16.mxu0 0
  %538 = vmatpush1.bf16.xpose.msra.mxu0 0
  %539 = vmatprep.subr.bf16.mxu0 0
  %540 = vmatpush1.bf16.xpose.msra.mxu0 %v523
  %541 = vmatprep.subr.bf16.mxu0 0
  %542 = vmatpush2.bf16.xpose.msra.mxu0 0
  %543 = vmatprep.subr.bf16.mxu0 0
  %544 = vmatpush2.bf16.xpose.msra.mxu0 0
  %545 = vmatprep.subr.bf16.mxu0 0
  %546 = vmatpush2.bf16.xpose.msra.mxu0 0
  %547 = vmatprep.subr.bf16.mxu0 0
  %548 = vmatpush2.bf16.xpose.msra.mxu0 0
  %549 = vmatprep.subr.bf16.mxu0 0
  %550 = vmatpush2.bf16.xpose.msra.mxu0 0
  %551 = vmatprep.subr.bf16.mxu0 0
  %552 = vmatpush2.bf16.xpose.msra.mxu0 0
  %553 = vmatprep.subr.bf16.mxu0 0
  %554 = vmatpush2.bf16.xpose.msra.mxu0 0
  %555 = vmatprep.subr.bf16.mxu0 0
  %556 = vmatpush2.bf16.xpose.msra.mxu0 0
  %557 = vmatprep.mubr.bf16.mxu0 0
  %558 = vmatmul.mubr.bf16.gmra.mxu0 %v520
  %v559 = vpop.f32.mrf.mxu0
  %v560 = vadd.f32 0.0, %v559
  %v561 = vpop.f32.mrf.mxu0
  %v562 = vpop.f32.mrf.mxu0
  %v563 = vpop.f32.mrf.mxu0
  %564 = vdwg.mxu0
  %v565 = vmul.f32 %v422, 0.35355338
  %v566 = vmul.f32 %v468, 0.35355338
  %v567 = vmul.f32 %v514, 0.35355338
  %v568 = vmul.f32 %v560, 0.35355338
  %v573 = vlaneseq
  %v574 = vshrl.u32 %v573, 7
  %v575 = vsub.s32 0, %v574
  %v576 = vrot.slane %v64, %v575
  %v577 = vlaneseq
  %v578 = vshrl.u32 %v577, 7
  %v579 = vsub.s32 0, %v578
  %v580 = vrot.slane %v65, %v579
  %v581 = vlaneseq
  %v582 = vshrl.u32 %v581, 7
  %v583 = vsub.s32 0, %v582
  %v584 = vrot.slane %v66, %v583
  %v585 = vlaneseq
  %v586 = vshrl.u32 %v585, 7
  %v587 = vsub.s32 0, %v586
  %v588 = vrot.slane %v67, %v587
  %v593 = vadd.f32 %v565, %v576
  %v594 = vadd.f32 %v566, %v580
  %v595 = vadd.f32 %v567, %v584
  %v596 = vadd.f32 %v568, %v588
  %v597 = vsel %vm380, %v593, -inf
  %598 = vmax.xlane.f32.xlu0 %v597
  %v599 = vpop.xlane.xlu0 %598
  %v600 = vsel %vm380, %v594, -inf
  %601 = vmax.xlane.f32.xlu0 %v600
  %v602 = vpop.xlane.xlu0 %601
  %v603 = vsel %vm380, %v595, -inf
  %604 = vmax.xlane.f32.xlu0 %v603
  %v605 = vpop.xlane.xlu0 %604
  %v606 = vsel %vm380, %v596, -inf
  %607 = vmax.xlane.f32.xlu0 %v606
  %v608 = vpop.xlane.xlu0 %607
  %v609 = vsub.f32 %v593, %v599
  %v610 = vsub.f32 %v594, %v602
  %v611 = vsub.f32 %v595, %v605
  %v612 = vsub.f32 %v596, %v608
  %v613 = vmul.f32 %v609, 1.442695
  %v614 = vpow.pop %v613
  %v615 = vmul.f32 %v610, 1.442695
  %v616 = vpow.pop %v615
  %v617 = vmul.f32 %v611, 1.442695
  %v618 = vpow.pop %v617
  %v619 = vmul.f32 %v612, 1.442695
  %v620 = vpow.pop %v619
  %v621 = vsel %vm380, %v614, 0.0
  %622 = vadd.xlane.f32.xlu0 %v621
  %v623 = vpop.xlane.xlu0 %622
  %v624 = vsel %vm380, %v616, 0.0
  %625 = vadd.xlane.f32.xlu0 %v624
  %v626 = vpop.xlane.xlu0 %625
  %v627 = vsel %vm380, %v618, 0.0
  %628 = vadd.xlane.f32.xlu0 %v627
  %v629 = vpop.xlane.xlu0 %628
  %v630 = vsel %vm380, %v620, 0.0
  %631 = vadd.xlane.f32.xlu0 %v630
  %v632 = vpop.xlane.xlu0 %631
  %v633 = vrcp.pop %v623
  %v634 = vrcp.pop %v626
  %v635 = vrcp.pop %v629
  %v636 = vrcp.pop %v632
  %v637 = vmul.f32 %v614, %v633
  %v638 = vmul.f32 %v616, %v634
  %v639 = vmul.f32 %v618, %v635
  %v640 = vmul.f32 %v620, %v636
  %v641 = vpack.c.bf16 %v637, %v637
  %v642 = vpack.c.bf16 %v638, %v638
  %v643 = vpack.c.bf16 %v639, %v639
  %v644 = vpack.c.bf16 %v640, %v640
  %v645 = vpack.c.bf16 %v358, %v358
  %v646 = vpack.c.bf16 %v361, %v361
  %v647 = vpack.c.bf16 %v366, %v366
  %v648 = vpack.c.bf16 %v369, %v369
  %v650 = vsel %vm380, %v641, 0
  %vm652 = vcmask 1043456
  %v654 = vsel %vm652, %v645, 0
  %656 = vmatprep.subr.bf16.mxu0 0
  %657 = vmatpush1.bf16.msra.mxu0 0
  %658 = vmatprep.subr.bf16.mxu0 0
  %659 = vmatpush1.bf16.msra.mxu0 0
  %660 = vmatprep.subr.bf16.mxu0 0
  %661 = vmatpush1.bf16.msra.mxu0 0
  %662 = vmatprep.subr.bf16.mxu0 0
  %663 = vmatpush1.bf16.msra.mxu0 0
  %664 = vmatprep.subr.bf16.mxu0 0
  %665 = vmatpush1.bf16.msra.mxu0 0
  %666 = vmatprep.subr.bf16.mxu0 0
  %667 = vmatpush1.bf16.msra.mxu0 0
  %668 = vmatprep.subr.bf16.mxu0 0
  %669 = vmatpush1.bf16.msra.mxu0 0
  %670 = vmatprep.subr.bf16.mxu0 0
  %671 = vmatpush1.bf16.msra.mxu0 %v654
  %672 = vmatprep.subr.bf16.mxu0 0
  %673 = vmatpush2.bf16.msra.mxu0 0
  %674 = vmatprep.subr.bf16.mxu0 0
  %675 = vmatpush2.bf16.msra.mxu0 0
  %676 = vmatprep.subr.bf16.mxu0 0
  %677 = vmatpush2.bf16.msra.mxu0 0
  %678 = vmatprep.subr.bf16.mxu0 0
  %679 = vmatpush2.bf16.msra.mxu0 0
  %680 = vmatprep.subr.bf16.mxu0 0
  %681 = vmatpush2.bf16.msra.mxu0 0
  %682 = vmatprep.subr.bf16.mxu0 0
  %683 = vmatpush2.bf16.msra.mxu0 0
  %684 = vmatprep.subr.bf16.mxu0 0
  %685 = vmatpush2.bf16.msra.mxu0 0
  %686 = vmatprep.subr.bf16.mxu0 0
  %687 = vmatpush2.bf16.msra.mxu0 0
  %688 = vmatprep.mubr.bf16.mxu0 0
  %689 = vmatmul.mubr.bf16.gmra.mxu0 %v650
  %v690 = vpop.f32.mrf.mxu0
  %v691 = vadd.f32 0.0, %v690
  %v692 = vpop.f32.mrf.mxu0
  %v693 = vpop.f32.mrf.mxu0
  %v694 = vpop.f32.mrf.mxu0
  %695 = vdwg.mxu0
  %v697 = vsel %vm380, %v642, 0
  %v700 = vsel %vm652, %v646, 0
  %702 = vmatprep.subr.bf16.mxu0 0
  %703 = vmatpush1.bf16.msra.mxu0 0
  %704 = vmatprep.subr.bf16.mxu0 0
  %705 = vmatpush1.bf16.msra.mxu0 0
  %706 = vmatprep.subr.bf16.mxu0 0
  %707 = vmatpush1.bf16.msra.mxu0 0
  %708 = vmatprep.subr.bf16.mxu0 0
  %709 = vmatpush1.bf16.msra.mxu0 0
  %710 = vmatprep.subr.bf16.mxu0 0
  %711 = vmatpush1.bf16.msra.mxu0 0
  %712 = vmatprep.subr.bf16.mxu0 0
  %713 = vmatpush1.bf16.msra.mxu0 0
  %714 = vmatprep.subr.bf16.mxu0 0
  %715 = vmatpush1.bf16.msra.mxu0 0
  %716 = vmatprep.subr.bf16.mxu0 0
  %717 = vmatpush1.bf16.msra.mxu0 %v700
  %718 = vmatprep.subr.bf16.mxu0 0
  %719 = vmatpush2.bf16.msra.mxu0 0
  %720 = vmatprep.subr.bf16.mxu0 0
  %721 = vmatpush2.bf16.msra.mxu0 0
  %722 = vmatprep.subr.bf16.mxu0 0
  %723 = vmatpush2.bf16.msra.mxu0 0
  %724 = vmatprep.subr.bf16.mxu0 0
  %725 = vmatpush2.bf16.msra.mxu0 0
  %726 = vmatprep.subr.bf16.mxu0 0
  %727 = vmatpush2.bf16.msra.mxu0 0
  %728 = vmatprep.subr.bf16.mxu0 0
  %729 = vmatpush2.bf16.msra.mxu0 0
  %730 = vmatprep.subr.bf16.mxu0 0
  %731 = vmatpush2.bf16.msra.mxu0 0
  %732 = vmatprep.subr.bf16.mxu0 0
  %733 = vmatpush2.bf16.msra.mxu0 0
  %734 = vmatprep.mubr.bf16.mxu0 0
  %735 = vmatmul.mubr.bf16.gmra.mxu0 %v697
  %v736 = vpop.f32.mrf.mxu0
  %v737 = vadd.f32 0.0, %v736
  %v738 = vpop.f32.mrf.mxu0
  %v739 = vpop.f32.mrf.mxu0
  %v740 = vpop.f32.mrf.mxu0
  %741 = vdwg.mxu0
  %v743 = vsel %vm380, %v643, 0
  %v746 = vsel %vm652, %v647, 0
  %748 = vmatprep.subr.bf16.mxu0 0
  %749 = vmatpush1.bf16.msra.mxu0 0
  %750 = vmatprep.subr.bf16.mxu0 0
  %751 = vmatpush1.bf16.msra.mxu0 0
  %752 = vmatprep.subr.bf16.mxu0 0
  %753 = vmatpush1.bf16.msra.mxu0 0
  %754 = vmatprep.subr.bf16.mxu0 0
  %755 = vmatpush1.bf16.msra.mxu0 0
  %756 = vmatprep.subr.bf16.mxu0 0
  %757 = vmatpush1.bf16.msra.mxu0 0
  %758 = vmatprep.subr.bf16.mxu0 0
  %759 = vmatpush1.bf16.msra.mxu0 0
  %760 = vmatprep.subr.bf16.mxu0 0
  %761 = vmatpush1.bf16.msra.mxu0 0
  %762 = vmatprep.subr.bf16.mxu0 0
  %763 = vmatpush1.bf16.msra.mxu0 %v746
  %764 = vmatprep.subr.bf16.mxu0 0
  %765 = vmatpush2.bf16.msra.mxu0 0
  %766 = vmatprep.subr.bf16.mxu0 0
  %767 = vmatpush2.bf16.msra.mxu0 0
  %768 = vmatprep.subr.bf16.mxu0 0
  %769 = vmatpush2.bf16.msra.mxu0 0
  %770 = vmatprep.subr.bf16.mxu0 0
  %771 = vmatpush2.bf16.msra.mxu0 0
  %772 = vmatprep.subr.bf16.mxu0 0
  %773 = vmatpush2.bf16.msra.mxu0 0
  %774 = vmatprep.subr.bf16.mxu0 0
  %775 = vmatpush2.bf16.msra.mxu0 0
  %776 = vmatprep.subr.bf16.mxu0 0
  %777 = vmatpush2.bf16.msra.mxu0 0
  %778 = vmatprep.subr.bf16.mxu0 0
  %779 = vmatpush2.bf16.msra.mxu0 0
  %780 = vmatprep.mubr.bf16.mxu0 0
  %781 = vmatmul.mubr.bf16.gmra.mxu0 %v743
  %v782 = vpop.f32.mrf.mxu0
  %v783 = vadd.f32 0.0, %v782
  %v784 = vpop.f32.mrf.mxu0
  %v785 = vpop.f32.mrf.mxu0
  %v786 = vpop.f32.mrf.mxu0
  %787 = vdwg.mxu0
  %v789 = vsel %vm380, %v644, 0
  %v792 = vsel %vm652, %v648, 0
  %794 = vmatprep.subr.bf16.mxu0 0
  %795 = vmatpush1.bf16.msra.mxu0 0
  %796 = vmatprep.subr.bf16.mxu0 0
  %797 = vmatpush1.bf16.msra.mxu0 0
  %798 = vmatprep.subr.bf16.mxu0 0
  %799 = vmatpush1.bf16.msra.mxu0 0
  %800 = vmatprep.subr.bf16.mxu0 0
  %801 = vmatpush1.bf16.msra.mxu0 0
  %802 = vmatprep.subr.bf16.mxu0 0
  %803 = vmatpush1.bf16.msra.mxu0 0
  %804 = vmatprep.subr.bf16.mxu0 0
  %805 = vmatpush1.bf16.msra.mxu0 0
  %806 = vmatprep.subr.bf16.mxu0 0
  %807 = vmatpush1.bf16.msra.mxu0 0
  %808 = vmatprep.subr.bf16.mxu0 0
  %809 = vmatpush1.bf16.msra.mxu0 %v792
  %810 = vmatprep.subr.bf16.mxu0 0
  %811 = vmatpush2.bf16.msra.mxu0 0
  %812 = vmatprep.subr.bf16.mxu0 0
  %813 = vmatpush2.bf16.msra.mxu0 0
  %814 = vmatprep.subr.bf16.mxu0 0
  %815 = vmatpush2.bf16.msra.mxu0 0
  %816 = vmatprep.subr.bf16.mxu0 0
  %817 = vmatpush2.bf16.msra.mxu0 0
  %818 = vmatprep.subr.bf16.mxu0 0
  %819 = vmatpush2.bf16.msra.mxu0 0
  %820 = vmatprep.subr.bf16.mxu0 0
  %821 = vmatpush2.bf16.msra.mxu0 0
  %822 = vmatprep.subr.bf16.mxu0 0
  %823 = vmatpush2.bf16.msra.mxu0 0
  %824 = vmatprep.subr.bf16.mxu0 0
  %825 = vmatpush2.bf16.msra.mxu0 0
  %826 = vmatprep.mubr.bf16.mxu0 0
  %827 = vmatmul.mubr.bf16.gmra.mxu0 %v789
  %v828 = vpop.f32.mrf.mxu0
  %v829 = vadd.f32 0.0, %v828
  %v830 = vpop.f32.mrf.mxu0
  %v831 = vpop.f32.mrf.mxu0
  %v832 = vpop.f32.mrf.mxu0
  %833 = vdwg.mxu0
  %v834 = vpack.c.bf16 %v737, %v691
  %v835 = vpack.c.bf16 %v829, %v783
  %v836 = vld [vmem:[%s6] sm:$0xf]
  %s837 = scalar_lea.vmem %s4, 16
  %v838 = vld [vmem:[%s837] sm:$0xf]
  %v839 = vld [vmem:[%s837 + $0x4] sm:$0xf]
  %v840 = vld [vmem:[%s837 + $0x8] sm:$0xf]
  %v841 = vld [vmem:[%s837 + $0xc] sm:$0xf]
  %s842 = scalar_lea.vmem %s5, 1
  %v843 = vld [vmem:[%s842] sm:$0x1]
  %v845 = vlaneseq
  %v846 = vshrl.u32 %v845, 7
  %v847 = vsub.s32 0, %v846
  %v848 = vrot.slane %v843, %v847
  %v854 = vunpack.c.l.b16 %v838
  %v855 = vunpack.c.l.b16 %v839
  %v856 = vunpack.c.l.b16 %v840
  %v857 = vunpack.c.l.b16 %v841
  %v858 = vpack.c.b16 %v855, %v854
  %v859 = vpack.c.b16 %v857, %v856
  %862 = vmatprep.subr.bf16.mxu0 0
  %863 = vmatpush1.bf16.msra.mxu0 0
  %864 = vmatprep.subr.bf16.mxu0 0
  %865 = vmatpush1.bf16.msra.mxu0 0
  %866 = vmatprep.subr.bf16.mxu0 0
  %867 = vmatpush1.bf16.msra.mxu0 0
  %868 = vmatprep.subr.bf16.mxu0 0
  %869 = vmatpush1.bf16.msra.mxu0 0
  %870 = vmatprep.subr.bf16.mxu0 0
  %871 = vmatpush1.bf16.msra.mxu0 0
  %872 = vmatprep.subr.bf16.mxu0 0
  %873 = vmatpush1.bf16.msra.mxu0 0
  %874 = vmatprep.subr.bf16.mxu0 0
  %875 = vmatpush1.bf16.msra.mxu0 %v859
  %876 = vmatprep.subr.bf16.mxu0 0
  %877 = vmatpush1.bf16.msra.mxu0 %v858
  %878 = vmatprep.subr.bf16.mxu0 0
  %879 = vmatpush2.bf16.msra.mxu0 0
  %880 = vmatprep.subr.bf16.mxu0 0
  %881 = vmatpush2.bf16.msra.mxu0 0
  %882 = vmatprep.subr.bf16.mxu0 0
  %883 = vmatpush2.bf16.msra.mxu0 0
  %884 = vmatprep.subr.bf16.mxu0 0
  %885 = vmatpush2.bf16.msra.mxu0 0
  %886 = vmatprep.subr.bf16.mxu0 0
  %887 = vmatpush2.bf16.msra.mxu0 0
  %888 = vmatprep.subr.bf16.mxu0 0
  %889 = vmatpush2.bf16.msra.mxu0 0
  %890 = vmatprep.subr.bf16.mxu0 0
  %891 = vmatpush2.bf16.msra.mxu0 0
  %892 = vmatprep.subr.bf16.mxu0 0
  %893 = vmatpush2.bf16.msra.mxu0 0
  %894 = vmatprep.mubr.bf16.mxu0 0
  %895 = vmatmul.mubr.bf16.gmra.mxu0 %v170
  %v896 = vpop.f32.mrf.mxu0
  %v897 = vadd.f32 %v848, %v896
  %v898 = vpop.f32.mrf.mxu0
  %v899 = vpop.f32.mrf.mxu0
  %v900 = vadd.f32 %v848, %v899
  %v901 = vpop.f32.mrf.mxu0
  %902 = vmatprep.mubr.bf16.mxu0 0
  %903 = vmatmul.mubr.bf16.gmra.mxu0 %v173
  %v904 = vpop.f32.mrf.mxu0
  %v905 = vadd.f32 %v848, %v904
  %v906 = vpop.f32.mrf.mxu0
  %v907 = vpop.f32.mrf.mxu0
  %v908 = vadd.f32 %v848, %v907
  %v909 = vpop.f32.mrf.mxu0
  %910 = vdwg.mxu0
  %s911 = scalar_lea.vmem %s4, 80
  %v912 = vld [vmem:[%s911] sm:$0xf]
  %v913 = vld [vmem:[%s911 + $0x4] sm:$0xf]
  %v914 = vld [vmem:[%s911 + $0x8] sm:$0xf]
  %v915 = vld [vmem:[%s911 + $0xc] sm:$0xf]
  %s916 = scalar_lea.vmem %s5, 5
  %v917 = vld [vmem:[%s916] sm:$0x1]
  %v919 = vlaneseq
  %v920 = vshrl.u32 %v919, 7
  %v921 = vsub.s32 0, %v920
  %v922 = vrot.slane %v917, %v921
  %v928 = vunpack.c.l.b16 %v912
  %v929 = vunpack.c.l.b16 %v913
  %v930 = vunpack.c.l.b16 %v914
  %v931 = vunpack.c.l.b16 %v915
  %v932 = vpack.c.b16 %v929, %v928
  %v933 = vpack.c.b16 %v931, %v930
  %936 = vmatprep.subr.bf16.mxu0 0
  %937 = vmatpush1.bf16.msra.mxu0 0
  %938 = vmatprep.subr.bf16.mxu0 0
  %939 = vmatpush1.bf16.msra.mxu0 0
  %940 = vmatprep.subr.bf16.mxu0 0
  %941 = vmatpush1.bf16.msra.mxu0 0
  %942 = vmatprep.subr.bf16.mxu0 0
  %943 = vmatpush1.bf16.msra.mxu0 0
  %944 = vmatprep.subr.bf16.mxu0 0
  %945 = vmatpush1.bf16.msra.mxu0 0
  %946 = vmatprep.subr.bf16.mxu0 0
  %947 = vmatpush1.bf16.msra.mxu0 0
  %948 = vmatprep.subr.bf16.mxu0 0
  %949 = vmatpush1.bf16.msra.mxu0 %v933
  %950 = vmatprep.subr.bf16.mxu0 0
  %951 = vmatpush1.bf16.msra.mxu0 %v932
  %952 = vmatprep.subr.bf16.mxu0 0
  %953 = vmatpush2.bf16.msra.mxu0 0
  %954 = vmatprep.subr.bf16.mxu0 0
  %955 = vmatpush2.bf16.msra.mxu0 0
  %956 = vmatprep.subr.bf16.mxu0 0
  %957 = vmatpush2.bf16.msra.mxu0 0
  %958 = vmatprep.subr.bf16.mxu0 0
  %959 = vmatpush2.bf16.msra.mxu0 0
  %960 = vmatprep.subr.bf16.mxu0 0
  %961 = vmatpush2.bf16.msra.mxu0 0
  %962 = vmatprep.subr.bf16.mxu0 0
  %963 = vmatpush2.bf16.msra.mxu0 0
  %964 = vmatprep.subr.bf16.mxu0 0
  %965 = vmatpush2.bf16.msra.mxu0 0
  %966 = vmatprep.subr.bf16.mxu0 0
  %967 = vmatpush2.bf16.msra.mxu0 0
  %968 = vmatprep.mubr.bf16.mxu0 0
  %969 = vmatmul.mubr.bf16.gmra.mxu0 %v170
  %v970 = vpop.f32.mrf.mxu0
  %v971 = vadd.f32 %v922, %v970
  %v972 = vpop.f32.mrf.mxu0
  %v973 = vpop.f32.mrf.mxu0
  %v974 = vadd.f32 %v922, %v973
  %v975 = vpop.f32.mrf.mxu0
  %976 = vmatprep.mubr.bf16.mxu0 0
  %977 = vmatmul.mubr.bf16.gmra.mxu0 %v173
  %v978 = vpop.f32.mrf.mxu0
  %v979 = vadd.f32 %v922, %v978
  %v980 = vpop.f32.mrf.mxu0
  %v981 = vpop.f32.mrf.mxu0
  %v982 = vadd.f32 %v922, %v981
  %v983 = vpop.f32.mrf.mxu0
  %984 = vdwg.mxu0
  %s985 = scalar_lea.vmem %s4, 144
  %v986 = vld [vmem:[%s985] sm:$0xf]
  %v987 = vld [vmem:[%s985 + $0x4] sm:$0xf]
  %v988 = vld [vmem:[%s985 + $0x8] sm:$0xf]
  %v989 = vld [vmem:[%s985 + $0xc] sm:$0xf]
  %s990 = scalar_lea.vmem %s5, 9
  %v991 = vld [vmem:[%s990] sm:$0x1]
  %v993 = vlaneseq
  %v994 = vshrl.u32 %v993, 7
  %v995 = vsub.s32 0, %v994
  %v996 = vrot.slane %v991, %v995
  %v1002 = vunpack.c.l.b16 %v986
  %v1003 = vunpack.c.l.b16 %v987
  %v1004 = vunpack.c.l.b16 %v988
  %v1005 = vunpack.c.l.b16 %v989
  %v1006 = vpack.c.b16 %v1003, %v1002
  %v1007 = vpack.c.b16 %v1005, %v1004
  %1010 = vmatprep.subr.bf16.mxu0 0
  %1011 = vmatpush1.bf16.msra.mxu0 0
  %1012 = vmatprep.subr.bf16.mxu0 0
  %1013 = vmatpush1.bf16.msra.mxu0 0
  %1014 = vmatprep.subr.bf16.mxu0 0
  %1015 = vmatpush1.bf16.msra.mxu0 0
  %1016 = vmatprep.subr.bf16.mxu0 0
  %1017 = vmatpush1.bf16.msra.mxu0 0
  %1018 = vmatprep.subr.bf16.mxu0 0
  %1019 = vmatpush1.bf16.msra.mxu0 0
  %1020 = vmatprep.subr.bf16.mxu0 0
  %1021 = vmatpush1.bf16.msra.mxu0 0
  %1022 = vmatprep.subr.bf16.mxu0 0
  %1023 = vmatpush1.bf16.msra.mxu0 %v1007
  %1024 = vmatprep.subr.bf16.mxu0 0
  %1025 = vmatpush1.bf16.msra.mxu0 %v1006
  %1026 = vmatprep.subr.bf16.mxu0 0
  %1027 = vmatpush2.bf16.msra.mxu0 0
  %1028 = vmatprep.subr.bf16.mxu0 0
  %1029 = vmatpush2.bf16.msra.mxu0 0
  %1030 = vmatprep.subr.bf16.mxu0 0
  %1031 = vmatpush2.bf16.msra.mxu0 0
  %1032 = vmatprep.subr.bf16.mxu0 0
  %1033 = vmatpush2.bf16.msra.mxu0 0
  %1034 = vmatprep.subr.bf16.mxu0 0
  %1035 = vmatpush2.bf16.msra.mxu0 0
  %1036 = vmatprep.subr.bf16.mxu0 0
  %1037 = vmatpush2.bf16.msra.mxu0 0
  %1038 = vmatprep.subr.bf16.mxu0 0
  %1039 = vmatpush2.bf16.msra.mxu0 0
  %1040 = vmatprep.subr.bf16.mxu0 0
  %1041 = vmatpush2.bf16.msra.mxu0 0
  %1042 = vmatprep.mubr.bf16.mxu0 0
  %1043 = vmatmul.mubr.bf16.gmra.mxu0 %v170
  %v1044 = vpop.f32.mrf.mxu0
  %v1045 = vadd.f32 %v996, %v1044
  %v1046 = vpop.f32.mrf.mxu0
  %v1047 = vpop.f32.mrf.mxu0
  %v1048 = vadd.f32 %v996, %v1047
  %v1049 = vpop.f32.mrf.mxu0
  %1050 = vmatprep.mubr.bf16.mxu0 0
  %1051 = vmatmul.mubr.bf16.gmra.mxu0 %v173
  %v1052 = vpop.f32.mrf.mxu0
  %v1053 = vadd.f32 %v996, %v1052
  %v1054 = vpop.f32.mrf.mxu0
  %v1055 = vpop.f32.mrf.mxu0
  %v1056 = vadd.f32 %v996, %v1055
  %v1057 = vpop.f32.mrf.mxu0
  %1058 = vdwg.mxu0
  %v1059 = vpack.c.bf16 %v897, %v897
  %v1060 = vpack.c.bf16 %v900, %v900
  %v1061 = vpack.c.bf16 %v905, %v905
  %v1062 = vpack.c.bf16 %v908, %v908
  %v1063 = vpack.c.bf16 %v971, %v971
  %v1064 = vpack.c.bf16 %v974, %v974
  %v1065 = vpack.c.bf16 %v979, %v979
  %v1066 = vpack.c.bf16 %v982, %v982
  %v1068 = vsel %vm380, %v1059, 0
  %v1071 = vsel %vm380, %v1063, 0
  %1073 = vmatprep.subr.bf16.mxu0 0
  %1074 = vmatpush1.bf16.xpose.msra.mxu0 0
  %1075 = vmatprep.subr.bf16.mxu0 0
  %1076 = vmatpush1.bf16.xpose.msra.mxu0 0
  %1077 = vmatprep.subr.bf16.mxu0 0
  %1078 = vmatpush1.bf16.xpose.msra.mxu0 0
  %1079 = vmatprep.subr.bf16.mxu0 0
  %1080 = vmatpush1.bf16.xpose.msra.mxu0 0
  %1081 = vmatprep.subr.bf16.mxu0 0
  %1082 = vmatpush1.bf16.xpose.msra.mxu0 0
  %1083 = vmatprep.subr.bf16.mxu0 0
  %1084 = vmatpush1.bf16.xpose.msra.mxu0 0
  %1085 = vmatprep.subr.bf16.mxu0 0
  %1086 = vmatpush1.bf16.xpose.msra.mxu0 0
  %1087 = vmatprep.subr.bf16.mxu0 0
  %1088 = vmatpush1.bf16.xpose.msra.mxu0 %v1071
  %1089 = vmatprep.subr.bf16.mxu0 0
  %1090 = vmatpush2.bf16.xpose.msra.mxu0 0
  %1091 = vmatprep.subr.bf16.mxu0 0
  %1092 = vmatpush2.bf16.xpose.msra.mxu0 0
  %1093 = vmatprep.subr.bf16.mxu0 0
  %1094 = vmatpush2.bf16.xpose.msra.mxu0 0
  %1095 = vmatprep.subr.bf16.mxu0 0
  %1096 = vmatpush2.bf16.xpose.msra.mxu0 0
  %1097 = vmatprep.subr.bf16.mxu0 0
  %1098 = vmatpush2.bf16.xpose.msra.mxu0 0
  %1099 = vmatprep.subr.bf16.mxu0 0
  %1100 = vmatpush2.bf16.xpose.msra.mxu0 0
  %1101 = vmatprep.subr.bf16.mxu0 0
  %1102 = vmatpush2.bf16.xpose.msra.mxu0 0
  %1103 = vmatprep.subr.bf16.mxu0 0
  %1104 = vmatpush2.bf16.xpose.msra.mxu0 0
  %1105 = vmatprep.mubr.bf16.mxu0 0
  %1106 = vmatmul.mubr.bf16.gmra.mxu0 %v1068
  %v1107 = vpop.f32.mrf.mxu0
  %v1108 = vadd.f32 0.0, %v1107
  %v1109 = vpop.f32.mrf.mxu0
  %v1110 = vpop.f32.mrf.mxu0
  %v1111 = vpop.f32.mrf.mxu0
  %1112 = vdwg.mxu0
  %v1114 = vsel %vm380, %v1060, 0
  %v1117 = vsel %vm380, %v1064, 0
  %1119 = vmatprep.subr.bf16.mxu0 0
  %1120 = vmatpush1.bf16.xpose.msra.mxu0 0
  %1121 = vmatprep.subr.bf16.mxu0 0
  %1122 = vmatpush1.bf16.xpose.msra.mxu0 0
  %1123 = vmatprep.subr.bf16.mxu0 0
  %1124 = vmatpush1.bf16.xpose.msra.mxu0 0
  %1125 = vmatprep.subr.bf16.mxu0 0
  %1126 = vmatpush1.bf16.xpose.msra.mxu0 0
  %1127 = vmatprep.subr.bf16.mxu0 0
  %1128 = vmatpush1.bf16.xpose.msra.mxu0 0
  %1129 = vmatprep.subr.bf16.mxu0 0
  %1130 = vmatpush1.bf16.xpose.msra.mxu0 0
  %1131 = vmatprep.subr.bf16.mxu0 0
  %1132 = vmatpush1.bf16.xpose.msra.mxu0 0
  %1133 = vmatprep.subr.bf16.mxu0 0
  %1134 = vmatpush1.bf16.xpose.msra.mxu0 %v1117
  %1135 = vmatprep.subr.bf16.mxu0 0
  %1136 = vmatpush2.bf16.xpose.msra.mxu0 0
  %1137 = vmatprep.subr.bf16.mxu0 0
  %1138 = vmatpush2.bf16.xpose.msra.mxu0 0
  %1139 = vmatprep.subr.bf16.mxu0 0
  %1140 = vmatpush2.bf16.xpose.msra.mxu0 0
  %1141 = vmatprep.subr.bf16.mxu0 0
  %1142 = vmatpush2.bf16.xpose.msra.mxu0 0
  %1143 = vmatprep.subr.bf16.mxu0 0
  %1144 = vmatpush2.bf16.xpose.msra.mxu0 0
  %1145 = vmatprep.subr.bf16.mxu0 0
  %1146 = vmatpush2.bf16.xpose.msra.mxu0 0
  %1147 = vmatprep.subr.bf16.mxu0 0
  %1148 = vmatpush2.bf16.xpose.msra.mxu0 0
  %1149 = vmatprep.subr.bf16.mxu0 0
  %1150 = vmatpush2.bf16.xpose.msra.mxu0 0
  %1151 = vmatprep.mubr.bf16.mxu0 0
  %1152 = vmatmul.mubr.bf16.gmra.mxu0 %v1114
  %v1153 = vpop.f32.mrf.mxu0
  %v1154 = vadd.f32 0.0, %v1153
  %v1155 = vpop.f32.mrf.mxu0
  %v1156 = vpop.f32.mrf.mxu0
  %v1157 = vpop.f32.mrf.mxu0
  %1158 = vdwg.mxu0
  %v1160 = vsel %vm380, %v1061, 0
  %v1163 = vsel %vm380, %v1065, 0
  %1165 = vmatprep.subr.bf16.mxu0 0
  %1166 = vmatpush1.bf16.xpose.msra.mxu0 0
  %1167 = vmatprep.subr.bf16.mxu0 0
  %1168 = vmatpush1.bf16.xpose.msra.mxu0 0
  %1169 = vmatprep.subr.bf16.mxu0 0
  %1170 = vmatpush1.bf16.xpose.msra.mxu0 0
  %1171 = vmatprep.subr.bf16.mxu0 0
  %1172 = vmatpush1.bf16.xpose.msra.mxu0 0
  %1173 = vmatprep.subr.bf16.mxu0 0
  %1174 = vmatpush1.bf16.xpose.msra.mxu0 0
  %1175 = vmatprep.subr.bf16.mxu0 0
  %1176 = vmatpush1.bf16.xpose.msra.mxu0 0
  %1177 = vmatprep.subr.bf16.mxu0 0
  %1178 = vmatpush1.bf16.xpose.msra.mxu0 0
  %1179 = vmatprep.subr.bf16.mxu0 0
  %1180 = vmatpush1.bf16.xpose.msra.mxu0 %v1163
  %1181 = vmatprep.subr.bf16.mxu0 0
  %1182 = vmatpush2.bf16.xpose.msra.mxu0 0
  %1183 = vmatprep.subr.bf16.mxu0 0
  %1184 = vmatpush2.bf16.xpose.msra.mxu0 0
  %1185 = vmatprep.subr.bf16.mxu0 0
  %1186 = vmatpush2.bf16.xpose.msra.mxu0 0
  %1187 = vmatprep.subr.bf16.mxu0 0
  %1188 = vmatpush2.bf16.xpose.msra.mxu0 0
  %1189 = vmatprep.subr.bf16.mxu0 0
  %1190 = vmatpush2.bf16.xpose.msra.mxu0 0
  %1191 = vmatprep.subr.bf16.mxu0 0
  %1192 = vmatpush2.bf16.xpose.msra.mxu0 0
  %1193 = vmatprep.subr.bf16.mxu0 0
  %1194 = vmatpush2.bf16.xpose.msra.mxu0 0
  %1195 = vmatprep.subr.bf16.mxu0 0
  %1196 = vmatpush2.bf16.xpose.msra.mxu0 0
  %1197 = vmatprep.mubr.bf16.mxu0 0
  %1198 = vmatmul.mubr.bf16.gmra.mxu0 %v1160
  %v1199 = vpop.f32.mrf.mxu0
  %v1200 = vadd.f32 0.0, %v1199
  %v1201 = vpop.f32.mrf.mxu0
  %v1202 = vpop.f32.mrf.mxu0
  %v1203 = vpop.f32.mrf.mxu0
  %1204 = vdwg.mxu0
  %v1206 = vsel %vm380, %v1062, 0
  %v1209 = vsel %vm380, %v1066, 0
  %1211 = vmatprep.subr.bf16.mxu0 0
  %1212 = vmatpush1.bf16.xpose.msra.mxu0 0
  %1213 = vmatprep.subr.bf16.mxu0 0
  %1214 = vmatpush1.bf16.xpose.msra.mxu0 0
  %1215 = vmatprep.subr.bf16.mxu0 0
  %1216 = vmatpush1.bf16.xpose.msra.mxu0 0
  %1217 = vmatprep.subr.bf16.mxu0 0
  %1218 = vmatpush1.bf16.xpose.msra.mxu0 0
  %1219 = vmatprep.subr.bf16.mxu0 0
  %1220 = vmatpush1.bf16.xpose.msra.mxu0 0
  %1221 = vmatprep.subr.bf16.mxu0 0
  %1222 = vmatpush1.bf16.xpose.msra.mxu0 0
  %1223 = vmatprep.subr.bf16.mxu0 0
  %1224 = vmatpush1.bf16.xpose.msra.mxu0 0
  %1225 = vmatprep.subr.bf16.mxu0 0
  %1226 = vmatpush1.bf16.xpose.msra.mxu0 %v1209
  %1227 = vmatprep.subr.bf16.mxu0 0
  %1228 = vmatpush2.bf16.xpose.msra.mxu0 0
  %1229 = vmatprep.subr.bf16.mxu0 0
  %1230 = vmatpush2.bf16.xpose.msra.mxu0 0
  %1231 = vmatprep.subr.bf16.mxu0 0
  %1232 = vmatpush2.bf16.xpose.msra.mxu0 0
  %1233 = vmatprep.subr.bf16.mxu0 0
  %1234 = vmatpush2.bf16.xpose.msra.mxu0 0
  %1235 = vmatprep.subr.bf16.mxu0 0
  %1236 = vmatpush2.bf16.xpose.msra.mxu0 0
  %1237 = vmatprep.subr.bf16.mxu0 0
  %1238 = vmatpush2.bf16.xpose.msra.mxu0 0
  %1239 = vmatprep.subr.bf16.mxu0 0
  %1240 = vmatpush2.bf16.xpose.msra.mxu0 0
  %1241 = vmatprep.subr.bf16.mxu0 0
  %1242 = vmatpush2.bf16.xpose.msra.mxu0 0
  %1243 = vmatprep.mubr.bf16.mxu0 0
  %1244 = vmatmul.mubr.bf16.gmra.mxu0 %v1206
  %v1245 = vpop.f32.mrf.mxu0
  %v1246 = vadd.f32 0.0, %v1245
  %v1247 = vpop.f32.mrf.mxu0
  %v1248 = vpop.f32.mrf.mxu0
  %v1249 = vpop.f32.mrf.mxu0
  %1250 = vdwg.mxu0
  %v1251 = vmul.f32 %v1108, 0.35355338
  %v1252 = vmul.f32 %v1154, 0.35355338
  %v1253 = vmul.f32 %v1200, 0.35355338
  %v1254 = vmul.f32 %v1246, 0.35355338
  %v1255 = vadd.f32 %v1251, %v576
  %v1256 = vadd.f32 %v1252, %v580
  %v1257 = vadd.f32 %v1253, %v584
  %v1258 = vadd.f32 %v1254, %v588
  %v1259 = vsel %vm380, %v1255, -inf
  %1260 = vmax.xlane.f32.xlu0 %v1259
  %v1261 = vpop.xlane.xlu0 %1260
  %v1262 = vsel %vm380, %v1256, -inf
  %1263 = vmax.xlane.f32.xlu0 %v1262
  %v1264 = vpop.xlane.xlu0 %1263
  %v1265 = vsel %vm380, %v1257, -inf
  %1266 = vmax.xlane.f32.xlu0 %v1265
  %v1267 = vpop.xlane.xlu0 %1266
  %v1268 = vsel %vm380, %v1258, -inf
  %1269 = vmax.xlane.f32.xlu0 %v1268
  %v1270 = vpop.xlane.xlu0 %1269
  %v1271 = vsub.f32 %v1255, %v1261
  %v1272 = vsub.f32 %v1256, %v1264
  %v1273 = vsub.f32 %v1257, %v1267
  %v1274 = vsub.f32 %v1258, %v1270
  %v1275 = vmul.f32 %v1271, 1.442695
  %v1276 = vpow.pop %v1275
  %v1277 = vmul.f32 %v1272, 1.442695
  %v1278 = vpow.pop %v1277
  %v1279 = vmul.f32 %v1273, 1.442695
  %v1280 = vpow.pop %v1279
  %v1281 = vmul.f32 %v1274, 1.442695
  %v1282 = vpow.pop %v1281
  %v1283 = vsel %vm380, %v1276, 0.0
  %1284 = vadd.xlane.f32.xlu0 %v1283
  %v1285 = vpop.xlane.xlu0 %1284
  %v1286 = vsel %vm380, %v1278, 0.0
  %1287 = vadd.xlane.f32.xlu0 %v1286
  %v1288 = vpop.xlane.xlu0 %1287
  %v1289 = vsel %vm380, %v1280, 0.0
  %1290 = vadd.xlane.f32.xlu0 %v1289
  %v1291 = vpop.xlane.xlu0 %1290
  %v1292 = vsel %vm380, %v1282, 0.0
  %1293 = vadd.xlane.f32.xlu0 %v1292
  %v1294 = vpop.xlane.xlu0 %1293
  %v1295 = vrcp.pop %v1285
  %v1296 = vrcp.pop %v1288
  %v1297 = vrcp.pop %v1291
  %v1298 = vrcp.pop %v1294
  %v1299 = vmul.f32 %v1276, %v1295
  %v1300 = vmul.f32 %v1278, %v1296
  %v1301 = vmul.f32 %v1280, %v1297
  %v1302 = vmul.f32 %v1282, %v1298
  %v1303 = vpack.c.bf16 %v1299, %v1299
  %v1304 = vpack.c.bf16 %v1300, %v1300
  %v1305 = vpack.c.bf16 %v1301, %v1301
  %v1306 = vpack.c.bf16 %v1302, %v1302
  %v1307 = vpack.c.bf16 %v1045, %v1045
  %v1308 = vpack.c.bf16 %v1048, %v1048
  %v1309 = vpack.c.bf16 %v1053, %v1053
  %v1310 = vpack.c.bf16 %v1056, %v1056
  %v1312 = vsel %vm380, %v1303, 0
  %v1315 = vsel %vm652, %v1307, 0
  %1317 = vmatprep.subr.bf16.mxu0 0
  %1318 = vmatpush1.bf16.msra.mxu0 0
  %1319 = vmatprep.subr.bf16.mxu0 0
  %1320 = vmatpush1.bf16.msra.mxu0 0
  %1321 = vmatprep.subr.bf16.mxu0 0
  %1322 = vmatpush1.bf16.msra.mxu0 0
  %1323 = vmatprep.subr.bf16.mxu0 0
  %1324 = vmatpush1.bf16.msra.mxu0 0
  %1325 = vmatprep.subr.bf16.mxu0 0
  %1326 = vmatpush1.bf16.msra.mxu0 0
  %1327 = vmatprep.subr.bf16.mxu0 0
  %1328 = vmatpush1.bf16.msra.mxu0 0
  %1329 = vmatprep.subr.bf16.mxu0 0
  %1330 = vmatpush1.bf16.msra.mxu0 0
  %1331 = vmatprep.subr.bf16.mxu0 0
  %1332 = vmatpush1.bf16.msra.mxu0 %v1315
  %1333 = vmatprep.subr.bf16.mxu0 0
  %1334 = vmatpush2.bf16.msra.mxu0 0
  %1335 = vmatprep.subr.bf16.mxu0 0
  %1336 = vmatpush2.bf16.msra.mxu0 0
  %1337 = vmatprep.subr.bf16.mxu0 0
  %1338 = vmatpush2.bf16.msra.mxu0 0
  %1339 = vmatprep.subr.bf16.mxu0 0
  %1340 = vmatpush2.bf16.msra.mxu0 0
  %1341 = vmatprep.subr.bf16.mxu0 0
  %1342 = vmatpush2.bf16.msra.mxu0 0
  %1343 = vmatprep.subr.bf16.mxu0 0
  %1344 = vmatpush2.bf16.msra.mxu0 0
  %1345 = vmatprep.subr.bf16.mxu0 0
  %1346 = vmatpush2.bf16.msra.mxu0 0
  %1347 = vmatprep.subr.bf16.mxu0 0
  %1348 = vmatpush2.bf16.msra.mxu0 0
  %1349 = vmatprep.mubr.bf16.mxu0 0
  %1350 = vmatmul.mubr.bf16.gmra.mxu0 %v1312
  %v1351 = vpop.f32.mrf.mxu0
  %v1352 = vadd.f32 0.0, %v1351
  %v1353 = vpop.f32.mrf.mxu0
  %v1354 = vpop.f32.mrf.mxu0
  %v1355 = vpop.f32.mrf.mxu0
  %1356 = vdwg.mxu0
  %v1358 = vsel %vm380, %v1304, 0
  %v1361 = vsel %vm652, %v1308, 0
  %1363 = vmatprep.subr.bf16.mxu0 0
  %1364 = vmatpush1.bf16.msra.mxu0 0
  %1365 = vmatprep.subr.bf16.mxu0 0
  %1366 = vmatpush1.bf16.msra.mxu0 0
  %1367 = vmatprep.subr.bf16.mxu0 0
  %1368 = vmatpush1.bf16.msra.mxu0 0
  %1369 = vmatprep.subr.bf16.mxu0 0
  %1370 = vmatpush1.bf16.msra.mxu0 0
  %1371 = vmatprep.subr.bf16.mxu0 0
  %1372 = vmatpush1.bf16.msra.mxu0 0
  %1373 = vmatprep.subr.bf16.mxu0 0
  %1374 = vmatpush1.bf16.msra.mxu0 0
  %1375 = vmatprep.subr.bf16.mxu0 0
  %1376 = vmatpush1.bf16.msra.mxu0 0
  %1377 = vmatprep.subr.bf16.mxu0 0
  %1378 = vmatpush1.bf16.msra.mxu0 %v1361
  %1379 = vmatprep.subr.bf16.mxu0 0
  %1380 = vmatpush2.bf16.msra.mxu0 0
  %1381 = vmatprep.subr.bf16.mxu0 0
  %1382 = vmatpush2.bf16.msra.mxu0 0
  %1383 = vmatprep.subr.bf16.mxu0 0
  %1384 = vmatpush2.bf16.msra.mxu0 0
  %1385 = vmatprep.subr.bf16.mxu0 0
  %1386 = vmatpush2.bf16.msra.mxu0 0
  %1387 = vmatprep.subr.bf16.mxu0 0
  %1388 = vmatpush2.bf16.msra.mxu0 0
  %1389 = vmatprep.subr.bf16.mxu0 0
  %1390 = vmatpush2.bf16.msra.mxu0 0
  %1391 = vmatprep.subr.bf16.mxu0 0
  %1392 = vmatpush2.bf16.msra.mxu0 0
  %1393 = vmatprep.subr.bf16.mxu0 0
  %1394 = vmatpush2.bf16.msra.mxu0 0
  %1395 = vmatprep.mubr.bf16.mxu0 0
  %1396 = vmatmul.mubr.bf16.gmra.mxu0 %v1358
  %v1397 = vpop.f32.mrf.mxu0
  %v1398 = vadd.f32 0.0, %v1397
  %v1399 = vpop.f32.mrf.mxu0
  %v1400 = vpop.f32.mrf.mxu0
  %v1401 = vpop.f32.mrf.mxu0
  %1402 = vdwg.mxu0
  %v1404 = vsel %vm380, %v1305, 0
  %v1407 = vsel %vm652, %v1309, 0
  %1409 = vmatprep.subr.bf16.mxu0 0
  %1410 = vmatpush1.bf16.msra.mxu0 0
  %1411 = vmatprep.subr.bf16.mxu0 0
  %1412 = vmatpush1.bf16.msra.mxu0 0
  %1413 = vmatprep.subr.bf16.mxu0 0
  %1414 = vmatpush1.bf16.msra.mxu0 0
  %1415 = vmatprep.subr.bf16.mxu0 0
  %1416 = vmatpush1.bf16.msra.mxu0 0
  %1417 = vmatprep.subr.bf16.mxu0 0
  %1418 = vmatpush1.bf16.msra.mxu0 0
  %1419 = vmatprep.subr.bf16.mxu0 0
  %1420 = vmatpush1.bf16.msra.mxu0 0
  %1421 = vmatprep.subr.bf16.mxu0 0
  %1422 = vmatpush1.bf16.msra.mxu0 0
  %1423 = vmatprep.subr.bf16.mxu0 0
  %1424 = vmatpush1.bf16.msra.mxu0 %v1407
  %1425 = vmatprep.subr.bf16.mxu0 0
  %1426 = vmatpush2.bf16.msra.mxu0 0
  %1427 = vmatprep.subr.bf16.mxu0 0
  %1428 = vmatpush2.bf16.msra.mxu0 0
  %1429 = vmatprep.subr.bf16.mxu0 0
  %1430 = vmatpush2.bf16.msra.mxu0 0
  %1431 = vmatprep.subr.bf16.mxu0 0
  %1432 = vmatpush2.bf16.msra.mxu0 0
  %1433 = vmatprep.subr.bf16.mxu0 0
  %1434 = vmatpush2.bf16.msra.mxu0 0
  %1435 = vmatprep.subr.bf16.mxu0 0
  %1436 = vmatpush2.bf16.msra.mxu0 0
  %1437 = vmatprep.subr.bf16.mxu0 0
  %1438 = vmatpush2.bf16.msra.mxu0 0
  %1439 = vmatprep.subr.bf16.mxu0 0
  %1440 = vmatpush2.bf16.msra.mxu0 0
  %1441 = vmatprep.mubr.bf16.mxu0 0
  %1442 = vmatmul.mubr.bf16.gmra.mxu0 %v1404
  %v1443 = vpop.f32.mrf.mxu0
  %v1444 = vadd.f32 0.0, %v1443
  %v1445 = vpop.f32.mrf.mxu0
  %v1446 = vpop.f32.mrf.mxu0
  %v1447 = vpop.f32.mrf.mxu0
  %1448 = vdwg.mxu0
  %v1450 = vsel %vm380, %v1306, 0
  %v1453 = vsel %vm652, %v1310, 0
  %1455 = vmatprep.subr.bf16.mxu0 0
  %1456 = vmatpush1.bf16.msra.mxu0 0
  %1457 = vmatprep.subr.bf16.mxu0 0
  %1458 = vmatpush1.bf16.msra.mxu0 0
  %1459 = vmatprep.subr.bf16.mxu0 0
  %1460 = vmatpush1.bf16.msra.mxu0 0
  %1461 = vmatprep.subr.bf16.mxu0 0
  %1462 = vmatpush1.bf16.msra.mxu0 0
  %1463 = vmatprep.subr.bf16.mxu0 0
  %1464 = vmatpush1.bf16.msra.mxu0 0
  %1465 = vmatprep.subr.bf16.mxu0 0
  %1466 = vmatpush1.bf16.msra.mxu0 0
  %1467 = vmatprep.subr.bf16.mxu0 0
  %1468 = vmatpush1.bf16.msra.mxu0 0
  %1469 = vmatprep.subr.bf16.mxu0 0
  %1470 = vmatpush1.bf16.msra.mxu0 %v1453
  %1471 = vmatprep.subr.bf16.mxu0 0
  %1472 = vmatpush2.bf16.msra.mxu0 0
  %1473 = vmatprep.subr.bf16.mxu0 0
  %1474 = vmatpush2.bf16.msra.mxu0 0
  %1475 = vmatprep.subr.bf16.mxu0 0
  %1476 = vmatpush2.bf16.msra.mxu0 0
  %1477 = vmatprep.subr.bf16.mxu0 0
  %1478 = vmatpush2.bf16.msra.mxu0 0
  %1479 = vmatprep.subr.bf16.mxu0 0
  %1480 = vmatpush2.bf16.msra.mxu0 0
  %1481 = vmatprep.subr.bf16.mxu0 0
  %1482 = vmatpush2.bf16.msra.mxu0 0
  %1483 = vmatprep.subr.bf16.mxu0 0
  %1484 = vmatpush2.bf16.msra.mxu0 0
  %1485 = vmatprep.subr.bf16.mxu0 0
  %1486 = vmatpush2.bf16.msra.mxu0 0
  %1487 = vmatprep.mubr.bf16.mxu0 0
  %1488 = vmatmul.mubr.bf16.gmra.mxu0 %v1450
  %v1489 = vpop.f32.mrf.mxu0
  %v1490 = vadd.f32 0.0, %v1489
  %v1491 = vpop.f32.mrf.mxu0
  %v1492 = vpop.f32.mrf.mxu0
  %v1493 = vpop.f32.mrf.mxu0
  %1494 = vdwg.mxu0
  %v1495 = vpack.c.bf16 %v1398, %v1352
  %v1496 = vpack.c.bf16 %v1490, %v1444
  %s1497 = scalar_lea.vmem %s6, 4
  %v1498 = vld [vmem:[%s1497] sm:$0xf]
  %v1500 = vsel %vm380, %v1495, 0
  %v1503 = vsel %vm380, %v1496, 0
  %v1506 = vsel %vm652, %v1498, 0
  %1508 = vmatprep.subr.bf16.mxu0 0
  %1509 = vmatpush1.bf16.msra.mxu0 0
  %1510 = vmatprep.subr.bf16.mxu0 0
  %1511 = vmatpush1.bf16.msra.mxu0 0
  %1512 = vmatprep.subr.bf16.mxu0 0
  %1513 = vmatpush1.bf16.msra.mxu0 0
  %1514 = vmatprep.subr.bf16.mxu0 0
  %1515 = vmatpush1.bf16.msra.mxu0 0
  %1516 = vmatprep.subr.bf16.mxu0 0
  %1517 = vmatpush1.bf16.msra.mxu0 0
  %1518 = vmatprep.subr.bf16.mxu0 0
  %1519 = vmatpush1.bf16.msra.mxu0 0
  %1520 = vmatprep.subr.bf16.mxu0 0
  %1521 = vmatpush1.bf16.msra.mxu0 0
  %1522 = vmatprep.subr.bf16.mxu0 0
  %1523 = vmatpush1.bf16.msra.mxu0 %v1506
  %1524 = vmatprep.subr.bf16.mxu0 0
  %1525 = vmatpush2.bf16.msra.mxu0 0
  %1526 = vmatprep.subr.bf16.mxu0 0
  %1527 = vmatpush2.bf16.msra.mxu0 0
  %1528 = vmatprep.subr.bf16.mxu0 0
  %1529 = vmatpush2.bf16.msra.mxu0 0
  %1530 = vmatprep.subr.bf16.mxu0 0
  %1531 = vmatpush2.bf16.msra.mxu0 0
  %1532 = vmatprep.subr.bf16.mxu0 0
  %1533 = vmatpush2.bf16.msra.mxu0 0
  %1534 = vmatprep.subr.bf16.mxu0 0
  %1535 = vmatpush2.bf16.msra.mxu0 0
  %1536 = vmatprep.subr.bf16.mxu0 0
  %1537 = vmatpush2.bf16.msra.mxu0 0
  %1538 = vmatprep.subr.bf16.mxu0 0
  %1539 = vmatpush2.bf16.msra.mxu0 0
  %1540 = vmatprep.mubr.bf16.mxu0 0
  %1541 = vmatmul.mubr.bf16.gmra.mxu0 %v1500
  %v1542 = vpop.f32.mrf.mxu0
  %v1543 = vadd.f32 0.0, %v1542
  %v1544 = vpop.f32.mrf.mxu0
  %v1545 = vpop.f32.mrf.mxu0
  %v1546 = vadd.f32 0.0, %v1545
  %v1547 = vpop.f32.mrf.mxu0
  %1548 = vmatprep.mubr.bf16.mxu0 0
  %1549 = vmatmul.mubr.bf16.gmra.mxu0 %v1503
  %v1550 = vpop.f32.mrf.mxu0
  %v1551 = vadd.f32 0.0, %v1550
  %v1552 = vpop.f32.mrf.mxu0
  %v1553 = vpop.f32.mrf.mxu0
  %v1554 = vadd.f32 0.0, %v1553
  %v1555 = vpop.f32.mrf.mxu0
  %1556 = vdwg.mxu0
  %v1558 = vsel %vm380, %v834, 0
  %v1561 = vsel %vm380, %v835, 0
  %v1564 = vsel %vm652, %v836, 0
  %1566 = vmatprep.subr.bf16.mxu0 0
  %1567 = vmatpush1.bf16.msra.mxu0 0
  %1568 = vmatprep.subr.bf16.mxu0 0
  %1569 = vmatpush1.bf16.msra.mxu0 0
  %1570 = vmatprep.subr.bf16.mxu0 0
  %1571 = vmatpush1.bf16.msra.mxu0 0
  %1572 = vmatprep.subr.bf16.mxu0 0
  %1573 = vmatpush1.bf16.msra.mxu0 0
  %1574 = vmatprep.subr.bf16.mxu0 0
  %1575 = vmatpush1.bf16.msra.mxu0 0
  %1576 = vmatprep.subr.bf16.mxu0 0
  %1577 = vmatpush1.bf16.msra.mxu0 0
  %1578 = vmatprep.subr.bf16.mxu0 0
  %1579 = vmatpush1.bf16.msra.mxu0 0
  %1580 = vmatprep.subr.bf16.mxu0 0
  %1581 = vmatpush1.bf16.msra.mxu0 %v1564
  %1582 = vmatprep.subr.bf16.mxu0 0
  %1583 = vmatpush2.bf16.msra.mxu0 0
  %1584 = vmatprep.subr.bf16.mxu0 0
  %1585 = vmatpush2.bf16.msra.mxu0 0
  %1586 = vmatprep.subr.bf16.mxu0 0
  %1587 = vmatpush2.bf16.msra.mxu0 0
  %1588 = vmatprep.subr.bf16.mxu0 0
  %1589 = vmatpush2.bf16.msra.mxu0 0
  %1590 = vmatprep.subr.bf16.mxu0 0
  %1591 = vmatpush2.bf16.msra.mxu0 0
  %1592 = vmatprep.subr.bf16.mxu0 0
  %1593 = vmatpush2.bf16.msra.mxu0 0
  %1594 = vmatprep.subr.bf16.mxu0 0
  %1595 = vmatpush2.bf16.msra.mxu0 0
  %1596 = vmatprep.subr.bf16.mxu0 0
  %1597 = vmatpush2.bf16.msra.mxu0 0
  %1598 = vmatprep.mubr.bf16.mxu0 0
  %1599 = vmatmul.mubr.bf16.gmra.mxu0 %v1558
  %v1600 = vpop.f32.mrf.mxu0
  %v1601 = vadd.f32 %v1543, %v1600
  %v1602 = vpop.f32.mrf.mxu0
  %v1603 = vpop.f32.mrf.mxu0
  %v1604 = vadd.f32 %v1546, %v1603
  %v1605 = vpop.f32.mrf.mxu0
  %1606 = vmatprep.mubr.bf16.mxu0 0
  %1607 = vmatmul.mubr.bf16.gmra.mxu0 %v1561
  %v1608 = vpop.f32.mrf.mxu0
  %v1609 = vadd.f32 %v1551, %v1608
  %v1610 = vpop.f32.mrf.mxu0
  %v1611 = vpop.f32.mrf.mxu0
  %v1612 = vadd.f32 %v1554, %v1611
  %v1613 = vpop.f32.mrf.mxu0
  %1614 = vdwg.mxu0
  %s1615 = scalar_lea.vmem %s4, 32
  %v1616 = vld [vmem:[%s1615] sm:$0xf]
  %v1617 = vld [vmem:[%s1615 + $0x4] sm:$0xf]
  %v1618 = vld [vmem:[%s1615 + $0x8] sm:$0xf]
  %v1619 = vld [vmem:[%s1615 + $0xc] sm:$0xf]
  %s1620 = scalar_lea.vmem %s5, 2
  %v1621 = vld [vmem:[%s1620] sm:$0x1]
  %v1623 = vlaneseq
  %v1624 = vshrl.u32 %v1623, 7
  %v1625 = vsub.s32 0, %v1624
  %v1626 = vrot.slane %v1621, %v1625
  %v1632 = vunpack.c.l.b16 %v1616
  %v1633 = vunpack.c.l.b16 %v1617
  %v1634 = vunpack.c.l.b16 %v1618
  %v1635 = vunpack.c.l.b16 %v1619
  %v1636 = vpack.c.b16 %v1633, %v1632
  %v1637 = vpack.c.b16 %v1635, %v1634
  %1640 = vmatprep.subr.bf16.mxu0 0
  %1641 = vmatpush1.bf16.msra.mxu0 0
  %1642 = vmatprep.subr.bf16.mxu0 0
  %1643 = vmatpush1.bf16.msra.mxu0 0
  %1644 = vmatprep.subr.bf16.mxu0 0
  %1645 = vmatpush1.bf16.msra.mxu0 0
  %1646 = vmatprep.subr.bf16.mxu0 0
  %1647 = vmatpush1.bf16.msra.mxu0 0
  %1648 = vmatprep.subr.bf16.mxu0 0
  %1649 = vmatpush1.bf16.msra.mxu0 0
  %1650 = vmatprep.subr.bf16.mxu0 0
  %1651 = vmatpush1.bf16.msra.mxu0 0
  %1652 = vmatprep.subr.bf16.mxu0 0
  %1653 = vmatpush1.bf16.msra.mxu0 %v1637
  %1654 = vmatprep.subr.bf16.mxu0 0
  %1655 = vmatpush1.bf16.msra.mxu0 %v1636
  %1656 = vmatprep.subr.bf16.mxu0 0
  %1657 = vmatpush2.bf16.msra.mxu0 0
  %1658 = vmatprep.subr.bf16.mxu0 0
  %1659 = vmatpush2.bf16.msra.mxu0 0
  %1660 = vmatprep.subr.bf16.mxu0 0
  %1661 = vmatpush2.bf16.msra.mxu0 0
  %1662 = vmatprep.subr.bf16.mxu0 0
  %1663 = vmatpush2.bf16.msra.mxu0 0
  %1664 = vmatprep.subr.bf16.mxu0 0
  %1665 = vmatpush2.bf16.msra.mxu0 0
  %1666 = vmatprep.subr.bf16.mxu0 0
  %1667 = vmatpush2.bf16.msra.mxu0 0
  %1668 = vmatprep.subr.bf16.mxu0 0
  %1669 = vmatpush2.bf16.msra.mxu0 0
  %1670 = vmatprep.subr.bf16.mxu0 0
  %1671 = vmatpush2.bf16.msra.mxu0 0
  %1672 = vmatprep.mubr.bf16.mxu0 0
  %1673 = vmatmul.mubr.bf16.gmra.mxu0 %v170
  %v1674 = vpop.f32.mrf.mxu0
  %v1675 = vadd.f32 %v1626, %v1674
  %v1676 = vpop.f32.mrf.mxu0
  %v1677 = vpop.f32.mrf.mxu0
  %v1678 = vadd.f32 %v1626, %v1677
  %v1679 = vpop.f32.mrf.mxu0
  %1680 = vmatprep.mubr.bf16.mxu0 0
  %1681 = vmatmul.mubr.bf16.gmra.mxu0 %v173
  %v1682 = vpop.f32.mrf.mxu0
  %v1683 = vadd.f32 %v1626, %v1682
  %v1684 = vpop.f32.mrf.mxu0
  %v1685 = vpop.f32.mrf.mxu0
  %v1686 = vadd.f32 %v1626, %v1685
  %v1687 = vpop.f32.mrf.mxu0
  %1688 = vdwg.mxu0
  %s1689 = scalar_lea.vmem %s4, 96
  %v1690 = vld [vmem:[%s1689] sm:$0xf]
  %v1691 = vld [vmem:[%s1689 + $0x4] sm:$0xf]
  %v1692 = vld [vmem:[%s1689 + $0x8] sm:$0xf]
  %v1693 = vld [vmem:[%s1689 + $0xc] sm:$0xf]
  %s1694 = scalar_lea.vmem %s5, 6
  %v1695 = vld [vmem:[%s1694] sm:$0x1]
  %v1697 = vlaneseq
  %v1698 = vshrl.u32 %v1697, 7
  %v1699 = vsub.s32 0, %v1698
  %v1700 = vrot.slane %v1695, %v1699
  %v1706 = vunpack.c.l.b16 %v1690
  %v1707 = vunpack.c.l.b16 %v1691
  %v1708 = vunpack.c.l.b16 %v1692
  %v1709 = vunpack.c.l.b16 %v1693
  %v1710 = vpack.c.b16 %v1707, %v1706
  %v1711 = vpack.c.b16 %v1709, %v1708
  %1714 = vmatprep.subr.bf16.mxu0 0
  %1715 = vmatpush1.bf16.msra.mxu0 0
  %1716 = vmatprep.subr.bf16.mxu0 0
  %1717 = vmatpush1.bf16.msra.mxu0 0
  %1718 = vmatprep.subr.bf16.mxu0 0
  %1719 = vmatpush1.bf16.msra.mxu0 0
  %1720 = vmatprep.subr.bf16.mxu0 0
  %1721 = vmatpush1.bf16.msra.mxu0 0
  %1722 = vmatprep.subr.bf16.mxu0 0
  %1723 = vmatpush1.bf16.msra.mxu0 0
  %1724 = vmatprep.subr.bf16.mxu0 0
  %1725 = vmatpush1.bf16.msra.mxu0 0
  %1726 = vmatprep.subr.bf16.mxu0 0
  %1727 = vmatpush1.bf16.msra.mxu0 %v1711
  %1728 = vmatprep.subr.bf16.mxu0 0
  %1729 = vmatpush1.bf16.msra.mxu0 %v1710
  %1730 = vmatprep.subr.bf16.mxu0 0
  %1731 = vmatpush2.bf16.msra.mxu0 0
  %1732 = vmatprep.subr.bf16.mxu0 0
  %1733 = vmatpush2.bf16.msra.mxu0 0
  %1734 = vmatprep.subr.bf16.mxu0 0
  %1735 = vmatpush2.bf16.msra.mxu0 0
  %1736 = vmatprep.subr.bf16.mxu0 0
  %1737 = vmatpush2.bf16.msra.mxu0 0
  %1738 = vmatprep.subr.bf16.mxu0 0
  %1739 = vmatpush2.bf16.msra.mxu0 0
  %1740 = vmatprep.subr.bf16.mxu0 0
  %1741 = vmatpush2.bf16.msra.mxu0 0
  %1742 = vmatprep.subr.bf16.mxu0 0
  %1743 = vmatpush2.bf16.msra.mxu0 0
  %1744 = vmatprep.subr.bf16.mxu0 0
  %1745 = vmatpush2.bf16.msra.mxu0 0
  %1746 = vmatprep.mubr.bf16.mxu0 0
  %1747 = vmatmul.mubr.bf16.gmra.mxu0 %v170
  %v1748 = vpop.f32.mrf.mxu0
  %v1749 = vadd.f32 %v1700, %v1748
  %v1750 = vpop.f32.mrf.mxu0
  %v1751 = vpop.f32.mrf.mxu0
  %v1752 = vadd.f32 %v1700, %v1751
  %v1753 = vpop.f32.mrf.mxu0
  %1754 = vmatprep.mubr.bf16.mxu0 0
  %1755 = vmatmul.mubr.bf16.gmra.mxu0 %v173
  %v1756 = vpop.f32.mrf.mxu0
  %v1757 = vadd.f32 %v1700, %v1756
  %v1758 = vpop.f32.mrf.mxu0
  %v1759 = vpop.f32.mrf.mxu0
  %v1760 = vadd.f32 %v1700, %v1759
  %v1761 = vpop.f32.mrf.mxu0
  %1762 = vdwg.mxu0
  %s1763 = scalar_lea.vmem %s4, 160
  %v1764 = vld [vmem:[%s1763] sm:$0xf]
  %v1765 = vld [vmem:[%s1763 + $0x4] sm:$0xf]
  %v1766 = vld [vmem:[%s1763 + $0x8] sm:$0xf]
  %v1767 = vld [vmem:[%s1763 + $0xc] sm:$0xf]
  %s1768 = scalar_lea.vmem %s5, 10
  %v1769 = vld [vmem:[%s1768] sm:$0x1]
  %v1771 = vlaneseq
  %v1772 = vshrl.u32 %v1771, 7
  %v1773 = vsub.s32 0, %v1772
  %v1774 = vrot.slane %v1769, %v1773
  %v1780 = vunpack.c.l.b16 %v1764
  %v1781 = vunpack.c.l.b16 %v1765
  %v1782 = vunpack.c.l.b16 %v1766
  %v1783 = vunpack.c.l.b16 %v1767
  %v1784 = vpack.c.b16 %v1781, %v1780
  %v1785 = vpack.c.b16 %v1783, %v1782
  %1788 = vmatprep.subr.bf16.mxu0 0
  %1789 = vmatpush1.bf16.msra.mxu0 0
  %1790 = vmatprep.subr.bf16.mxu0 0
  %1791 = vmatpush1.bf16.msra.mxu0 0
  %1792 = vmatprep.subr.bf16.mxu0 0
  %1793 = vmatpush1.bf16.msra.mxu0 0
  %1794 = vmatprep.subr.bf16.mxu0 0
  %1795 = vmatpush1.bf16.msra.mxu0 0
  %1796 = vmatprep.subr.bf16.mxu0 0
  %1797 = vmatpush1.bf16.msra.mxu0 0
  %1798 = vmatprep.subr.bf16.mxu0 0
  %1799 = vmatpush1.bf16.msra.mxu0 0
  %1800 = vmatprep.subr.bf16.mxu0 0
  %1801 = vmatpush1.bf16.msra.mxu0 %v1785
  %1802 = vmatprep.subr.bf16.mxu0 0
  %1803 = vmatpush1.bf16.msra.mxu0 %v1784
  %1804 = vmatprep.subr.bf16.mxu0 0
  %1805 = vmatpush2.bf16.msra.mxu0 0
  %1806 = vmatprep.subr.bf16.mxu0 0
  %1807 = vmatpush2.bf16.msra.mxu0 0
  %1808 = vmatprep.subr.bf16.mxu0 0
  %1809 = vmatpush2.bf16.msra.mxu0 0
  %1810 = vmatprep.subr.bf16.mxu0 0
  %1811 = vmatpush2.bf16.msra.mxu0 0
  %1812 = vmatprep.subr.bf16.mxu0 0
  %1813 = vmatpush2.bf16.msra.mxu0 0
  %1814 = vmatprep.subr.bf16.mxu0 0
  %1815 = vmatpush2.bf16.msra.mxu0 0
  %1816 = vmatprep.subr.bf16.mxu0 0
  %1817 = vmatpush2.bf16.msra.mxu0 0
  %1818 = vmatprep.subr.bf16.mxu0 0
  %1819 = vmatpush2.bf16.msra.mxu0 0
  %1820 = vmatprep.mubr.bf16.mxu0 0
  %1821 = vmatmul.mubr.bf16.gmra.mxu0 %v170
  %v1822 = vpop.f32.mrf.mxu0
  %v1823 = vadd.f32 %v1774, %v1822
  %v1824 = vpop.f32.mrf.mxu0
  %v1825 = vpop.f32.mrf.mxu0
  %v1826 = vadd.f32 %v1774, %v1825
  %v1827 = vpop.f32.mrf.mxu0
  %1828 = vmatprep.mubr.bf16.mxu0 0
  %1829 = vmatmul.mubr.bf16.gmra.mxu0 %v173
  %v1830 = vpop.f32.mrf.mxu0
  %v1831 = vadd.f32 %v1774, %v1830
  %v1832 = vpop.f32.mrf.mxu0
  %v1833 = vpop.f32.mrf.mxu0
  %v1834 = vadd.f32 %v1774, %v1833
  %v1835 = vpop.f32.mrf.mxu0
  %1836 = vdwg.mxu0
  %v1837 = vpack.c.bf16 %v1675, %v1675
  %v1838 = vpack.c.bf16 %v1678, %v1678
  %v1839 = vpack.c.bf16 %v1683, %v1683
  %v1840 = vpack.c.bf16 %v1686, %v1686
  %v1841 = vpack.c.bf16 %v1749, %v1749
  %v1842 = vpack.c.bf16 %v1752, %v1752
  %v1843 = vpack.c.bf16 %v1757, %v1757
  %v1844 = vpack.c.bf16 %v1760, %v1760
  %v1846 = vsel %vm380, %v1837, 0
  %v1849 = vsel %vm380, %v1841, 0
  %1851 = vmatprep.subr.bf16.mxu0 0
  %1852 = vmatpush1.bf16.xpose.msra.mxu0 0
  %1853 = vmatprep.subr.bf16.mxu0 0
  %1854 = vmatpush1.bf16.xpose.msra.mxu0 0
  %1855 = vmatprep.subr.bf16.mxu0 0
  %1856 = vmatpush1.bf16.xpose.msra.mxu0 0
  %1857 = vmatprep.subr.bf16.mxu0 0
  %1858 = vmatpush1.bf16.xpose.msra.mxu0 0
  %1859 = vmatprep.subr.bf16.mxu0 0
  %1860 = vmatpush1.bf16.xpose.msra.mxu0 0
  %1861 = vmatprep.subr.bf16.mxu0 0
  %1862 = vmatpush1.bf16.xpose.msra.mxu0 0
  %1863 = vmatprep.subr.bf16.mxu0 0
  %1864 = vmatpush1.bf16.xpose.msra.mxu0 0
  %1865 = vmatprep.subr.bf16.mxu0 0
  %1866 = vmatpush1.bf16.xpose.msra.mxu0 %v1849
  %1867 = vmatprep.subr.bf16.mxu0 0
  %1868 = vmatpush2.bf16.xpose.msra.mxu0 0
  %1869 = vmatprep.subr.bf16.mxu0 0
  %1870 = vmatpush2.bf16.xpose.msra.mxu0 0
  %1871 = vmatprep.subr.bf16.mxu0 0
  %1872 = vmatpush2.bf16.xpose.msra.mxu0 0
  %1873 = vmatprep.subr.bf16.mxu0 0
  %1874 = vmatpush2.bf16.xpose.msra.mxu0 0
  %1875 = vmatprep.subr.bf16.mxu0 0
  %1876 = vmatpush2.bf16.xpose.msra.mxu0 0
  %1877 = vmatprep.subr.bf16.mxu0 0
  %1878 = vmatpush2.bf16.xpose.msra.mxu0 0
  %1879 = vmatprep.subr.bf16.mxu0 0
  %1880 = vmatpush2.bf16.xpose.msra.mxu0 0
  %1881 = vmatprep.subr.bf16.mxu0 0
  %1882 = vmatpush2.bf16.xpose.msra.mxu0 0
  %1883 = vmatprep.mubr.bf16.mxu0 0
  %1884 = vmatmul.mubr.bf16.gmra.mxu0 %v1846
  %v1885 = vpop.f32.mrf.mxu0
  %v1886 = vadd.f32 0.0, %v1885
  %v1887 = vpop.f32.mrf.mxu0
  %v1888 = vpop.f32.mrf.mxu0
  %v1889 = vpop.f32.mrf.mxu0
  %1890 = vdwg.mxu0
  %v1892 = vsel %vm380, %v1838, 0
  %v1895 = vsel %vm380, %v1842, 0
  %1897 = vmatprep.subr.bf16.mxu0 0
  %1898 = vmatpush1.bf16.xpose.msra.mxu0 0
  %1899 = vmatprep.subr.bf16.mxu0 0
  %1900 = vmatpush1.bf16.xpose.msra.mxu0 0
  %1901 = vmatprep.subr.bf16.mxu0 0
  %1902 = vmatpush1.bf16.xpose.msra.mxu0 0
  %1903 = vmatprep.subr.bf16.mxu0 0
  %1904 = vmatpush1.bf16.xpose.msra.mxu0 0
  %1905 = vmatprep.subr.bf16.mxu0 0
  %1906 = vmatpush1.bf16.xpose.msra.mxu0 0
  %1907 = vmatprep.subr.bf16.mxu0 0
  %1908 = vmatpush1.bf16.xpose.msra.mxu0 0
  %1909 = vmatprep.subr.bf16.mxu0 0
  %1910 = vmatpush1.bf16.xpose.msra.mxu0 0
  %1911 = vmatprep.subr.bf16.mxu0 0
  %1912 = vmatpush1.bf16.xpose.msra.mxu0 %v1895
  %1913 = vmatprep.subr.bf16.mxu0 0
  %1914 = vmatpush2.bf16.xpose.msra.mxu0 0
  %1915 = vmatprep.subr.bf16.mxu0 0
  %1916 = vmatpush2.bf16.xpose.msra.mxu0 0
  %1917 = vmatprep.subr.bf16.mxu0 0
  %1918 = vmatpush2.bf16.xpose.msra.mxu0 0
  %1919 = vmatprep.subr.bf16.mxu0 0
  %1920 = vmatpush2.bf16.xpose.msra.mxu0 0
  %1921 = vmatprep.subr.bf16.mxu0 0
  %1922 = vmatpush2.bf16.xpose.msra.mxu0 0
  %1923 = vmatprep.subr.bf16.mxu0 0
  %1924 = vmatpush2.bf16.xpose.msra.mxu0 0
  %1925 = vmatprep.subr.bf16.mxu0 0
  %1926 = vmatpush2.bf16.xpose.msra.mxu0 0
  %1927 = vmatprep.subr.bf16.mxu0 0
  %1928 = vmatpush2.bf16.xpose.msra.mxu0 0
  %1929 = vmatprep.mubr.bf16.mxu0 0
  %1930 = vmatmul.mubr.bf16.gmra.mxu0 %v1892
  %v1931 = vpop.f32.mrf.mxu0
  %v1932 = vadd.f32 0.0, %v1931
  %v1933 = vpop.f32.mrf.mxu0
  %v1934 = vpop.f32.mrf.mxu0
  %v1935 = vpop.f32.mrf.mxu0
  %1936 = vdwg.mxu0
  %v1938 = vsel %vm380, %v1839, 0
  %v1941 = vsel %vm380, %v1843, 0
  %1943 = vmatprep.subr.bf16.mxu0 0
  %1944 = vmatpush1.bf16.xpose.msra.mxu0 0
  %1945 = vmatprep.subr.bf16.mxu0 0
  %1946 = vmatpush1.bf16.xpose.msra.mxu0 0
  %1947 = vmatprep.subr.bf16.mxu0 0
  %1948 = vmatpush1.bf16.xpose.msra.mxu0 0
  %1949 = vmatprep.subr.bf16.mxu0 0
  %1950 = vmatpush1.bf16.xpose.msra.mxu0 0
  %1951 = vmatprep.subr.bf16.mxu0 0
  %1952 = vmatpush1.bf16.xpose.msra.mxu0 0
  %1953 = vmatprep.subr.bf16.mxu0 0
  %1954 = vmatpush1.bf16.xpose.msra.mxu0 0
  %1955 = vmatprep.subr.bf16.mxu0 0
  %1956 = vmatpush1.bf16.xpose.msra.mxu0 0
  %1957 = vmatprep.subr.bf16.mxu0 0
  %1958 = vmatpush1.bf16.xpose.msra.mxu0 %v1941
  %1959 = vmatprep.subr.bf16.mxu0 0
  %1960 = vmatpush2.bf16.xpose.msra.mxu0 0
  %1961 = vmatprep.subr.bf16.mxu0 0
  %1962 = vmatpush2.bf16.xpose.msra.mxu0 0
  %1963 = vmatprep.subr.bf16.mxu0 0
  %1964 = vmatpush2.bf16.xpose.msra.mxu0 0
  %1965 = vmatprep.subr.bf16.mxu0 0
  %1966 = vmatpush2.bf16.xpose.msra.mxu0 0
  %1967 = vmatprep.subr.bf16.mxu0 0
  %1968 = vmatpush2.bf16.xpose.msra.mxu0 0
  %1969 = vmatprep.subr.bf16.mxu0 0
  %1970 = vmatpush2.bf16.xpose.msra.mxu0 0
  %1971 = vmatprep.subr.bf16.mxu0 0
  %1972 = vmatpush2.bf16.xpose.msra.mxu0 0
  %1973 = vmatprep.subr.bf16.mxu0 0
  %1974 = vmatpush2.bf16.xpose.msra.mxu0 0
  %1975 = vmatprep.mubr.bf16.mxu0 0
  %1976 = vmatmul.mubr.bf16.gmra.mxu0 %v1938
  %v1977 = vpop.f32.mrf.mxu0
  %v1978 = vadd.f32 0.0, %v1977
  %v1979 = vpop.f32.mrf.mxu0
  %v1980 = vpop.f32.mrf.mxu0
  %v1981 = vpop.f32.mrf.mxu0
  %1982 = vdwg.mxu0
  %v1984 = vsel %vm380, %v1840, 0
  %v1987 = vsel %vm380, %v1844, 0
  %1989 = vmatprep.subr.bf16.mxu0 0
  %1990 = vmatpush1.bf16.xpose.msra.mxu0 0
  %1991 = vmatprep.subr.bf16.mxu0 0
  %1992 = vmatpush1.bf16.xpose.msra.mxu0 0
  %1993 = vmatprep.subr.bf16.mxu0 0
  %1994 = vmatpush1.bf16.xpose.msra.mxu0 0
  %1995 = vmatprep.subr.bf16.mxu0 0
  %1996 = vmatpush1.bf16.xpose.msra.mxu0 0
  %1997 = vmatprep.subr.bf16.mxu0 0
  %1998 = vmatpush1.bf16.xpose.msra.mxu0 0
  %1999 = vmatprep.subr.bf16.mxu0 0
  %2000 = vmatpush1.bf16.xpose.msra.mxu0 0
  %2001 = vmatprep.subr.bf16.mxu0 0
  %2002 = vmatpush1.bf16.xpose.msra.mxu0 0
  %2003 = vmatprep.subr.bf16.mxu0 0
  %2004 = vmatpush1.bf16.xpose.msra.mxu0 %v1987
  %2005 = vmatprep.subr.bf16.mxu0 0
  %2006 = vmatpush2.bf16.xpose.msra.mxu0 0
  %2007 = vmatprep.subr.bf16.mxu0 0
  %2008 = vmatpush2.bf16.xpose.msra.mxu0 0
  %2009 = vmatprep.subr.bf16.mxu0 0
  %2010 = vmatpush2.bf16.xpose.msra.mxu0 0
  %2011 = vmatprep.subr.bf16.mxu0 0
  %2012 = vmatpush2.bf16.xpose.msra.mxu0 0
  %2013 = vmatprep.subr.bf16.mxu0 0
  %2014 = vmatpush2.bf16.xpose.msra.mxu0 0
  %2015 = vmatprep.subr.bf16.mxu0 0
  %2016 = vmatpush2.bf16.xpose.msra.mxu0 0
  %2017 = vmatprep.subr.bf16.mxu0 0
  %2018 = vmatpush2.bf16.xpose.msra.mxu0 0
  %2019 = vmatprep.subr.bf16.mxu0 0
  %2020 = vmatpush2.bf16.xpose.msra.mxu0 0
  %2021 = vmatprep.mubr.bf16.mxu0 0
  %2022 = vmatmul.mubr.bf16.gmra.mxu0 %v1984
  %v2023 = vpop.f32.mrf.mxu0
  %v2024 = vadd.f32 0.0, %v2023
  %v2025 = vpop.f32.mrf.mxu0
  %v2026 = vpop.f32.mrf.mxu0
  %v2027 = vpop.f32.mrf.mxu0
  %2028 = vdwg.mxu0
  %v2029 = vmul.f32 %v1886, 0.35355338
  %v2030 = vmul.f32 %v1932, 0.35355338
  %v2031 = vmul.f32 %v1978, 0.35355338
  %v2032 = vmul.f32 %v2024, 0.35355338
  %v2033 = vadd.f32 %v2029, %v576
  %v2034 = vadd.f32 %v2030, %v580
  %v2035 = vadd.f32 %v2031, %v584
  %v2036 = vadd.f32 %v2032, %v588
  %v2037 = vsel %vm380, %v2033, -inf
  %2038 = vmax.xlane.f32.xlu0 %v2037
  %v2039 = vpop.xlane.xlu0 %2038
  %v2040 = vsel %vm380, %v2034, -inf
  %2041 = vmax.xlane.f32.xlu0 %v2040
  %v2042 = vpop.xlane.xlu0 %2041
  %v2043 = vsel %vm380, %v2035, -inf
  %2044 = vmax.xlane.f32.xlu0 %v2043
  %v2045 = vpop.xlane.xlu0 %2044
  %v2046 = vsel %vm380, %v2036, -inf
  %2047 = vmax.xlane.f32.xlu0 %v2046
  %v2048 = vpop.xlane.xlu0 %2047
  %v2049 = vsub.f32 %v2033, %v2039
  %v2050 = vsub.f32 %v2034, %v2042
  %v2051 = vsub.f32 %v2035, %v2045
  %v2052 = vsub.f32 %v2036, %v2048
  %v2053 = vmul.f32 %v2049, 1.442695
  %v2054 = vpow.pop %v2053
  %v2055 = vmul.f32 %v2050, 1.442695
  %v2056 = vpow.pop %v2055
  %v2057 = vmul.f32 %v2051, 1.442695
  %v2058 = vpow.pop %v2057
  %v2059 = vmul.f32 %v2052, 1.442695
  %v2060 = vpow.pop %v2059
  %v2061 = vsel %vm380, %v2054, 0.0
  %2062 = vadd.xlane.f32.xlu0 %v2061
  %v2063 = vpop.xlane.xlu0 %2062
  %v2064 = vsel %vm380, %v2056, 0.0
  %2065 = vadd.xlane.f32.xlu0 %v2064
  %v2066 = vpop.xlane.xlu0 %2065
  %v2067 = vsel %vm380, %v2058, 0.0
  %2068 = vadd.xlane.f32.xlu0 %v2067
  %v2069 = vpop.xlane.xlu0 %2068
  %v2070 = vsel %vm380, %v2060, 0.0
  %2071 = vadd.xlane.f32.xlu0 %v2070
  %v2072 = vpop.xlane.xlu0 %2071
  %v2073 = vrcp.pop %v2063
  %v2074 = vrcp.pop %v2066
  %v2075 = vrcp.pop %v2069
  %v2076 = vrcp.pop %v2072
  %v2077 = vmul.f32 %v2054, %v2073
  %v2078 = vmul.f32 %v2056, %v2074
  %v2079 = vmul.f32 %v2058, %v2075
  %v2080 = vmul.f32 %v2060, %v2076
  %v2081 = vpack.c.bf16 %v2077, %v2077
  %v2082 = vpack.c.bf16 %v2078, %v2078
  %v2083 = vpack.c.bf16 %v2079, %v2079
  %v2084 = vpack.c.bf16 %v2080, %v2080
  %v2085 = vpack.c.bf16 %v1823, %v1823
  %v2086 = vpack.c.bf16 %v1826, %v1826
  %v2087 = vpack.c.bf16 %v1831, %v1831
  %v2088 = vpack.c.bf16 %v1834, %v1834
  %v2090 = vsel %vm380, %v2081, 0
  %v2093 = vsel %vm652, %v2085, 0
  %2095 = vmatprep.subr.bf16.mxu0 0
  %2096 = vmatpush1.bf16.msra.mxu0 0
  %2097 = vmatprep.subr.bf16.mxu0 0
  %2098 = vmatpush1.bf16.msra.mxu0 0
  %2099 = vmatprep.subr.bf16.mxu0 0
  %2100 = vmatpush1.bf16.msra.mxu0 0
  %2101 = vmatprep.subr.bf16.mxu0 0
  %2102 = vmatpush1.bf16.msra.mxu0 0
  %2103 = vmatprep.subr.bf16.mxu0 0
  %2104 = vmatpush1.bf16.msra.mxu0 0
  %2105 = vmatprep.subr.bf16.mxu0 0
  %2106 = vmatpush1.bf16.msra.mxu0 0
  %2107 = vmatprep.subr.bf16.mxu0 0
  %2108 = vmatpush1.bf16.msra.mxu0 0
  %2109 = vmatprep.subr.bf16.mxu0 0
  %2110 = vmatpush1.bf16.msra.mxu0 %v2093
  %2111 = vmatprep.subr.bf16.mxu0 0
  %2112 = vmatpush2.bf16.msra.mxu0 0
  %2113 = vmatprep.subr.bf16.mxu0 0
  %2114 = vmatpush2.bf16.msra.mxu0 0
  %2115 = vmatprep.subr.bf16.mxu0 0
  %2116 = vmatpush2.bf16.msra.mxu0 0
  %2117 = vmatprep.subr.bf16.mxu0 0
  %2118 = vmatpush2.bf16.msra.mxu0 0
  %2119 = vmatprep.subr.bf16.mxu0 0
  %2120 = vmatpush2.bf16.msra.mxu0 0
  %2121 = vmatprep.subr.bf16.mxu0 0
  %2122 = vmatpush2.bf16.msra.mxu0 0
  %2123 = vmatprep.subr.bf16.mxu0 0
  %2124 = vmatpush2.bf16.msra.mxu0 0
  %2125 = vmatprep.subr.bf16.mxu0 0
  %2126 = vmatpush2.bf16.msra.mxu0 0
  %2127 = vmatprep.mubr.bf16.mxu0 0
  %2128 = vmatmul.mubr.bf16.gmra.mxu0 %v2090
  %v2129 = vpop.f32.mrf.mxu0
  %v2130 = vadd.f32 0.0, %v2129
  %v2131 = vpop.f32.mrf.mxu0
  %v2132 = vpop.f32.mrf.mxu0
  %v2133 = vpop.f32.mrf.mxu0
  %2134 = vdwg.mxu0
  %v2136 = vsel %vm380, %v2082, 0
  %v2139 = vsel %vm652, %v2086, 0
  %2141 = vmatprep.subr.bf16.mxu0 0
  %2142 = vmatpush1.bf16.msra.mxu0 0
  %2143 = vmatprep.subr.bf16.mxu0 0
  %2144 = vmatpush1.bf16.msra.mxu0 0
  %2145 = vmatprep.subr.bf16.mxu0 0
  %2146 = vmatpush1.bf16.msra.mxu0 0
  %2147 = vmatprep.subr.bf16.mxu0 0
  %2148 = vmatpush1.bf16.msra.mxu0 0
  %2149 = vmatprep.subr.bf16.mxu0 0
  %2150 = vmatpush1.bf16.msra.mxu0 0
  %2151 = vmatprep.subr.bf16.mxu0 0
  %2152 = vmatpush1.bf16.msra.mxu0 0
  %2153 = vmatprep.subr.bf16.mxu0 0
  %2154 = vmatpush1.bf16.msra.mxu0 0
  %2155 = vmatprep.subr.bf16.mxu0 0
  %2156 = vmatpush1.bf16.msra.mxu0 %v2139
  %2157 = vmatprep.subr.bf16.mxu0 0
  %2158 = vmatpush2.bf16.msra.mxu0 0
  %2159 = vmatprep.subr.bf16.mxu0 0
  %2160 = vmatpush2.bf16.msra.mxu0 0
  %2161 = vmatprep.subr.bf16.mxu0 0
  %2162 = vmatpush2.bf16.msra.mxu0 0
  %2163 = vmatprep.subr.bf16.mxu0 0
  %2164 = vmatpush2.bf16.msra.mxu0 0
  %2165 = vmatprep.subr.bf16.mxu0 0
  %2166 = vmatpush2.bf16.msra.mxu0 0
  %2167 = vmatprep.subr.bf16.mxu0 0
  %2168 = vmatpush2.bf16.msra.mxu0 0
  %2169 = vmatprep.subr.bf16.mxu0 0
  %2170 = vmatpush2.bf16.msra.mxu0 0
  %2171 = vmatprep.subr.bf16.mxu0 0
  %2172 = vmatpush2.bf16.msra.mxu0 0
  %2173 = vmatprep.mubr.bf16.mxu0 0
  %2174 = vmatmul.mubr.bf16.gmra.mxu0 %v2136
  %v2175 = vpop.f32.mrf.mxu0
  %v2176 = vadd.f32 0.0, %v2175
  %v2177 = vpop.f32.mrf.mxu0
  %v2178 = vpop.f32.mrf.mxu0
  %v2179 = vpop.f32.mrf.mxu0
  %2180 = vdwg.mxu0
  %v2182 = vsel %vm380, %v2083, 0
  %v2185 = vsel %vm652, %v2087, 0
  %2187 = vmatprep.subr.bf16.mxu0 0
  %2188 = vmatpush1.bf16.msra.mxu0 0
  %2189 = vmatprep.subr.bf16.mxu0 0
  %2190 = vmatpush1.bf16.msra.mxu0 0
  %2191 = vmatprep.subr.bf16.mxu0 0
  %2192 = vmatpush1.bf16.msra.mxu0 0
  %2193 = vmatprep.subr.bf16.mxu0 0
  %2194 = vmatpush1.bf16.msra.mxu0 0
  %2195 = vmatprep.subr.bf16.mxu0 0
  %2196 = vmatpush1.bf16.msra.mxu0 0
  %2197 = vmatprep.subr.bf16.mxu0 0
  %2198 = vmatpush1.bf16.msra.mxu0 0
  %2199 = vmatprep.subr.bf16.mxu0 0
  %2200 = vmatpush1.bf16.msra.mxu0 0
  %2201 = vmatprep.subr.bf16.mxu0 0
  %2202 = vmatpush1.bf16.msra.mxu0 %v2185
  %2203 = vmatprep.subr.bf16.mxu0 0
  %2204 = vmatpush2.bf16.msra.mxu0 0
  %2205 = vmatprep.subr.bf16.mxu0 0
  %2206 = vmatpush2.bf16.msra.mxu0 0
  %2207 = vmatprep.subr.bf16.mxu0 0
  %2208 = vmatpush2.bf16.msra.mxu0 0
  %2209 = vmatprep.subr.bf16.mxu0 0
  %2210 = vmatpush2.bf16.msra.mxu0 0
  %2211 = vmatprep.subr.bf16.mxu0 0
  %2212 = vmatpush2.bf16.msra.mxu0 0
  %2213 = vmatprep.subr.bf16.mxu0 0
  %2214 = vmatpush2.bf16.msra.mxu0 0
  %2215 = vmatprep.subr.bf16.mxu0 0
  %2216 = vmatpush2.bf16.msra.mxu0 0
  %2217 = vmatprep.subr.bf16.mxu0 0
  %2218 = vmatpush2.bf16.msra.mxu0 0
  %2219 = vmatprep.mubr.bf16.mxu0 0
  %2220 = vmatmul.mubr.bf16.gmra.mxu0 %v2182
  %v2221 = vpop.f32.mrf.mxu0
  %v2222 = vadd.f32 0.0, %v2221
  %v2223 = vpop.f32.mrf.mxu0
  %v2224 = vpop.f32.mrf.mxu0
  %v2225 = vpop.f32.mrf.mxu0
  %2226 = vdwg.mxu0
  %v2228 = vsel %vm380, %v2084, 0
  %v2231 = vsel %vm652, %v2088, 0
  %2233 = vmatprep.subr.bf16.mxu0 0
  %2234 = vmatpush1.bf16.msra.mxu0 0
  %2235 = vmatprep.subr.bf16.mxu0 0
  %2236 = vmatpush1.bf16.msra.mxu0 0
  %2237 = vmatprep.subr.bf16.mxu0 0
  %2238 = vmatpush1.bf16.msra.mxu0 0
  %2239 = vmatprep.subr.bf16.mxu0 0
  %2240 = vmatpush1.bf16.msra.mxu0 0
  %2241 = vmatprep.subr.bf16.mxu0 0
  %2242 = vmatpush1.bf16.msra.mxu0 0
  %2243 = vmatprep.subr.bf16.mxu0 0
  %2244 = vmatpush1.bf16.msra.mxu0 0
  %2245 = vmatprep.subr.bf16.mxu0 0
  %2246 = vmatpush1.bf16.msra.mxu0 0
  %2247 = vmatprep.subr.bf16.mxu0 0
  %2248 = vmatpush1.bf16.msra.mxu0 %v2231
  %2249 = vmatprep.subr.bf16.mxu0 0
  %2250 = vmatpush2.bf16.msra.mxu0 0
  %2251 = vmatprep.subr.bf16.mxu0 0
  %2252 = vmatpush2.bf16.msra.mxu0 0
  %2253 = vmatprep.subr.bf16.mxu0 0
  %2254 = vmatpush2.bf16.msra.mxu0 0
  %2255 = vmatprep.subr.bf16.mxu0 0
  %2256 = vmatpush2.bf16.msra.mxu0 0
  %2257 = vmatprep.subr.bf16.mxu0 0
  %2258 = vmatpush2.bf16.msra.mxu0 0
  %2259 = vmatprep.subr.bf16.mxu0 0
  %2260 = vmatpush2.bf16.msra.mxu0 0
  %2261 = vmatprep.subr.bf16.mxu0 0
  %2262 = vmatpush2.bf16.msra.mxu0 0
  %2263 = vmatprep.subr.bf16.mxu0 0
  %2264 = vmatpush2.bf16.msra.mxu0 0
  %2265 = vmatprep.mubr.bf16.mxu0 0
  %2266 = vmatmul.mubr.bf16.gmra.mxu0 %v2228
  %v2267 = vpop.f32.mrf.mxu0
  %v2268 = vadd.f32 0.0, %v2267
  %v2269 = vpop.f32.mrf.mxu0
  %v2270 = vpop.f32.mrf.mxu0
  %v2271 = vpop.f32.mrf.mxu0
  %2272 = vdwg.mxu0
  %v2273 = vpack.c.bf16 %v2176, %v2130
  %v2274 = vpack.c.bf16 %v2268, %v2222
  %s2275 = scalar_lea.vmem %s6, 8
  %v2276 = vld [vmem:[%s2275] sm:$0xf]
  %v2278 = vsel %vm380, %v2273, 0
  %v2281 = vsel %vm380, %v2274, 0
  %v2284 = vsel %vm652, %v2276, 0
  %2286 = vmatprep.subr.bf16.mxu0 0
  %2287 = vmatpush1.bf16.msra.mxu0 0
  %2288 = vmatprep.subr.bf16.mxu0 0
  %2289 = vmatpush1.bf16.msra.mxu0 0
  %2290 = vmatprep.subr.bf16.mxu0 0
  %2291 = vmatpush1.bf16.msra.mxu0 0
  %2292 = vmatprep.subr.bf16.mxu0 0
  %2293 = vmatpush1.bf16.msra.mxu0 0
  %2294 = vmatprep.subr.bf16.mxu0 0
  %2295 = vmatpush1.bf16.msra.mxu0 0
  %2296 = vmatprep.subr.bf16.mxu0 0
  %2297 = vmatpush1.bf16.msra.mxu0 0
  %2298 = vmatprep.subr.bf16.mxu0 0
  %2299 = vmatpush1.bf16.msra.mxu0 0
  %2300 = vmatprep.subr.bf16.mxu0 0
  %2301 = vmatpush1.bf16.msra.mxu0 %v2284
  %2302 = vmatprep.subr.bf16.mxu0 0
  %2303 = vmatpush2.bf16.msra.mxu0 0
  %2304 = vmatprep.subr.bf16.mxu0 0
  %2305 = vmatpush2.bf16.msra.mxu0 0
  %2306 = vmatprep.subr.bf16.mxu0 0
  %2307 = vmatpush2.bf16.msra.mxu0 0
  %2308 = vmatprep.subr.bf16.mxu0 0
  %2309 = vmatpush2.bf16.msra.mxu0 0
  %2310 = vmatprep.subr.bf16.mxu0 0
  %2311 = vmatpush2.bf16.msra.mxu0 0
  %2312 = vmatprep.subr.bf16.mxu0 0
  %2313 = vmatpush2.bf16.msra.mxu0 0
  %2314 = vmatprep.subr.bf16.mxu0 0
  %2315 = vmatpush2.bf16.msra.mxu0 0
  %2316 = vmatprep.subr.bf16.mxu0 0
  %2317 = vmatpush2.bf16.msra.mxu0 0
  %2318 = vmatprep.mubr.bf16.mxu0 0
  %2319 = vmatmul.mubr.bf16.gmra.mxu0 %v2278
  %v2320 = vpop.f32.mrf.mxu0
  %v2321 = vadd.f32 0.0, %v2320
  %v2322 = vpop.f32.mrf.mxu0
  %v2323 = vpop.f32.mrf.mxu0
  %v2324 = vadd.f32 0.0, %v2323
  %v2325 = vpop.f32.mrf.mxu0
  %2326 = vmatprep.mubr.bf16.mxu0 0
  %2327 = vmatmul.mubr.bf16.gmra.mxu0 %v2281
  %v2328 = vpop.f32.mrf.mxu0
  %v2329 = vadd.f32 0.0, %v2328
  %v2330 = vpop.f32.mrf.mxu0
  %v2331 = vpop.f32.mrf.mxu0
  %v2332 = vadd.f32 0.0, %v2331
  %v2333 = vpop.f32.mrf.mxu0
  %2334 = vdwg.mxu0
  %v2335 = vadd.f32 %v1601, %v2321
  %v2336 = vadd.f32 %v1604, %v2324
  %v2337 = vadd.f32 %v1609, %v2329
  %v2338 = vadd.f32 %v1612, %v2332
  %s2339 = scalar_lea.vmem %s4, 48
  %v2340 = vld [vmem:[%s2339] sm:$0xf]
  %v2341 = vld [vmem:[%s2339 + $0x4] sm:$0xf]
  %v2342 = vld [vmem:[%s2339 + $0x8] sm:$0xf]
  %v2343 = vld [vmem:[%s2339 + $0xc] sm:$0xf]
  %s2344 = scalar_lea.vmem %s5, 3
  %v2345 = vld [vmem:[%s2344] sm:$0x1]
  %v2347 = vlaneseq
  %v2348 = vshrl.u32 %v2347, 7
  %v2349 = vsub.s32 0, %v2348
  %v2350 = vrot.slane %v2345, %v2349
  %v2356 = vunpack.c.l.b16 %v2340
  %v2357 = vunpack.c.l.b16 %v2341
  %v2358 = vunpack.c.l.b16 %v2342
  %v2359 = vunpack.c.l.b16 %v2343
  %v2360 = vpack.c.b16 %v2357, %v2356
  %v2361 = vpack.c.b16 %v2359, %v2358
  %2364 = vmatprep.subr.bf16.mxu0 0
  %2365 = vmatpush1.bf16.msra.mxu0 0
  %2366 = vmatprep.subr.bf16.mxu0 0
  %2367 = vmatpush1.bf16.msra.mxu0 0
  %2368 = vmatprep.subr.bf16.mxu0 0
  %2369 = vmatpush1.bf16.msra.mxu0 0
  %2370 = vmatprep.subr.bf16.mxu0 0
  %2371 = vmatpush1.bf16.msra.mxu0 0
  %2372 = vmatprep.subr.bf16.mxu0 0
  %2373 = vmatpush1.bf16.msra.mxu0 0
  %2374 = vmatprep.subr.bf16.mxu0 0
  %2375 = vmatpush1.bf16.msra.mxu0 0
  %2376 = vmatprep.subr.bf16.mxu0 0
  %2377 = vmatpush1.bf16.msra.mxu0 %v2361
  %2378 = vmatprep.subr.bf16.mxu0 0
  %2379 = vmatpush1.bf16.msra.mxu0 %v2360
  %2380 = vmatprep.subr.bf16.mxu0 0
  %2381 = vmatpush2.bf16.msra.mxu0 0
  %2382 = vmatprep.subr.bf16.mxu0 0
  %2383 = vmatpush2.bf16.msra.mxu0 0
  %2384 = vmatprep.subr.bf16.mxu0 0
  %2385 = vmatpush2.bf16.msra.mxu0 0
  %2386 = vmatprep.subr.bf16.mxu0 0
  %2387 = vmatpush2.bf16.msra.mxu0 0
  %2388 = vmatprep.subr.bf16.mxu0 0
  %2389 = vmatpush2.bf16.msra.mxu0 0
  %2390 = vmatprep.subr.bf16.mxu0 0
  %2391 = vmatpush2.bf16.msra.mxu0 0
  %2392 = vmatprep.subr.bf16.mxu0 0
  %2393 = vmatpush2.bf16.msra.mxu0 0
  %2394 = vmatprep.subr.bf16.mxu0 0
  %2395 = vmatpush2.bf16.msra.mxu0 0
  %2396 = vmatprep.mubr.bf16.mxu0 0
  %2397 = vmatmul.mubr.bf16.gmra.mxu0 %v170
  %v2398 = vpop.f32.mrf.mxu0
  %v2399 = vadd.f32 %v2350, %v2398
  %v2400 = vpop.f32.mrf.mxu0
  %v2401 = vpop.f32.mrf.mxu0
  %v2402 = vadd.f32 %v2350, %v2401
  %v2403 = vpop.f32.mrf.mxu0
  %2404 = vmatprep.mubr.bf16.mxu0 0
  %2405 = vmatmul.mubr.bf16.gmra.mxu0 %v173
  %v2406 = vpop.f32.mrf.mxu0
  %v2407 = vadd.f32 %v2350, %v2406
  %v2408 = vpop.f32.mrf.mxu0
  %v2409 = vpop.f32.mrf.mxu0
  %v2410 = vadd.f32 %v2350, %v2409
  %v2411 = vpop.f32.mrf.mxu0
  %2412 = vdwg.mxu0
  %s2413 = scalar_lea.vmem %s4, 112
  %v2414 = vld [vmem:[%s2413] sm:$0xf]
  %v2415 = vld [vmem:[%s2413 + $0x4] sm:$0xf]
  %v2416 = vld [vmem:[%s2413 + $0x8] sm:$0xf]
  %v2417 = vld [vmem:[%s2413 + $0xc] sm:$0xf]
  %s2418 = scalar_lea.vmem %s5, 7
  %v2419 = vld [vmem:[%s2418] sm:$0x1]
  %v2421 = vlaneseq
  %v2422 = vshrl.u32 %v2421, 7
  %v2423 = vsub.s32 0, %v2422
  %v2424 = vrot.slane %v2419, %v2423
  %v2430 = vunpack.c.l.b16 %v2414
  %v2431 = vunpack.c.l.b16 %v2415
  %v2432 = vunpack.c.l.b16 %v2416
  %v2433 = vunpack.c.l.b16 %v2417
  %v2434 = vpack.c.b16 %v2431, %v2430
  %v2435 = vpack.c.b16 %v2433, %v2432
  %2438 = vmatprep.subr.bf16.mxu0 0
  %2439 = vmatpush1.bf16.msra.mxu0 0
  %2440 = vmatprep.subr.bf16.mxu0 0
  %2441 = vmatpush1.bf16.msra.mxu0 0
  %2442 = vmatprep.subr.bf16.mxu0 0
  %2443 = vmatpush1.bf16.msra.mxu0 0
  %2444 = vmatprep.subr.bf16.mxu0 0
  %2445 = vmatpush1.bf16.msra.mxu0 0
  %2446 = vmatprep.subr.bf16.mxu0 0
  %2447 = vmatpush1.bf16.msra.mxu0 0
  %2448 = vmatprep.subr.bf16.mxu0 0
  %2449 = vmatpush1.bf16.msra.mxu0 0
  %2450 = vmatprep.subr.bf16.mxu0 0
  %2451 = vmatpush1.bf16.msra.mxu0 %v2435
  %2452 = vmatprep.subr.bf16.mxu0 0
  %2453 = vmatpush1.bf16.msra.mxu0 %v2434
  %2454 = vmatprep.subr.bf16.mxu0 0
  %2455 = vmatpush2.bf16.msra.mxu0 0
  %2456 = vmatprep.subr.bf16.mxu0 0
  %2457 = vmatpush2.bf16.msra.mxu0 0
  %2458 = vmatprep.subr.bf16.mxu0 0
  %2459 = vmatpush2.bf16.msra.mxu0 0
  %2460 = vmatprep.subr.bf16.mxu0 0
  %2461 = vmatpush2.bf16.msra.mxu0 0
  %2462 = vmatprep.subr.bf16.mxu0 0
  %2463 = vmatpush2.bf16.msra.mxu0 0
  %2464 = vmatprep.subr.bf16.mxu0 0
  %2465 = vmatpush2.bf16.msra.mxu0 0
  %2466 = vmatprep.subr.bf16.mxu0 0
  %2467 = vmatpush2.bf16.msra.mxu0 0
  %2468 = vmatprep.subr.bf16.mxu0 0
  %2469 = vmatpush2.bf16.msra.mxu0 0
  %2470 = vmatprep.mubr.bf16.mxu0 0
  %2471 = vmatmul.mubr.bf16.gmra.mxu0 %v170
  %v2472 = vpop.f32.mrf.mxu0
  %v2473 = vadd.f32 %v2424, %v2472
  %v2474 = vpop.f32.mrf.mxu0
  %v2475 = vpop.f32.mrf.mxu0
  %v2476 = vadd.f32 %v2424, %v2475
  %v2477 = vpop.f32.mrf.mxu0
  %2478 = vmatprep.mubr.bf16.mxu0 0
  %2479 = vmatmul.mubr.bf16.gmra.mxu0 %v173
  %v2480 = vpop.f32.mrf.mxu0
  %v2481 = vadd.f32 %v2424, %v2480
  %v2482 = vpop.f32.mrf.mxu0
  %v2483 = vpop.f32.mrf.mxu0
  %v2484 = vadd.f32 %v2424, %v2483
  %v2485 = vpop.f32.mrf.mxu0
  %2486 = vdwg.mxu0
  %s2487 = scalar_lea.vmem %s4, 176
  %v2488 = vld [vmem:[%s2487] sm:$0xf]
  %v2489 = vld [vmem:[%s2487 + $0x4] sm:$0xf]
  %v2490 = vld [vmem:[%s2487 + $0x8] sm:$0xf]
  %v2491 = vld [vmem:[%s2487 + $0xc] sm:$0xf]
  %s2492 = scalar_lea.vmem %s5, 11
  %v2493 = vld [vmem:[%s2492] sm:$0x1]
  %v2495 = vlaneseq
  %v2496 = vshrl.u32 %v2495, 7
  %v2497 = vsub.s32 0, %v2496
  %v2498 = vrot.slane %v2493, %v2497
  %v2504 = vunpack.c.l.b16 %v2488
  %v2505 = vunpack.c.l.b16 %v2489
  %v2506 = vunpack.c.l.b16 %v2490
  %v2507 = vunpack.c.l.b16 %v2491
  %v2508 = vpack.c.b16 %v2505, %v2504
  %v2509 = vpack.c.b16 %v2507, %v2506
  %2512 = vmatprep.subr.bf16.mxu0 0
  %2513 = vmatpush1.bf16.msra.mxu0 0
  %2514 = vmatprep.subr.bf16.mxu0 0
  %2515 = vmatpush1.bf16.msra.mxu0 0
  %2516 = vmatprep.subr.bf16.mxu0 0
  %2517 = vmatpush1.bf16.msra.mxu0 0
  %2518 = vmatprep.subr.bf16.mxu0 0
  %2519 = vmatpush1.bf16.msra.mxu0 0
  %2520 = vmatprep.subr.bf16.mxu0 0
  %2521 = vmatpush1.bf16.msra.mxu0 0
  %2522 = vmatprep.subr.bf16.mxu0 0
  %2523 = vmatpush1.bf16.msra.mxu0 0
  %2524 = vmatprep.subr.bf16.mxu0 0
  %2525 = vmatpush1.bf16.msra.mxu0 %v2509
  %2526 = vmatprep.subr.bf16.mxu0 0
  %2527 = vmatpush1.bf16.msra.mxu0 %v2508
  %2528 = vmatprep.subr.bf16.mxu0 0
  %2529 = vmatpush2.bf16.msra.mxu0 0
  %2530 = vmatprep.subr.bf16.mxu0 0
  %2531 = vmatpush2.bf16.msra.mxu0 0
  %2532 = vmatprep.subr.bf16.mxu0 0
  %2533 = vmatpush2.bf16.msra.mxu0 0
  %2534 = vmatprep.subr.bf16.mxu0 0
  %2535 = vmatpush2.bf16.msra.mxu0 0
  %2536 = vmatprep.subr.bf16.mxu0 0
  %2537 = vmatpush2.bf16.msra.mxu0 0
  %2538 = vmatprep.subr.bf16.mxu0 0
  %2539 = vmatpush2.bf16.msra.mxu0 0
  %2540 = vmatprep.subr.bf16.mxu0 0
  %2541 = vmatpush2.bf16.msra.mxu0 0
  %2542 = vmatprep.subr.bf16.mxu0 0
  %2543 = vmatpush2.bf16.msra.mxu0 0
  %2544 = vmatprep.mubr.bf16.mxu0 0
  %2545 = vmatmul.mubr.bf16.gmra.mxu0 %v170
  %v2546 = vpop.f32.mrf.mxu0
  %v2547 = vadd.f32 %v2498, %v2546
  %v2548 = vpop.f32.mrf.mxu0
  %v2549 = vpop.f32.mrf.mxu0
  %v2550 = vadd.f32 %v2498, %v2549
  %v2551 = vpop.f32.mrf.mxu0
  %2552 = vmatprep.mubr.bf16.mxu0 0
  %2553 = vmatmul.mubr.bf16.gmra.mxu0 %v173
  %v2554 = vpop.f32.mrf.mxu0
  %v2555 = vadd.f32 %v2498, %v2554
  %v2556 = vpop.f32.mrf.mxu0
  %v2557 = vpop.f32.mrf.mxu0
  %v2558 = vadd.f32 %v2498, %v2557
  %v2559 = vpop.f32.mrf.mxu0
  %2560 = vdwg.mxu0
  %v2561 = vpack.c.bf16 %v2399, %v2399
  %v2562 = vpack.c.bf16 %v2402, %v2402
  %v2563 = vpack.c.bf16 %v2407, %v2407
  %v2564 = vpack.c.bf16 %v2410, %v2410
  %v2565 = vpack.c.bf16 %v2473, %v2473
  %v2566 = vpack.c.bf16 %v2476, %v2476
  %v2567 = vpack.c.bf16 %v2481, %v2481
  %v2568 = vpack.c.bf16 %v2484, %v2484
  %v2570 = vsel %vm380, %v2561, 0
  %v2573 = vsel %vm380, %v2565, 0
  %2575 = vmatprep.subr.bf16.mxu0 0
  %2576 = vmatpush1.bf16.xpose.msra.mxu0 0
  %2577 = vmatprep.subr.bf16.mxu0 0
  %2578 = vmatpush1.bf16.xpose.msra.mxu0 0
  %2579 = vmatprep.subr.bf16.mxu0 0
  %2580 = vmatpush1.bf16.xpose.msra.mxu0 0
  %2581 = vmatprep.subr.bf16.mxu0 0
  %2582 = vmatpush1.bf16.xpose.msra.mxu0 0
  %2583 = vmatprep.subr.bf16.mxu0 0
  %2584 = vmatpush1.bf16.xpose.msra.mxu0 0
  %2585 = vmatprep.subr.bf16.mxu0 0
  %2586 = vmatpush1.bf16.xpose.msra.mxu0 0
  %2587 = vmatprep.subr.bf16.mxu0 0
  %2588 = vmatpush1.bf16.xpose.msra.mxu0 0
  %2589 = vmatprep.subr.bf16.mxu0 0
  %2590 = vmatpush1.bf16.xpose.msra.mxu0 %v2573
  %2591 = vmatprep.subr.bf16.mxu0 0
  %2592 = vmatpush2.bf16.xpose.msra.mxu0 0
  %2593 = vmatprep.subr.bf16.mxu0 0
  %2594 = vmatpush2.bf16.xpose.msra.mxu0 0
  %2595 = vmatprep.subr.bf16.mxu0 0
  %2596 = vmatpush2.bf16.xpose.msra.mxu0 0
  %2597 = vmatprep.subr.bf16.mxu0 0
  %2598 = vmatpush2.bf16.xpose.msra.mxu0 0
  %2599 = vmatprep.subr.bf16.mxu0 0
  %2600 = vmatpush2.bf16.xpose.msra.mxu0 0
  %2601 = vmatprep.subr.bf16.mxu0 0
  %2602 = vmatpush2.bf16.xpose.msra.mxu0 0
  %2603 = vmatprep.subr.bf16.mxu0 0
  %2604 = vmatpush2.bf16.xpose.msra.mxu0 0
  %2605 = vmatprep.subr.bf16.mxu0 0
  %2606 = vmatpush2.bf16.xpose.msra.mxu0 0
  %2607 = vmatprep.mubr.bf16.mxu0 0
  %2608 = vmatmul.mubr.bf16.gmra.mxu0 %v2570
  %v2609 = vpop.f32.mrf.mxu0
  %v2610 = vadd.f32 0.0, %v2609
  %v2611 = vpop.f32.mrf.mxu0
  %v2612 = vpop.f32.mrf.mxu0
  %v2613 = vpop.f32.mrf.mxu0
  %2614 = vdwg.mxu0
  %v2616 = vsel %vm380, %v2562, 0
  %v2619 = vsel %vm380, %v2566, 0
  %2621 = vmatprep.subr.bf16.mxu0 0
  %2622 = vmatpush1.bf16.xpose.msra.mxu0 0
  %2623 = vmatprep.subr.bf16.mxu0 0
  %2624 = vmatpush1.bf16.xpose.msra.mxu0 0
  %2625 = vmatprep.subr.bf16.mxu0 0
  %2626 = vmatpush1.bf16.xpose.msra.mxu0 0
  %2627 = vmatprep.subr.bf16.mxu0 0
  %2628 = vmatpush1.bf16.xpose.msra.mxu0 0
  %2629 = vmatprep.subr.bf16.mxu0 0
  %2630 = vmatpush1.bf16.xpose.msra.mxu0 0
  %2631 = vmatprep.subr.bf16.mxu0 0
  %2632 = vmatpush1.bf16.xpose.msra.mxu0 0
  %2633 = vmatprep.subr.bf16.mxu0 0
  %2634 = vmatpush1.bf16.xpose.msra.mxu0 0
  %2635 = vmatprep.subr.bf16.mxu0 0
  %2636 = vmatpush1.bf16.xpose.msra.mxu0 %v2619
  %2637 = vmatprep.subr.bf16.mxu0 0
  %2638 = vmatpush2.bf16.xpose.msra.mxu0 0
  %2639 = vmatprep.subr.bf16.mxu0 0
  %2640 = vmatpush2.bf16.xpose.msra.mxu0 0
  %2641 = vmatprep.subr.bf16.mxu0 0
  %2642 = vmatpush2.bf16.xpose.msra.mxu0 0
  %2643 = vmatprep.subr.bf16.mxu0 0
  %2644 = vmatpush2.bf16.xpose.msra.mxu0 0
  %2645 = vmatprep.subr.bf16.mxu0 0
  %2646 = vmatpush2.bf16.xpose.msra.mxu0 0
  %2647 = vmatprep.subr.bf16.mxu0 0
  %2648 = vmatpush2.bf16.xpose.msra.mxu0 0
  %2649 = vmatprep.subr.bf16.mxu0 0
  %2650 = vmatpush2.bf16.xpose.msra.mxu0 0
  %2651 = vmatprep.subr.bf16.mxu0 0
  %2652 = vmatpush2.bf16.xpose.msra.mxu0 0
  %2653 = vmatprep.mubr.bf16.mxu0 0
  %2654 = vmatmul.mubr.bf16.gmra.mxu0 %v2616
  %v2655 = vpop.f32.mrf.mxu0
  %v2656 = vadd.f32 0.0, %v2655
  %v2657 = vpop.f32.mrf.mxu0
  %v2658 = vpop.f32.mrf.mxu0
  %v2659 = vpop.f32.mrf.mxu0
  %2660 = vdwg.mxu0
  %v2662 = vsel %vm380, %v2563, 0
  %v2665 = vsel %vm380, %v2567, 0
  %2667 = vmatprep.subr.bf16.mxu0 0
  %2668 = vmatpush1.bf16.xpose.msra.mxu0 0
  %2669 = vmatprep.subr.bf16.mxu0 0
  %2670 = vmatpush1.bf16.xpose.msra.mxu0 0
  %2671 = vmatprep.subr.bf16.mxu0 0
  %2672 = vmatpush1.bf16.xpose.msra.mxu0 0
  %2673 = vmatprep.subr.bf16.mxu0 0
  %2674 = vmatpush1.bf16.xpose.msra.mxu0 0
  %2675 = vmatprep.subr.bf16.mxu0 0
  %2676 = vmatpush1.bf16.xpose.msra.mxu0 0
  %2677 = vmatprep.subr.bf16.mxu0 0
  %2678 = vmatpush1.bf16.xpose.msra.mxu0 0
  %2679 = vmatprep.subr.bf16.mxu0 0
  %2680 = vmatpush1.bf16.xpose.msra.mxu0 0
  %2681 = vmatprep.subr.bf16.mxu0 0
  %2682 = vmatpush1.bf16.xpose.msra.mxu0 %v2665
  %2683 = vmatprep.subr.bf16.mxu0 0
  %2684 = vmatpush2.bf16.xpose.msra.mxu0 0
  %2685 = vmatprep.subr.bf16.mxu0 0
  %2686 = vmatpush2.bf16.xpose.msra.mxu0 0
  %2687 = vmatprep.subr.bf16.mxu0 0
  %2688 = vmatpush2.bf16.xpose.msra.mxu0 0
  %2689 = vmatprep.subr.bf16.mxu0 0
  %2690 = vmatpush2.bf16.xpose.msra.mxu0 0
  %2691 = vmatprep.subr.bf16.mxu0 0
  %2692 = vmatpush2.bf16.xpose.msra.mxu0 0
  %2693 = vmatprep.subr.bf16.mxu0 0
  %2694 = vmatpush2.bf16.xpose.msra.mxu0 0
  %2695 = vmatprep.subr.bf16.mxu0 0
  %2696 = vmatpush2.bf16.xpose.msra.mxu0 0
  %2697 = vmatprep.subr.bf16.mxu0 0
  %2698 = vmatpush2.bf16.xpose.msra.mxu0 0
  %2699 = vmatprep.mubr.bf16.mxu0 0
  %2700 = vmatmul.mubr.bf16.gmra.mxu0 %v2662
  %v2701 = vpop.f32.mrf.mxu0
  %v2702 = vadd.f32 0.0, %v2701
  %v2703 = vpop.f32.mrf.mxu0
  %v2704 = vpop.f32.mrf.mxu0
  %v2705 = vpop.f32.mrf.mxu0
  %2706 = vdwg.mxu0
  %v2708 = vsel %vm380, %v2564, 0
  %v2711 = vsel %vm380, %v2568, 0
  %2713 = vmatprep.subr.bf16.mxu0 0
  %2714 = vmatpush1.bf16.xpose.msra.mxu0 0
  %2715 = vmatprep.subr.bf16.mxu0 0
  %2716 = vmatpush1.bf16.xpose.msra.mxu0 0
  %2717 = vmatprep.subr.bf16.mxu0 0
  %2718 = vmatpush1.bf16.xpose.msra.mxu0 0
  %2719 = vmatprep.subr.bf16.mxu0 0
  %2720 = vmatpush1.bf16.xpose.msra.mxu0 0
  %2721 = vmatprep.subr.bf16.mxu0 0
  %2722 = vmatpush1.bf16.xpose.msra.mxu0 0
  %2723 = vmatprep.subr.bf16.mxu0 0
  %2724 = vmatpush1.bf16.xpose.msra.mxu0 0
  %2725 = vmatprep.subr.bf16.mxu0 0
  %2726 = vmatpush1.bf16.xpose.msra.mxu0 0
  %2727 = vmatprep.subr.bf16.mxu0 0
  %2728 = vmatpush1.bf16.xpose.msra.mxu0 %v2711
  %2729 = vmatprep.subr.bf16.mxu0 0
  %2730 = vmatpush2.bf16.xpose.msra.mxu0 0
  %2731 = vmatprep.subr.bf16.mxu0 0
  %2732 = vmatpush2.bf16.xpose.msra.mxu0 0
  %2733 = vmatprep.subr.bf16.mxu0 0
  %2734 = vmatpush2.bf16.xpose.msra.mxu0 0
  %2735 = vmatprep.subr.bf16.mxu0 0
  %2736 = vmatpush2.bf16.xpose.msra.mxu0 0
  %2737 = vmatprep.subr.bf16.mxu0 0
  %2738 = vmatpush2.bf16.xpose.msra.mxu0 0
  %2739 = vmatprep.subr.bf16.mxu0 0
  %2740 = vmatpush2.bf16.xpose.msra.mxu0 0
  %2741 = vmatprep.subr.bf16.mxu0 0
  %2742 = vmatpush2.bf16.xpose.msra.mxu0 0
  %2743 = vmatprep.subr.bf16.mxu0 0
  %2744 = vmatpush2.bf16.xpose.msra.mxu0 0
  %2745 = vmatprep.mubr.bf16.mxu0 0
  %2746 = vmatmul.mubr.bf16.gmra.mxu0 %v2708
  %v2747 = vpop.f32.mrf.mxu0
  %v2748 = vadd.f32 0.0, %v2747
  %v2749 = vpop.f32.mrf.mxu0
  %v2750 = vpop.f32.mrf.mxu0
  %v2751 = vpop.f32.mrf.mxu0
  %2752 = vdwg.mxu0
  %v2753 = vmul.f32 %v2610, 0.35355338
  %v2754 = vmul.f32 %v2656, 0.35355338
  %v2755 = vmul.f32 %v2702, 0.35355338
  %v2756 = vmul.f32 %v2748, 0.35355338
  %v2757 = vadd.f32 %v2753, %v576
  %v2758 = vadd.f32 %v2754, %v580
  %v2759 = vadd.f32 %v2755, %v584
  %v2760 = vadd.f32 %v2756, %v588
  %v2761 = vsel %vm380, %v2757, -inf
  %2762 = vmax.xlane.f32.xlu0 %v2761
  %v2763 = vpop.xlane.xlu0 %2762
  %v2764 = vsel %vm380, %v2758, -inf
  %2765 = vmax.xlane.f32.xlu0 %v2764
  %v2766 = vpop.xlane.xlu0 %2765
  %v2767 = vsel %vm380, %v2759, -inf
  %2768 = vmax.xlane.f32.xlu0 %v2767
  %v2769 = vpop.xlane.xlu0 %2768
  %v2770 = vsel %vm380, %v2760, -inf
  %2771 = vmax.xlane.f32.xlu0 %v2770
  %v2772 = vpop.xlane.xlu0 %2771
  %v2773 = vsub.f32 %v2757, %v2763
  %v2774 = vsub.f32 %v2758, %v2766
  %v2775 = vsub.f32 %v2759, %v2769
  %v2776 = vsub.f32 %v2760, %v2772
  %v2777 = vmul.f32 %v2773, 1.442695
  %v2778 = vpow.pop %v2777
  %v2779 = vmul.f32 %v2774, 1.442695
  %v2780 = vpow.pop %v2779
  %v2781 = vmul.f32 %v2775, 1.442695
  %v2782 = vpow.pop %v2781
  %v2783 = vmul.f32 %v2776, 1.442695
  %v2784 = vpow.pop %v2783
  %v2785 = vsel %vm380, %v2778, 0.0
  %2786 = vadd.xlane.f32.xlu0 %v2785
  %v2787 = vpop.xlane.xlu0 %2786
  %v2788 = vsel %vm380, %v2780, 0.0
  %2789 = vadd.xlane.f32.xlu0 %v2788
  %v2790 = vpop.xlane.xlu0 %2789
  %v2791 = vsel %vm380, %v2782, 0.0
  %2792 = vadd.xlane.f32.xlu0 %v2791
  %v2793 = vpop.xlane.xlu0 %2792
  %v2794 = vsel %vm380, %v2784, 0.0
  %2795 = vadd.xlane.f32.xlu0 %v2794
  %v2796 = vpop.xlane.xlu0 %2795
  %v2797 = vrcp.pop %v2787
  %v2798 = vrcp.pop %v2790
  %v2799 = vrcp.pop %v2793
  %v2800 = vrcp.pop %v2796
  %v2801 = vmul.f32 %v2778, %v2797
  %v2802 = vmul.f32 %v2780, %v2798
  %v2803 = vmul.f32 %v2782, %v2799
  %v2804 = vmul.f32 %v2784, %v2800
  %v2805 = vpack.c.bf16 %v2801, %v2801
  %v2806 = vpack.c.bf16 %v2802, %v2802
  %v2807 = vpack.c.bf16 %v2803, %v2803
  %v2808 = vpack.c.bf16 %v2804, %v2804
  %v2809 = vpack.c.bf16 %v2547, %v2547
  %v2810 = vpack.c.bf16 %v2550, %v2550
  %v2811 = vpack.c.bf16 %v2555, %v2555
  %v2812 = vpack.c.bf16 %v2558, %v2558
  %v2814 = vsel %vm380, %v2805, 0
  %v2817 = vsel %vm652, %v2809, 0
  %2819 = vmatprep.subr.bf16.mxu0 0
  %2820 = vmatpush1.bf16.msra.mxu0 0
  %2821 = vmatprep.subr.bf16.mxu0 0
  %2822 = vmatpush1.bf16.msra.mxu0 0
  %2823 = vmatprep.subr.bf16.mxu0 0
  %2824 = vmatpush1.bf16.msra.mxu0 0
  %2825 = vmatprep.subr.bf16.mxu0 0
  %2826 = vmatpush1.bf16.msra.mxu0 0
  %2827 = vmatprep.subr.bf16.mxu0 0
  %2828 = vmatpush1.bf16.msra.mxu0 0
  %2829 = vmatprep.subr.bf16.mxu0 0
  %2830 = vmatpush1.bf16.msra.mxu0 0
  %2831 = vmatprep.subr.bf16.mxu0 0
  %2832 = vmatpush1.bf16.msra.mxu0 0
  %2833 = vmatprep.subr.bf16.mxu0 0
  %2834 = vmatpush1.bf16.msra.mxu0 %v2817
  %2835 = vmatprep.subr.bf16.mxu0 0
  %2836 = vmatpush2.bf16.msra.mxu0 0
  %2837 = vmatprep.subr.bf16.mxu0 0
  %2838 = vmatpush2.bf16.msra.mxu0 0
  %2839 = vmatprep.subr.bf16.mxu0 0
  %2840 = vmatpush2.bf16.msra.mxu0 0
  %2841 = vmatprep.subr.bf16.mxu0 0
  %2842 = vmatpush2.bf16.msra.mxu0 0
  %2843 = vmatprep.subr.bf16.mxu0 0
  %2844 = vmatpush2.bf16.msra.mxu0 0
  %2845 = vmatprep.subr.bf16.mxu0 0
  %2846 = vmatpush2.bf16.msra.mxu0 0
  %2847 = vmatprep.subr.bf16.mxu0 0
  %2848 = vmatpush2.bf16.msra.mxu0 0
  %2849 = vmatprep.subr.bf16.mxu0 0
  %2850 = vmatpush2.bf16.msra.mxu0 0
  %2851 = vmatprep.mubr.bf16.mxu0 0
  %2852 = vmatmul.mubr.bf16.gmra.mxu0 %v2814
  %v2853 = vpop.f32.mrf.mxu0
  %v2854 = vadd.f32 0.0, %v2853
  %v2855 = vpop.f32.mrf.mxu0
  %v2856 = vpop.f32.mrf.mxu0
  %v2857 = vpop.f32.mrf.mxu0
  %2858 = vdwg.mxu0
  %v2860 = vsel %vm380, %v2806, 0
  %v2863 = vsel %vm652, %v2810, 0
  %2865 = vmatprep.subr.bf16.mxu0 0
  %2866 = vmatpush1.bf16.msra.mxu0 0
  %2867 = vmatprep.subr.bf16.mxu0 0
  %2868 = vmatpush1.bf16.msra.mxu0 0
  %2869 = vmatprep.subr.bf16.mxu0 0
  %2870 = vmatpush1.bf16.msra.mxu0 0
  %2871 = vmatprep.subr.bf16.mxu0 0
  %2872 = vmatpush1.bf16.msra.mxu0 0
  %2873 = vmatprep.subr.bf16.mxu0 0
  %2874 = vmatpush1.bf16.msra.mxu0 0
  %2875 = vmatprep.subr.bf16.mxu0 0
  %2876 = vmatpush1.bf16.msra.mxu0 0
  %2877 = vmatprep.subr.bf16.mxu0 0
  %2878 = vmatpush1.bf16.msra.mxu0 0
  %2879 = vmatprep.subr.bf16.mxu0 0
  %2880 = vmatpush1.bf16.msra.mxu0 %v2863
  %2881 = vmatprep.subr.bf16.mxu0 0
  %2882 = vmatpush2.bf16.msra.mxu0 0
  %2883 = vmatprep.subr.bf16.mxu0 0
  %2884 = vmatpush2.bf16.msra.mxu0 0
  %2885 = vmatprep.subr.bf16.mxu0 0
  %2886 = vmatpush2.bf16.msra.mxu0 0
  %2887 = vmatprep.subr.bf16.mxu0 0
  %2888 = vmatpush2.bf16.msra.mxu0 0
  %2889 = vmatprep.subr.bf16.mxu0 0
  %2890 = vmatpush2.bf16.msra.mxu0 0
  %2891 = vmatprep.subr.bf16.mxu0 0
  %2892 = vmatpush2.bf16.msra.mxu0 0
  %2893 = vmatprep.subr.bf16.mxu0 0
  %2894 = vmatpush2.bf16.msra.mxu0 0
  %2895 = vmatprep.subr.bf16.mxu0 0
  %2896 = vmatpush2.bf16.msra.mxu0 0
  %2897 = vmatprep.mubr.bf16.mxu0 0
  %2898 = vmatmul.mubr.bf16.gmra.mxu0 %v2860
  %v2899 = vpop.f32.mrf.mxu0
  %v2900 = vadd.f32 0.0, %v2899
  %v2901 = vpop.f32.mrf.mxu0
  %v2902 = vpop.f32.mrf.mxu0
  %v2903 = vpop.f32.mrf.mxu0
  %2904 = vdwg.mxu0
  %v2906 = vsel %vm380, %v2807, 0
  %v2909 = vsel %vm652, %v2811, 0
  %2911 = vmatprep.subr.bf16.mxu0 0
  %2912 = vmatpush1.bf16.msra.mxu0 0
  %2913 = vmatprep.subr.bf16.mxu0 0
  %2914 = vmatpush1.bf16.msra.mxu0 0
  %2915 = vmatprep.subr.bf16.mxu0 0
  %2916 = vmatpush1.bf16.msra.mxu0 0
  %2917 = vmatprep.subr.bf16.mxu0 0
  %2918 = vmatpush1.bf16.msra.mxu0 0
  %2919 = vmatprep.subr.bf16.mxu0 0
  %2920 = vmatpush1.bf16.msra.mxu0 0
  %2921 = vmatprep.subr.bf16.mxu0 0
  %2922 = vmatpush1.bf16.msra.mxu0 0
  %2923 = vmatprep.subr.bf16.mxu0 0
  %2924 = vmatpush1.bf16.msra.mxu0 0
  %2925 = vmatprep.subr.bf16.mxu0 0
  %2926 = vmatpush1.bf16.msra.mxu0 %v2909
  %2927 = vmatprep.subr.bf16.mxu0 0
  %2928 = vmatpush2.bf16.msra.mxu0 0
  %2929 = vmatprep.subr.bf16.mxu0 0
  %2930 = vmatpush2.bf16.msra.mxu0 0
  %2931 = vmatprep.subr.bf16.mxu0 0
  %2932 = vmatpush2.bf16.msra.mxu0 0
  %2933 = vmatprep.subr.bf16.mxu0 0
  %2934 = vmatpush2.bf16.msra.mxu0 0
  %2935 = vmatprep.subr.bf16.mxu0 0
  %2936 = vmatpush2.bf16.msra.mxu0 0
  %2937 = vmatprep.subr.bf16.mxu0 0
  %2938 = vmatpush2.bf16.msra.mxu0 0
  %2939 = vmatprep.subr.bf16.mxu0 0
  %2940 = vmatpush2.bf16.msra.mxu0 0
  %2941 = vmatprep.subr.bf16.mxu0 0
  %2942 = vmatpush2.bf16.msra.mxu0 0
  %2943 = vmatprep.mubr.bf16.mxu0 0
  %2944 = vmatmul.mubr.bf16.gmra.mxu0 %v2906
  %v2945 = vpop.f32.mrf.mxu0
  %v2946 = vadd.f32 0.0, %v2945
  %v2947 = vpop.f32.mrf.mxu0
  %v2948 = vpop.f32.mrf.mxu0
  %v2949 = vpop.f32.mrf.mxu0
  %2950 = vdwg.mxu0
  %v2952 = vsel %vm380, %v2808, 0
  %v2955 = vsel %vm652, %v2812, 0
  %2957 = vmatprep.subr.bf16.mxu0 0
  %2958 = vmatpush1.bf16.msra.mxu0 0
  %2959 = vmatprep.subr.bf16.mxu0 0
  %2960 = vmatpush1.bf16.msra.mxu0 0
  %2961 = vmatprep.subr.bf16.mxu0 0
  %2962 = vmatpush1.bf16.msra.mxu0 0
  %2963 = vmatprep.subr.bf16.mxu0 0
  %2964 = vmatpush1.bf16.msra.mxu0 0
  %2965 = vmatprep.subr.bf16.mxu0 0
  %2966 = vmatpush1.bf16.msra.mxu0 0
  %2967 = vmatprep.subr.bf16.mxu0 0
  %2968 = vmatpush1.bf16.msra.mxu0 0
  %2969 = vmatprep.subr.bf16.mxu0 0
  %2970 = vmatpush1.bf16.msra.mxu0 0
  %2971 = vmatprep.subr.bf16.mxu0 0
  %2972 = vmatpush1.bf16.msra.mxu0 %v2955
  %2973 = vmatprep.subr.bf16.mxu0 0
  %2974 = vmatpush2.bf16.msra.mxu0 0
  %2975 = vmatprep.subr.bf16.mxu0 0
  %2976 = vmatpush2.bf16.msra.mxu0 0
  %2977 = vmatprep.subr.bf16.mxu0 0
  %2978 = vmatpush2.bf16.msra.mxu0 0
  %2979 = vmatprep.subr.bf16.mxu0 0
  %2980 = vmatpush2.bf16.msra.mxu0 0
  %2981 = vmatprep.subr.bf16.mxu0 0
  %2982 = vmatpush2.bf16.msra.mxu0 0
  %2983 = vmatprep.subr.bf16.mxu0 0
  %2984 = vmatpush2.bf16.msra.mxu0 0
  %2985 = vmatprep.subr.bf16.mxu0 0
  %2986 = vmatpush2.bf16.msra.mxu0 0
  %2987 = vmatprep.subr.bf16.mxu0 0
  %2988 = vmatpush2.bf16.msra.mxu0 0
  %2989 = vmatprep.mubr.bf16.mxu0 0
  %2990 = vmatmul.mubr.bf16.gmra.mxu0 %v2952
  %v2991 = vpop.f32.mrf.mxu0
  %v2992 = vadd.f32 0.0, %v2991
  %v2993 = vpop.f32.mrf.mxu0
  %v2994 = vpop.f32.mrf.mxu0
  %v2995 = vpop.f32.mrf.mxu0
  %2996 = vdwg.mxu0
  %v2997 = vpack.c.bf16 %v2900, %v2854
  %v2998 = vpack.c.bf16 %v2992, %v2946
  %s2999 = scalar_lea.vmem %s6, 12
  %v3000 = vld [vmem:[%s2999] sm:$0xf]
  %v3002 = vsel %vm380, %v2997, 0
  %v3005 = vsel %vm380, %v2998, 0
  %v3008 = vsel %vm652, %v3000, 0
  %3010 = vmatprep.subr.bf16.mxu0 0
  %3011 = vmatpush1.bf16.msra.mxu0 0
  %3012 = vmatprep.subr.bf16.mxu0 0
  %3013 = vmatpush1.bf16.msra.mxu0 0
  %3014 = vmatprep.subr.bf16.mxu0 0
  %3015 = vmatpush1.bf16.msra.mxu0 0
  %3016 = vmatprep.subr.bf16.mxu0 0
  %3017 = vmatpush1.bf16.msra.mxu0 0
  %3018 = vmatprep.subr.bf16.mxu0 0
  %3019 = vmatpush1.bf16.msra.mxu0 0
  %3020 = vmatprep.subr.bf16.mxu0 0
  %3021 = vmatpush1.bf16.msra.mxu0 0
  %3022 = vmatprep.subr.bf16.mxu0 0
  %3023 = vmatpush1.bf16.msra.mxu0 0
  %3024 = vmatprep.subr.bf16.mxu0 0
  %3025 = vmatpush1.bf16.msra.mxu0 %v3008
  %3026 = vmatprep.subr.bf16.mxu0 0
  %3027 = vmatpush2.bf16.msra.mxu0 0
  %3028 = vmatprep.subr.bf16.mxu0 0
  %3029 = vmatpush2.bf16.msra.mxu0 0
  %3030 = vmatprep.subr.bf16.mxu0 0
  %3031 = vmatpush2.bf16.msra.mxu0 0
  %3032 = vmatprep.subr.bf16.mxu0 0
  %3033 = vmatpush2.bf16.msra.mxu0 0
  %3034 = vmatprep.subr.bf16.mxu0 0
  %3035 = vmatpush2.bf16.msra.mxu0 0
  %3036 = vmatprep.subr.bf16.mxu0 0
  %3037 = vmatpush2.bf16.msra.mxu0 0
  %3038 = vmatprep.subr.bf16.mxu0 0
  %3039 = vmatpush2.bf16.msra.mxu0 0
  %3040 = vmatprep.subr.bf16.mxu0 0
  %3041 = vmatpush2.bf16.msra.mxu0 0
  %3042 = vmatprep.mubr.bf16.mxu0 0
  %3043 = vmatmul.mubr.bf16.gmra.mxu0 %v3002
  %v3044 = vpop.f32.mrf.mxu0
  %v3045 = vadd.f32 0.0, %v3044
  %v3046 = vpop.f32.mrf.mxu0
  %v3047 = vpop.f32.mrf.mxu0
  %v3048 = vadd.f32 0.0, %v3047
  %v3049 = vpop.f32.mrf.mxu0
  %3050 = vmatprep.mubr.bf16.mxu0 0
  %3051 = vmatmul.mubr.bf16.gmra.mxu0 %v3005
  %v3052 = vpop.f32.mrf.mxu0
  %v3053 = vadd.f32 0.0, %v3052
  %v3054 = vpop.f32.mrf.mxu0
  %v3055 = vpop.f32.mrf.mxu0
  %v3056 = vadd.f32 0.0, %v3055
  %v3057 = vpop.f32.mrf.mxu0
  %3058 = vdwg.mxu0
  %v3059 = vadd.f32 %v2335, %v3045
  %v3060 = vadd.f32 %v2336, %v3048
  %v3061 = vadd.f32 %v2337, %v3053
  %v3062 = vadd.f32 %v2338, %v3056
  %v3063 = vld [vmem:[%s7] sm:$0x1]
  %v3065 = vlaneseq
  %v3066 = vshrl.u32 %v3065, 7
  %v3067 = vsub.s32 0, %v3066
  %v3068 = vrot.slane %v3063, %v3067
  %v3070 = vadd.f32 %v3059, %v3068
  %v3071 = vadd.f32 %v3060, %v3068
  %v3072 = vadd.f32 %v3061, %v3068
  %v3073 = vadd.f32 %v3062, %v3068
  %v3074 = vadd.f32 %v140, %v3070
  %v3075 = vadd.f32 %v141, %v3071
  %v3076 = vadd.f32 %v142, %v3072
  %v3077 = vadd.f32 %v143, %v3073
  %v3078 = vld [vmem:[%s8] sm:$0x1]
  %v3079 = vld [vmem:[%s9] sm:$0x1]
  %v3080 = vsel %vm70, %v3074, 0.0
  %3081 = vadd.xlane.f32.xlu0 %v3080
  %v3082 = vpop.xlane.xlu0 %3081
  %v3083 = vsel %vm70, %v3075, 0.0
  %3084 = vadd.xlane.f32.xlu0 %v3083
  %v3085 = vpop.xlane.xlu0 %3084
  %v3086 = vsel %vm70, %v3076, 0.0
  %3087 = vadd.xlane.f32.xlu0 %v3086
  %v3088 = vpop.xlane.xlu0 %3087
  %v3089 = vsel %vm70, %v3077, 0.0
  %3090 = vadd.xlane.f32.xlu0 %v3089
  %v3091 = vpop.xlane.xlu0 %3090
  %v3092 = vmul.f32 %v3082, %v83
  %v3093 = vmul.f32 %v3085, %v83
  %v3094 = vmul.f32 %v3088, %v83
  %v3095 = vmul.f32 %v3091, %v83
  %v3096 = vsub.f32 %v3074, %v3092
  %v3097 = vsub.f32 %v3075, %v3093
  %v3098 = vsub.f32 %v3076, %v3094
  %v3099 = vsub.f32 %v3077, %v3095
  %v3100 = vmul.f32 %v3096, %v3096
  %v3101 = vmul.f32 %v3097, %v3097
  %v3102 = vmul.f32 %v3098, %v3098
  %v3103 = vmul.f32 %v3099, %v3099
  %v3104 = vsel %vm70, %v3100, 0.0
  %3105 = vadd.xlane.f32.xlu0 %v3104
  %v3106 = vpop.xlane.xlu0 %3105
  %v3107 = vsel %vm70, %v3101, 0.0
  %3108 = vadd.xlane.f32.xlu0 %v3107
  %v3109 = vpop.xlane.xlu0 %3108
  %v3110 = vsel %vm70, %v3102, 0.0
  %3111 = vadd.xlane.f32.xlu0 %v3110
  %v3112 = vpop.xlane.xlu0 %3111
  %v3113 = vsel %vm70, %v3103, 0.0
  %3114 = vadd.xlane.f32.xlu0 %v3113
  %v3115 = vpop.xlane.xlu0 %3114
  %v3116 = vmul.f32 %v3106, %v83
  %v3117 = vmul.f32 %v3109, %v83
  %v3118 = vmul.f32 %v3112, %v83
  %v3119 = vmul.f32 %v3115, %v83
  %v3120 = vadd.f32 %v3116, 1e-12
  %v3121 = vadd.f32 %v3117, 1e-12
  %v3122 = vadd.f32 %v3118, 1e-12
  %v3123 = vadd.f32 %v3119, 1e-12
  %v3124 = vrsqrt.pop %v3120
  %v3125 = vrsqrt.pop %v3121
  %v3126 = vrsqrt.pop %v3122
  %v3127 = vrsqrt.pop %v3123
  %v3128 = vmul.f32 %v3096, %v3124
  %v3129 = vmul.f32 %v3097, %v3125
  %v3130 = vmul.f32 %v3098, %v3126
  %v3131 = vmul.f32 %v3099, %v3127
  %v3133 = vlaneseq
  %v3134 = vshrl.u32 %v3133, 7
  %v3135 = vsub.s32 0, %v3134
  %v3136 = vrot.slane %v3078, %v3135
  %v3138 = vmul.f32 %v3128, %v3136
  %v3139 = vmul.f32 %v3129, %v3136
  %v3140 = vmul.f32 %v3130, %v3136
  %v3141 = vmul.f32 %v3131, %v3136
  %v3143 = vlaneseq
  %v3144 = vshrl.u32 %v3143, 7
  %v3145 = vsub.s32 0, %v3144
  %v3146 = vrot.slane %v3079, %v3145
  %v3148 = vadd.f32 %v3138, %v3146
  %v3149 = vadd.f32 %v3139, %v3146
  %v3150 = vadd.f32 %v3140, %v3146
  %v3151 = vadd.f32 %v3141, %v3146
  %v3152 = vpack.c.bf16 %v3149, %v3148
  %v3153 = vpack.c.bf16 %v3151, %v3150
  %v3154 = vld [vmem:[%s10] sm:$0xf]
  %v3155 = vld [vmem:[%s10 + $0x4] sm:$0xf]
  %v3156 = vld [vmem:[%s10 + $0x8] sm:$0xf]
  %v3157 = vld [vmem:[%s10 + $0xc] sm:$0xf]
  %v3158 = vld [vmem:[%s11] sm:$0x1]
  %v3160 = vlaneseq
  %v3161 = vshrl.u32 %v3160, 7
  %v3162 = vsub.s32 0, %v3161
  %v3163 = vrot.slane %v3158, %v3162
  %v3169 = vunpack.c.l.b16 %v3154
  %v3170 = vunpack.c.l.b16 %v3155
  %v3171 = vunpack.c.l.b16 %v3156
  %v3172 = vunpack.c.l.b16 %v3157
  %v3173 = vpack.c.b16 %v3170, %v3169
  %v3174 = vpack.c.b16 %v3172, %v3171
  %v3178 = vsel %vm70, %v3152, 0
  %v3181 = vsel %vm70, %v3153, 0
  %3183 = vmatprep.subr.bf16.mxu0 0
  %3184 = vmatpush1.bf16.msra.mxu0 0
  %3185 = vmatprep.subr.bf16.mxu0 0
  %3186 = vmatpush1.bf16.msra.mxu0 0
  %3187 = vmatprep.subr.bf16.mxu0 0
  %3188 = vmatpush1.bf16.msra.mxu0 0
  %3189 = vmatprep.subr.bf16.mxu0 0
  %3190 = vmatpush1.bf16.msra.mxu0 0
  %3191 = vmatprep.subr.bf16.mxu0 0
  %3192 = vmatpush1.bf16.msra.mxu0 0
  %3193 = vmatprep.subr.bf16.mxu0 0
  %3194 = vmatpush1.bf16.msra.mxu0 0
  %3195 = vmatprep.subr.bf16.mxu0 0
  %3196 = vmatpush1.bf16.msra.mxu0 %v3174
  %3197 = vmatprep.subr.bf16.mxu0 0
  %3198 = vmatpush1.bf16.msra.mxu0 %v3173
  %3199 = vmatprep.subr.bf16.mxu0 0
  %3200 = vmatpush2.bf16.msra.mxu0 0
  %3201 = vmatprep.subr.bf16.mxu0 0
  %3202 = vmatpush2.bf16.msra.mxu0 0
  %3203 = vmatprep.subr.bf16.mxu0 0
  %3204 = vmatpush2.bf16.msra.mxu0 0
  %3205 = vmatprep.subr.bf16.mxu0 0
  %3206 = vmatpush2.bf16.msra.mxu0 0
  %3207 = vmatprep.subr.bf16.mxu0 0
  %3208 = vmatpush2.bf16.msra.mxu0 0
  %3209 = vmatprep.subr.bf16.mxu0 0
  %3210 = vmatpush2.bf16.msra.mxu0 0
  %3211 = vmatprep.subr.bf16.mxu0 0
  %3212 = vmatpush2.bf16.msra.mxu0 0
  %3213 = vmatprep.subr.bf16.mxu0 0
  %3214 = vmatpush2.bf16.msra.mxu0 0
  %3215 = vmatprep.mubr.bf16.mxu0 0
  %3216 = vmatmul.mubr.bf16.gmra.mxu0 %v3178
  %v3217 = vpop.f32.mrf.mxu0
  %v3218 = vadd.f32 %v3163, %v3217
  %v3219 = vpop.f32.mrf.mxu0
  %v3220 = vpop.f32.mrf.mxu0
  %v3221 = vadd.f32 %v3163, %v3220
  %v3222 = vpop.f32.mrf.mxu0
  %3223 = vmatprep.mubr.bf16.mxu0 0
  %3224 = vmatmul.mubr.bf16.gmra.mxu0 %v3181
  %v3225 = vpop.f32.mrf.mxu0
  %v3226 = vadd.f32 %v3163, %v3225
  %v3227 = vpop.f32.mrf.mxu0
  %v3228 = vpop.f32.mrf.mxu0
  %v3229 = vadd.f32 %v3163, %v3228
  %v3230 = vpop.f32.mrf.mxu0
  %3231 = vdwg.mxu0
  %v3232 = vmul.f32 %v3218, 0.5
  %v3233 = vmul.f32 %v3221, 0.5
  %v3234 = vmul.f32 %v3226, 0.5
  %v3235 = vmul.f32 %v3229, 0.5
  %v3236 = vmul.f32 %v3218, %v3218
  %v3237 = vmul.f32 %v3221, %v3221
  %v3238 = vmul.f32 %v3226, %v3226
  %v3239 = vmul.f32 %v3229, %v3229
  %v3240 = vmul.f32 %v3236, %v3218
  %v3241 = vmul.f32 %v3237, %v3221
  %v3242 = vmul.f32 %v3238, %v3226
  %v3243 = vmul.f32 %v3239, %v3229
  %v3244 = vmul.f32 %v3240, 0.044715
  %v3245 = vmul.f32 %v3241, 0.044715
  %v3246 = vmul.f32 %v3242, 0.044715
  %v3247 = vmul.f32 %v3243, 0.044715
  %v3248 = vadd.f32 %v3218, %v3244
  %v3249 = vadd.f32 %v3221, %v3245
  %v3250 = vadd.f32 %v3226, %v3246
  %v3251 = vadd.f32 %v3229, %v3247
  %v3252 = vmul.f32 %v3248, 0.7978846
  %v3253 = vmul.f32 %v3249, 0.7978846
  %v3254 = vmul.f32 %v3250, 0.7978846
  %v3255 = vmul.f32 %v3251, 0.7978846
  %v3256 = vtanh.pop %v3252
  %v3257 = vtanh.pop %v3253
  %v3258 = vtanh.pop %v3254
  %v3259 = vtanh.pop %v3255
  %v3260 = vadd.f32 %v3256, 1.0
  %v3261 = vadd.f32 %v3257, 1.0
  %v3262 = vadd.f32 %v3258, 1.0
  %v3263 = vadd.f32 %v3259, 1.0
  %v3264 = vmul.f32 %v3232, %v3260
  %v3265 = vmul.f32 %v3233, %v3261
  %v3266 = vmul.f32 %v3234, %v3262
  %v3267 = vmul.f32 %v3235, %v3263
  %v3268 = vpack.c.bf16 %v3265, %v3264
  %v3269 = vpack.c.bf16 %v3267, %v3266
  %v3270 = vld [vmem:[%s12] sm:$0xf]
  %v3271 = vld [vmem:[%s12 + $0x4] sm:$0xf]
  %v3272 = vld [vmem:[%s12 + $0x8] sm:$0xf]
  %v3273 = vld [vmem:[%s12 + $0xc] sm:$0xf]
  %v3274 = vld [vmem:[%s12 + $0x10] sm:$0xf]
  %v3275 = vld [vmem:[%s12 + $0x14] sm:$0xf]
  %v3276 = vld [vmem:[%s12 + $0x18] sm:$0xf]
  %v3277 = vld [vmem:[%s12 + $0x1c] sm:$0xf]
  %v3278 = vld [vmem:[%s13] sm:$0x1]
  %v3280 = vlaneseq
  %v3281 = vshrl.u32 %v3280, 7
  %v3282 = vsub.s32 0, %v3281
  %v3283 = vrot.slane %v3278, %v3282
  %v3293 = vunpack.c.l.b16 %v3270
  %v3294 = vunpack.c.l.b16 %v3271
  %v3295 = vunpack.c.l.b16 %v3272
  %v3296 = vunpack.c.l.b16 %v3273
  %v3297 = vunpack.c.l.b16 %v3274
  %v3298 = vunpack.c.l.b16 %v3275
  %v3299 = vunpack.c.l.b16 %v3276
  %v3300 = vunpack.c.l.b16 %v3277
  %v3301 = vpack.c.b16 %v3294, %v3293
  %v3302 = vpack.c.b16 %v3296, %v3295
  %v3303 = vpack.c.b16 %v3298, %v3297
  %v3304 = vpack.c.b16 %v3300, %v3299
  %vm3309 = vcmask 523264
  %v3311 = vsel %vm3309, %v3268, 0
  %v3314 = vsel %vm3309, %v3269, 0
  %3316 = vmatprep.subr.bf16.mxu0 0
  %3317 = vmatpush1.bf16.msra.mxu0 0
  %3318 = vmatprep.subr.bf16.mxu0 0
  %3319 = vmatpush1.bf16.msra.mxu0 0
  %3320 = vmatprep.subr.bf16.mxu0 0
  %3321 = vmatpush1.bf16.msra.mxu0 0
  %3322 = vmatprep.subr.bf16.mxu0 0
  %3323 = vmatpush1.bf16.msra.mxu0 0
  %3324 = vmatprep.subr.bf16.mxu0 0
  %3325 = vmatpush1.bf16.msra.mxu0 %v3304
  %3326 = vmatprep.subr.bf16.mxu0 0
  %3327 = vmatpush1.bf16.msra.mxu0 %v3303
  %3328 = vmatprep.subr.bf16.mxu0 0
  %3329 = vmatpush1.bf16.msra.mxu0 %v3302
  %3330 = vmatprep.subr.bf16.mxu0 0
  %3331 = vmatpush1.bf16.msra.mxu0 %v3301
  %3332 = vmatprep.subr.bf16.mxu0 0
  %3333 = vmatpush2.bf16.msra.mxu0 0
  %3334 = vmatprep.subr.bf16.mxu0 0
  %3335 = vmatpush2.bf16.msra.mxu0 0
  %3336 = vmatprep.subr.bf16.mxu0 0
  %3337 = vmatpush2.bf16.msra.mxu0 0
  %3338 = vmatprep.subr.bf16.mxu0 0
  %3339 = vmatpush2.bf16.msra.mxu0 0
  %3340 = vmatprep.subr.bf16.mxu0 0
  %3341 = vmatpush2.bf16.msra.mxu0 0
  %3342 = vmatprep.subr.bf16.mxu0 0
  %3343 = vmatpush2.bf16.msra.mxu0 0
  %3344 = vmatprep.subr.bf16.mxu0 0
  %3345 = vmatpush2.bf16.msra.mxu0 0
  %3346 = vmatprep.subr.bf16.mxu0 0
  %3347 = vmatpush2.bf16.msra.mxu0 0
  %3348 = vmatprep.mubr.bf16.mxu0 0
  %3349 = vmatmul.mubr.bf16.gmra.mxu0 %v3311
  %v3350 = vpop.f32.mrf.mxu0
  %v3351 = vadd.f32 %v3283, %v3350
  %v3352 = vpop.f32.mrf.mxu0
  %v3353 = vpop.f32.mrf.mxu0
  %v3354 = vadd.f32 %v3283, %v3353
  %v3355 = vpop.f32.mrf.mxu0
  %3356 = vmatprep.mubr.bf16.mxu0 0
  %3357 = vmatmul.mubr.bf16.gmra.mxu0 %v3314
  %v3358 = vpop.f32.mrf.mxu0
  %v3359 = vadd.f32 %v3283, %v3358
  %v3360 = vpop.f32.mrf.mxu0
  %v3361 = vpop.f32.mrf.mxu0
  %v3362 = vadd.f32 %v3283, %v3361
  %v3363 = vpop.f32.mrf.mxu0
  %3364 = vdwg.mxu0
  %v3365 = vadd.f32 %v3148, %v3351
  %v3366 = vadd.f32 %v3149, %v3354
  %v3367 = vadd.f32 %v3150, %v3359
  %v3368 = vadd.f32 %v3151, %v3362
  %v3369 = vld [vmem:[%s14] sm:$0x1]
  %v3370 = vld [vmem:[%s15] sm:$0x1]
  %v3371 = vsel %vm70, %v3365, 0.0
  %3372 = vadd.xlane.f32.xlu0 %v3371
  %v3373 = vpop.xlane.xlu0 %3372
  %v3374 = vsel %vm70, %v3366, 0.0
  %3375 = vadd.xlane.f32.xlu0 %v3374
  %v3376 = vpop.xlane.xlu0 %3375
  %v3377 = vsel %vm70, %v3367, 0.0
  %3378 = vadd.xlane.f32.xlu0 %v3377
  %v3379 = vpop.xlane.xlu0 %3378
  %v3380 = vsel %vm70, %v3368, 0.0
  %3381 = vadd.xlane.f32.xlu0 %v3380
  %v3382 = vpop.xlane.xlu0 %3381
  %v3383 = vmul.f32 %v3373, %v83
  %v3384 = vmul.f32 %v3376, %v83
  %v3385 = vmul.f32 %v3379, %v83
  %v3386 = vmul.f32 %v3382, %v83
  %v3387 = vsub.f32 %v3365, %v3383
  %v3388 = vsub.f32 %v3366, %v3384
  %v3389 = vsub.f32 %v3367, %v3385
  %v3390 = vsub.f32 %v3368, %v3386
  %v3391 = vmul.f32 %v3387, %v3387
  %v3392 = vmul.f32 %v3388, %v3388
  %v3393 = vmul.f32 %v3389, %v3389
  %v3394 = vmul.f32 %v3390, %v3390
  %v3395 = vsel %vm70, %v3391, 0.0
  %3396 = vadd.xlane.f32.xlu0 %v3395
  %v3397 = vpop.xlane.xlu0 %3396
  %v3398 = vsel %vm70, %v3392, 0.0
  %3399 = vadd.xlane.f32.xlu0 %v3398
  %v3400 = vpop.xlane.xlu0 %3399
  %v3401 = vsel %vm70, %v3393, 0.0
  %3402 = vadd.xlane.f32.xlu0 %v3401
  %v3403 = vpop.xlane.xlu0 %3402
  %v3404 = vsel %vm70, %v3394, 0.0
  %3405 = vadd.xlane.f32.xlu0 %v3404
  %v3406 = vpop.xlane.xlu0 %3405
  %v3407 = vmul.f32 %v3397, %v83
  %v3408 = vmul.f32 %v3400, %v83
  %v3409 = vmul.f32 %v3403, %v83
  %v3410 = vmul.f32 %v3406, %v83
  %v3411 = vadd.f32 %v3407, 1e-12
  %v3412 = vadd.f32 %v3408, 1e-12
  %v3413 = vadd.f32 %v3409, 1e-12
  %v3414 = vadd.f32 %v3410, 1e-12
  %v3415 = vrsqrt.pop %v3411
  %v3416 = vrsqrt.pop %v3412
  %v3417 = vrsqrt.pop %v3413
  %v3418 = vrsqrt.pop %v3414
  %v3419 = vmul.f32 %v3387, %v3415
  %v3420 = vmul.f32 %v3388, %v3416
  %v3421 = vmul.f32 %v3389, %v3417
  %v3422 = vmul.f32 %v3390, %v3418
  %v3424 = vlaneseq
  %v3425 = vshrl.u32 %v3424, 7
  %v3426 = vsub.s32 0, %v3425
  %v3427 = vrot.slane %v3369, %v3426
  %v3429 = vmul.f32 %v3419, %v3427
  %v3430 = vmul.f32 %v3420, %v3427
  %v3431 = vmul.f32 %v3421, %v3427
  %v3432 = vmul.f32 %v3422, %v3427
  %v3434 = vlaneseq
  %v3435 = vshrl.u32 %v3434, 7
  %v3436 = vsub.s32 0, %v3435
  %v3437 = vrot.slane %v3370, %v3436
  %v3439 = vadd.f32 %v3429, %v3437
  %v3440 = vadd.f32 %v3430, %v3437
  %v3441 = vadd.f32 %v3431, %v3437
  %v3442 = vadd.f32 %v3432, %v3437
  %v3443 = vpack.c.bf16 %v3440, %v3439
  %v3444 = vpack.c.bf16 %v3442, %v3441
  %s3445 = scalar_lea.vmem %s4, 192
  %v3446 = vld [vmem:[%s3445] sm:$0xf]
  %v3447 = vld [vmem:[%s3445 + $0x4] sm:$0xf]
  %v3448 = vld [vmem:[%s3445 + $0x8] sm:$0xf]
  %v3449 = vld [vmem:[%s3445 + $0xc] sm:$0xf]
  %s3450 = scalar_lea.vmem %s5, 12
  %v3451 = vld [vmem:[%s3450] sm:$0x1]
  %v3453 = vlaneseq
  %v3454 = vshrl.u32 %v3453, 7
  %v3455 = vsub.s32 0, %v3454
  %v3456 = vrot.slane %v3451, %v3455
  %v3462 = vunpack.c.l.b16 %v3446
  %v3463 = vunpack.c.l.b16 %v3447
  %v3464 = vunpack.c.l.b16 %v3448
  %v3465 = vunpack.c.l.b16 %v3449
  %v3466 = vpack.c.b16 %v3463, %v3462
  %v3467 = vpack.c.b16 %v3465, %v3464
  %v3471 = vsel %vm70, %v3443, 0
  %v3474 = vsel %vm70, %v3444, 0
  %3476 = vmatprep.subr.bf16.mxu0 0
  %3477 = vmatpush1.bf16.msra.mxu0 0
  %3478 = vmatprep.subr.bf16.mxu0 0
  %3479 = vmatpush1.bf16.msra.mxu0 0
  %3480 = vmatprep.subr.bf16.mxu0 0
  %3481 = vmatpush1.bf16.msra.mxu0 0
  %3482 = vmatprep.subr.bf16.mxu0 0
  %3483 = vmatpush1.bf16.msra.mxu0 0
  %3484 = vmatprep.subr.bf16.mxu0 0
  %3485 = vmatpush1.bf16.msra.mxu0 0
  %3486 = vmatprep.subr.bf16.mxu0 0
  %3487 = vmatpush1.bf16.msra.mxu0 0
  %3488 = vmatprep.subr.bf16.mxu0 0
  %3489 = vmatpush1.bf16.msra.mxu0 %v3467
  %3490 = vmatprep.subr.bf16.mxu0 0
  %3491 = vmatpush1.bf16.msra.mxu0 %v3466
  %3492 = vmatprep.subr.bf16.mxu0 0
  %3493 = vmatpush2.bf16.msra.mxu0 0
  %3494 = vmatprep.subr.bf16.mxu0 0
  %3495 = vmatpush2.bf16.msra.mxu0 0
  %3496 = vmatprep.subr.bf16.mxu0 0
  %3497 = vmatpush2.bf16.msra.mxu0 0
  %3498 = vmatprep.subr.bf16.mxu0 0
  %3499 = vmatpush2.bf16.msra.mxu0 0
  %3500 = vmatprep.subr.bf16.mxu0 0
  %3501 = vmatpush2.bf16.msra.mxu0 0
  %3502 = vmatprep.subr.bf16.mxu0 0
  %3503 = vmatpush2.bf16.msra.mxu0 0
  %3504 = vmatprep.subr.bf16.mxu0 0
  %3505 = vmatpush2.bf16.msra.mxu0 0
  %3506 = vmatprep.subr.bf16.mxu0 0
  %3507 = vmatpush2.bf16.msra.mxu0 0
  %3508 = vmatprep.mubr.bf16.mxu0 0
  %3509 = vmatmul.mubr.bf16.gmra.mxu0 %v3471
  %v3510 = vpop.f32.mrf.mxu0
  %v3511 = vadd.f32 %v3456, %v3510
  %v3512 = vpop.f32.mrf.mxu0
  %v3513 = vpop.f32.mrf.mxu0
  %v3514 = vadd.f32 %v3456, %v3513
  %v3515 = vpop.f32.mrf.mxu0
  %3516 = vmatprep.mubr.bf16.mxu0 0
  %3517 = vmatmul.mubr.bf16.gmra.mxu0 %v3474
  %v3518 = vpop.f32.mrf.mxu0
  %v3519 = vadd.f32 %v3456, %v3518
  %v3520 = vpop.f32.mrf.mxu0
  %v3521 = vpop.f32.mrf.mxu0
  %v3522 = vadd.f32 %v3456, %v3521
  %v3523 = vpop.f32.mrf.mxu0
  %3524 = vdwg.mxu0
  %s3525 = scalar_lea.vmem %s4, 256
  %v3526 = vld [vmem:[%s3525] sm:$0xf]
  %v3527 = vld [vmem:[%s3525 + $0x4] sm:$0xf]
  %v3528 = vld [vmem:[%s3525 + $0x8] sm:$0xf]
  %v3529 = vld [vmem:[%s3525 + $0xc] sm:$0xf]
  %s3530 = scalar_lea.vmem %s5, 16
  %v3531 = vld [vmem:[%s3530] sm:$0x1]
  %v3533 = vlaneseq
  %v3534 = vshrl.u32 %v3533, 7
  %v3535 = vsub.s32 0, %v3534
  %v3536 = vrot.slane %v3531, %v3535
  %v3542 = vunpack.c.l.b16 %v3526
  %v3543 = vunpack.c.l.b16 %v3527
  %v3544 = vunpack.c.l.b16 %v3528
  %v3545 = vunpack.c.l.b16 %v3529
  %v3546 = vpack.c.b16 %v3543, %v3542
  %v3547 = vpack.c.b16 %v3545, %v3544
  %3550 = vmatprep.subr.bf16.mxu0 0
  %3551 = vmatpush1.bf16.msra.mxu0 0
  %3552 = vmatprep.subr.bf16.mxu0 0
  %3553 = vmatpush1.bf16.msra.mxu0 0
  %3554 = vmatprep.subr.bf16.mxu0 0
  %3555 = vmatpush1.bf16.msra.mxu0 0
  %3556 = vmatprep.subr.bf16.mxu0 0
  %3557 = vmatpush1.bf16.msra.mxu0 0
  %3558 = vmatprep.subr.bf16.mxu0 0
  %3559 = vmatpush1.bf16.msra.mxu0 0
  %3560 = vmatprep.subr.bf16.mxu0 0
  %3561 = vmatpush1.bf16.msra.mxu0 0
  %3562 = vmatprep.subr.bf16.mxu0 0
  %3563 = vmatpush1.bf16.msra.mxu0 %v3547
  %3564 = vmatprep.subr.bf16.mxu0 0
  %3565 = vmatpush1.bf16.msra.mxu0 %v3546
  %3566 = vmatprep.subr.bf16.mxu0 0
  %3567 = vmatpush2.bf16.msra.mxu0 0
  %3568 = vmatprep.subr.bf16.mxu0 0
  %3569 = vmatpush2.bf16.msra.mxu0 0
  %3570 = vmatprep.subr.bf16.mxu0 0
  %3571 = vmatpush2.bf16.msra.mxu0 0
  %3572 = vmatprep.subr.bf16.mxu0 0
  %3573 = vmatpush2.bf16.msra.mxu0 0
  %3574 = vmatprep.subr.bf16.mxu0 0
  %3575 = vmatpush2.bf16.msra.mxu0 0
  %3576 = vmatprep.subr.bf16.mxu0 0
  %3577 = vmatpush2.bf16.msra.mxu0 0
  %3578 = vmatprep.subr.bf16.mxu0 0
  %3579 = vmatpush2.bf16.msra.mxu0 0
  %3580 = vmatprep.subr.bf16.mxu0 0
  %3581 = vmatpush2.bf16.msra.mxu0 0
  %3582 = vmatprep.mubr.bf16.mxu0 0
  %3583 = vmatmul.mubr.bf16.gmra.mxu0 %v3471
  %v3584 = vpop.f32.mrf.mxu0
  %v3585 = vadd.f32 %v3536, %v3584
  %v3586 = vpop.f32.mrf.mxu0
  %v3587 = vpop.f32.mrf.mxu0
  %v3588 = vadd.f32 %v3536, %v3587
  %v3589 = vpop.f32.mrf.mxu0
  %3590 = vmatprep.mubr.bf16.mxu0 0
  %3591 = vmatmul.mubr.bf16.gmra.mxu0 %v3474
  %v3592 = vpop.f32.mrf.mxu0
  %v3593 = vadd.f32 %v3536, %v3592
  %v3594 = vpop.f32.mrf.mxu0
  %v3595 = vpop.f32.mrf.mxu0
  %v3596 = vadd.f32 %v3536, %v3595
  %v3597 = vpop.f32.mrf.mxu0
  %3598 = vdwg.mxu0
  %s3599 = scalar_lea.vmem %s4, 320
  %v3600 = vld [vmem:[%s3599] sm:$0xf]
  %v3601 = vld [vmem:[%s3599 + $0x4] sm:$0xf]
  %v3602 = vld [vmem:[%s3599 + $0x8] sm:$0xf]
  %v3603 = vld [vmem:[%s3599 + $0xc] sm:$0xf]
  %s3604 = scalar_lea.vmem %s5, 20
  %v3605 = vld [vmem:[%s3604] sm:$0x1]
  %v3607 = vlaneseq
  %v3608 = vshrl.u32 %v3607, 7
  %v3609 = vsub.s32 0, %v3608
  %v3610 = vrot.slane %v3605, %v3609
  %v3616 = vunpack.c.l.b16 %v3600
  %v3617 = vunpack.c.l.b16 %v3601
  %v3618 = vunpack.c.l.b16 %v3602
  %v3619 = vunpack.c.l.b16 %v3603
  %v3620 = vpack.c.b16 %v3617, %v3616
  %v3621 = vpack.c.b16 %v3619, %v3618
  %3624 = vmatprep.subr.bf16.mxu0 0
  %3625 = vmatpush1.bf16.msra.mxu0 0
  %3626 = vmatprep.subr.bf16.mxu0 0
  %3627 = vmatpush1.bf16.msra.mxu0 0
  %3628 = vmatprep.subr.bf16.mxu0 0
  %3629 = vmatpush1.bf16.msra.mxu0 0
  %3630 = vmatprep.subr.bf16.mxu0 0
  %3631 = vmatpush1.bf16.msra.mxu0 0
  %3632 = vmatprep.subr.bf16.mxu0 0
  %3633 = vmatpush1.bf16.msra.mxu0 0
  %3634 = vmatprep.subr.bf16.mxu0 0
  %3635 = vmatpush1.bf16.msra.mxu0 0
  %3636 = vmatprep.subr.bf16.mxu0 0
  %3637 = vmatpush1.bf16.msra.mxu0 %v3621
  %3638 = vmatprep.subr.bf16.mxu0 0
  %3639 = vmatpush1.bf16.msra.mxu0 %v3620
  %3640 = vmatprep.subr.bf16.mxu0 0
  %3641 = vmatpush2.bf16.msra.mxu0 0
  %3642 = vmatprep.subr.bf16.mxu0 0
  %3643 = vmatpush2.bf16.msra.mxu0 0
  %3644 = vmatprep.subr.bf16.mxu0 0
  %3645 = vmatpush2.bf16.msra.mxu0 0
  %3646 = vmatprep.subr.bf16.mxu0 0
  %3647 = vmatpush2.bf16.msra.mxu0 0
  %3648 = vmatprep.subr.bf16.mxu0 0
  %3649 = vmatpush2.bf16.msra.mxu0 0
  %3650 = vmatprep.subr.bf16.mxu0 0
  %3651 = vmatpush2.bf16.msra.mxu0 0
  %3652 = vmatprep.subr.bf16.mxu0 0
  %3653 = vmatpush2.bf16.msra.mxu0 0
  %3654 = vmatprep.subr.bf16.mxu0 0
  %3655 = vmatpush2.bf16.msra.mxu0 0
  %3656 = vmatprep.mubr.bf16.mxu0 0
  %3657 = vmatmul.mubr.bf16.gmra.mxu0 %v3471
  %v3658 = vpop.f32.mrf.mxu0
  %v3659 = vadd.f32 %v3610, %v3658
  %v3660 = vpop.f32.mrf.mxu0
  %v3661 = vpop.f32.mrf.mxu0
  %v3662 = vadd.f32 %v3610, %v3661
  %v3663 = vpop.f32.mrf.mxu0
  %3664 = vmatprep.mubr.bf16.mxu0 0
  %3665 = vmatmul.mubr.bf16.gmra.mxu0 %v3474
  %v3666 = vpop.f32.mrf.mxu0
  %v3667 = vadd.f32 %v3610, %v3666
  %v3668 = vpop.f32.mrf.mxu0
  %v3669 = vpop.f32.mrf.mxu0
  %v3670 = vadd.f32 %v3610, %v3669
  %v3671 = vpop.f32.mrf.mxu0
  %3672 = vdwg.mxu0
  %v3673 = vpack.c.bf16 %v3511, %v3511
  %v3674 = vpack.c.bf16 %v3514, %v3514
  %v3675 = vpack.c.bf16 %v3519, %v3519
  %v3676 = vpack.c.bf16 %v3522, %v3522
  %v3677 = vpack.c.bf16 %v3585, %v3585
  %v3678 = vpack.c.bf16 %v3588, %v3588
  %v3679 = vpack.c.bf16 %v3593, %v3593
  %v3680 = vpack.c.bf16 %v3596, %v3596
  %v3682 = vsel %vm380, %v3673, 0
  %v3685 = vsel %vm380, %v3677, 0
  %3687 = vmatprep.subr.bf16.mxu0 0
  %3688 = vmatpush1.bf16.xpose.msra.mxu0 0
  %3689 = vmatprep.subr.bf16.mxu0 0
  %3690 = vmatpush1.bf16.xpose.msra.mxu0 0
  %3691 = vmatprep.subr.bf16.mxu0 0
  %3692 = vmatpush1.bf16.xpose.msra.mxu0 0
  %3693 = vmatprep.subr.bf16.mxu0 0
  %3694 = vmatpush1.bf16.xpose.msra.mxu0 0
  %3695 = vmatprep.subr.bf16.mxu0 0
  %3696 = vmatpush1.bf16.xpose.msra.mxu0 0
  %3697 = vmatprep.subr.bf16.mxu0 0
  %3698 = vmatpush1.bf16.xpose.msra.mxu0 0
  %3699 = vmatprep.subr.bf16.mxu0 0
  %3700 = vmatpush1.bf16.xpose.msra.mxu0 0
  %3701 = vmatprep.subr.bf16.mxu0 0
  %3702 = vmatpush1.bf16.xpose.msra.mxu0 %v3685
  %3703 = vmatprep.subr.bf16.mxu0 0
  %3704 = vmatpush2.bf16.xpose.msra.mxu0 0
  %3705 = vmatprep.subr.bf16.mxu0 0
  %3706 = vmatpush2.bf16.xpose.msra.mxu0 0
  %3707 = vmatprep.subr.bf16.mxu0 0
  %3708 = vmatpush2.bf16.xpose.msra.mxu0 0
  %3709 = vmatprep.subr.bf16.mxu0 0
  %3710 = vmatpush2.bf16.xpose.msra.mxu0 0
  %3711 = vmatprep.subr.bf16.mxu0 0
  %3712 = vmatpush2.bf16.xpose.msra.mxu0 0
  %3713 = vmatprep.subr.bf16.mxu0 0
  %3714 = vmatpush2.bf16.xpose.msra.mxu0 0
  %3715 = vmatprep.subr.bf16.mxu0 0
  %3716 = vmatpush2.bf16.xpose.msra.mxu0 0
  %3717 = vmatprep.subr.bf16.mxu0 0
  %3718 = vmatpush2.bf16.xpose.msra.mxu0 0
  %3719 = vmatprep.mubr.bf16.mxu0 0
  %3720 = vmatmul.mubr.bf16.gmra.mxu0 %v3682
  %v3721 = vpop.f32.mrf.mxu0
  %v3722 = vadd.f32 0.0, %v3721
  %v3723 = vpop.f32.mrf.mxu0
  %v3724 = vpop.f32.mrf.mxu0
  %v3725 = vpop.f32.mrf.mxu0
  %3726 = vdwg.mxu0
  %v3728 = vsel %vm380, %v3674, 0
  %v3731 = vsel %vm380, %v3678, 0
  %3733 = vmatprep.subr.bf16.mxu0 0
  %3734 = vmatpush1.bf16.xpose.msra.mxu0 0
  %3735 = vmatprep.subr.bf16.mxu0 0
  %3736 = vmatpush1.bf16.xpose.msra.mxu0 0
  %3737 = vmatprep.subr.bf16.mxu0 0
  %3738 = vmatpush1.bf16.xpose.msra.mxu0 0
  %3739 = vmatprep.subr.bf16.mxu0 0
  %3740 = vmatpush1.bf16.xpose.msra.mxu0 0
  %3741 = vmatprep.subr.bf16.mxu0 0
  %3742 = vmatpush1.bf16.xpose.msra.mxu0 0
  %3743 = vmatprep.subr.bf16.mxu0 0
  %3744 = vmatpush1.bf16.xpose.msra.mxu0 0
  %3745 = vmatprep.subr.bf16.mxu0 0
  %3746 = vmatpush1.bf16.xpose.msra.mxu0 0
  %3747 = vmatprep.subr.bf16.mxu0 0
  %3748 = vmatpush1.bf16.xpose.msra.mxu0 %v3731
  %3749 = vmatprep.subr.bf16.mxu0 0
  %3750 = vmatpush2.bf16.xpose.msra.mxu0 0
  %3751 = vmatprep.subr.bf16.mxu0 0
  %3752 = vmatpush2.bf16.xpose.msra.mxu0 0
  %3753 = vmatprep.subr.bf16.mxu0 0
  %3754 = vmatpush2.bf16.xpose.msra.mxu0 0
  %3755 = vmatprep.subr.bf16.mxu0 0
  %3756 = vmatpush2.bf16.xpose.msra.mxu0 0
  %3757 = vmatprep.subr.bf16.mxu0 0
  %3758 = vmatpush2.bf16.xpose.msra.mxu0 0
  %3759 = vmatprep.subr.bf16.mxu0 0
  %3760 = vmatpush2.bf16.xpose.msra.mxu0 0
  %3761 = vmatprep.subr.bf16.mxu0 0
  %3762 = vmatpush2.bf16.xpose.msra.mxu0 0
  %3763 = vmatprep.subr.bf16.mxu0 0
  %3764 = vmatpush2.bf16.xpose.msra.mxu0 0
  %3765 = vmatprep.mubr.bf16.mxu0 0
  %3766 = vmatmul.mubr.bf16.gmra.mxu0 %v3728
  %v3767 = vpop.f32.mrf.mxu0
  %v3768 = vadd.f32 0.0, %v3767
  %v3769 = vpop.f32.mrf.mxu0
  %v3770 = vpop.f32.mrf.mxu0
  %v3771 = vpop.f32.mrf.mxu0
  %3772 = vdwg.mxu0
  %v3774 = vsel %vm380, %v3675, 0
  %v3777 = vsel %vm380, %v3679, 0
  %3779 = vmatprep.subr.bf16.mxu0 0
  %3780 = vmatpush1.bf16.xpose.msra.mxu0 0
  %3781 = vmatprep.subr.bf16.mxu0 0
  %3782 = vmatpush1.bf16.xpose.msra.mxu0 0
  %3783 = vmatprep.subr.bf16.mxu0 0
  %3784 = vmatpush1.bf16.xpose.msra.mxu0 0
  %3785 = vmatprep.subr.bf16.mxu0 0
  %3786 = vmatpush1.bf16.xpose.msra.mxu0 0
  %3787 = vmatprep.subr.bf16.mxu0 0
  %3788 = vmatpush1.bf16.xpose.msra.mxu0 0
  %3789 = vmatprep.subr.bf16.mxu0 0
  %3790 = vmatpush1.bf16.xpose.msra.mxu0 0
  %3791 = vmatprep.subr.bf16.mxu0 0
  %3792 = vmatpush1.bf16.xpose.msra.mxu0 0
  %3793 = vmatprep.subr.bf16.mxu0 0
  %3794 = vmatpush1.bf16.xpose.msra.mxu0 %v3777
  %3795 = vmatprep.subr.bf16.mxu0 0
  %3796 = vmatpush2.bf16.xpose.msra.mxu0 0
  %3797 = vmatprep.subr.bf16.mxu0 0
  %3798 = vmatpush2.bf16.xpose.msra.mxu0 0
  %3799 = vmatprep.subr.bf16.mxu0 0
  %3800 = vmatpush2.bf16.xpose.msra.mxu0 0
  %3801 = vmatprep.subr.bf16.mxu0 0
  %3802 = vmatpush2.bf16.xpose.msra.mxu0 0
  %3803 = vmatprep.subr.bf16.mxu0 0
  %3804 = vmatpush2.bf16.xpose.msra.mxu0 0
  %3805 = vmatprep.subr.bf16.mxu0 0
  %3806 = vmatpush2.bf16.xpose.msra.mxu0 0
  %3807 = vmatprep.subr.bf16.mxu0 0
  %3808 = vmatpush2.bf16.xpose.msra.mxu0 0
  %3809 = vmatprep.subr.bf16.mxu0 0
  %3810 = vmatpush2.bf16.xpose.msra.mxu0 0
  %3811 = vmatprep.mubr.bf16.mxu0 0
  %3812 = vmatmul.mubr.bf16.gmra.mxu0 %v3774
  %v3813 = vpop.f32.mrf.mxu0
  %v3814 = vadd.f32 0.0, %v3813
  %v3815 = vpop.f32.mrf.mxu0
  %v3816 = vpop.f32.mrf.mxu0
  %v3817 = vpop.f32.mrf.mxu0
  %3818 = vdwg.mxu0
  %v3820 = vsel %vm380, %v3676, 0
  %v3823 = vsel %vm380, %v3680, 0
  %3825 = vmatprep.subr.bf16.mxu0 0
  %3826 = vmatpush1.bf16.xpose.msra.mxu0 0
  %3827 = vmatprep.subr.bf16.mxu0 0
  %3828 = vmatpush1.bf16.xpose.msra.mxu0 0
  %3829 = vmatprep.subr.bf16.mxu0 0
  %3830 = vmatpush1.bf16.xpose.msra.mxu0 0
  %3831 = vmatprep.subr.bf16.mxu0 0
  %3832 = vmatpush1.bf16.xpose.msra.mxu0 0
  %3833 = vmatprep.subr.bf16.mxu0 0
  %3834 = vmatpush1.bf16.xpose.msra.mxu0 0
  %3835 = vmatprep.subr.bf16.mxu0 0
  %3836 = vmatpush1.bf16.xpose.msra.mxu0 0
  %3837 = vmatprep.subr.bf16.mxu0 0
  %3838 = vmatpush1.bf16.xpose.msra.mxu0 0
  %3839 = vmatprep.subr.bf16.mxu0 0
  %3840 = vmatpush1.bf16.xpose.msra.mxu0 %v3823
  %3841 = vmatprep.subr.bf16.mxu0 0
  %3842 = vmatpush2.bf16.xpose.msra.mxu0 0
  %3843 = vmatprep.subr.bf16.mxu0 0
  %3844 = vmatpush2.bf16.xpose.msra.mxu0 0
  %3845 = vmatprep.subr.bf16.mxu0 0
  %3846 = vmatpush2.bf16.xpose.msra.mxu0 0
  %3847 = vmatprep.subr.bf16.mxu0 0
  %3848 = vmatpush2.bf16.xpose.msra.mxu0 0
  %3849 = vmatprep.subr.bf16.mxu0 0
  %3850 = vmatpush2.bf16.xpose.msra.mxu0 0
  %3851 = vmatprep.subr.bf16.mxu0 0
  %3852 = vmatpush2.bf16.xpose.msra.mxu0 0
  %3853 = vmatprep.subr.bf16.mxu0 0
  %3854 = vmatpush2.bf16.xpose.msra.mxu0 0
  %3855 = vmatprep.subr.bf16.mxu0 0
  %3856 = vmatpush2.bf16.xpose.msra.mxu0 0
  %3857 = vmatprep.mubr.bf16.mxu0 0
  %3858 = vmatmul.mubr.bf16.gmra.mxu0 %v3820
  %v3859 = vpop.f32.mrf.mxu0
  %v3860 = vadd.f32 0.0, %v3859
  %v3861 = vpop.f32.mrf.mxu0
  %v3862 = vpop.f32.mrf.mxu0
  %v3863 = vpop.f32.mrf.mxu0
  %3864 = vdwg.mxu0
  %v3865 = vmul.f32 %v3722, 0.35355338
  %v3866 = vmul.f32 %v3768, 0.35355338
  %v3867 = vmul.f32 %v3814, 0.35355338
  %v3868 = vmul.f32 %v3860, 0.35355338
  %v3869 = vadd.f32 %v3865, %v576
  %v3870 = vadd.f32 %v3866, %v580
  %v3871 = vadd.f32 %v3867, %v584
  %v3872 = vadd.f32 %v3868, %v588
  %v3873 = vsel %vm380, %v3869, -inf
  %3874 = vmax.xlane.f32.xlu0 %v3873
  %v3875 = vpop.xlane.xlu0 %3874
  %v3876 = vsel %vm380, %v3870, -inf
  %3877 = vmax.xlane.f32.xlu0 %v3876
  %v3878 = vpop.xlane.xlu0 %3877
  %v3879 = vsel %vm380, %v3871, -inf
  %3880 = vmax.xlane.f32.xlu0 %v3879
  %v3881 = vpop.xlane.xlu0 %3880
  %v3882 = vsel %vm380, %v3872, -inf
  %3883 = vmax.xlane.f32.xlu0 %v3882
  %v3884 = vpop.xlane.xlu0 %3883
  %v3885 = vsub.f32 %v3869, %v3875
  %v3886 = vsub.f32 %v3870, %v3878
  %v3887 = vsub.f32 %v3871, %v3881
  %v3888 = vsub.f32 %v3872, %v3884
  %v3889 = vmul.f32 %v3885, 1.442695
  %v3890 = vpow.pop %v3889
  %v3891 = vmul.f32 %v3886, 1.442695
  %v3892 = vpow.pop %v3891
  %v3893 = vmul.f32 %v3887, 1.442695
  %v3894 = vpow.pop %v3893
  %v3895 = vmul.f32 %v3888, 1.442695
  %v3896 = vpow.pop %v3895
  %v3897 = vsel %vm380, %v3890, 0.0
  %3898 = vadd.xlane.f32.xlu0 %v3897
  %v3899 = vpop.xlane.xlu0 %3898
  %v3900 = vsel %vm380, %v3892, 0.0
  %3901 = vadd.xlane.f32.xlu0 %v3900
  %v3902 = vpop.xlane.xlu0 %3901
  %v3903 = vsel %vm380, %v3894, 0.0
  %3904 = vadd.xlane.f32.xlu0 %v3903
  %v3905 = vpop.xlane.xlu0 %3904
  %v3906 = vsel %vm380, %v3896, 0.0
  %3907 = vadd.xlane.f32.xlu0 %v3906
  %v3908 = vpop.xlane.xlu0 %3907
  %v3909 = vrcp.pop %v3899
  %v3910 = vrcp.pop %v3902
  %v3911 = vrcp.pop %v3905
  %v3912 = vrcp.pop %v3908
  %v3913 = vmul.f32 %v3890, %v3909
  %v3914 = vmul.f32 %v3892, %v3910
  %v3915 = vmul.f32 %v3894, %v3911
  %v3916 = vmul.f32 %v3896, %v3912
  %v3917 = vpack.c.bf16 %v3913, %v3913
  %v3918 = vpack.c.bf16 %v3914, %v3914
  %v3919 = vpack.c.bf16 %v3915, %v3915
  %v3920 = vpack.c.bf16 %v3916, %v3916
  %v3921 = vpack.c.bf16 %v3659, %v3659
  %v3922 = vpack.c.bf16 %v3662, %v3662
  %v3923 = vpack.c.bf16 %v3667, %v3667
  %v3924 = vpack.c.bf16 %v3670, %v3670
  %v3926 = vsel %vm380, %v3917, 0
  %v3929 = vsel %vm652, %v3921, 0
  %3931 = vmatprep.subr.bf16.mxu0 0
  %3932 = vmatpush1.bf16.msra.mxu0 0
  %3933 = vmatprep.subr.bf16.mxu0 0
  %3934 = vmatpush1.bf16.msra.mxu0 0
  %3935 = vmatprep.subr.bf16.mxu0 0
  %3936 = vmatpush1.bf16.msra.mxu0 0
  %3937 = vmatprep.subr.bf16.mxu0 0
  %3938 = vmatpush1.bf16.msra.mxu0 0
  %3939 = vmatprep.subr.bf16.mxu0 0
  %3940 = vmatpush1.bf16.msra.mxu0 0
  %3941 = vmatprep.subr.bf16.mxu0 0
  %3942 = vmatpush1.bf16.msra.mxu0 0
  %3943 = vmatprep.subr.bf16.mxu0 0
  %3944 = vmatpush1.bf16.msra.mxu0 0
  %3945 = vmatprep.subr.bf16.mxu0 0
  %3946 = vmatpush1.bf16.msra.mxu0 %v3929
  %3947 = vmatprep.subr.bf16.mxu0 0
  %3948 = vmatpush2.bf16.msra.mxu0 0
  %3949 = vmatprep.subr.bf16.mxu0 0
  %3950 = vmatpush2.bf16.msra.mxu0 0
  %3951 = vmatprep.subr.bf16.mxu0 0
  %3952 = vmatpush2.bf16.msra.mxu0 0
  %3953 = vmatprep.subr.bf16.mxu0 0
  %3954 = vmatpush2.bf16.msra.mxu0 0
  %3955 = vmatprep.subr.bf16.mxu0 0
  %3956 = vmatpush2.bf16.msra.mxu0 0
  %3957 = vmatprep.subr.bf16.mxu0 0
  %3958 = vmatpush2.bf16.msra.mxu0 0
  %3959 = vmatprep.subr.bf16.mxu0 0
  %3960 = vmatpush2.bf16.msra.mxu0 0
  %3961 = vmatprep.subr.bf16.mxu0 0
  %3962 = vmatpush2.bf16.msra.mxu0 0
  %3963 = vmatprep.mubr.bf16.mxu0 0
  %3964 = vmatmul.mubr.bf16.gmra.mxu0 %v3926
  %v3965 = vpop.f32.mrf.mxu0
  %v3966 = vadd.f32 0.0, %v3965
  %v3967 = vpop.f32.mrf.mxu0
  %v3968 = vpop.f32.mrf.mxu0
  %v3969 = vpop.f32.mrf.mxu0
  %3970 = vdwg.mxu0
  %v3972 = vsel %vm380, %v3918, 0
  %v3975 = vsel %vm652, %v3922, 0
  %3977 = vmatprep.subr.bf16.mxu0 0
  %3978 = vmatpush1.bf16.msra.mxu0 0
  %3979 = vmatprep.subr.bf16.mxu0 0
  %3980 = vmatpush1.bf16.msra.mxu0 0
  %3981 = vmatprep.subr.bf16.mxu0 0
  %3982 = vmatpush1.bf16.msra.mxu0 0
  %3983 = vmatprep.subr.bf16.mxu0 0
  %3984 = vmatpush1.bf16.msra.mxu0 0
  %3985 = vmatprep.subr.bf16.mxu0 0
  %3986 = vmatpush1.bf16.msra.mxu0 0
  %3987 = vmatprep.subr.bf16.mxu0 0
  %3988 = vmatpush1.bf16.msra.mxu0 0
  %3989 = vmatprep.subr.bf16.mxu0 0
  %3990 = vmatpush1.bf16.msra.mxu0 0
  %3991 = vmatprep.subr.bf16.mxu0 0
  %3992 = vmatpush1.bf16.msra.mxu0 %v3975
  %3993 = vmatprep.subr.bf16.mxu0 0
  %3994 = vmatpush2.bf16.msra.mxu0 0
  %3995 = vmatprep.subr.bf16.mxu0 0
  %3996 = vmatpush2.bf16.msra.mxu0 0
  %3997 = vmatprep.subr.bf16.mxu0 0
  %3998 = vmatpush2.bf16.msra.mxu0 0
  %3999 = vmatprep.subr.bf16.mxu0 0
  %4000 = vmatpush2.bf16.msra.mxu0 0
  %4001 = vmatprep.subr.bf16.mxu0 0
  %4002 = vmatpush2.bf16.msra.mxu0 0
  %4003 = vmatprep.subr.bf16.mxu0 0
  %4004 = vmatpush2.bf16.msra.mxu0 0
  %4005 = vmatprep.subr.bf16.mxu0 0
  %4006 = vmatpush2.bf16.msra.mxu0 0
  %4007 = vmatprep.subr.bf16.mxu0 0
  %4008 = vmatpush2.bf16.msra.mxu0 0
  %4009 = vmatprep.mubr.bf16.mxu0 0
  %4010 = vmatmul.mubr.bf16.gmra.mxu0 %v3972
  %v4011 = vpop.f32.mrf.mxu0
  %v4012 = vadd.f32 0.0, %v4011
  %v4013 = vpop.f32.mrf.mxu0
  %v4014 = vpop.f32.mrf.mxu0
  %v4015 = vpop.f32.mrf.mxu0
  %4016 = vdwg.mxu0
  %v4018 = vsel %vm380, %v3919, 0
  %v4021 = vsel %vm652, %v3923, 0
  %4023 = vmatprep.subr.bf16.mxu0 0
  %4024 = vmatpush1.bf16.msra.mxu0 0
  %4025 = vmatprep.subr.bf16.mxu0 0
  %4026 = vmatpush1.bf16.msra.mxu0 0
  %4027 = vmatprep.subr.bf16.mxu0 0
  %4028 = vmatpush1.bf16.msra.mxu0 0
  %4029 = vmatprep.subr.bf16.mxu0 0
  %4030 = vmatpush1.bf16.msra.mxu0 0
  %4031 = vmatprep.subr.bf16.mxu0 0
  %4032 = vmatpush1.bf16.msra.mxu0 0
  %4033 = vmatprep.subr.bf16.mxu0 0
  %4034 = vmatpush1.bf16.msra.mxu0 0
  %4035 = vmatprep.subr.bf16.mxu0 0
  %4036 = vmatpush1.bf16.msra.mxu0 0
  %4037 = vmatprep.subr.bf16.mxu0 0
  %4038 = vmatpush1.bf16.msra.mxu0 %v4021
  %4039 = vmatprep.subr.bf16.mxu0 0
  %4040 = vmatpush2.bf16.msra.mxu0 0
  %4041 = vmatprep.subr.bf16.mxu0 0
  %4042 = vmatpush2.bf16.msra.mxu0 0
  %4043 = vmatprep.subr.bf16.mxu0 0
  %4044 = vmatpush2.bf16.msra.mxu0 0
  %4045 = vmatprep.subr.bf16.mxu0 0
  %4046 = vmatpush2.bf16.msra.mxu0 0
  %4047 = vmatprep.subr.bf16.mxu0 0
  %4048 = vmatpush2.bf16.msra.mxu0 0
  %4049 = vmatprep.subr.bf16.mxu0 0
  %4050 = vmatpush2.bf16.msra.mxu0 0
  %4051 = vmatprep.subr.bf16.mxu0 0
  %4052 = vmatpush2.bf16.msra.mxu0 0
  %4053 = vmatprep.subr.bf16.mxu0 0
  %4054 = vmatpush2.bf16.msra.mxu0 0
  %4055 = vmatprep.mubr.bf16.mxu0 0
  %4056 = vmatmul.mubr.bf16.gmra.mxu0 %v4018
  %v4057 = vpop.f32.mrf.mxu0
  %v4058 = vadd.f32 0.0, %v4057
  %v4059 = vpop.f32.mrf.mxu0
  %v4060 = vpop.f32.mrf.mxu0
  %v4061 = vpop.f32.mrf.mxu0
  %4062 = vdwg.mxu0
  %v4064 = vsel %vm380, %v3920, 0
  %v4067 = vsel %vm652, %v3924, 0
  %4069 = vmatprep.subr.bf16.mxu0 0
  %4070 = vmatpush1.bf16.msra.mxu0 0
  %4071 = vmatprep.subr.bf16.mxu0 0
  %4072 = vmatpush1.bf16.msra.mxu0 0
  %4073 = vmatprep.subr.bf16.mxu0 0
  %4074 = vmatpush1.bf16.msra.mxu0 0
  %4075 = vmatprep.subr.bf16.mxu0 0
  %4076 = vmatpush1.bf16.msra.mxu0 0
  %4077 = vmatprep.subr.bf16.mxu0 0
  %4078 = vmatpush1.bf16.msra.mxu0 0
  %4079 = vmatprep.subr.bf16.mxu0 0
  %4080 = vmatpush1.bf16.msra.mxu0 0
  %4081 = vmatprep.subr.bf16.mxu0 0
  %4082 = vmatpush1.bf16.msra.mxu0 0
  %4083 = vmatprep.subr.bf16.mxu0 0
  %4084 = vmatpush1.bf16.msra.mxu0 %v4067
  %4085 = vmatprep.subr.bf16.mxu0 0
  %4086 = vmatpush2.bf16.msra.mxu0 0
  %4087 = vmatprep.subr.bf16.mxu0 0
  %4088 = vmatpush2.bf16.msra.mxu0 0
  %4089 = vmatprep.subr.bf16.mxu0 0
  %4090 = vmatpush2.bf16.msra.mxu0 0
  %4091 = vmatprep.subr.bf16.mxu0 0
  %4092 = vmatpush2.bf16.msra.mxu0 0
  %4093 = vmatprep.subr.bf16.mxu0 0
  %4094 = vmatpush2.bf16.msra.mxu0 0
  %4095 = vmatprep.subr.bf16.mxu0 0
  %4096 = vmatpush2.bf16.msra.mxu0 0
  %4097 = vmatprep.subr.bf16.mxu0 0
  %4098 = vmatpush2.bf16.msra.mxu0 0
  %4099 = vmatprep.subr.bf16.mxu0 0
  %4100 = vmatpush2.bf16.msra.mxu0 0
  %4101 = vmatprep.mubr.bf16.mxu0 0
  %4102 = vmatmul.mubr.bf16.gmra.mxu0 %v4064
  %v4103 = vpop.f32.mrf.mxu0
  %v4104 = vadd.f32 0.0, %v4103
  %v4105 = vpop.f32.mrf.mxu0
  %v4106 = vpop.f32.mrf.mxu0
  %v4107 = vpop.f32.mrf.mxu0
  %4108 = vdwg.mxu0
  %v4109 = vpack.c.bf16 %v4012, %v3966
  %v4110 = vpack.c.bf16 %v4104, %v4058
  %s4111 = scalar_lea.vmem %s6, 16
  %v4112 = vld [vmem:[%s4111] sm:$0xf]
  %s4113 = scalar_lea.vmem %s4, 208
  %v4114 = vld [vmem:[%s4113] sm:$0xf]
  %v4115 = vld [vmem:[%s4113 + $0x4] sm:$0xf]
  %v4116 = vld [vmem:[%s4113 + $0x8] sm:$0xf]
  %v4117 = vld [vmem:[%s4113 + $0xc] sm:$0xf]
  %s4118 = scalar_lea.vmem %s5, 13
  %v4119 = vld [vmem:[%s4118] sm:$0x1]
  %v4121 = vlaneseq
  %v4122 = vshrl.u32 %v4121, 7
  %v4123 = vsub.s32 0, %v4122
  %v4124 = vrot.slane %v4119, %v4123
  %v4130 = vunpack.c.l.b16 %v4114
  %v4131 = vunpack.c.l.b16 %v4115
  %v4132 = vunpack.c.l.b16 %v4116
  %v4133 = vunpack.c.l.b16 %v4117
  %v4134 = vpack.c.b16 %v4131, %v4130
  %v4135 = vpack.c.b16 %v4133, %v4132
  %4138 = vmatprep.subr.bf16.mxu0 0
  %4139 = vmatpush1.bf16.msra.mxu0 0
  %4140 = vmatprep.subr.bf16.mxu0 0
  %4141 = vmatpush1.bf16.msra.mxu0 0
  %4142 = vmatprep.subr.bf16.mxu0 0
  %4143 = vmatpush1.bf16.msra.mxu0 0
  %4144 = vmatprep.subr.bf16.mxu0 0
  %4145 = vmatpush1.bf16.msra.mxu0 0
  %4146 = vmatprep.subr.bf16.mxu0 0
  %4147 = vmatpush1.bf16.msra.mxu0 0
  %4148 = vmatprep.subr.bf16.mxu0 0
  %4149 = vmatpush1.bf16.msra.mxu0 0
  %4150 = vmatprep.subr.bf16.mxu0 0
  %4151 = vmatpush1.bf16.msra.mxu0 %v4135
  %4152 = vmatprep.subr.bf16.mxu0 0
  %4153 = vmatpush1.bf16.msra.mxu0 %v4134
  %4154 = vmatprep.subr.bf16.mxu0 0
  %4155 = vmatpush2.bf16.msra.mxu0 0
  %4156 = vmatprep.subr.bf16.mxu0 0
  %4157 = vmatpush2.bf16.msra.mxu0 0
  %4158 = vmatprep.subr.bf16.mxu0 0
  %4159 = vmatpush2.bf16.msra.mxu0 0
  %4160 = vmatprep.subr.bf16.mxu0 0
  %4161 = vmatpush2.bf16.msra.mxu0 0
  %4162 = vmatprep.subr.bf16.mxu0 0
  %4163 = vmatpush2.bf16.msra.mxu0 0
  %4164 = vmatprep.subr.bf16.mxu0 0
  %4165 = vmatpush2.bf16.msra.mxu0 0
  %4166 = vmatprep.subr.bf16.mxu0 0
  %4167 = vmatpush2.bf16.msra.mxu0 0
  %4168 = vmatprep.subr.bf16.mxu0 0
  %4169 = vmatpush2.bf16.msra.mxu0 0
  %4170 = vmatprep.mubr.bf16.mxu0 0
  %4171 = vmatmul.mubr.bf16.gmra.mxu0 %v3471
  %v4172 = vpop.f32.mrf.mxu0
  %v4173 = vadd.f32 %v4124, %v4172
  %v4174 = vpop.f32.mrf.mxu0
  %v4175 = vpop.f32.mrf.mxu0
  %v4176 = vadd.f32 %v4124, %v4175
  %v4177 = vpop.f32.mrf.mxu0
  %4178 = vmatprep.mubr.bf16.mxu0 0
  %4179 = vmatmul.mubr.bf16.gmra.mxu0 %v3474
  %v4180 = vpop.f32.mrf.mxu0
  %v4181 = vadd.f32 %v4124, %v4180
  %v4182 = vpop.f32.mrf.mxu0
  %v4183 = vpop.f32.mrf.mxu0
  %v4184 = vadd.f32 %v4124, %v4183
  %v4185 = vpop.f32.mrf.mxu0
  %4186 = vdwg.mxu0
  %s4187 = scalar_lea.vmem %s4, 272
  %v4188 = vld [vmem:[%s4187] sm:$0xf]
  %v4189 = vld [vmem:[%s4187 + $0x4] sm:$0xf]
  %v4190 = vld [vmem:[%s4187 + $0x8] sm:$0xf]
  %v4191 = vld [vmem:[%s4187 + $0xc] sm:$0xf]
  %s4192 = scalar_lea.vmem %s5, 17
  %v4193 = vld [vmem:[%s4192] sm:$0x1]
  %v4195 = vlaneseq
  %v4196 = vshrl.u32 %v4195, 7
  %v4197 = vsub.s32 0, %v4196
  %v4198 = vrot.slane %v4193, %v4197
  %v4204 = vunpack.c.l.b16 %v4188
  %v4205 = vunpack.c.l.b16 %v4189
  %v4206 = vunpack.c.l.b16 %v4190
  %v4207 = vunpack.c.l.b16 %v4191
  %v4208 = vpack.c.b16 %v4205, %v4204
  %v4209 = vpack.c.b16 %v4207, %v4206
  %4212 = vmatprep.subr.bf16.mxu0 0
  %4213 = vmatpush1.bf16.msra.mxu0 0
  %4214 = vmatprep.subr.bf16.mxu0 0
  %4215 = vmatpush1.bf16.msra.mxu0 0
  %4216 = vmatprep.subr.bf16.mxu0 0
  %4217 = vmatpush1.bf16.msra.mxu0 0
  %4218 = vmatprep.subr.bf16.mxu0 0
  %4219 = vmatpush1.bf16.msra.mxu0 0
  %4220 = vmatprep.subr.bf16.mxu0 0
  %4221 = vmatpush1.bf16.msra.mxu0 0
  %4222 = vmatprep.subr.bf16.mxu0 0
  %4223 = vmatpush1.bf16.msra.mxu0 0
  %4224 = vmatprep.subr.bf16.mxu0 0
  %4225 = vmatpush1.bf16.msra.mxu0 %v4209
  %4226 = vmatprep.subr.bf16.mxu0 0
  %4227 = vmatpush1.bf16.msra.mxu0 %v4208
  %4228 = vmatprep.subr.bf16.mxu0 0
  %4229 = vmatpush2.bf16.msra.mxu0 0
  %4230 = vmatprep.subr.bf16.mxu0 0
  %4231 = vmatpush2.bf16.msra.mxu0 0
  %4232 = vmatprep.subr.bf16.mxu0 0
  %4233 = vmatpush2.bf16.msra.mxu0 0
  %4234 = vmatprep.subr.bf16.mxu0 0
  %4235 = vmatpush2.bf16.msra.mxu0 0
  %4236 = vmatprep.subr.bf16.mxu0 0
  %4237 = vmatpush2.bf16.msra.mxu0 0
  %4238 = vmatprep.subr.bf16.mxu0 0
  %4239 = vmatpush2.bf16.msra.mxu0 0
  %4240 = vmatprep.subr.bf16.mxu0 0
  %4241 = vmatpush2.bf16.msra.mxu0 0
  %4242 = vmatprep.subr.bf16.mxu0 0
  %4243 = vmatpush2.bf16.msra.mxu0 0
  %4244 = vmatprep.mubr.bf16.mxu0 0
  %4245 = vmatmul.mubr.bf16.gmra.mxu0 %v3471
  %v4246 = vpop.f32.mrf.mxu0
  %v4247 = vadd.f32 %v4198, %v4246
  %v4248 = vpop.f32.mrf.mxu0
  %v4249 = vpop.f32.mrf.mxu0
  %v4250 = vadd.f32 %v4198, %v4249
  %v4251 = vpop.f32.mrf.mxu0
  %4252 = vmatprep.mubr.bf16.mxu0 0
  %4253 = vmatmul.mubr.bf16.gmra.mxu0 %v3474
  %v4254 = vpop.f32.mrf.mxu0
  %v4255 = vadd.f32 %v4198, %v4254
  %v4256 = vpop.f32.mrf.mxu0
  %v4257 = vpop.f32.mrf.mxu0
  %v4258 = vadd.f32 %v4198, %v4257
  %v4259 = vpop.f32.mrf.mxu0
  %4260 = vdwg.mxu0
  %s4261 = scalar_lea.vmem %s4, 336
  %v4262 = vld [vmem:[%s4261] sm:$0xf]
  %v4263 = vld [vmem:[%s4261 + $0x4] sm:$0xf]
  %v4264 = vld [vmem:[%s4261 + $0x8] sm:$0xf]
  %v4265 = vld [vmem:[%s4261 + $0xc] sm:$0xf]
  %s4266 = scalar_lea.vmem %s5, 21
  %v4267 = vld [vmem:[%s4266] sm:$0x1]
  %v4269 = vlaneseq
  %v4270 = vshrl.u32 %v4269, 7
  %v4271 = vsub.s32 0, %v4270
  %v4272 = vrot.slane %v4267, %v4271
  %v4278 = vunpack.c.l.b16 %v4262
  %v4279 = vunpack.c.l.b16 %v4263
  %v4280 = vunpack.c.l.b16 %v4264
  %v4281 = vunpack.c.l.b16 %v4265
  %v4282 = vpack.c.b16 %v4279, %v4278
  %v4283 = vpack.c.b16 %v4281, %v4280
  %4286 = vmatprep.subr.bf16.mxu0 0
  %4287 = vmatpush1.bf16.msra.mxu0 0
  %4288 = vmatprep.subr.bf16.mxu0 0
  %4289 = vmatpush1.bf16.msra.mxu0 0
  %4290 = vmatprep.subr.bf16.mxu0 0
  %4291 = vmatpush1.bf16.msra.mxu0 0
  %4292 = vmatprep.subr.bf16.mxu0 0
  %4293 = vmatpush1.bf16.msra.mxu0 0
  %4294 = vmatprep.subr.bf16.mxu0 0
  %4295 = vmatpush1.bf16.msra.mxu0 0
  %4296 = vmatprep.subr.bf16.mxu0 0
  %4297 = vmatpush1.bf16.msra.mxu0 0
  %4298 = vmatprep.subr.bf16.mxu0 0
  %4299 = vmatpush1.bf16.msra.mxu0 %v4283
  %4300 = vmatprep.subr.bf16.mxu0 0
  %4301 = vmatpush1.bf16.msra.mxu0 %v4282
  %4302 = vmatprep.subr.bf16.mxu0 0
  %4303 = vmatpush2.bf16.msra.mxu0 0
  %4304 = vmatprep.subr.bf16.mxu0 0
  %4305 = vmatpush2.bf16.msra.mxu0 0
  %4306 = vmatprep.subr.bf16.mxu0 0
  %4307 = vmatpush2.bf16.msra.mxu0 0
  %4308 = vmatprep.subr.bf16.mxu0 0
  %4309 = vmatpush2.bf16.msra.mxu0 0
  %4310 = vmatprep.subr.bf16.mxu0 0
  %4311 = vmatpush2.bf16.msra.mxu0 0
  %4312 = vmatprep.subr.bf16.mxu0 0
  %4313 = vmatpush2.bf16.msra.mxu0 0
  %4314 = vmatprep.subr.bf16.mxu0 0
  %4315 = vmatpush2.bf16.msra.mxu0 0
  %4316 = vmatprep.subr.bf16.mxu0 0
  %4317 = vmatpush2.bf16.msra.mxu0 0
  %4318 = vmatprep.mubr.bf16.mxu0 0
  %4319 = vmatmul.mubr.bf16.gmra.mxu0 %v3471
  %v4320 = vpop.f32.mrf.mxu0
  %v4321 = vadd.f32 %v4272, %v4320
  %v4322 = vpop.f32.mrf.mxu0
  %v4323 = vpop.f32.mrf.mxu0
  %v4324 = vadd.f32 %v4272, %v4323
  %v4325 = vpop.f32.mrf.mxu0
  %4326 = vmatprep.mubr.bf16.mxu0 0
  %4327 = vmatmul.mubr.bf16.gmra.mxu0 %v3474
  %v4328 = vpop.f32.mrf.mxu0
  %v4329 = vadd.f32 %v4272, %v4328
  %v4330 = vpop.f32.mrf.mxu0
  %v4331 = vpop.f32.mrf.mxu0
  %v4332 = vadd.f32 %v4272, %v4331
  %v4333 = vpop.f32.mrf.mxu0
  %4334 = vdwg.mxu0
  %v4335 = vpack.c.bf16 %v4173, %v4173
  %v4336 = vpack.c.bf16 %v4176, %v4176
  %v4337 = vpack.c.bf16 %v4181, %v4181
  %v4338 = vpack.c.bf16 %v4184, %v4184
  %v4339 = vpack.c.bf16 %v4247, %v4247
  %v4340 = vpack.c.bf16 %v4250, %v4250
  %v4341 = vpack.c.bf16 %v4255, %v4255
  %v4342 = vpack.c.bf16 %v4258, %v4258
  %v4344 = vsel %vm380, %v4335, 0
  %v4347 = vsel %vm380, %v4339, 0
  %4349 = vmatprep.subr.bf16.mxu0 0
  %4350 = vmatpush1.bf16.xpose.msra.mxu0 0
  %4351 = vmatprep.subr.bf16.mxu0 0
  %4352 = vmatpush1.bf16.xpose.msra.mxu0 0
  %4353 = vmatprep.subr.bf16.mxu0 0
  %4354 = vmatpush1.bf16.xpose.msra.mxu0 0
  %4355 = vmatprep.subr.bf16.mxu0 0
  %4356 = vmatpush1.bf16.xpose.msra.mxu0 0
  %4357 = vmatprep.subr.bf16.mxu0 0
  %4358 = vmatpush1.bf16.xpose.msra.mxu0 0
  %4359 = vmatprep.subr.bf16.mxu0 0
  %4360 = vmatpush1.bf16.xpose.msra.mxu0 0
  %4361 = vmatprep.subr.bf16.mxu0 0
  %4362 = vmatpush1.bf16.xpose.msra.mxu0 0
  %4363 = vmatprep.subr.bf16.mxu0 0
  %4364 = vmatpush1.bf16.xpose.msra.mxu0 %v4347
  %4365 = vmatprep.subr.bf16.mxu0 0
  %4366 = vmatpush2.bf16.xpose.msra.mxu0 0
  %4367 = vmatprep.subr.bf16.mxu0 0
  %4368 = vmatpush2.bf16.xpose.msra.mxu0 0
  %4369 = vmatprep.subr.bf16.mxu0 0
  %4370 = vmatpush2.bf16.xpose.msra.mxu0 0
  %4371 = vmatprep.subr.bf16.mxu0 0
  %4372 = vmatpush2.bf16.xpose.msra.mxu0 0
  %4373 = vmatprep.subr.bf16.mxu0 0
  %4374 = vmatpush2.bf16.xpose.msra.mxu0 0
  %4375 = vmatprep.subr.bf16.mxu0 0
  %4376 = vmatpush2.bf16.xpose.msra.mxu0 0
  %4377 = vmatprep.subr.bf16.mxu0 0
  %4378 = vmatpush2.bf16.xpose.msra.mxu0 0
  %4379 = vmatprep.subr.bf16.mxu0 0
  %4380 = vmatpush2.bf16.xpose.msra.mxu0 0
  %4381 = vmatprep.mubr.bf16.mxu0 0
  %4382 = vmatmul.mubr.bf16.gmra.mxu0 %v4344
  %v4383 = vpop.f32.mrf.mxu0
  %v4384 = vadd.f32 0.0, %v4383
  %v4385 = vpop.f32.mrf.mxu0
  %v4386 = vpop.f32.mrf.mxu0
  %v4387 = vpop.f32.mrf.mxu0
  %4388 = vdwg.mxu0
  %v4390 = vsel %vm380, %v4336, 0
  %v4393 = vsel %vm380, %v4340, 0
  %4395 = vmatprep.subr.bf16.mxu0 0
  %4396 = vmatpush1.bf16.xpose.msra.mxu0 0
  %4397 = vmatprep.subr.bf16.mxu0 0
  %4398 = vmatpush1.bf16.xpose.msra.mxu0 0
  %4399 = vmatprep.subr.bf16.mxu0 0
  %4400 = vmatpush1.bf16.xpose.msra.mxu0 0
  %4401 = vmatprep.subr.bf16.mxu0 0
  %4402 = vmatpush1.bf16.xpose.msra.mxu0 0
  %4403 = vmatprep.subr.bf16.mxu0 0
  %4404 = vmatpush1.bf16.xpose.msra.mxu0 0
  %4405 = vmatprep.subr.bf16.mxu0 0
  %4406 = vmatpush1.bf16.xpose.msra.mxu0 0
  %4407 = vmatprep.subr.bf16.mxu0 0
  %4408 = vmatpush1.bf16.xpose.msra.mxu0 0
  %4409 = vmatprep.subr.bf16.mxu0 0
  %4410 = vmatpush1.bf16.xpose.msra.mxu0 %v4393
  %4411 = vmatprep.subr.bf16.mxu0 0
  %4412 = vmatpush2.bf16.xpose.msra.mxu0 0
  %4413 = vmatprep.subr.bf16.mxu0 0
  %4414 = vmatpush2.bf16.xpose.msra.mxu0 0
  %4415 = vmatprep.subr.bf16.mxu0 0
  %4416 = vmatpush2.bf16.xpose.msra.mxu0 0
  %4417 = vmatprep.subr.bf16.mxu0 0
  %4418 = vmatpush2.bf16.xpose.msra.mxu0 0
  %4419 = vmatprep.subr.bf16.mxu0 0
  %4420 = vmatpush2.bf16.xpose.msra.mxu0 0
  %4421 = vmatprep.subr.bf16.mxu0 0
  %4422 = vmatpush2.bf16.xpose.msra.mxu0 0
  %4423 = vmatprep.subr.bf16.mxu0 0
  %4424 = vmatpush2.bf16.xpose.msra.mxu0 0
  %4425 = vmatprep.subr.bf16.mxu0 0
  %4426 = vmatpush2.bf16.xpose.msra.mxu0 0
  %4427 = vmatprep.mubr.bf16.mxu0 0
  %4428 = vmatmul.mubr.bf16.gmra.mxu0 %v4390
  %v4429 = vpop.f32.mrf.mxu0
  %v4430 = vadd.f32 0.0, %v4429
  %v4431 = vpop.f32.mrf.mxu0
  %v4432 = vpop.f32.mrf.mxu0
  %v4433 = vpop.f32.mrf.mxu0
  %4434 = vdwg.mxu0
  %v4436 = vsel %vm380, %v4337, 0
  %v4439 = vsel %vm380, %v4341, 0
  %4441 = vmatprep.subr.bf16.mxu0 0
  %4442 = vmatpush1.bf16.xpose.msra.mxu0 0
  %4443 = vmatprep.subr.bf16.mxu0 0
  %4444 = vmatpush1.bf16.xpose.msra.mxu0 0
  %4445 = vmatprep.subr.bf16.mxu0 0
  %4446 = vmatpush1.bf16.xpose.msra.mxu0 0
  %4447 = vmatprep.subr.bf16.mxu0 0
  %4448 = vmatpush1.bf16.xpose.msra.mxu0 0
  %4449 = vmatprep.subr.bf16.mxu0 0
  %4450 = vmatpush1.bf16.xpose.msra.mxu0 0
  %4451 = vmatprep.subr.bf16.mxu0 0
  %4452 = vmatpush1.bf16.xpose.msra.mxu0 0
  %4453 = vmatprep.subr.bf16.mxu0 0
  %4454 = vmatpush1.bf16.xpose.msra.mxu0 0
  %4455 = vmatprep.subr.bf16.mxu0 0
  %4456 = vmatpush1.bf16.xpose.msra.mxu0 %v4439
  %4457 = vmatprep.subr.bf16.mxu0 0
  %4458 = vmatpush2.bf16.xpose.msra.mxu0 0
  %4459 = vmatprep.subr.bf16.mxu0 0
  %4460 = vmatpush2.bf16.xpose.msra.mxu0 0
  %4461 = vmatprep.subr.bf16.mxu0 0
  %4462 = vmatpush2.bf16.xpose.msra.mxu0 0
  %4463 = vmatprep.subr.bf16.mxu0 0
  %4464 = vmatpush2.bf16.xpose.msra.mxu0 0
  %4465 = vmatprep.subr.bf16.mxu0 0
  %4466 = vmatpush2.bf16.xpose.msra.mxu0 0
  %4467 = vmatprep.subr.bf16.mxu0 0
  %4468 = vmatpush2.bf16.xpose.msra.mxu0 0
  %4469 = vmatprep.subr.bf16.mxu0 0
  %4470 = vmatpush2.bf16.xpose.msra.mxu0 0
  %4471 = vmatprep.subr.bf16.mxu0 0
  %4472 = vmatpush2.bf16.xpose.msra.mxu0 0
  %4473 = vmatprep.mubr.bf16.mxu0 0
  %4474 = vmatmul.mubr.bf16.gmra.mxu0 %v4436
  %v4475 = vpop.f32.mrf.mxu0
  %v4476 = vadd.f32 0.0, %v4475
  %v4477 = vpop.f32.mrf.mxu0
  %v4478 = vpop.f32.mrf.mxu0
  %v4479 = vpop.f32.mrf.mxu0
  %4480 = vdwg.mxu0
  %v4482 = vsel %vm380, %v4338, 0
  %v4485 = vsel %vm380, %v4342, 0
  %4487 = vmatprep.subr.bf16.mxu0 0
  %4488 = vmatpush1.bf16.xpose.msra.mxu0 0
  %4489 = vmatprep.subr.bf16.mxu0 0
  %4490 = vmatpush1.bf16.xpose.msra.mxu0 0
  %4491 = vmatprep.subr.bf16.mxu0 0
  %4492 = vmatpush1.bf16.xpose.msra.mxu0 0
  %4493 = vmatprep.subr.bf16.mxu0 0
  %4494 = vmatpush1.bf16.xpose.msra.mxu0 0
  %4495 = vmatprep.subr.bf16.mxu0 0
  %4496 = vmatpush1.bf16.xpose.msra.mxu0 0
  %4497 = vmatprep.subr.bf16.mxu0 0
  %4498 = vmatpush1.bf16.xpose.msra.mxu0 0
  %4499 = vmatprep.subr.bf16.mxu0 0
  %4500 = vmatpush1.bf16.xpose.msra.mxu0 0
  %4501 = vmatprep.subr.bf16.mxu0 0
  %4502 = vmatpush1.bf16.xpose.msra.mxu0 %v4485
  %4503 = vmatprep.subr.bf16.mxu0 0
  %4504 = vmatpush2.bf16.xpose.msra.mxu0 0
  %4505 = vmatprep.subr.bf16.mxu0 0
  %4506 = vmatpush2.bf16.xpose.msra.mxu0 0
  %4507 = vmatprep.subr.bf16.mxu0 0
  %4508 = vmatpush2.bf16.xpose.msra.mxu0 0
  %4509 = vmatprep.subr.bf16.mxu0 0
  %4510 = vmatpush2.bf16.xpose.msra.mxu0 0
  %4511 = vmatprep.subr.bf16.mxu0 0
  %4512 = vmatpush2.bf16.xpose.msra.mxu0 0
  %4513 = vmatprep.subr.bf16.mxu0 0
  %4514 = vmatpush2.bf16.xpose.msra.mxu0 0
  %4515 = vmatprep.subr.bf16.mxu0 0
  %4516 = vmatpush2.bf16.xpose.msra.mxu0 0
  %4517 = vmatprep.subr.bf16.mxu0 0
  %4518 = vmatpush2.bf16.xpose.msra.mxu0 0
  %4519 = vmatprep.mubr.bf16.mxu0 0
  %4520 = vmatmul.mubr.bf16.gmra.mxu0 %v4482
  %v4521 = vpop.f32.mrf.mxu0
  %v4522 = vadd.f32 0.0, %v4521
  %v4523 = vpop.f32.mrf.mxu0
  %v4524 = vpop.f32.mrf.mxu0
  %v4525 = vpop.f32.mrf.mxu0
  %4526 = vdwg.mxu0
  %v4527 = vmul.f32 %v4384, 0.35355338
  %v4528 = vmul.f32 %v4430, 0.35355338
  %v4529 = vmul.f32 %v4476, 0.35355338
  %v4530 = vmul.f32 %v4522, 0.35355338
  %v4531 = vadd.f32 %v4527, %v576
  %v4532 = vadd.f32 %v4528, %v580
  %v4533 = vadd.f32 %v4529, %v584
  %v4534 = vadd.f32 %v4530, %v588
  %v4535 = vsel %vm380, %v4531, -inf
  %4536 = vmax.xlane.f32.xlu0 %v4535
  %v4537 = vpop.xlane.xlu0 %4536
  %v4538 = vsel %vm380, %v4532, -inf
  %4539 = vmax.xlane.f32.xlu0 %v4538
  %v4540 = vpop.xlane.xlu0 %4539
  %v4541 = vsel %vm380, %v4533, -inf
  %4542 = vmax.xlane.f32.xlu0 %v4541
  %v4543 = vpop.xlane.xlu0 %4542
  %v4544 = vsel %vm380, %v4534, -inf
  %4545 = vmax.xlane.f32.xlu0 %v4544
  %v4546 = vpop.xlane.xlu0 %4545
  %v4547 = vsub.f32 %v4531, %v4537
  %v4548 = vsub.f32 %v4532, %v4540
  %v4549 = vsub.f32 %v4533, %v4543
  %v4550 = vsub.f32 %v4534, %v4546
  %v4551 = vmul.f32 %v4547, 1.442695
  %v4552 = vpow.pop %v4551
  %v4553 = vmul.f32 %v4548, 1.442695
  %v4554 = vpow.pop %v4553
  %v4555 = vmul.f32 %v4549, 1.442695
  %v4556 = vpow.pop %v4555
  %v4557 = vmul.f32 %v4550, 1.442695
  %v4558 = vpow.pop %v4557
  %v4559 = vsel %vm380, %v4552, 0.0
  %4560 = vadd.xlane.f32.xlu0 %v4559
  %v4561 = vpop.xlane.xlu0 %4560
  %v4562 = vsel %vm380, %v4554, 0.0
  %4563 = vadd.xlane.f32.xlu0 %v4562
  %v4564 = vpop.xlane.xlu0 %4563
  %v4565 = vsel %vm380, %v4556, 0.0
  %4566 = vadd.xlane.f32.xlu0 %v4565
  %v4567 = vpop.xlane.xlu0 %4566
  %v4568 = vsel %vm380, %v4558, 0.0
  %4569 = vadd.xlane.f32.xlu0 %v4568
  %v4570 = vpop.xlane.xlu0 %4569
  %v4571 = vrcp.pop %v4561
  %v4572 = vrcp.pop %v4564
  %v4573 = vrcp.pop %v4567
  %v4574 = vrcp.pop %v4570
  %v4575 = vmul.f32 %v4552, %v4571
  %v4576 = vmul.f32 %v4554, %v4572
  %v4577 = vmul.f32 %v4556, %v4573
  %v4578 = vmul.f32 %v4558, %v4574
  %v4579 = vpack.c.bf16 %v4575, %v4575
  %v4580 = vpack.c.bf16 %v4576, %v4576
  %v4581 = vpack.c.bf16 %v4577, %v4577
  %v4582 = vpack.c.bf16 %v4578, %v4578
  %v4583 = vpack.c.bf16 %v4321, %v4321
  %v4584 = vpack.c.bf16 %v4324, %v4324
  %v4585 = vpack.c.bf16 %v4329, %v4329
  %v4586 = vpack.c.bf16 %v4332, %v4332
  %v4588 = vsel %vm380, %v4579, 0
  %v4591 = vsel %vm652, %v4583, 0
  %4593 = vmatprep.subr.bf16.mxu0 0
  %4594 = vmatpush1.bf16.msra.mxu0 0
  %4595 = vmatprep.subr.bf16.mxu0 0
  %4596 = vmatpush1.bf16.msra.mxu0 0
  %4597 = vmatprep.subr.bf16.mxu0 0
  %4598 = vmatpush1.bf16.msra.mxu0 0
  %4599 = vmatprep.subr.bf16.mxu0 0
  %4600 = vmatpush1.bf16.msra.mxu0 0
  %4601 = vmatprep.subr.bf16.mxu0 0
  %4602 = vmatpush1.bf16.msra.mxu0 0
  %4603 = vmatprep.subr.bf16.mxu0 0
  %4604 = vmatpush1.bf16.msra.mxu0 0
  %4605 = vmatprep.subr.bf16.mxu0 0
  %4606 = vmatpush1.bf16.msra.mxu0 0
  %4607 = vmatprep.subr.bf16.mxu0 0
  %4608 = vmatpush1.bf16.msra.mxu0 %v4591
  %4609 = vmatprep.subr.bf16.mxu0 0
  %4610 = vmatpush2.bf16.msra.mxu0 0
  %4611 = vmatprep.subr.bf16.mxu0 0
  %4612 = vmatpush2.bf16.msra.mxu0 0
  %4613 = vmatprep.subr.bf16.mxu0 0
  %4614 = vmatpush2.bf16.msra.mxu0 0
  %4615 = vmatprep.subr.bf16.mxu0 0
  %4616 = vmatpush2.bf16.msra.mxu0 0
  %4617 = vmatprep.subr.bf16.mxu0 0
  %4618 = vmatpush2.bf16.msra.mxu0 0
  %4619 = vmatprep.subr.bf16.mxu0 0
  %4620 = vmatpush2.bf16.msra.mxu0 0
  %4621 = vmatprep.subr.bf16.mxu0 0
  %4622 = vmatpush2.bf16.msra.mxu0 0
  %4623 = vmatprep.subr.bf16.mxu0 0
  %4624 = vmatpush2.bf16.msra.mxu0 0
  %4625 = vmatprep.mubr.bf16.mxu0 0
  %4626 = vmatmul.mubr.bf16.gmra.mxu0 %v4588
  %v4627 = vpop.f32.mrf.mxu0
  %v4628 = vadd.f32 0.0, %v4627
  %v4629 = vpop.f32.mrf.mxu0
  %v4630 = vpop.f32.mrf.mxu0
  %v4631 = vpop.f32.mrf.mxu0
  %4632 = vdwg.mxu0
  %v4634 = vsel %vm380, %v4580, 0
  %v4637 = vsel %vm652, %v4584, 0
  %4639 = vmatprep.subr.bf16.mxu0 0
  %4640 = vmatpush1.bf16.msra.mxu0 0
  %4641 = vmatprep.subr.bf16.mxu0 0
  %4642 = vmatpush1.bf16.msra.mxu0 0
  %4643 = vmatprep.subr.bf16.mxu0 0
  %4644 = vmatpush1.bf16.msra.mxu0 0
  %4645 = vmatprep.subr.bf16.mxu0 0
  %4646 = vmatpush1.bf16.msra.mxu0 0
  %4647 = vmatprep.subr.bf16.mxu0 0
  %4648 = vmatpush1.bf16.msra.mxu0 0
  %4649 = vmatprep.subr.bf16.mxu0 0
  %4650 = vmatpush1.bf16.msra.mxu0 0
  %4651 = vmatprep.subr.bf16.mxu0 0
  %4652 = vmatpush1.bf16.msra.mxu0 0
  %4653 = vmatprep.subr.bf16.mxu0 0
  %4654 = vmatpush1.bf16.msra.mxu0 %v4637
  %4655 = vmatprep.subr.bf16.mxu0 0
  %4656 = vmatpush2.bf16.msra.mxu0 0
  %4657 = vmatprep.subr.bf16.mxu0 0
  %4658 = vmatpush2.bf16.msra.mxu0 0
  %4659 = vmatprep.subr.bf16.mxu0 0
  %4660 = vmatpush2.bf16.msra.mxu0 0
  %4661 = vmatprep.subr.bf16.mxu0 0
  %4662 = vmatpush2.bf16.msra.mxu0 0
  %4663 = vmatprep.subr.bf16.mxu0 0
  %4664 = vmatpush2.bf16.msra.mxu0 0
  %4665 = vmatprep.subr.bf16.mxu0 0
  %4666 = vmatpush2.bf16.msra.mxu0 0
  %4667 = vmatprep.subr.bf16.mxu0 0
  %4668 = vmatpush2.bf16.msra.mxu0 0
  %4669 = vmatprep.subr.bf16.mxu0 0
  %4670 = vmatpush2.bf16.msra.mxu0 0
  %4671 = vmatprep.mubr.bf16.mxu0 0
  %4672 = vmatmul.mubr.bf16.gmra.mxu0 %v4634
  %v4673 = vpop.f32.mrf.mxu0
  %v4674 = vadd.f32 0.0, %v4673
  %v4675 = vpop.f32.mrf.mxu0
  %v4676 = vpop.f32.mrf.mxu0
  %v4677 = vpop.f32.mrf.mxu0
  %4678 = vdwg.mxu0
  %v4680 = vsel %vm380, %v4581, 0
  %v4683 = vsel %vm652, %v4585, 0
  %4685 = vmatprep.subr.bf16.mxu0 0
  %4686 = vmatpush1.bf16.msra.mxu0 0
  %4687 = vmatprep.subr.bf16.mxu0 0
  %4688 = vmatpush1.bf16.msra.mxu0 0
  %4689 = vmatprep.subr.bf16.mxu0 0
  %4690 = vmatpush1.bf16.msra.mxu0 0
  %4691 = vmatprep.subr.bf16.mxu0 0
  %4692 = vmatpush1.bf16.msra.mxu0 0
  %4693 = vmatprep.subr.bf16.mxu0 0
  %4694 = vmatpush1.bf16.msra.mxu0 0
  %4695 = vmatprep.subr.bf16.mxu0 0
  %4696 = vmatpush1.bf16.msra.mxu0 0
  %4697 = vmatprep.subr.bf16.mxu0 0
  %4698 = vmatpush1.bf16.msra.mxu0 0
  %4699 = vmatprep.subr.bf16.mxu0 0
  %4700 = vmatpush1.bf16.msra.mxu0 %v4683
  %4701 = vmatprep.subr.bf16.mxu0 0
  %4702 = vmatpush2.bf16.msra.mxu0 0
  %4703 = vmatprep.subr.bf16.mxu0 0
  %4704 = vmatpush2.bf16.msra.mxu0 0
  %4705 = vmatprep.subr.bf16.mxu0 0
  %4706 = vmatpush2.bf16.msra.mxu0 0
  %4707 = vmatprep.subr.bf16.mxu0 0
  %4708 = vmatpush2.bf16.msra.mxu0 0
  %4709 = vmatprep.subr.bf16.mxu0 0
  %4710 = vmatpush2.bf16.msra.mxu0 0
  %4711 = vmatprep.subr.bf16.mxu0 0
  %4712 = vmatpush2.bf16.msra.mxu0 0
  %4713 = vmatprep.subr.bf16.mxu0 0
  %4714 = vmatpush2.bf16.msra.mxu0 0
  %4715 = vmatprep.subr.bf16.mxu0 0
  %4716 = vmatpush2.bf16.msra.mxu0 0
  %4717 = vmatprep.mubr.bf16.mxu0 0
  %4718 = vmatmul.mubr.bf16.gmra.mxu0 %v4680
  %v4719 = vpop.f32.mrf.mxu0
  %v4720 = vadd.f32 0.0, %v4719
  %v4721 = vpop.f32.mrf.mxu0
  %v4722 = vpop.f32.mrf.mxu0
  %v4723 = vpop.f32.mrf.mxu0
  %4724 = vdwg.mxu0
  %v4726 = vsel %vm380, %v4582, 0
  %v4729 = vsel %vm652, %v4586, 0
  %4731 = vmatprep.subr.bf16.mxu0 0
  %4732 = vmatpush1.bf16.msra.mxu0 0
  %4733 = vmatprep.subr.bf16.mxu0 0
  %4734 = vmatpush1.bf16.msra.mxu0 0
  %4735 = vmatprep.subr.bf16.mxu0 0
  %4736 = vmatpush1.bf16.msra.mxu0 0
  %4737 = vmatprep.subr.bf16.mxu0 0
  %4738 = vmatpush1.bf16.msra.mxu0 0
  %4739 = vmatprep.subr.bf16.mxu0 0
  %4740 = vmatpush1.bf16.msra.mxu0 0
  %4741 = vmatprep.subr.bf16.mxu0 0
  %4742 = vmatpush1.bf16.msra.mxu0 0
  %4743 = vmatprep.subr.bf16.mxu0 0
  %4744 = vmatpush1.bf16.msra.mxu0 0
  %4745 = vmatprep.subr.bf16.mxu0 0
  %4746 = vmatpush1.bf16.msra.mxu0 %v4729
  %4747 = vmatprep.subr.bf16.mxu0 0
  %4748 = vmatpush2.bf16.msra.mxu0 0
  %4749 = vmatprep.subr.bf16.mxu0 0
  %4750 = vmatpush2.bf16.msra.mxu0 0
  %4751 = vmatprep.subr.bf16.mxu0 0
  %4752 = vmatpush2.bf16.msra.mxu0 0
  %4753 = vmatprep.subr.bf16.mxu0 0
  %4754 = vmatpush2.bf16.msra.mxu0 0
  %4755 = vmatprep.subr.bf16.mxu0 0
  %4756 = vmatpush2.bf16.msra.mxu0 0
  %4757 = vmatprep.subr.bf16.mxu0 0
  %4758 = vmatpush2.bf16.msra.mxu0 0
  %4759 = vmatprep.subr.bf16.mxu0 0
  %4760 = vmatpush2.bf16.msra.mxu0 0
  %4761 = vmatprep.subr.bf16.mxu0 0
  %4762 = vmatpush2.bf16.msra.mxu0 0
  %4763 = vmatprep.mubr.bf16.mxu0 0
  %4764 = vmatmul.mubr.bf16.gmra.mxu0 %v4726
  %v4765 = vpop.f32.mrf.mxu0
  %v4766 = vadd.f32 0.0, %v4765
  %v4767 = vpop.f32.mrf.mxu0
  %v4768 = vpop.f32.mrf.mxu0
  %v4769 = vpop.f32.mrf.mxu0
  %4770 = vdwg.mxu0
  %v4771 = vpack.c.bf16 %v4674, %v4628
  %v4772 = vpack.c.bf16 %v4766, %v4720
  %s4773 = scalar_lea.vmem %s6, 20
  %v4774 = vld [vmem:[%s4773] sm:$0xf]
  %v4776 = vsel %vm380, %v4771, 0
  %v4779 = vsel %vm380, %v4772, 0
  %v4782 = vsel %vm652, %v4774, 0
  %4784 = vmatprep.subr.bf16.mxu0 0
  %4785 = vmatpush1.bf16.msra.mxu0 0
  %4786 = vmatprep.subr.bf16.mxu0 0
  %4787 = vmatpush1.bf16.msra.mxu0 0
  %4788 = vmatprep.subr.bf16.mxu0 0
  %4789 = vmatpush1.bf16.msra.mxu0 0
  %4790 = vmatprep.subr.bf16.mxu0 0
  %4791 = vmatpush1.bf16.msra.mxu0 0
  %4792 = vmatprep.subr.bf16.mxu0 0
  %4793 = vmatpush1.bf16.msra.mxu0 0
  %4794 = vmatprep.subr.bf16.mxu0 0
  %4795 = vmatpush1.bf16.msra.mxu0 0
  %4796 = vmatprep.subr.bf16.mxu0 0
  %4797 = vmatpush1.bf16.msra.mxu0 0
  %4798 = vmatprep.subr.bf16.mxu0 0
  %4799 = vmatpush1.bf16.msra.mxu0 %v4782
  %4800 = vmatprep.subr.bf16.mxu0 0
  %4801 = vmatpush2.bf16.msra.mxu0 0
  %4802 = vmatprep.subr.bf16.mxu0 0
  %4803 = vmatpush2.bf16.msra.mxu0 0
  %4804 = vmatprep.subr.bf16.mxu0 0
  %4805 = vmatpush2.bf16.msra.mxu0 0
  %4806 = vmatprep.subr.bf16.mxu0 0
  %4807 = vmatpush2.bf16.msra.mxu0 0
  %4808 = vmatprep.subr.bf16.mxu0 0
  %4809 = vmatpush2.bf16.msra.mxu0 0
  %4810 = vmatprep.subr.bf16.mxu0 0
  %4811 = vmatpush2.bf16.msra.mxu0 0
  %4812 = vmatprep.subr.bf16.mxu0 0
  %4813 = vmatpush2.bf16.msra.mxu0 0
  %4814 = vmatprep.subr.bf16.mxu0 0
  %4815 = vmatpush2.bf16.msra.mxu0 0
  %4816 = vmatprep.mubr.bf16.mxu0 0
  %4817 = vmatmul.mubr.bf16.gmra.mxu0 %v4776
  %v4818 = vpop.f32.mrf.mxu0
  %v4819 = vadd.f32 0.0, %v4818
  %v4820 = vpop.f32.mrf.mxu0
  %v4821 = vpop.f32.mrf.mxu0
  %v4822 = vadd.f32 0.0, %v4821
  %v4823 = vpop.f32.mrf.mxu0
  %4824 = vmatprep.mubr.bf16.mxu0 0
  %4825 = vmatmul.mubr.bf16.gmra.mxu0 %v4779
  %v4826 = vpop.f32.mrf.mxu0
  %v4827 = vadd.f32 0.0, %v4826
  %v4828 = vpop.f32.mrf.mxu0
  %v4829 = vpop.f32.mrf.mxu0
  %v4830 = vadd.f32 0.0, %v4829
  %v4831 = vpop.f32.mrf.mxu0
  %4832 = vdwg.mxu0
  %v4834 = vsel %vm380, %v4109, 0
  %v4837 = vsel %vm380, %v4110, 0
  %v4840 = vsel %vm652, %v4112, 0
  %4842 = vmatprep.subr.bf16.mxu0 0
  %4843 = vmatpush1.bf16.msra.mxu0 0
  %4844 = vmatprep.subr.bf16.mxu0 0
  %4845 = vmatpush1.bf16.msra.mxu0 0
  %4846 = vmatprep.subr.bf16.mxu0 0
  %4847 = vmatpush1.bf16.msra.mxu0 0
  %4848 = vmatprep.subr.bf16.mxu0 0
  %4849 = vmatpush1.bf16.msra.mxu0 0
  %4850 = vmatprep.subr.bf16.mxu0 0
  %4851 = vmatpush1.bf16.msra.mxu0 0
  %4852 = vmatprep.subr.bf16.mxu0 0
  %4853 = vmatpush1.bf16.msra.mxu0 0
  %4854 = vmatprep.subr.bf16.mxu0 0
  %4855 = vmatpush1.bf16.msra.mxu0 0
  %4856 = vmatprep.subr.bf16.mxu0 0
  %4857 = vmatpush1.bf16.msra.mxu0 %v4840
  %4858 = vmatprep.subr.bf16.mxu0 0
  %4859 = vmatpush2.bf16.msra.mxu0 0
  %4860 = vmatprep.subr.bf16.mxu0 0
  %4861 = vmatpush2.bf16.msra.mxu0 0
  %4862 = vmatprep.subr.bf16.mxu0 0
  %4863 = vmatpush2.bf16.msra.mxu0 0
  %4864 = vmatprep.subr.bf16.mxu0 0
  %4865 = vmatpush2.bf16.msra.mxu0 0
  %4866 = vmatprep.subr.bf16.mxu0 0
  %4867 = vmatpush2.bf16.msra.mxu0 0
  %4868 = vmatprep.subr.bf16.mxu0 0
  %4869 = vmatpush2.bf16.msra.mxu0 0
  %4870 = vmatprep.subr.bf16.mxu0 0
  %4871 = vmatpush2.bf16.msra.mxu0 0
  %4872 = vmatprep.subr.bf16.mxu0 0
  %4873 = vmatpush2.bf16.msra.mxu0 0
  %4874 = vmatprep.mubr.bf16.mxu0 0
  %4875 = vmatmul.mubr.bf16.gmra.mxu0 %v4834
  %v4876 = vpop.f32.mrf.mxu0
  %v4877 = vadd.f32 %v4819, %v4876
  %v4878 = vpop.f32.mrf.mxu0
  %v4879 = vpop.f32.mrf.mxu0
  %v4880 = vadd.f32 %v4822, %v4879
  %v4881 = vpop.f32.mrf.mxu0
  %4882 = vmatprep.mubr.bf16.mxu0 0
  %4883 = vmatmul.mubr.bf16.gmra.mxu0 %v4837
  %v4884 = vpop.f32.mrf.mxu0
  %v4885 = vadd.f32 %v4827, %v4884
  %v4886 = vpop.f32.mrf.mxu0
  %v4887 = vpop.f32.mrf.mxu0
  %v4888 = vadd.f32 %v4830, %v4887
  %v4889 = vpop.f32.mrf.mxu0
  %4890 = vdwg.mxu0
  %s4891 = scalar_lea.vmem %s4, 224
  %v4892 = vld [vmem:[%s4891] sm:$0xf]
  %v4893 = vld [vmem:[%s4891 + $0x4] sm:$0xf]
  %v4894 = vld [vmem:[%s4891 + $0x8] sm:$0xf]
  %v4895 = vld [vmem:[%s4891 + $0xc] sm:$0xf]
  %s4896 = scalar_lea.vmem %s5, 14
  %v4897 = vld [vmem:[%s4896] sm:$0x1]
  %v4899 = vlaneseq
  %v4900 = vshrl.u32 %v4899, 7
  %v4901 = vsub.s32 0, %v4900
  %v4902 = vrot.slane %v4897, %v4901
  %v4908 = vunpack.c.l.b16 %v4892
  %v4909 = vunpack.c.l.b16 %v4893
  %v4910 = vunpack.c.l.b16 %v4894
  %v4911 = vunpack.c.l.b16 %v4895
  %v4912 = vpack.c.b16 %v4909, %v4908
  %v4913 = vpack.c.b16 %v4911, %v4910
  %4916 = vmatprep.subr.bf16.mxu0 0
  %4917 = vmatpush1.bf16.msra.mxu0 0
  %4918 = vmatprep.subr.bf16.mxu0 0
  %4919 = vmatpush1.bf16.msra.mxu0 0
  %4920 = vmatprep.subr.bf16.mxu0 0
  %4921 = vmatpush1.bf16.msra.mxu0 0
  %4922 = vmatprep.subr.bf16.mxu0 0
  %4923 = vmatpush1.bf16.msra.mxu0 0
  %4924 = vmatprep.subr.bf16.mxu0 0
  %4925 = vmatpush1.bf16.msra.mxu0 0
  %4926 = vmatprep.subr.bf16.mxu0 0
  %4927 = vmatpush1.bf16.msra.mxu0 0
  %4928 = vmatprep.subr.bf16.mxu0 0
  %4929 = vmatpush1.bf16.msra.mxu0 %v4913
  %4930 = vmatprep.subr.bf16.mxu0 0
  %4931 = vmatpush1.bf16.msra.mxu0 %v4912
  %4932 = vmatprep.subr.bf16.mxu0 0
  %4933 = vmatpush2.bf16.msra.mxu0 0
  %4934 = vmatprep.subr.bf16.mxu0 0
  %4935 = vmatpush2.bf16.msra.mxu0 0
  %4936 = vmatprep.subr.bf16.mxu0 0
  %4937 = vmatpush2.bf16.msra.mxu0 0
  %4938 = vmatprep.subr.bf16.mxu0 0
  %4939 = vmatpush2.bf16.msra.mxu0 0
  %4940 = vmatprep.subr.bf16.mxu0 0
  %4941 = vmatpush2.bf16.msra.mxu0 0
  %4942 = vmatprep.subr.bf16.mxu0 0
  %4943 = vmatpush2.bf16.msra.mxu0 0
  %4944 = vmatprep.subr.bf16.mxu0 0
  %4945 = vmatpush2.bf16.msra.mxu0 0
  %4946 = vmatprep.subr.bf16.mxu0 0
  %4947 = vmatpush2.bf16.msra.mxu0 0
  %4948 = vmatprep.mubr.bf16.mxu0 0
  %4949 = vmatmul.mubr.bf16.gmra.mxu0 %v3471
  %v4950 = vpop.f32.mrf.mxu0
  %v4951 = vadd.f32 %v4902, %v4950
  %v4952 = vpop.f32.mrf.mxu0
  %v4953 = vpop.f32.mrf.mxu0
  %v4954 = vadd.f32 %v4902, %v4953
  %v4955 = vpop.f32.mrf.mxu0
  %4956 = vmatprep.mubr.bf16.mxu0 0
  %4957 = vmatmul.mubr.bf16.gmra.mxu0 %v3474
  %v4958 = vpop.f32.mrf.mxu0
  %v4959 = vadd.f32 %v4902, %v4958
  %v4960 = vpop.f32.mrf.mxu0
  %v4961 = vpop.f32.mrf.mxu0
  %v4962 = vadd.f32 %v4902, %v4961
  %v4963 = vpop.f32.mrf.mxu0
  %4964 = vdwg.mxu0
  %s4965 = scalar_lea.vmem %s4, 288
  %v4966 = vld [vmem:[%s4965] sm:$0xf]
  %v4967 = vld [vmem:[%s4965 + $0x4] sm:$0xf]
  %v4968 = vld [vmem:[%s4965 + $0x8] sm:$0xf]
  %v4969 = vld [vmem:[%s4965 + $0xc] sm:$0xf]
  %s4970 = scalar_lea.vmem %s5, 18
  %v4971 = vld [vmem:[%s4970] sm:$0x1]
  %v4973 = vlaneseq
  %v4974 = vshrl.u32 %v4973, 7
  %v4975 = vsub.s32 0, %v4974
  %v4976 = vrot.slane %v4971, %v4975
  %v4982 = vunpack.c.l.b16 %v4966
  %v4983 = vunpack.c.l.b16 %v4967
  %v4984 = vunpack.c.l.b16 %v4968
  %v4985 = vunpack.c.l.b16 %v4969
  %v4986 = vpack.c.b16 %v4983, %v4982
  %v4987 = vpack.c.b16 %v4985, %v4984
  %4990 = vmatprep.subr.bf16.mxu0 0
  %4991 = vmatpush1.bf16.msra.mxu0 0
  %4992 = vmatprep.subr.bf16.mxu0 0
  %4993 = vmatpush1.bf16.msra.mxu0 0
  %4994 = vmatprep.subr.bf16.mxu0 0
  %4995 = vmatpush1.bf16.msra.mxu0 0
  %4996 = vmatprep.subr.bf16.mxu0 0
  %4997 = vmatpush1.bf16.msra.mxu0 0
  %4998 = vmatprep.subr.bf16.mxu0 0
  %4999 = vmatpush1.bf16.msra.mxu0 0
  %5000 = vmatprep.subr.bf16.mxu0 0
  %5001 = vmatpush1.bf16.msra.mxu0 0
  %5002 = vmatprep.subr.bf16.mxu0 0
  %5003 = vmatpush1.bf16.msra.mxu0 %v4987
  %5004 = vmatprep.subr.bf16.mxu0 0
  %5005 = vmatpush1.bf16.msra.mxu0 %v4986
  %5006 = vmatprep.subr.bf16.mxu0 0
  %5007 = vmatpush2.bf16.msra.mxu0 0
  %5008 = vmatprep.subr.bf16.mxu0 0
  %5009 = vmatpush2.bf16.msra.mxu0 0
  %5010 = vmatprep.subr.bf16.mxu0 0
  %5011 = vmatpush2.bf16.msra.mxu0 0
  %5012 = vmatprep.subr.bf16.mxu0 0
  %5013 = vmatpush2.bf16.msra.mxu0 0
  %5014 = vmatprep.subr.bf16.mxu0 0
  %5015 = vmatpush2.bf16.msra.mxu0 0
  %5016 = vmatprep.subr.bf16.mxu0 0
  %5017 = vmatpush2.bf16.msra.mxu0 0
  %5018 = vmatprep.subr.bf16.mxu0 0
  %5019 = vmatpush2.bf16.msra.mxu0 0
  %5020 = vmatprep.subr.bf16.mxu0 0
  %5021 = vmatpush2.bf16.msra.mxu0 0
  %5022 = vmatprep.mubr.bf16.mxu0 0
  %5023 = vmatmul.mubr.bf16.gmra.mxu0 %v3471
  %v5024 = vpop.f32.mrf.mxu0
  %v5025 = vadd.f32 %v4976, %v5024
  %v5026 = vpop.f32.mrf.mxu0
  %v5027 = vpop.f32.mrf.mxu0
  %v5028 = vadd.f32 %v4976, %v5027
  %v5029 = vpop.f32.mrf.mxu0
  %5030 = vmatprep.mubr.bf16.mxu0 0
  %5031 = vmatmul.mubr.bf16.gmra.mxu0 %v3474
  %v5032 = vpop.f32.mrf.mxu0
  %v5033 = vadd.f32 %v4976, %v5032
  %v5034 = vpop.f32.mrf.mxu0
  %v5035 = vpop.f32.mrf.mxu0
  %v5036 = vadd.f32 %v4976, %v5035
  %v5037 = vpop.f32.mrf.mxu0
  %5038 = vdwg.mxu0
  %s5039 = scalar_lea.vmem %s4, 352
  %v5040 = vld [vmem:[%s5039] sm:$0xf]
  %v5041 = vld [vmem:[%s5039 + $0x4] sm:$0xf]
  %v5042 = vld [vmem:[%s5039 + $0x8] sm:$0xf]
  %v5043 = vld [vmem:[%s5039 + $0xc] sm:$0xf]
  %s5044 = scalar_lea.vmem %s5, 22
  %v5045 = vld [vmem:[%s5044] sm:$0x1]
  %v5047 = vlaneseq
  %v5048 = vshrl.u32 %v5047, 7
  %v5049 = vsub.s32 0, %v5048
  %v5050 = vrot.slane %v5045, %v5049
  %v5056 = vunpack.c.l.b16 %v5040
  %v5057 = vunpack.c.l.b16 %v5041
  %v5058 = vunpack.c.l.b16 %v5042
  %v5059 = vunpack.c.l.b16 %v5043
  %v5060 = vpack.c.b16 %v5057, %v5056
  %v5061 = vpack.c.b16 %v5059, %v5058
  %5064 = vmatprep.subr.bf16.mxu0 0
  %5065 = vmatpush1.bf16.msra.mxu0 0
  %5066 = vmatprep.subr.bf16.mxu0 0
  %5067 = vmatpush1.bf16.msra.mxu0 0
  %5068 = vmatprep.subr.bf16.mxu0 0
  %5069 = vmatpush1.bf16.msra.mxu0 0
  %5070 = vmatprep.subr.bf16.mxu0 0
  %5071 = vmatpush1.bf16.msra.mxu0 0
  %5072 = vmatprep.subr.bf16.mxu0 0
  %5073 = vmatpush1.bf16.msra.mxu0 0
  %5074 = vmatprep.subr.bf16.mxu0 0
  %5075 = vmatpush1.bf16.msra.mxu0 0
  %5076 = vmatprep.subr.bf16.mxu0 0
  %5077 = vmatpush1.bf16.msra.mxu0 %v5061
  %5078 = vmatprep.subr.bf16.mxu0 0
  %5079 = vmatpush1.bf16.msra.mxu0 %v5060
  %5080 = vmatprep.subr.bf16.mxu0 0
  %5081 = vmatpush2.bf16.msra.mxu0 0
  %5082 = vmatprep.subr.bf16.mxu0 0
  %5083 = vmatpush2.bf16.msra.mxu0 0
  %5084 = vmatprep.subr.bf16.mxu0 0
  %5085 = vmatpush2.bf16.msra.mxu0 0
  %5086 = vmatprep.subr.bf16.mxu0 0
  %5087 = vmatpush2.bf16.msra.mxu0 0
  %5088 = vmatprep.subr.bf16.mxu0 0
  %5089 = vmatpush2.bf16.msra.mxu0 0
  %5090 = vmatprep.subr.bf16.mxu0 0
  %5091 = vmatpush2.bf16.msra.mxu0 0
  %5092 = vmatprep.subr.bf16.mxu0 0
  %5093 = vmatpush2.bf16.msra.mxu0 0
  %5094 = vmatprep.subr.bf16.mxu0 0
  %5095 = vmatpush2.bf16.msra.mxu0 0
  %5096 = vmatprep.mubr.bf16.mxu0 0
  %5097 = vmatmul.mubr.bf16.gmra.mxu0 %v3471
  %v5098 = vpop.f32.mrf.mxu0
  %v5099 = vadd.f32 %v5050, %v5098
  %v5100 = vpop.f32.mrf.mxu0
  %v5101 = vpop.f32.mrf.mxu0
  %v5102 = vadd.f32 %v5050, %v5101
  %v5103 = vpop.f32.mrf.mxu0
  %5104 = vmatprep.mubr.bf16.mxu0 0
  %5105 = vmatmul.mubr.bf16.gmra.mxu0 %v3474
  %v5106 = vpop.f32.mrf.mxu0
  %v5107 = vadd.f32 %v5050, %v5106
  %v5108 = vpop.f32.mrf.mxu0
  %v5109 = vpop.f32.mrf.mxu0
  %v5110 = vadd.f32 %v5050, %v5109
  %v5111 = vpop.f32.mrf.mxu0
  %5112 = vdwg.mxu0
  %v5113 = vpack.c.bf16 %v4951, %v4951
  %v5114 = vpack.c.bf16 %v4954, %v4954
  %v5115 = vpack.c.bf16 %v4959, %v4959
  %v5116 = vpack.c.bf16 %v4962, %v4962
  %v5117 = vpack.c.bf16 %v5025, %v5025
  %v5118 = vpack.c.bf16 %v5028, %v5028
  %v5119 = vpack.c.bf16 %v5033, %v5033
  %v5120 = vpack.c.bf16 %v5036, %v5036
  %v5122 = vsel %vm380, %v5113, 0
  %v5125 = vsel %vm380, %v5117, 0
  %5127 = vmatprep.subr.bf16.mxu0 0
  %5128 = vmatpush1.bf16.xpose.msra.mxu0 0
  %5129 = vmatprep.subr.bf16.mxu0 0
  %5130 = vmatpush1.bf16.xpose.msra.mxu0 0
  %5131 = vmatprep.subr.bf16.mxu0 0
  %5132 = vmatpush1.bf16.xpose.msra.mxu0 0
  %5133 = vmatprep.subr.bf16.mxu0 0
  %5134 = vmatpush1.bf16.xpose.msra.mxu0 0
  %5135 = vmatprep.subr.bf16.mxu0 0
  %5136 = vmatpush1.bf16.xpose.msra.mxu0 0
  %5137 = vmatprep.subr.bf16.mxu0 0
  %5138 = vmatpush1.bf16.xpose.msra.mxu0 0
  %5139 = vmatprep.subr.bf16.mxu0 0
  %5140 = vmatpush1.bf16.xpose.msra.mxu0 0
  %5141 = vmatprep.subr.bf16.mxu0 0
  %5142 = vmatpush1.bf16.xpose.msra.mxu0 %v5125
  %5143 = vmatprep.subr.bf16.mxu0 0
  %5144 = vmatpush2.bf16.xpose.msra.mxu0 0
  %5145 = vmatprep.subr.bf16.mxu0 0
  %5146 = vmatpush2.bf16.xpose.msra.mxu0 0
  %5147 = vmatprep.subr.bf16.mxu0 0
  %5148 = vmatpush2.bf16.xpose.msra.mxu0 0
  %5149 = vmatprep.subr.bf16.mxu0 0
  %5150 = vmatpush2.bf16.xpose.msra.mxu0 0
  %5151 = vmatprep.subr.bf16.mxu0 0
  %5152 = vmatpush2.bf16.xpose.msra.mxu0 0
  %5153 = vmatprep.subr.bf16.mxu0 0
  %5154 = vmatpush2.bf16.xpose.msra.mxu0 0
  %5155 = vmatprep.subr.bf16.mxu0 0
  %5156 = vmatpush2.bf16.xpose.msra.mxu0 0
  %5157 = vmatprep.subr.bf16.mxu0 0
  %5158 = vmatpush2.bf16.xpose.msra.mxu0 0
  %5159 = vmatprep.mubr.bf16.mxu0 0
  %5160 = vmatmul.mubr.bf16.gmra.mxu0 %v5122
  %v5161 = vpop.f32.mrf.mxu0
  %v5162 = vadd.f32 0.0, %v5161
  %v5163 = vpop.f32.mrf.mxu0
  %v5164 = vpop.f32.mrf.mxu0
  %v5165 = vpop.f32.mrf.mxu0
  %5166 = vdwg.mxu0
  %v5168 = vsel %vm380, %v5114, 0
  %v5171 = vsel %vm380, %v5118, 0
  %5173 = vmatprep.subr.bf16.mxu0 0
  %5174 = vmatpush1.bf16.xpose.msra.mxu0 0
  %5175 = vmatprep.subr.bf16.mxu0 0
  %5176 = vmatpush1.bf16.xpose.msra.mxu0 0
  %5177 = vmatprep.subr.bf16.mxu0 0
  %5178 = vmatpush1.bf16.xpose.msra.mxu0 0
  %5179 = vmatprep.subr.bf16.mxu0 0
  %5180 = vmatpush1.bf16.xpose.msra.mxu0 0
  %5181 = vmatprep.subr.bf16.mxu0 0
  %5182 = vmatpush1.bf16.xpose.msra.mxu0 0
  %5183 = vmatprep.subr.bf16.mxu0 0
  %5184 = vmatpush1.bf16.xpose.msra.mxu0 0
  %5185 = vmatprep.subr.bf16.mxu0 0
  %5186 = vmatpush1.bf16.xpose.msra.mxu0 0
  %5187 = vmatprep.subr.bf16.mxu0 0
  %5188 = vmatpush1.bf16.xpose.msra.mxu0 %v5171
  %5189 = vmatprep.subr.bf16.mxu0 0
  %5190 = vmatpush2.bf16.xpose.msra.mxu0 0
  %5191 = vmatprep.subr.bf16.mxu0 0
  %5192 = vmatpush2.bf16.xpose.msra.mxu0 0
  %5193 = vmatprep.subr.bf16.mxu0 0
  %5194 = vmatpush2.bf16.xpose.msra.mxu0 0
  %5195 = vmatprep.subr.bf16.mxu0 0
  %5196 = vmatpush2.bf16.xpose.msra.mxu0 0
  %5197 = vmatprep.subr.bf16.mxu0 0
  %5198 = vmatpush2.bf16.xpose.msra.mxu0 0
  %5199 = vmatprep.subr.bf16.mxu0 0
  %5200 = vmatpush2.bf16.xpose.msra.mxu0 0
  %5201 = vmatprep.subr.bf16.mxu0 0
  %5202 = vmatpush2.bf16.xpose.msra.mxu0 0
  %5203 = vmatprep.subr.bf16.mxu0 0
  %5204 = vmatpush2.bf16.xpose.msra.mxu0 0
  %5205 = vmatprep.mubr.bf16.mxu0 0
  %5206 = vmatmul.mubr.bf16.gmra.mxu0 %v5168
  %v5207 = vpop.f32.mrf.mxu0
  %v5208 = vadd.f32 0.0, %v5207
  %v5209 = vpop.f32.mrf.mxu0
  %v5210 = vpop.f32.mrf.mxu0
  %v5211 = vpop.f32.mrf.mxu0
  %5212 = vdwg.mxu0
  %v5214 = vsel %vm380, %v5115, 0
  %v5217 = vsel %vm380, %v5119, 0
  %5219 = vmatprep.subr.bf16.mxu0 0
  %5220 = vmatpush1.bf16.xpose.msra.mxu0 0
  %5221 = vmatprep.subr.bf16.mxu0 0
  %5222 = vmatpush1.bf16.xpose.msra.mxu0 0
  %5223 = vmatprep.subr.bf16.mxu0 0
  %5224 = vmatpush1.bf16.xpose.msra.mxu0 0
  %5225 = vmatprep.subr.bf16.mxu0 0
  %5226 = vmatpush1.bf16.xpose.msra.mxu0 0
  %5227 = vmatprep.subr.bf16.mxu0 0
  %5228 = vmatpush1.bf16.xpose.msra.mxu0 0
  %5229 = vmatprep.subr.bf16.mxu0 0
  %5230 = vmatpush1.bf16.xpose.msra.mxu0 0
  %5231 = vmatprep.subr.bf16.mxu0 0
  %5232 = vmatpush1.bf16.xpose.msra.mxu0 0
  %5233 = vmatprep.subr.bf16.mxu0 0
  %5234 = vmatpush1.bf16.xpose.msra.mxu0 %v5217
  %5235 = vmatprep.subr.bf16.mxu0 0
  %5236 = vmatpush2.bf16.xpose.msra.mxu0 0
  %5237 = vmatprep.subr.bf16.mxu0 0
  %5238 = vmatpush2.bf16.xpose.msra.mxu0 0
  %5239 = vmatprep.subr.bf16.mxu0 0
  %5240 = vmatpush2.bf16.xpose.msra.mxu0 0
  %5241 = vmatprep.subr.bf16.mxu0 0
  %5242 = vmatpush2.bf16.xpose.msra.mxu0 0
  %5243 = vmatprep.subr.bf16.mxu0 0
  %5244 = vmatpush2.bf16.xpose.msra.mxu0 0
  %5245 = vmatprep.subr.bf16.mxu0 0
  %5246 = vmatpush2.bf16.xpose.msra.mxu0 0
  %5247 = vmatprep.subr.bf16.mxu0 0
  %5248 = vmatpush2.bf16.xpose.msra.mxu0 0
  %5249 = vmatprep.subr.bf16.mxu0 0
  %5250 = vmatpush2.bf16.xpose.msra.mxu0 0
  %5251 = vmatprep.mubr.bf16.mxu0 0
  %5252 = vmatmul.mubr.bf16.gmra.mxu0 %v5214
  %v5253 = vpop.f32.mrf.mxu0
  %v5254 = vadd.f32 0.0, %v5253
  %v5255 = vpop.f32.mrf.mxu0
  %v5256 = vpop.f32.mrf.mxu0
  %v5257 = vpop.f32.mrf.mxu0
  %5258 = vdwg.mxu0
  %v5260 = vsel %vm380, %v5116, 0
  %v5263 = vsel %vm380, %v5120, 0
  %5265 = vmatprep.subr.bf16.mxu0 0
  %5266 = vmatpush1.bf16.xpose.msra.mxu0 0
  %5267 = vmatprep.subr.bf16.mxu0 0
  %5268 = vmatpush1.bf16.xpose.msra.mxu0 0
  %5269 = vmatprep.subr.bf16.mxu0 0
  %5270 = vmatpush1.bf16.xpose.msra.mxu0 0
  %5271 = vmatprep.subr.bf16.mxu0 0
  %5272 = vmatpush1.bf16.xpose.msra.mxu0 0
  %5273 = vmatprep.subr.bf16.mxu0 0
  %5274 = vmatpush1.bf16.xpose.msra.mxu0 0
  %5275 = vmatprep.subr.bf16.mxu0 0
  %5276 = vmatpush1.bf16.xpose.msra.mxu0 0
  %5277 = vmatprep.subr.bf16.mxu0 0
  %5278 = vmatpush1.bf16.xpose.msra.mxu0 0
  %5279 = vmatprep.subr.bf16.mxu0 0
  %5280 = vmatpush1.bf16.xpose.msra.mxu0 %v5263
  %5281 = vmatprep.subr.bf16.mxu0 0
  %5282 = vmatpush2.bf16.xpose.msra.mxu0 0
  %5283 = vmatprep.subr.bf16.mxu0 0
  %5284 = vmatpush2.bf16.xpose.msra.mxu0 0
  %5285 = vmatprep.subr.bf16.mxu0 0
  %5286 = vmatpush2.bf16.xpose.msra.mxu0 0
  %5287 = vmatprep.subr.bf16.mxu0 0
  %5288 = vmatpush2.bf16.xpose.msra.mxu0 0
  %5289 = vmatprep.subr.bf16.mxu0 0
  %5290 = vmatpush2.bf16.xpose.msra.mxu0 0
  %5291 = vmatprep.subr.bf16.mxu0 0
  %5292 = vmatpush2.bf16.xpose.msra.mxu0 0
  %5293 = vmatprep.subr.bf16.mxu0 0
  %5294 = vmatpush2.bf16.xpose.msra.mxu0 0
  %5295 = vmatprep.subr.bf16.mxu0 0
  %5296 = vmatpush2.bf16.xpose.msra.mxu0 0
  %5297 = vmatprep.mubr.bf16.mxu0 0
  %5298 = vmatmul.mubr.bf16.gmra.mxu0 %v5260
  %v5299 = vpop.f32.mrf.mxu0
  %v5300 = vadd.f32 0.0, %v5299
  %v5301 = vpop.f32.mrf.mxu0
  %v5302 = vpop.f32.mrf.mxu0
  %v5303 = vpop.f32.mrf.mxu0
  %5304 = vdwg.mxu0
  %v5305 = vmul.f32 %v5162, 0.35355338
  %v5306 = vmul.f32 %v5208, 0.35355338
  %v5307 = vmul.f32 %v5254, 0.35355338
  %v5308 = vmul.f32 %v5300, 0.35355338
  %v5309 = vadd.f32 %v5305, %v576
  %v5310 = vadd.f32 %v5306, %v580
  %v5311 = vadd.f32 %v5307, %v584
  %v5312 = vadd.f32 %v5308, %v588
  %v5313 = vsel %vm380, %v5309, -inf
  %5314 = vmax.xlane.f32.xlu0 %v5313
  %v5315 = vpop.xlane.xlu0 %5314
  %v5316 = vsel %vm380, %v5310, -inf
  %5317 = vmax.xlane.f32.xlu0 %v5316
  %v5318 = vpop.xlane.xlu0 %5317
  %v5319 = vsel %vm380, %v5311, -inf
  %5320 = vmax.xlane.f32.xlu0 %v5319
  %v5321 = vpop.xlane.xlu0 %5320
  %v5322 = vsel %vm380, %v5312, -inf
  %5323 = vmax.xlane.f32.xlu0 %v5322
  %v5324 = vpop.xlane.xlu0 %5323
  %v5325 = vsub.f32 %v5309, %v5315
  %v5326 = vsub.f32 %v5310, %v5318
  %v5327 = vsub.f32 %v5311, %v5321
  %v5328 = vsub.f32 %v5312, %v5324
  %v5329 = vmul.f32 %v5325, 1.442695
  %v5330 = vpow.pop %v5329
  %v5331 = vmul.f32 %v5326, 1.442695
  %v5332 = vpow.pop %v5331
  %v5333 = vmul.f32 %v5327, 1.442695
  %v5334 = vpow.pop %v5333
  %v5335 = vmul.f32 %v5328, 1.442695
  %v5336 = vpow.pop %v5335
  %v5337 = vsel %vm380, %v5330, 0.0
  %5338 = vadd.xlane.f32.xlu0 %v5337
  %v5339 = vpop.xlane.xlu0 %5338
  %v5340 = vsel %vm380, %v5332, 0.0
  %5341 = vadd.xlane.f32.xlu0 %v5340
  %v5342 = vpop.xlane.xlu0 %5341
  %v5343 = vsel %vm380, %v5334, 0.0
  %5344 = vadd.xlane.f32.xlu0 %v5343
  %v5345 = vpop.xlane.xlu0 %5344
  %v5346 = vsel %vm380, %v5336, 0.0
  %5347 = vadd.xlane.f32.xlu0 %v5346
  %v5348 = vpop.xlane.xlu0 %5347
  %v5349 = vrcp.pop %v5339
  %v5350 = vrcp.pop %v5342
  %v5351 = vrcp.pop %v5345
  %v5352 = vrcp.pop %v5348
  %v5353 = vmul.f32 %v5330, %v5349
  %v5354 = vmul.f32 %v5332, %v5350
  %v5355 = vmul.f32 %v5334, %v5351
  %v5356 = vmul.f32 %v5336, %v5352
  %v5357 = vpack.c.bf16 %v5353, %v5353
  %v5358 = vpack.c.bf16 %v5354, %v5354
  %v5359 = vpack.c.bf16 %v5355, %v5355
  %v5360 = vpack.c.bf16 %v5356, %v5356
  %v5361 = vpack.c.bf16 %v5099, %v5099
  %v5362 = vpack.c.bf16 %v5102, %v5102
  %v5363 = vpack.c.bf16 %v5107, %v5107
  %v5364 = vpack.c.bf16 %v5110, %v5110
  %v5366 = vsel %vm380, %v5357, 0
  %v5369 = vsel %vm652, %v5361, 0
  %5371 = vmatprep.subr.bf16.mxu0 0
  %5372 = vmatpush1.bf16.msra.mxu0 0
  %5373 = vmatprep.subr.bf16.mxu0 0
  %5374 = vmatpush1.bf16.msra.mxu0 0
  %5375 = vmatprep.subr.bf16.mxu0 0
  %5376 = vmatpush1.bf16.msra.mxu0 0
  %5377 = vmatprep.subr.bf16.mxu0 0
  %5378 = vmatpush1.bf16.msra.mxu0 0
  %5379 = vmatprep.subr.bf16.mxu0 0
  %5380 = vmatpush1.bf16.msra.mxu0 0
  %5381 = vmatprep.subr.bf16.mxu0 0
  %5382 = vmatpush1.bf16.msra.mxu0 0
  %5383 = vmatprep.subr.bf16.mxu0 0
  %5384 = vmatpush1.bf16.msra.mxu0 0
  %5385 = vmatprep.subr.bf16.mxu0 0
  %5386 = vmatpush1.bf16.msra.mxu0 %v5369
  %5387 = vmatprep.subr.bf16.mxu0 0
  %5388 = vmatpush2.bf16.msra.mxu0 0
  %5389 = vmatprep.subr.bf16.mxu0 0
  %5390 = vmatpush2.bf16.msra.mxu0 0
  %5391 = vmatprep.subr.bf16.mxu0 0
  %5392 = vmatpush2.bf16.msra.mxu0 0
  %5393 = vmatprep.subr.bf16.mxu0 0
  %5394 = vmatpush2.bf16.msra.mxu0 0
  %5395 = vmatprep.subr.bf16.mxu0 0
  %5396 = vmatpush2.bf16.msra.mxu0 0
  %5397 = vmatprep.subr.bf16.mxu0 0
  %5398 = vmatpush2.bf16.msra.mxu0 0
  %5399 = vmatprep.subr.bf16.mxu0 0
  %5400 = vmatpush2.bf16.msra.mxu0 0
  %5401 = vmatprep.subr.bf16.mxu0 0
  %5402 = vmatpush2.bf16.msra.mxu0 0
  %5403 = vmatprep.mubr.bf16.mxu0 0
  %5404 = vmatmul.mubr.bf16.gmra.mxu0 %v5366
  %v5405 = vpop.f32.mrf.mxu0
  %v5406 = vadd.f32 0.0, %v5405
  %v5407 = vpop.f32.mrf.mxu0
  %v5408 = vpop.f32.mrf.mxu0
  %v5409 = vpop.f32.mrf.mxu0
  %5410 = vdwg.mxu0
  %v5412 = vsel %vm380, %v5358, 0
  %v5415 = vsel %vm652, %v5362, 0
  %5417 = vmatprep.subr.bf16.mxu0 0
  %5418 = vmatpush1.bf16.msra.mxu0 0
  %5419 = vmatprep.subr.bf16.mxu0 0
  %5420 = vmatpush1.bf16.msra.mxu0 0
  %5421 = vmatprep.subr.bf16.mxu0 0
  %5422 = vmatpush1.bf16.msra.mxu0 0
  %5423 = vmatprep.subr.bf16.mxu0 0
  %5424 = vmatpush1.bf16.msra.mxu0 0
  %5425 = vmatprep.subr.bf16.mxu0 0
  %5426 = vmatpush1.bf16.msra.mxu0 0
  %5427 = vmatprep.subr.bf16.mxu0 0
  %5428 = vmatpush1.bf16.msra.mxu0 0
  %5429 = vmatprep.subr.bf16.mxu0 0
  %5430 = vmatpush1.bf16.msra.mxu0 0
  %5431 = vmatprep.subr.bf16.mxu0 0
  %5432 = vmatpush1.bf16.msra.mxu0 %v5415
  %5433 = vmatprep.subr.bf16.mxu0 0
  %5434 = vmatpush2.bf16.msra.mxu0 0
  %5435 = vmatprep.subr.bf16.mxu0 0
  %5436 = vmatpush2.bf16.msra.mxu0 0
  %5437 = vmatprep.subr.bf16.mxu0 0
  %5438 = vmatpush2.bf16.msra.mxu0 0
  %5439 = vmatprep.subr.bf16.mxu0 0
  %5440 = vmatpush2.bf16.msra.mxu0 0
  %5441 = vmatprep.subr.bf16.mxu0 0
  %5442 = vmatpush2.bf16.msra.mxu0 0
  %5443 = vmatprep.subr.bf16.mxu0 0
  %5444 = vmatpush2.bf16.msra.mxu0 0
  %5445 = vmatprep.subr.bf16.mxu0 0
  %5446 = vmatpush2.bf16.msra.mxu0 0
  %5447 = vmatprep.subr.bf16.mxu0 0
  %5448 = vmatpush2.bf16.msra.mxu0 0
  %5449 = vmatprep.mubr.bf16.mxu0 0
  %5450 = vmatmul.mubr.bf16.gmra.mxu0 %v5412
  %v5451 = vpop.f32.mrf.mxu0
  %v5452 = vadd.f32 0.0, %v5451
  %v5453 = vpop.f32.mrf.mxu0
  %v5454 = vpop.f32.mrf.mxu0
  %v5455 = vpop.f32.mrf.mxu0
  %5456 = vdwg.mxu0
  %v5458 = vsel %vm380, %v5359, 0
  %v5461 = vsel %vm652, %v5363, 0
  %5463 = vmatprep.subr.bf16.mxu0 0
  %5464 = vmatpush1.bf16.msra.mxu0 0
  %5465 = vmatprep.subr.bf16.mxu0 0
  %5466 = vmatpush1.bf16.msra.mxu0 0
  %5467 = vmatprep.subr.bf16.mxu0 0
  %5468 = vmatpush1.bf16.msra.mxu0 0
  %5469 = vmatprep.subr.bf16.mxu0 0
  %5470 = vmatpush1.bf16.msra.mxu0 0
  %5471 = vmatprep.subr.bf16.mxu0 0
  %5472 = vmatpush1.bf16.msra.mxu0 0
  %5473 = vmatprep.subr.bf16.mxu0 0
  %5474 = vmatpush1.bf16.msra.mxu0 0
  %5475 = vmatprep.subr.bf16.mxu0 0
  %5476 = vmatpush1.bf16.msra.mxu0 0
  %5477 = vmatprep.subr.bf16.mxu0 0
  %5478 = vmatpush1.bf16.msra.mxu0 %v5461
  %5479 = vmatprep.subr.bf16.mxu0 0
  %5480 = vmatpush2.bf16.msra.mxu0 0
  %5481 = vmatprep.subr.bf16.mxu0 0
  %5482 = vmatpush2.bf16.msra.mxu0 0
  %5483 = vmatprep.subr.bf16.mxu0 0
  %5484 = vmatpush2.bf16.msra.mxu0 0
  %5485 = vmatprep.subr.bf16.mxu0 0
  %5486 = vmatpush2.bf16.msra.mxu0 0
  %5487 = vmatprep.subr.bf16.mxu0 0
  %5488 = vmatpush2.bf16.msra.mxu0 0
  %5489 = vmatprep.subr.bf16.mxu0 0
  %5490 = vmatpush2.bf16.msra.mxu0 0
  %5491 = vmatprep.subr.bf16.mxu0 0
  %5492 = vmatpush2.bf16.msra.mxu0 0
  %5493 = vmatprep.subr.bf16.mxu0 0
  %5494 = vmatpush2.bf16.msra.mxu0 0
  %5495 = vmatprep.mubr.bf16.mxu0 0
  %5496 = vmatmul.mubr.bf16.gmra.mxu0 %v5458
  %v5497 = vpop.f32.mrf.mxu0
  %v5498 = vadd.f32 0.0, %v5497
  %v5499 = vpop.f32.mrf.mxu0
  %v5500 = vpop.f32.mrf.mxu0
  %v5501 = vpop.f32.mrf.mxu0
  %5502 = vdwg.mxu0
  %v5504 = vsel %vm380, %v5360, 0
  %v5507 = vsel %vm652, %v5364, 0
  %5509 = vmatprep.subr.bf16.mxu0 0
  %5510 = vmatpush1.bf16.msra.mxu0 0
  %5511 = vmatprep.subr.bf16.mxu0 0
  %5512 = vmatpush1.bf16.msra.mxu0 0
  %5513 = vmatprep.subr.bf16.mxu0 0
  %5514 = vmatpush1.bf16.msra.mxu0 0
  %5515 = vmatprep.subr.bf16.mxu0 0
  %5516 = vmatpush1.bf16.msra.mxu0 0
  %5517 = vmatprep.subr.bf16.mxu0 0
  %5518 = vmatpush1.bf16.msra.mxu0 0
  %5519 = vmatprep.subr.bf16.mxu0 0
  %5520 = vmatpush1.bf16.msra.mxu0 0
  %5521 = vmatprep.subr.bf16.mxu0 0
  %5522 = vmatpush1.bf16.msra.mxu0 0
  %5523 = vmatprep.subr.bf16.mxu0 0
  %5524 = vmatpush1.bf16.msra.mxu0 %v5507
  %5525 = vmatprep.subr.bf16.mxu0 0
  %5526 = vmatpush2.bf16.msra.mxu0 0
  %5527 = vmatprep.subr.bf16.mxu0 0
  %5528 = vmatpush2.bf16.msra.mxu0 0
  %5529 = vmatprep.subr.bf16.mxu0 0
  %5530 = vmatpush2.bf16.msra.mxu0 0
  %5531 = vmatprep.subr.bf16.mxu0 0
  %5532 = vmatpush2.bf16.msra.mxu0 0
  %5533 = vmatprep.subr.bf16.mxu0 0
  %5534 = vmatpush2.bf16.msra.mxu0 0
  %5535 = vmatprep.subr.bf16.mxu0 0
  %5536 = vmatpush2.bf16.msra.mxu0 0
  %5537 = vmatprep.subr.bf16.mxu0 0
  %5538 = vmatpush2.bf16.msra.mxu0 0
  %5539 = vmatprep.subr.bf16.mxu0 0
  %5540 = vmatpush2.bf16.msra.mxu0 0
  %5541 = vmatprep.mubr.bf16.mxu0 0
  %5542 = vmatmul.mubr.bf16.gmra.mxu0 %v5504
  %v5543 = vpop.f32.mrf.mxu0
  %v5544 = vadd.f32 0.0, %v5543
  %v5545 = vpop.f32.mrf.mxu0
  %v5546 = vpop.f32.mrf.mxu0
  %v5547 = vpop.f32.mrf.mxu0
  %5548 = vdwg.mxu0
  %v5549 = vpack.c.bf16 %v5452, %v5406
  %v5550 = vpack.c.bf16 %v5544, %v5498
  %s5551 = scalar_lea.vmem %s6, 24
  %v5552 = vld [vmem:[%s5551] sm:$0xf]
  %v5554 = vsel %vm380, %v5549, 0
  %v5557 = vsel %vm380, %v5550, 0
  %v5560 = vsel %vm652, %v5552, 0
  %5562 = vmatprep.subr.bf16.mxu0 0
  %5563 = vmatpush1.bf16.msra.mxu0 0
  %5564 = vmatprep.subr.bf16.mxu0 0
  %5565 = vmatpush1.bf16.msra.mxu0 0
  %5566 = vmatprep.subr.bf16.mxu0 0
  %5567 = vmatpush1.bf16.msra.mxu0 0
  %5568 = vmatprep.subr.bf16.mxu0 0
  %5569 = vmatpush1.bf16.msra.mxu0 0
  %5570 = vmatprep.subr.bf16.mxu0 0
  %5571 = vmatpush1.bf16.msra.mxu0 0
  %5572 = vmatprep.subr.bf16.mxu0 0
  %5573 = vmatpush1.bf16.msra.mxu0 0
  %5574 = vmatprep.subr.bf16.mxu0 0
  %5575 = vmatpush1.bf16.msra.mxu0 0
  %5576 = vmatprep.subr.bf16.mxu0 0
  %5577 = vmatpush1.bf16.msra.mxu0 %v5560
  %5578 = vmatprep.subr.bf16.mxu0 0
  %5579 = vmatpush2.bf16.msra.mxu0 0
  %5580 = vmatprep.subr.bf16.mxu0 0
  %5581 = vmatpush2.bf16.msra.mxu0 0
  %5582 = vmatprep.subr.bf16.mxu0 0
  %5583 = vmatpush2.bf16.msra.mxu0 0
  %5584 = vmatprep.subr.bf16.mxu0 0
  %5585 = vmatpush2.bf16.msra.mxu0 0
  %5586 = vmatprep.subr.bf16.mxu0 0
  %5587 = vmatpush2.bf16.msra.mxu0 0
  %5588 = vmatprep.subr.bf16.mxu0 0
  %5589 = vmatpush2.bf16.msra.mxu0 0
  %5590 = vmatprep.subr.bf16.mxu0 0
  %5591 = vmatpush2.bf16.msra.mxu0 0
  %5592 = vmatprep.subr.bf16.mxu0 0
  %5593 = vmatpush2.bf16.msra.mxu0 0
  %5594 = vmatprep.mubr.bf16.mxu0 0
  %5595 = vmatmul.mubr.bf16.gmra.mxu0 %v5554
  %v5596 = vpop.f32.mrf.mxu0
  %v5597 = vadd.f32 0.0, %v5596
  %v5598 = vpop.f32.mrf.mxu0
  %v5599 = vpop.f32.mrf.mxu0
  %v5600 = vadd.f32 0.0, %v5599
  %v5601 = vpop.f32.mrf.mxu0
  %5602 = vmatprep.mubr.bf16.mxu0 0
  %5603 = vmatmul.mubr.bf16.gmra.mxu0 %v5557
  %v5604 = vpop.f32.mrf.mxu0
  %v5605 = vadd.f32 0.0, %v5604
  %v5606 = vpop.f32.mrf.mxu0
  %v5607 = vpop.f32.mrf.mxu0
  %v5608 = vadd.f32 0.0, %v5607
  %v5609 = vpop.f32.mrf.mxu0
  %5610 = vdwg.mxu0
  %v5611 = vadd.f32 %v4877, %v5597
  %v5612 = vadd.f32 %v4880, %v5600
  %v5613 = vadd.f32 %v4885, %v5605
  %v5614 = vadd.f32 %v4888, %v5608
  %s5615 = scalar_lea.vmem %s4, 240
  %v5616 = vld [vmem:[%s5615] sm:$0xf]
  %v5617 = vld [vmem:[%s5615 + $0x4] sm:$0xf]
  %v5618 = vld [vmem:[%s5615 + $0x8] sm:$0xf]
  %v5619 = vld [vmem:[%s5615 + $0xc] sm:$0xf]
  %s5620 = scalar_lea.vmem %s5, 15
  %v5621 = vld [vmem:[%s5620] sm:$0x1]
  %v5623 = vlaneseq
  %v5624 = vshrl.u32 %v5623, 7
  %v5625 = vsub.s32 0, %v5624
  %v5626 = vrot.slane %v5621, %v5625
  %v5632 = vunpack.c.l.b16 %v5616
  %v5633 = vunpack.c.l.b16 %v5617
  %v5634 = vunpack.c.l.b16 %v5618
  %v5635 = vunpack.c.l.b16 %v5619
  %v5636 = vpack.c.b16 %v5633, %v5632
  %v5637 = vpack.c.b16 %v5635, %v5634
  %5640 = vmatprep.subr.bf16.mxu0 0
  %5641 = vmatpush1.bf16.msra.mxu0 0
  %5642 = vmatprep.subr.bf16.mxu0 0
  %5643 = vmatpush1.bf16.msra.mxu0 0
  %5644 = vmatprep.subr.bf16.mxu0 0
  %5645 = vmatpush1.bf16.msra.mxu0 0
  %5646 = vmatprep.subr.bf16.mxu0 0
  %5647 = vmatpush1.bf16.msra.mxu0 0
  %5648 = vmatprep.subr.bf16.mxu0 0
  %5649 = vmatpush1.bf16.msra.mxu0 0
  %5650 = vmatprep.subr.bf16.mxu0 0
  %5651 = vmatpush1.bf16.msra.mxu0 0
  %5652 = vmatprep.subr.bf16.mxu0 0
  %5653 = vmatpush1.bf16.msra.mxu0 %v5637
  %5654 = vmatprep.subr.bf16.mxu0 0
  %5655 = vmatpush1.bf16.msra.mxu0 %v5636
  %5656 = vmatprep.subr.bf16.mxu0 0
  %5657 = vmatpush2.bf16.msra.mxu0 0
  %5658 = vmatprep.subr.bf16.mxu0 0
  %5659 = vmatpush2.bf16.msra.mxu0 0
  %5660 = vmatprep.subr.bf16.mxu0 0
  %5661 = vmatpush2.bf16.msra.mxu0 0
  %5662 = vmatprep.subr.bf16.mxu0 0
  %5663 = vmatpush2.bf16.msra.mxu0 0
  %5664 = vmatprep.subr.bf16.mxu0 0
  %5665 = vmatpush2.bf16.msra.mxu0 0
  %5666 = vmatprep.subr.bf16.mxu0 0
  %5667 = vmatpush2.bf16.msra.mxu0 0
  %5668 = vmatprep.subr.bf16.mxu0 0
  %5669 = vmatpush2.bf16.msra.mxu0 0
  %5670 = vmatprep.subr.bf16.mxu0 0
  %5671 = vmatpush2.bf16.msra.mxu0 0
  %5672 = vmatprep.mubr.bf16.mxu0 0
  %5673 = vmatmul.mubr.bf16.gmra.mxu0 %v3471
  %v5674 = vpop.f32.mrf.mxu0
  %v5675 = vadd.f32 %v5626, %v5674
  %v5676 = vpop.f32.mrf.mxu0
  %v5677 = vpop.f32.mrf.mxu0
  %v5678 = vadd.f32 %v5626, %v5677
  %v5679 = vpop.f32.mrf.mxu0
  %5680 = vmatprep.mubr.bf16.mxu0 0
  %5681 = vmatmul.mubr.bf16.gmra.mxu0 %v3474
  %v5682 = vpop.f32.mrf.mxu0
  %v5683 = vadd.f32 %v5626, %v5682
  %v5684 = vpop.f32.mrf.mxu0
  %v5685 = vpop.f32.mrf.mxu0
  %v5686 = vadd.f32 %v5626, %v5685
  %v5687 = vpop.f32.mrf.mxu0
  %5688 = vdwg.mxu0
  %s5689 = scalar_lea.vmem %s4, 304
  %v5690 = vld [vmem:[%s5689] sm:$0xf]
  %v5691 = vld [vmem:[%s5689 + $0x4] sm:$0xf]
  %v5692 = vld [vmem:[%s5689 + $0x8] sm:$0xf]
  %v5693 = vld [vmem:[%s5689 + $0xc] sm:$0xf]
  %s5694 = scalar_lea.vmem %s5, 19
  %v5695 = vld [vmem:[%s5694] sm:$0x1]
  %v5697 = vlaneseq
  %v5698 = vshrl.u32 %v5697, 7
  %v5699 = vsub.s32 0, %v5698
  %v5700 = vrot.slane %v5695, %v5699
  %v5706 = vunpack.c.l.b16 %v5690
  %v5707 = vunpack.c.l.b16 %v5691
  %v5708 = vunpack.c.l.b16 %v5692
  %v5709 = vunpack.c.l.b16 %v5693
  %v5710 = vpack.c.b16 %v5707, %v5706
  %v5711 = vpack.c.b16 %v5709, %v5708
  %5714 = vmatprep.subr.bf16.mxu0 0
  %5715 = vmatpush1.bf16.msra.mxu0 0
  %5716 = vmatprep.subr.bf16.mxu0 0
  %5717 = vmatpush1.bf16.msra.mxu0 0
  %5718 = vmatprep.subr.bf16.mxu0 0
  %5719 = vmatpush1.bf16.msra.mxu0 0
  %5720 = vmatprep.subr.bf16.mxu0 0
  %5721 = vmatpush1.bf16.msra.mxu0 0
  %5722 = vmatprep.subr.bf16.mxu0 0
  %5723 = vmatpush1.bf16.msra.mxu0 0
  %5724 = vmatprep.subr.bf16.mxu0 0
  %5725 = vmatpush1.bf16.msra.mxu0 0
  %5726 = vmatprep.subr.bf16.mxu0 0
  %5727 = vmatpush1.bf16.msra.mxu0 %v5711
  %5728 = vmatprep.subr.bf16.mxu0 0
  %5729 = vmatpush1.bf16.msra.mxu0 %v5710
  %5730 = vmatprep.subr.bf16.mxu0 0
  %5731 = vmatpush2.bf16.msra.mxu0 0
  %5732 = vmatprep.subr.bf16.mxu0 0
  %5733 = vmatpush2.bf16.msra.mxu0 0
  %5734 = vmatprep.subr.bf16.mxu0 0
  %5735 = vmatpush2.bf16.msra.mxu0 0
  %5736 = vmatprep.subr.bf16.mxu0 0
  %5737 = vmatpush2.bf16.msra.mxu0 0
  %5738 = vmatprep.subr.bf16.mxu0 0
  %5739 = vmatpush2.bf16.msra.mxu0 0
  %5740 = vmatprep.subr.bf16.mxu0 0
  %5741 = vmatpush2.bf16.msra.mxu0 0
  %5742 = vmatprep.subr.bf16.mxu0 0
  %5743 = vmatpush2.bf16.msra.mxu0 0
  %5744 = vmatprep.subr.bf16.mxu0 0
  %5745 = vmatpush2.bf16.msra.mxu0 0
  %5746 = vmatprep.mubr.bf16.mxu0 0
  %5747 = vmatmul.mubr.bf16.gmra.mxu0 %v3471
  %v5748 = vpop.f32.mrf.mxu0
  %v5749 = vadd.f32 %v5700, %v5748
  %v5750 = vpop.f32.mrf.mxu0
  %v5751 = vpop.f32.mrf.mxu0
  %v5752 = vadd.f32 %v5700, %v5751
  %v5753 = vpop.f32.mrf.mxu0
  %5754 = vmatprep.mubr.bf16.mxu0 0
  %5755 = vmatmul.mubr.bf16.gmra.mxu0 %v3474
  %v5756 = vpop.f32.mrf.mxu0
  %v5757 = vadd.f32 %v5700, %v5756
  %v5758 = vpop.f32.mrf.mxu0
  %v5759 = vpop.f32.mrf.mxu0
  %v5760 = vadd.f32 %v5700, %v5759
  %v5761 = vpop.f32.mrf.mxu0
  %5762 = vdwg.mxu0
  %s5763 = scalar_lea.vmem %s4, 368
  %v5764 = vld [vmem:[%s5763] sm:$0xf]
  %v5765 = vld [vmem:[%s5763 + $0x4] sm:$0xf]
  %v5766 = vld [vmem:[%s5763 + $0x8] sm:$0xf]
  %v5767 = vld [vmem:[%s5763 + $0xc] sm:$0xf]
  %s5768 = scalar_lea.vmem %s5, 23
  %v5769 = vld [vmem:[%s5768] sm:$0x1]
  %v5771 = vlaneseq
  %v5772 = vshrl.u32 %v5771, 7
  %v5773 = vsub.s32 0, %v5772
  %v5774 = vrot.slane %v5769, %v5773
  %v5780 = vunpack.c.l.b16 %v5764
  %v5781 = vunpack.c.l.b16 %v5765
  %v5782 = vunpack.c.l.b16 %v5766
  %v5783 = vunpack.c.l.b16 %v5767
  %v5784 = vpack.c.b16 %v5781, %v5780
  %v5785 = vpack.c.b16 %v5783, %v5782
  %5788 = vmatprep.subr.bf16.mxu0 0
  %5789 = vmatpush1.bf16.msra.mxu0 0
  %5790 = vmatprep.subr.bf16.mxu0 0
  %5791 = vmatpush1.bf16.msra.mxu0 0
  %5792 = vmatprep.subr.bf16.mxu0 0
  %5793 = vmatpush1.bf16.msra.mxu0 0
  %5794 = vmatprep.subr.bf16.mxu0 0
  %5795 = vmatpush1.bf16.msra.mxu0 0
  %5796 = vmatprep.subr.bf16.mxu0 0
  %5797 = vmatpush1.bf16.msra.mxu0 0
  %5798 = vmatprep.subr.bf16.mxu0 0
  %5799 = vmatpush1.bf16.msra.mxu0 0
  %5800 = vmatprep.subr.bf16.mxu0 0
  %5801 = vmatpush1.bf16.msra.mxu0 %v5785
  %5802 = vmatprep.subr.bf16.mxu0 0
  %5803 = vmatpush1.bf16.msra.mxu0 %v5784
  %5804 = vmatprep.subr.bf16.mxu0 0
  %5805 = vmatpush2.bf16.msra.mxu0 0
  %5806 = vmatprep.subr.bf16.mxu0 0
  %5807 = vmatpush2.bf16.msra.mxu0 0
  %5808 = vmatprep.subr.bf16.mxu0 0
  %5809 = vmatpush2.bf16.msra.mxu0 0
  %5810 = vmatprep.subr.bf16.mxu0 0
  %5811 = vmatpush2.bf16.msra.mxu0 0
  %5812 = vmatprep.subr.bf16.mxu0 0
  %5813 = vmatpush2.bf16.msra.mxu0 0
  %5814 = vmatprep.subr.bf16.mxu0 0
  %5815 = vmatpush2.bf16.msra.mxu0 0
  %5816 = vmatprep.subr.bf16.mxu0 0
  %5817 = vmatpush2.bf16.msra.mxu0 0
  %5818 = vmatprep.subr.bf16.mxu0 0
  %5819 = vmatpush2.bf16.msra.mxu0 0
  %5820 = vmatprep.mubr.bf16.mxu0 0
  %5821 = vmatmul.mubr.bf16.gmra.mxu0 %v3471
  %v5822 = vpop.f32.mrf.mxu0
  %v5823 = vadd.f32 %v5774, %v5822
  %v5824 = vpop.f32.mrf.mxu0
  %v5825 = vpop.f32.mrf.mxu0
  %v5826 = vadd.f32 %v5774, %v5825
  %v5827 = vpop.f32.mrf.mxu0
  %5828 = vmatprep.mubr.bf16.mxu0 0
  %5829 = vmatmul.mubr.bf16.gmra.mxu0 %v3474
  %v5830 = vpop.f32.mrf.mxu0
  %v5831 = vadd.f32 %v5774, %v5830
  %v5832 = vpop.f32.mrf.mxu0
  %v5833 = vpop.f32.mrf.mxu0
  %v5834 = vadd.f32 %v5774, %v5833
  %v5835 = vpop.f32.mrf.mxu0
  %5836 = vdwg.mxu0
  %v5837 = vpack.c.bf16 %v5675, %v5675
  %v5838 = vpack.c.bf16 %v5678, %v5678
  %v5839 = vpack.c.bf16 %v5683, %v5683
  %v5840 = vpack.c.bf16 %v5686, %v5686
  %v5841 = vpack.c.bf16 %v5749, %v5749
  %v5842 = vpack.c.bf16 %v5752, %v5752
  %v5843 = vpack.c.bf16 %v5757, %v5757
  %v5844 = vpack.c.bf16 %v5760, %v5760
  %v5846 = vsel %vm380, %v5837, 0
  %v5849 = vsel %vm380, %v5841, 0
  %5851 = vmatprep.subr.bf16.mxu0 0
  %5852 = vmatpush1.bf16.xpose.msra.mxu0 0
  %5853 = vmatprep.subr.bf16.mxu0 0
  %5854 = vmatpush1.bf16.xpose.msra.mxu0 0
  %5855 = vmatprep.subr.bf16.mxu0 0
  %5856 = vmatpush1.bf16.xpose.msra.mxu0 0
  %5857 = vmatprep.subr.bf16.mxu0 0
  %5858 = vmatpush1.bf16.xpose.msra.mxu0 0
  %5859 = vmatprep.subr.bf16.mxu0 0
  %5860 = vmatpush1.bf16.xpose.msra.mxu0 0
  %5861 = vmatprep.subr.bf16.mxu0 0
  %5862 = vmatpush1.bf16.xpose.msra.mxu0 0
  %5863 = vmatprep.subr.bf16.mxu0 0
  %5864 = vmatpush1.bf16.xpose.msra.mxu0 0
  %5865 = vmatprep.subr.bf16.mxu0 0
  %5866 = vmatpush1.bf16.xpose.msra.mxu0 %v5849
  %5867 = vmatprep.subr.bf16.mxu0 0
  %5868 = vmatpush2.bf16.xpose.msra.mxu0 0
  %5869 = vmatprep.subr.bf16.mxu0 0
  %5870 = vmatpush2.bf16.xpose.msra.mxu0 0
  %5871 = vmatprep.subr.bf16.mxu0 0
  %5872 = vmatpush2.bf16.xpose.msra.mxu0 0
  %5873 = vmatprep.subr.bf16.mxu0 0
  %5874 = vmatpush2.bf16.xpose.msra.mxu0 0
  %5875 = vmatprep.subr.bf16.mxu0 0
  %5876 = vmatpush2.bf16.xpose.msra.mxu0 0
  %5877 = vmatprep.subr.bf16.mxu0 0
  %5878 = vmatpush2.bf16.xpose.msra.mxu0 0
  %5879 = vmatprep.subr.bf16.mxu0 0
  %5880 = vmatpush2.bf16.xpose.msra.mxu0 0
  %5881 = vmatprep.subr.bf16.mxu0 0
  %5882 = vmatpush2.bf16.xpose.msra.mxu0 0
  %5883 = vmatprep.mubr.bf16.mxu0 0
  %5884 = vmatmul.mubr.bf16.gmra.mxu0 %v5846
  %v5885 = vpop.f32.mrf.mxu0
  %v5886 = vadd.f32 0.0, %v5885
  %v5887 = vpop.f32.mrf.mxu0
  %v5888 = vpop.f32.mrf.mxu0
  %v5889 = vpop.f32.mrf.mxu0
  %5890 = vdwg.mxu0
  %v5892 = vsel %vm380, %v5838, 0
  %v5895 = vsel %vm380, %v5842, 0
  %5897 = vmatprep.subr.bf16.mxu0 0
  %5898 = vmatpush1.bf16.xpose.msra.mxu0 0
  %5899 = vmatprep.subr.bf16.mxu0 0
  %5900 = vmatpush1.bf16.xpose.msra.mxu0 0
  %5901 = vmatprep.subr.bf16.mxu0 0
  %5902 = vmatpush1.bf16.xpose.msra.mxu0 0
  %5903 = vmatprep.subr.bf16.mxu0 0
  %5904 = vmatpush1.bf16.xpose.msra.mxu0 0
  %5905 = vmatprep.subr.bf16.mxu0 0
  %5906 = vmatpush1.bf16.xpose.msra.mxu0 0
  %5907 = vmatprep.subr.bf16.mxu0 0
  %5908 = vmatpush1.bf16.xpose.msra.mxu0 0
  %5909 = vmatprep.subr.bf16.mxu0 0
  %5910 = vmatpush1.bf16.xpose.msra.mxu0 0
  %5911 = vmatprep.subr.bf16.mxu0 0
  %5912 = vmatpush1.bf16.xpose.msra.mxu0 %v5895
  %5913 = vmatprep.subr.bf16.mxu0 0
  %5914 = vmatpush2.bf16.xpose.msra.mxu0 0
  %5915 = vmatprep.subr.bf16.mxu0 0
  %5916 = vmatpush2.bf16.xpose.msra.mxu0 0
  %5917 = vmatprep.subr.bf16.mxu0 0
  %5918 = vmatpush2.bf16.xpose.msra.mxu0 0
  %5919 = vmatprep.subr.bf16.mxu0 0
  %5920 = vmatpush2.bf16.xpose.msra.mxu0 0
  %5921 = vmatprep.subr.bf16.mxu0 0
  %5922 = vmatpush2.bf16.xpose.msra.mxu0 0
  %5923 = vmatprep.subr.bf16.mxu0 0
  %5924 = vmatpush2.bf16.xpose.msra.mxu0 0
  %5925 = vmatprep.subr.bf16.mxu0 0
  %5926 = vmatpush2.bf16.xpose.msra.mxu0 0
  %5927 = vmatprep.subr.bf16.mxu0 0
  %5928 = vmatpush2.bf16.xpose.msra.mxu0 0
  %5929 = vmatprep.mubr.bf16.mxu0 0
  %5930 = vmatmul.mubr.bf16.gmra.mxu0 %v5892
  %v5931 = vpop.f32.mrf.mxu0
  %v5932 = vadd.f32 0.0, %v5931
  %v5933 = vpop.f32.mrf.mxu0
  %v5934 = vpop.f32.mrf.mxu0
  %v5935 = vpop.f32.mrf.mxu0
  %5936 = vdwg.mxu0
  %v5938 = vsel %vm380, %v5839, 0
  %v5941 = vsel %vm380, %v5843, 0
  %5943 = vmatprep.subr.bf16.mxu0 0
  %5944 = vmatpush1.bf16.xpose.msra.mxu0 0
  %5945 = vmatprep.subr.bf16.mxu0 0
  %5946 = vmatpush1.bf16.xpose.msra.mxu0 0
  %5947 = vmatprep.subr.bf16.mxu0 0
  %5948 = vmatpush1.bf16.xpose.msra.mxu0 0
  %5949 = vmatprep.subr.bf16.mxu0 0
  %5950 = vmatpush1.bf16.xpose.msra.mxu0 0
  %5951 = vmatprep.subr.bf16.mxu0 0
  %5952 = vmatpush1.bf16.xpose.msra.mxu0 0
  %5953 = vmatprep.subr.bf16.mxu0 0
  %5954 = vmatpush1.bf16.xpose.msra.mxu0 0
  %5955 = vmatprep.subr.bf16.mxu0 0
  %5956 = vmatpush1.bf16.xpose.msra.mxu0 0
  %5957 = vmatprep.subr.bf16.mxu0 0
  %5958 = vmatpush1.bf16.xpose.msra.mxu0 %v5941
  %5959 = vmatprep.subr.bf16.mxu0 0
  %5960 = vmatpush2.bf16.xpose.msra.mxu0 0
  %5961 = vmatprep.subr.bf16.mxu0 0
  %5962 = vmatpush2.bf16.xpose.msra.mxu0 0
  %5963 = vmatprep.subr.bf16.mxu0 0
  %5964 = vmatpush2.bf16.xpose.msra.mxu0 0
  %5965 = vmatprep.subr.bf16.mxu0 0
  %5966 = vmatpush2.bf16.xpose.msra.mxu0 0
  %5967 = vmatprep.subr.bf16.mxu0 0
  %5968 = vmatpush2.bf16.xpose.msra.mxu0 0
  %5969 = vmatprep.subr.bf16.mxu0 0
  %5970 = vmatpush2.bf16.xpose.msra.mxu0 0
  %5971 = vmatprep.subr.bf16.mxu0 0
  %5972 = vmatpush2.bf16.xpose.msra.mxu0 0
  %5973 = vmatprep.subr.bf16.mxu0 0
  %5974 = vmatpush2.bf16.xpose.msra.mxu0 0
  %5975 = vmatprep.mubr.bf16.mxu0 0
  %5976 = vmatmul.mubr.bf16.gmra.mxu0 %v5938
  %v5977 = vpop.f32.mrf.mxu0
  %v5978 = vadd.f32 0.0, %v5977
  %v5979 = vpop.f32.mrf.mxu0
  %v5980 = vpop.f32.mrf.mxu0
  %v5981 = vpop.f32.mrf.mxu0
  %5982 = vdwg.mxu0
  %v5984 = vsel %vm380, %v5840, 0
  %v5987 = vsel %vm380, %v5844, 0
  %5989 = vmatprep.subr.bf16.mxu0 0
  %5990 = vmatpush1.bf16.xpose.msra.mxu0 0
  %5991 = vmatprep.subr.bf16.mxu0 0
  %5992 = vmatpush1.bf16.xpose.msra.mxu0 0
  %5993 = vmatprep.subr.bf16.mxu0 0
  %5994 = vmatpush1.bf16.xpose.msra.mxu0 0
  %5995 = vmatprep.subr.bf16.mxu0 0
  %5996 = vmatpush1.bf16.xpose.msra.mxu0 0
  %5997 = vmatprep.subr.bf16.mxu0 0
  %5998 = vmatpush1.bf16.xpose.msra.mxu0 0
  %5999 = vmatprep.subr.bf16.mxu0 0
  %6000 = vmatpush1.bf16.xpose.msra.mxu0 0
  %6001 = vmatprep.subr.bf16.mxu0 0
  %6002 = vmatpush1.bf16.xpose.msra.mxu0 0
  %6003 = vmatprep.subr.bf16.mxu0 0
  %6004 = vmatpush1.bf16.xpose.msra.mxu0 %v5987
  %6005 = vmatprep.subr.bf16.mxu0 0
  %6006 = vmatpush2.bf16.xpose.msra.mxu0 0
  %6007 = vmatprep.subr.bf16.mxu0 0
  %6008 = vmatpush2.bf16.xpose.msra.mxu0 0
  %6009 = vmatprep.subr.bf16.mxu0 0
  %6010 = vmatpush2.bf16.xpose.msra.mxu0 0
  %6011 = vmatprep.subr.bf16.mxu0 0
  %6012 = vmatpush2.bf16.xpose.msra.mxu0 0
  %6013 = vmatprep.subr.bf16.mxu0 0
  %6014 = vmatpush2.bf16.xpose.msra.mxu0 0
  %6015 = vmatprep.subr.bf16.mxu0 0
  %6016 = vmatpush2.bf16.xpose.msra.mxu0 0
  %6017 = vmatprep.subr.bf16.mxu0 0
  %6018 = vmatpush2.bf16.xpose.msra.mxu0 0
  %6019 = vmatprep.subr.bf16.mxu0 0
  %6020 = vmatpush2.bf16.xpose.msra.mxu0 0
  %6021 = vmatprep.mubr.bf16.mxu0 0
  %6022 = vmatmul.mubr.bf16.gmra.mxu0 %v5984
  %v6023 = vpop.f32.mrf.mxu0
  %v6024 = vadd.f32 0.0, %v6023
  %v6025 = vpop.f32.mrf.mxu0
  %v6026 = vpop.f32.mrf.mxu0
  %v6027 = vpop.f32.mrf.mxu0
  %6028 = vdwg.mxu0
  %v6029 = vmul.f32 %v5886, 0.35355338
  %v6030 = vmul.f32 %v5932, 0.35355338
  %v6031 = vmul.f32 %v5978, 0.35355338
  %v6032 = vmul.f32 %v6024, 0.35355338
  %v6033 = vadd.f32 %v6029, %v576
  %v6034 = vadd.f32 %v6030, %v580
  %v6035 = vadd.f32 %v6031, %v584
  %v6036 = vadd.f32 %v6032, %v588
  %v6037 = vsel %vm380, %v6033, -inf
  %6038 = vmax.xlane.f32.xlu0 %v6037
  %v6039 = vpop.xlane.xlu0 %6038
  %v6040 = vsel %vm380, %v6034, -inf
  %6041 = vmax.xlane.f32.xlu0 %v6040
  %v6042 = vpop.xlane.xlu0 %6041
  %v6043 = vsel %vm380, %v6035, -inf
  %6044 = vmax.xlane.f32.xlu0 %v6043
  %v6045 = vpop.xlane.xlu0 %6044
  %v6046 = vsel %vm380, %v6036, -inf
  %6047 = vmax.xlane.f32.xlu0 %v6046
  %v6048 = vpop.xlane.xlu0 %6047
  %v6049 = vsub.f32 %v6033, %v6039
  %v6050 = vsub.f32 %v6034, %v6042
  %v6051 = vsub.f32 %v6035, %v6045
  %v6052 = vsub.f32 %v6036, %v6048
  %v6053 = vmul.f32 %v6049, 1.442695
  %v6054 = vpow.pop %v6053
  %v6055 = vmul.f32 %v6050, 1.442695
  %v6056 = vpow.pop %v6055
  %v6057 = vmul.f32 %v6051, 1.442695
  %v6058 = vpow.pop %v6057
  %v6059 = vmul.f32 %v6052, 1.442695
  %v6060 = vpow.pop %v6059
  %v6061 = vsel %vm380, %v6054, 0.0
  %6062 = vadd.xlane.f32.xlu0 %v6061
  %v6063 = vpop.xlane.xlu0 %6062
  %v6064 = vsel %vm380, %v6056, 0.0
  %6065 = vadd.xlane.f32.xlu0 %v6064
  %v6066 = vpop.xlane.xlu0 %6065
  %v6067 = vsel %vm380, %v6058, 0.0
  %6068 = vadd.xlane.f32.xlu0 %v6067
  %v6069 = vpop.xlane.xlu0 %6068
  %v6070 = vsel %vm380, %v6060, 0.0
  %6071 = vadd.xlane.f32.xlu0 %v6070
  %v6072 = vpop.xlane.xlu0 %6071
  %v6073 = vrcp.pop %v6063
  %v6074 = vrcp.pop %v6066
  %v6075 = vrcp.pop %v6069
  %v6076 = vrcp.pop %v6072
  %v6077 = vmul.f32 %v6054, %v6073
  %v6078 = vmul.f32 %v6056, %v6074
  %v6079 = vmul.f32 %v6058, %v6075
  %v6080 = vmul.f32 %v6060, %v6076
  %v6081 = vpack.c.bf16 %v6077, %v6077
  %v6082 = vpack.c.bf16 %v6078, %v6078
  %v6083 = vpack.c.bf16 %v6079, %v6079
  %v6084 = vpack.c.bf16 %v6080, %v6080
  %v6085 = vpack.c.bf16 %v5823, %v5823
  %v6086 = vpack.c.bf16 %v5826, %v5826
  %v6087 = vpack.c.bf16 %v5831, %v5831
  %v6088 = vpack.c.bf16 %v5834, %v5834
  %v6090 = vsel %vm380, %v6081, 0
  %v6093 = vsel %vm652, %v6085, 0
  %6095 = vmatprep.subr.bf16.mxu0 0
  %6096 = vmatpush1.bf16.msra.mxu0 0
  %6097 = vmatprep.subr.bf16.mxu0 0
  %6098 = vmatpush1.bf16.msra.mxu0 0
  %6099 = vmatprep.subr.bf16.mxu0 0
  %6100 = vmatpush1.bf16.msra.mxu0 0
  %6101 = vmatprep.subr.bf16.mxu0 0
  %6102 = vmatpush1.bf16.msra.mxu0 0
  %6103 = vmatprep.subr.bf16.mxu0 0
  %6104 = vmatpush1.bf16.msra.mxu0 0
  %6105 = vmatprep.subr.bf16.mxu0 0
  %6106 = vmatpush1.bf16.msra.mxu0 0
  %6107 = vmatprep.subr.bf16.mxu0 0
  %6108 = vmatpush1.bf16.msra.mxu0 0
  %6109 = vmatprep.subr.bf16.mxu0 0
  %6110 = vmatpush1.bf16.msra.mxu0 %v6093
  %6111 = vmatprep.subr.bf16.mxu0 0
  %6112 = vmatpush2.bf16.msra.mxu0 0
  %6113 = vmatprep.subr.bf16.mxu0 0
  %6114 = vmatpush2.bf16.msra.mxu0 0
  %6115 = vmatprep.subr.bf16.mxu0 0
  %6116 = vmatpush2.bf16.msra.mxu0 0
  %6117 = vmatprep.subr.bf16.mxu0 0
  %6118 = vmatpush2.bf16.msra.mxu0 0
  %6119 = vmatprep.subr.bf16.mxu0 0
  %6120 = vmatpush2.bf16.msra.mxu0 0
  %6121 = vmatprep.subr.bf16.mxu0 0
  %6122 = vmatpush2.bf16.msra.mxu0 0
  %6123 = vmatprep.subr.bf16.mxu0 0
  %6124 = vmatpush2.bf16.msra.mxu0 0
  %6125 = vmatprep.subr.bf16.mxu0 0
  %6126 = vmatpush2.bf16.msra.mxu0 0
  %6127 = vmatprep.mubr.bf16.mxu0 0
  %6128 = vmatmul.mubr.bf16.gmra.mxu0 %v6090
  %v6129 = vpop.f32.mrf.mxu0
  %v6130 = vadd.f32 0.0, %v6129
  %v6131 = vpop.f32.mrf.mxu0
  %v6132 = vpop.f32.mrf.mxu0
  %v6133 = vpop.f32.mrf.mxu0
  %6134 = vdwg.mxu0
  %v6136 = vsel %vm380, %v6082, 0
  %v6139 = vsel %vm652, %v6086, 0
  %6141 = vmatprep.subr.bf16.mxu0 0
  %6142 = vmatpush1.bf16.msra.mxu0 0
  %6143 = vmatprep.subr.bf16.mxu0 0
  %6144 = vmatpush1.bf16.msra.mxu0 0
  %6145 = vmatprep.subr.bf16.mxu0 0
  %6146 = vmatpush1.bf16.msra.mxu0 0
  %6147 = vmatprep.subr.bf16.mxu0 0
  %6148 = vmatpush1.bf16.msra.mxu0 0
  %6149 = vmatprep.subr.bf16.mxu0 0
  %6150 = vmatpush1.bf16.msra.mxu0 0
  %6151 = vmatprep.subr.bf16.mxu0 0
  %6152 = vmatpush1.bf16.msra.mxu0 0
  %6153 = vmatprep.subr.bf16.mxu0 0
  %6154 = vmatpush1.bf16.msra.mxu0 0
  %6155 = vmatprep.subr.bf16.mxu0 0
  %6156 = vmatpush1.bf16.msra.mxu0 %v6139
  %6157 = vmatprep.subr.bf16.mxu0 0
  %6158 = vmatpush2.bf16.msra.mxu0 0
  %6159 = vmatprep.subr.bf16.mxu0 0
  %6160 = vmatpush2.bf16.msra.mxu0 0
  %6161 = vmatprep.subr.bf16.mxu0 0
  %6162 = vmatpush2.bf16.msra.mxu0 0
  %6163 = vmatprep.subr.bf16.mxu0 0
  %6164 = vmatpush2.bf16.msra.mxu0 0
  %6165 = vmatprep.subr.bf16.mxu0 0
  %6166 = vmatpush2.bf16.msra.mxu0 0
  %6167 = vmatprep.subr.bf16.mxu0 0
  %6168 = vmatpush2.bf16.msra.mxu0 0
  %6169 = vmatprep.subr.bf16.mxu0 0
  %6170 = vmatpush2.bf16.msra.mxu0 0
  %6171 = vmatprep.subr.bf16.mxu0 0
  %6172 = vmatpush2.bf16.msra.mxu0 0
  %6173 = vmatprep.mubr.bf16.mxu0 0
  %6174 = vmatmul.mubr.bf16.gmra.mxu0 %v6136
  %v6175 = vpop.f32.mrf.mxu0
  %v6176 = vadd.f32 0.0, %v6175
  %v6177 = vpop.f32.mrf.mxu0
  %v6178 = vpop.f32.mrf.mxu0
  %v6179 = vpop.f32.mrf.mxu0
  %6180 = vdwg.mxu0
  %v6182 = vsel %vm380, %v6083, 0
  %v6185 = vsel %vm652, %v6087, 0
  %6187 = vmatprep.subr.bf16.mxu0 0
  %6188 = vmatpush1.bf16.msra.mxu0 0
  %6189 = vmatprep.subr.bf16.mxu0 0
  %6190 = vmatpush1.bf16.msra.mxu0 0
  %6191 = vmatprep.subr.bf16.mxu0 0
  %6192 = vmatpush1.bf16.msra.mxu0 0
  %6193 = vmatprep.subr.bf16.mxu0 0
  %6194 = vmatpush1.bf16.msra.mxu0 0
  %6195 = vmatprep.subr.bf16.mxu0 0
  %6196 = vmatpush1.bf16.msra.mxu0 0
  %6197 = vmatprep.subr.bf16.mxu0 0
  %6198 = vmatpush1.bf16.msra.mxu0 0
  %6199 = vmatprep.subr.bf16.mxu0 0
  %6200 = vmatpush1.bf16.msra.mxu0 0
  %6201 = vmatprep.subr.bf16.mxu0 0
  %6202 = vmatpush1.bf16.msra.mxu0 %v6185
  %6203 = vmatprep.subr.bf16.mxu0 0
  %6204 = vmatpush2.bf16.msra.mxu0 0
  %6205 = vmatprep.subr.bf16.mxu0 0
  %6206 = vmatpush2.bf16.msra.mxu0 0
  %6207 = vmatprep.subr.bf16.mxu0 0
  %6208 = vmatpush2.bf16.msra.mxu0 0
  %6209 = vmatprep.subr.bf16.mxu0 0
  %6210 = vmatpush2.bf16.msra.mxu0 0
  %6211 = vmatprep.subr.bf16.mxu0 0
  %6212 = vmatpush2.bf16.msra.mxu0 0
  %6213 = vmatprep.subr.bf16.mxu0 0
  %6214 = vmatpush2.bf16.msra.mxu0 0
  %6215 = vmatprep.subr.bf16.mxu0 0
  %6216 = vmatpush2.bf16.msra.mxu0 0
  %6217 = vmatprep.subr.bf16.mxu0 0
  %6218 = vmatpush2.bf16.msra.mxu0 0
  %6219 = vmatprep.mubr.bf16.mxu0 0
  %6220 = vmatmul.mubr.bf16.gmra.mxu0 %v6182
  %v6221 = vpop.f32.mrf.mxu0
  %v6222 = vadd.f32 0.0, %v6221
  %v6223 = vpop.f32.mrf.mxu0
  %v6224 = vpop.f32.mrf.mxu0
  %v6225 = vpop.f32.mrf.mxu0
  %6226 = vdwg.mxu0
  %v6228 = vsel %vm380, %v6084, 0
  %v6231 = vsel %vm652, %v6088, 0
  %6233 = vmatprep.subr.bf16.mxu0 0
  %6234 = vmatpush1.bf16.msra.mxu0 0
  %6235 = vmatprep.subr.bf16.mxu0 0
  %6236 = vmatpush1.bf16.msra.mxu0 0
  %6237 = vmatprep.subr.bf16.mxu0 0
  %6238 = vmatpush1.bf16.msra.mxu0 0
  %6239 = vmatprep.subr.bf16.mxu0 0
  %6240 = vmatpush1.bf16.msra.mxu0 0
  %6241 = vmatprep.subr.bf16.mxu0 0
  %6242 = vmatpush1.bf16.msra.mxu0 0
  %6243 = vmatprep.subr.bf16.mxu0 0
  %6244 = vmatpush1.bf16.msra.mxu0 0
  %6245 = vmatprep.subr.bf16.mxu0 0
  %6246 = vmatpush1.bf16.msra.mxu0 0
  %6247 = vmatprep.subr.bf16.mxu0 0
  %6248 = vmatpush1.bf16.msra.mxu0 %v6231
  %6249 = vmatprep.subr.bf16.mxu0 0
  %6250 = vmatpush2.bf16.msra.mxu0 0
  %6251 = vmatprep.subr.bf16.mxu0 0
  %6252 = vmatpush2.bf16.msra.mxu0 0
  %6253 = vmatprep.subr.bf16.mxu0 0
  %6254 = vmatpush2.bf16.msra.mxu0 0
  %6255 = vmatprep.subr.bf16.mxu0 0
  %6256 = vmatpush2.bf16.msra.mxu0 0
  %6257 = vmatprep.subr.bf16.mxu0 0
  %6258 = vmatpush2.bf16.msra.mxu0 0
  %6259 = vmatprep.subr.bf16.mxu0 0
  %6260 = vmatpush2.bf16.msra.mxu0 0
  %6261 = vmatprep.subr.bf16.mxu0 0
  %6262 = vmatpush2.bf16.msra.mxu0 0
  %6263 = vmatprep.subr.bf16.mxu0 0
  %6264 = vmatpush2.bf16.msra.mxu0 0
  %6265 = vmatprep.mubr.bf16.mxu0 0
  %6266 = vmatmul.mubr.bf16.gmra.mxu0 %v6228
  %v6267 = vpop.f32.mrf.mxu0
  %v6268 = vadd.f32 0.0, %v6267
  %v6269 = vpop.f32.mrf.mxu0
  %v6270 = vpop.f32.mrf.mxu0
  %v6271 = vpop.f32.mrf.mxu0
  %6272 = vdwg.mxu0
  %v6273 = vpack.c.bf16 %v6176, %v6130
  %v6274 = vpack.c.bf16 %v6268, %v6222
  %s6275 = scalar_lea.vmem %s6, 28
  %v6276 = vld [vmem:[%s6275] sm:$0xf]
  %v6278 = vsel %vm380, %v6273, 0
  %v6281 = vsel %vm380, %v6274, 0
  %v6284 = vsel %vm652, %v6276, 0
  %6286 = vmatprep.subr.bf16.mxu0 0
  %6287 = vmatpush1.bf16.msra.mxu0 0
  %6288 = vmatprep.subr.bf16.mxu0 0
  %6289 = vmatpush1.bf16.msra.mxu0 0
  %6290 = vmatprep.subr.bf16.mxu0 0
  %6291 = vmatpush1.bf16.msra.mxu0 0
  %6292 = vmatprep.subr.bf16.mxu0 0
  %6293 = vmatpush1.bf16.msra.mxu0 0
  %6294 = vmatprep.subr.bf16.mxu0 0
  %6295 = vmatpush1.bf16.msra.mxu0 0
  %6296 = vmatprep.subr.bf16.mxu0 0
  %6297 = vmatpush1.bf16.msra.mxu0 0
  %6298 = vmatprep.subr.bf16.mxu0 0
  %6299 = vmatpush1.bf16.msra.mxu0 0
  %6300 = vmatprep.subr.bf16.mxu0 0
  %6301 = vmatpush1.bf16.msra.mxu0 %v6284
  %6302 = vmatprep.subr.bf16.mxu0 0
  %6303 = vmatpush2.bf16.msra.mxu0 0
  %6304 = vmatprep.subr.bf16.mxu0 0
  %6305 = vmatpush2.bf16.msra.mxu0 0
  %6306 = vmatprep.subr.bf16.mxu0 0
  %6307 = vmatpush2.bf16.msra.mxu0 0
  %6308 = vmatprep.subr.bf16.mxu0 0
  %6309 = vmatpush2.bf16.msra.mxu0 0
  %6310 = vmatprep.subr.bf16.mxu0 0
  %6311 = vmatpush2.bf16.msra.mxu0 0
  %6312 = vmatprep.subr.bf16.mxu0 0
  %6313 = vmatpush2.bf16.msra.mxu0 0
  %6314 = vmatprep.subr.bf16.mxu0 0
  %6315 = vmatpush2.bf16.msra.mxu0 0
  %6316 = vmatprep.subr.bf16.mxu0 0
  %6317 = vmatpush2.bf16.msra.mxu0 0
  %6318 = vmatprep.mubr.bf16.mxu0 0
  %6319 = vmatmul.mubr.bf16.gmra.mxu0 %v6278
  %v6320 = vpop.f32.mrf.mxu0
  %v6321 = vadd.f32 0.0, %v6320
  %v6322 = vpop.f32.mrf.mxu0
  %v6323 = vpop.f32.mrf.mxu0
  %v6324 = vadd.f32 0.0, %v6323
  %v6325 = vpop.f32.mrf.mxu0
  %6326 = vmatprep.mubr.bf16.mxu0 0
  %6327 = vmatmul.mubr.bf16.gmra.mxu0 %v6281
  %v6328 = vpop.f32.mrf.mxu0
  %v6329 = vadd.f32 0.0, %v6328
  %v6330 = vpop.f32.mrf.mxu0
  %v6331 = vpop.f32.mrf.mxu0
  %v6332 = vadd.f32 0.0, %v6331
  %v6333 = vpop.f32.mrf.mxu0
  %6334 = vdwg.mxu0
  %v6335 = vadd.f32 %v5611, %v6321
  %v6336 = vadd.f32 %v5612, %v6324
  %v6337 = vadd.f32 %v5613, %v6329
  %v6338 = vadd.f32 %v5614, %v6332
  %s6339 = scalar_lea.vmem %s7, 1
  %v6340 = vld [vmem:[%s6339] sm:$0x1]
  %v6342 = vlaneseq
  %v6343 = vshrl.u32 %v6342, 7
  %v6344 = vsub.s32 0, %v6343
  %v6345 = vrot.slane %v6340, %v6344
  %v6347 = vadd.f32 %v6335, %v6345
  %v6348 = vadd.f32 %v6336, %v6345
  %v6349 = vadd.f32 %v6337, %v6345
  %v6350 = vadd.f32 %v6338, %v6345
  %v6351 = vadd.f32 %v3439, %v6347
  %v6352 = vadd.f32 %v3440, %v6348
  %v6353 = vadd.f32 %v3441, %v6349
  %v6354 = vadd.f32 %v3442, %v6350
  %s6355 = scalar_lea.vmem %s8, 1
  %v6356 = vld [vmem:[%s6355] sm:$0x1]
  %s6357 = scalar_lea.vmem %s9, 1
  %v6358 = vld [vmem:[%s6357] sm:$0x1]
  %v6359 = vsel %vm70, %v6351, 0.0
  %6360 = vadd.xlane.f32.xlu0 %v6359
  %v6361 = vpop.xlane.xlu0 %6360
  %v6362 = vsel %vm70, %v6352, 0.0
  %6363 = vadd.xlane.f32.xlu0 %v6362
  %v6364 = vpop.xlane.xlu0 %6363
  %v6365 = vsel %vm70, %v6353, 0.0
  %6366 = vadd.xlane.f32.xlu0 %v6365
  %v6367 = vpop.xlane.xlu0 %6366
  %v6368 = vsel %vm70, %v6354, 0.0
  %6369 = vadd.xlane.f32.xlu0 %v6368
  %v6370 = vpop.xlane.xlu0 %6369
  %v6371 = vmul.f32 %v6361, %v83
  %v6372 = vmul.f32 %v6364, %v83
  %v6373 = vmul.f32 %v6367, %v83
  %v6374 = vmul.f32 %v6370, %v83
  %v6375 = vsub.f32 %v6351, %v6371
  %v6376 = vsub.f32 %v6352, %v6372
  %v6377 = vsub.f32 %v6353, %v6373
  %v6378 = vsub.f32 %v6354, %v6374
  %v6379 = vmul.f32 %v6375, %v6375
  %v6380 = vmul.f32 %v6376, %v6376
  %v6381 = vmul.f32 %v6377, %v6377
  %v6382 = vmul.f32 %v6378, %v6378
  %v6383 = vsel %vm70, %v6379, 0.0
  %6384 = vadd.xlane.f32.xlu0 %v6383
  %v6385 = vpop.xlane.xlu0 %6384
  %v6386 = vsel %vm70, %v6380, 0.0
  %6387 = vadd.xlane.f32.xlu0 %v6386
  %v6388 = vpop.xlane.xlu0 %6387
  %v6389 = vsel %vm70, %v6381, 0.0
  %6390 = vadd.xlane.f32.xlu0 %v6389
  %v6391 = vpop.xlane.xlu0 %6390
  %v6392 = vsel %vm70, %v6382, 0.0
  %6393 = vadd.xlane.f32.xlu0 %v6392
  %v6394 = vpop.xlane.xlu0 %6393
  %v6395 = vmul.f32 %v6385, %v83
  %v6396 = vmul.f32 %v6388, %v83
  %v6397 = vmul.f32 %v6391, %v83
  %v6398 = vmul.f32 %v6394, %v83
  %v6399 = vadd.f32 %v6395, 1e-12
  %v6400 = vadd.f32 %v6396, 1e-12
  %v6401 = vadd.f32 %v6397, 1e-12
  %v6402 = vadd.f32 %v6398, 1e-12
  %v6403 = vrsqrt.pop %v6399
  %v6404 = vrsqrt.pop %v6400
  %v6405 = vrsqrt.pop %v6401
  %v6406 = vrsqrt.pop %v6402
  %v6407 = vmul.f32 %v6375, %v6403
  %v6408 = vmul.f32 %v6376, %v6404
  %v6409 = vmul.f32 %v6377, %v6405
  %v6410 = vmul.f32 %v6378, %v6406
  %v6412 = vlaneseq
  %v6413 = vshrl.u32 %v6412, 7
  %v6414 = vsub.s32 0, %v6413
  %v6415 = vrot.slane %v6356, %v6414
  %v6417 = vmul.f32 %v6407, %v6415
  %v6418 = vmul.f32 %v6408, %v6415
  %v6419 = vmul.f32 %v6409, %v6415
  %v6420 = vmul.f32 %v6410, %v6415
  %v6422 = vlaneseq
  %v6423 = vshrl.u32 %v6422, 7
  %v6424 = vsub.s32 0, %v6423
  %v6425 = vrot.slane %v6358, %v6424
  %v6427 = vadd.f32 %v6417, %v6425
  %v6428 = vadd.f32 %v6418, %v6425
  %v6429 = vadd.f32 %v6419, %v6425
  %v6430 = vadd.f32 %v6420, %v6425
  %v6431 = vpack.c.bf16 %v6428, %v6427
  %v6432 = vpack.c.bf16 %v6430, %v6429
  %s6433 = scalar_lea.vmem %s10, 16
  %v6434 = vld [vmem:[%s6433] sm:$0xf]
  %v6435 = vld [vmem:[%s6433 + $0x4] sm:$0xf]
  %v6436 = vld [vmem:[%s6433 + $0x8] sm:$0xf]
  %v6437 = vld [vmem:[%s6433 + $0xc] sm:$0xf]
  %s6438 = scalar_lea.vmem %s11, 1
  %v6439 = vld [vmem:[%s6438] sm:$0x1]
  %v6441 = vlaneseq
  %v6442 = vshrl.u32 %v6441, 7
  %v6443 = vsub.s32 0, %v6442
  %v6444 = vrot.slane %v6439, %v6443
  %v6450 = vunpack.c.l.b16 %v6434
  %v6451 = vunpack.c.l.b16 %v6435
  %v6452 = vunpack.c.l.b16 %v6436
  %v6453 = vunpack.c.l.b16 %v6437
  %v6454 = vpack.c.b16 %v6451, %v6450
  %v6455 = vpack.c.b16 %v6453, %v6452
  %v6459 = vsel %vm70, %v6431, 0
  %v6462 = vsel %vm70, %v6432, 0
  %6464 = vmatprep.subr.bf16.mxu0 0
  %6465 = vmatpush1.bf16.msra.mxu0 0
  %6466 = vmatprep.subr.bf16.mxu0 0
  %6467 = vmatpush1.bf16.msra.mxu0 0
  %6468 = vmatprep.subr.bf16.mxu0 0
  %6469 = vmatpush1.bf16.msra.mxu0 0
  %6470 = vmatprep.subr.bf16.mxu0 0
  %6471 = vmatpush1.bf16.msra.mxu0 0
  %6472 = vmatprep.subr.bf16.mxu0 0
  %6473 = vmatpush1.bf16.msra.mxu0 0
  %6474 = vmatprep.subr.bf16.mxu0 0
  %6475 = vmatpush1.bf16.msra.mxu0 0
  %6476 = vmatprep.subr.bf16.mxu0 0
  %6477 = vmatpush1.bf16.msra.mxu0 %v6455
  %6478 = vmatprep.subr.bf16.mxu0 0
  %6479 = vmatpush1.bf16.msra.mxu0 %v6454
  %6480 = vmatprep.subr.bf16.mxu0 0
  %6481 = vmatpush2.bf16.msra.mxu0 0
  %6482 = vmatprep.subr.bf16.mxu0 0
  %6483 = vmatpush2.bf16.msra.mxu0 0
  %6484 = vmatprep.subr.bf16.mxu0 0
  %6485 = vmatpush2.bf16.msra.mxu0 0
  %6486 = vmatprep.subr.bf16.mxu0 0
  %6487 = vmatpush2.bf16.msra.mxu0 0
  %6488 = vmatprep.subr.bf16.mxu0 0
  %6489 = vmatpush2.bf16.msra.mxu0 0
  %6490 = vmatprep.subr.bf16.mxu0 0
  %6491 = vmatpush2.bf16.msra.mxu0 0
  %6492 = vmatprep.subr.bf16.mxu0 0
  %6493 = vmatpush2.bf16.msra.mxu0 0
  %6494 = vmatprep.subr.bf16.mxu0 0
  %6495 = vmatpush2.bf16.msra.mxu0 0
  %6496 = vmatprep.mubr.bf16.mxu0 0
  %6497 = vmatmul.mubr.bf16.gmra.mxu0 %v6459
  %v6498 = vpop.f32.mrf.mxu0
  %v6499 = vadd.f32 %v6444, %v6498
  %v6500 = vpop.f32.mrf.mxu0
  %v6501 = vpop.f32.mrf.mxu0
  %v6502 = vadd.f32 %v6444, %v6501
  %v6503 = vpop.f32.mrf.mxu0
  %6504 = vmatprep.mubr.bf16.mxu0 0
  %6505 = vmatmul.mubr.bf16.gmra.mxu0 %v6462
  %v6506 = vpop.f32.mrf.mxu0
  %v6507 = vadd.f32 %v6444, %v6506
  %v6508 = vpop.f32.mrf.mxu0
  %v6509 = vpop.f32.mrf.mxu0
  %v6510 = vadd.f32 %v6444, %v6509
  %v6511 = vpop.f32.mrf.mxu0
  %6512 = vdwg.mxu0
  %v6513 = vmul.f32 %v6499, 0.5
  %v6514 = vmul.f32 %v6502, 0.5
  %v6515 = vmul.f32 %v6507, 0.5
  %v6516 = vmul.f32 %v6510, 0.5
  %v6517 = vmul.f32 %v6499, %v6499
  %v6518 = vmul.f32 %v6502, %v6502
  %v6519 = vmul.f32 %v6507, %v6507
  %v6520 = vmul.f32 %v6510, %v6510
  %v6521 = vmul.f32 %v6517, %v6499
  %v6522 = vmul.f32 %v6518, %v6502
  %v6523 = vmul.f32 %v6519, %v6507
  %v6524 = vmul.f32 %v6520, %v6510
  %v6525 = vmul.f32 %v6521, 0.044715
  %v6526 = vmul.f32 %v6522, 0.044715
  %v6527 = vmul.f32 %v6523, 0.044715
  %v6528 = vmul.f32 %v6524, 0.044715
  %v6529 = vadd.f32 %v6499, %v6525
  %v6530 = vadd.f32 %v6502, %v6526
  %v6531 = vadd.f32 %v6507, %v6527
  %v6532 = vadd.f32 %v6510, %v6528
  %v6533 = vmul.f32 %v6529, 0.7978846
  %v6534 = vmul.f32 %v6530, 0.7978846
  %v6535 = vmul.f32 %v6531, 0.7978846
  %v6536 = vmul.f32 %v6532, 0.7978846
  %v6537 = vtanh.pop %v6533
  %v6538 = vtanh.pop %v6534
  %v6539 = vtanh.pop %v6535
  %v6540 = vtanh.pop %v6536
  %v6541 = vadd.f32 %v6537, 1.0
  %v6542 = vadd.f32 %v6538, 1.0
  %v6543 = vadd.f32 %v6539, 1.0
  %v6544 = vadd.f32 %v6540, 1.0
  %v6545 = vmul.f32 %v6513, %v6541
  %v6546 = vmul.f32 %v6514, %v6542
  %v6547 = vmul.f32 %v6515, %v6543
  %v6548 = vmul.f32 %v6516, %v6544
  %v6549 = vpack.c.bf16 %v6546, %v6545
  %v6550 = vpack.c.bf16 %v6548, %v6547
  %s6551 = scalar_lea.vmem %s12, 32
  %v6552 = vld [vmem:[%s6551] sm:$0xf]
  %v6553 = vld [vmem:[%s6551 + $0x4] sm:$0xf]
  %v6554 = vld [vmem:[%s6551 + $0x8] sm:$0xf]
  %v6555 = vld [vmem:[%s6551 + $0xc] sm:$0xf]
  %v6556 = vld [vmem:[%s6551 + $0x10] sm:$0xf]
  %v6557 = vld [vmem:[%s6551 + $0x14] sm:$0xf]
  %v6558 = vld [vmem:[%s6551 + $0x18] sm:$0xf]
  %v6559 = vld [vmem:[%s6551 + $0x1c] sm:$0xf]
  %s6560 = scalar_lea.vmem %s13, 1
  %v6561 = vld [vmem:[%s6560] sm:$0x1]
  %v6563 = vlaneseq
  %v6564 = vshrl.u32 %v6563, 7
  %v6565 = vsub.s32 0, %v6564
  %v6566 = vrot.slane %v6561, %v6565
  %v6576 = vunpack.c.l.b16 %v6552
  %v6577 = vunpack.c.l.b16 %v6553
  %v6578 = vunpack.c.l.b16 %v6554
  %v6579 = vunpack.c.l.b16 %v6555
  %v6580 = vunpack.c.l.b16 %v6556
  %v6581 = vunpack.c.l.b16 %v6557
  %v6582 = vunpack.c.l.b16 %v6558
  %v6583 = vunpack.c.l.b16 %v6559
  %v6584 = vpack.c.b16 %v6577, %v6576
  %v6585 = vpack.c.b16 %v6579, %v6578
  %v6586 = vpack.c.b16 %v6581, %v6580
  %v6587 = vpack.c.b16 %v6583, %v6582
  %v6593 = vsel %vm3309, %v6549, 0
  %v6596 = vsel %vm3309, %v6550, 0
  %6598 = vmatprep.subr.bf16.mxu0 0
  %6599 = vmatpush1.bf16.msra.mxu0 0
  %6600 = vmatprep.subr.bf16.mxu0 0
  %6601 = vmatpush1.bf16.msra.mxu0 0
  %6602 = vmatprep.subr.bf16.mxu0 0
  %6603 = vmatpush1.bf16.msra.mxu0 0
  %6604 = vmatprep.subr.bf16.mxu0 0
  %6605 = vmatpush1.bf16.msra.mxu0 0
  %6606 = vmatprep.subr.bf16.mxu0 0
  %6607 = vmatpush1.bf16.msra.mxu0 %v6587
  %6608 = vmatprep.subr.bf16.mxu0 0
  %6609 = vmatpush1.bf16.msra.mxu0 %v6586
  %6610 = vmatprep.subr.bf16.mxu0 0
  %6611 = vmatpush1.bf16.msra.mxu0 %v6585
  %6612 = vmatprep.subr.bf16.mxu0 0
  %6613 = vmatpush1.bf16.msra.mxu0 %v6584
  %6614 = vmatprep.subr.bf16.mxu0 0
  %6615 = vmatpush2.bf16.msra.mxu0 0
  %6616 = vmatprep.subr.bf16.mxu0 0
  %6617 = vmatpush2.bf16.msra.mxu0 0
  %6618 = vmatprep.subr.bf16.mxu0 0
  %6619 = vmatpush2.bf16.msra.mxu0 0
  %6620 = vmatprep.subr.bf16.mxu0 0
  %6621 = vmatpush2.bf16.msra.mxu0 0
  %6622 = vmatprep.subr.bf16.mxu0 0
  %6623 = vmatpush2.bf16.msra.mxu0 0
  %6624 = vmatprep.subr.bf16.mxu0 0
  %6625 = vmatpush2.bf16.msra.mxu0 0
  %6626 = vmatprep.subr.bf16.mxu0 0
  %6627 = vmatpush2.bf16.msra.mxu0 0
  %6628 = vmatprep.subr.bf16.mxu0 0
  %6629 = vmatpush2.bf16.msra.mxu0 0
  %6630 = vmatprep.mubr.bf16.mxu0 0
  %6631 = vmatmul.mubr.bf16.gmra.mxu0 %v6593
  %v6632 = vpop.f32.mrf.mxu0
  %v6633 = vadd.f32 %v6566, %v6632
  %v6634 = vpop.f32.mrf.mxu0
  %v6635 = vpop.f32.mrf.mxu0
  %v6636 = vadd.f32 %v6566, %v6635
  %v6637 = vpop.f32.mrf.mxu0
  %6638 = vmatprep.mubr.bf16.mxu0 0
  %6639 = vmatmul.mubr.bf16.gmra.mxu0 %v6596
  %v6640 = vpop.f32.mrf.mxu0
  %v6641 = vadd.f32 %v6566, %v6640
  %v6642 = vpop.f32.mrf.mxu0
  %v6643 = vpop.f32.mrf.mxu0
  %v6644 = vadd.f32 %v6566, %v6643
  %v6645 = vpop.f32.mrf.mxu0
  %6646 = vdwg.mxu0
  %v6647 = vadd.f32 %v6427, %v6633
  %v6648 = vadd.f32 %v6428, %v6636
  %v6649 = vadd.f32 %v6429, %v6641
  %v6650 = vadd.f32 %v6430, %v6644
  %s6651 = scalar_lea.vmem %s14, 1
  %v6652 = vld [vmem:[%s6651] sm:$0x1]
  %s6653 = scalar_lea.vmem %s15, 1
  %v6654 = vld [vmem:[%s6653] sm:$0x1]
  %v6655 = vsel %vm70, %v6647, 0.0
  %6656 = vadd.xlane.f32.xlu0 %v6655
  %v6657 = vpop.xlane.xlu0 %6656
  %v6658 = vsel %vm70, %v6648, 0.0
  %6659 = vadd.xlane.f32.xlu0 %v6658
  %v6660 = vpop.xlane.xlu0 %6659
  %v6661 = vsel %vm70, %v6649, 0.0
  %6662 = vadd.xlane.f32.xlu0 %v6661
  %v6663 = vpop.xlane.xlu0 %6662
  %v6664 = vsel %vm70, %v6650, 0.0
  %6665 = vadd.xlane.f32.xlu0 %v6664
  %v6666 = vpop.xlane.xlu0 %6665
  %v6667 = vmul.f32 %v6657, %v83
  %v6668 = vmul.f32 %v6660, %v83
  %v6669 = vmul.f32 %v6663, %v83
  %v6670 = vmul.f32 %v6666, %v83
  %v6671 = vsub.f32 %v6647, %v6667
  %v6672 = vsub.f32 %v6648, %v6668
  %v6673 = vsub.f32 %v6649, %v6669
  %v6674 = vsub.f32 %v6650, %v6670
  %v6675 = vmul.f32 %v6671, %v6671
  %v6676 = vmul.f32 %v6672, %v6672
  %v6677 = vmul.f32 %v6673, %v6673
  %v6678 = vmul.f32 %v6674, %v6674
  %v6679 = vsel %vm70, %v6675, 0.0
  %6680 = vadd.xlane.f32.xlu0 %v6679
  %v6681 = vpop.xlane.xlu0 %6680
  %v6682 = vsel %vm70, %v6676, 0.0
  %6683 = vadd.xlane.f32.xlu0 %v6682
  %v6684 = vpop.xlane.xlu0 %6683
  %v6685 = vsel %vm70, %v6677, 0.0
  %6686 = vadd.xlane.f32.xlu0 %v6685
  %v6687 = vpop.xlane.xlu0 %6686
  %v6688 = vsel %vm70, %v6678, 0.0
  %6689 = vadd.xlane.f32.xlu0 %v6688
  %v6690 = vpop.xlane.xlu0 %6689
  %v6691 = vmul.f32 %v6681, %v83
  %v6692 = vmul.f32 %v6684, %v83
  %v6693 = vmul.f32 %v6687, %v83
  %v6694 = vmul.f32 %v6690, %v83
  %v6695 = vadd.f32 %v6691, 1e-12
  %v6696 = vadd.f32 %v6692, 1e-12
  %v6697 = vadd.f32 %v6693, 1e-12
  %v6698 = vadd.f32 %v6694, 1e-12
  %v6699 = vrsqrt.pop %v6695
  %v6700 = vrsqrt.pop %v6696
  %v6701 = vrsqrt.pop %v6697
  %v6702 = vrsqrt.pop %v6698
  %v6703 = vmul.f32 %v6671, %v6699
  %v6704 = vmul.f32 %v6672, %v6700
  %v6705 = vmul.f32 %v6673, %v6701
  %v6706 = vmul.f32 %v6674, %v6702
  %v6708 = vlaneseq
  %v6709 = vshrl.u32 %v6708, 7
  %v6710 = vsub.s32 0, %v6709
  %v6711 = vrot.slane %v6652, %v6710
  %v6713 = vmul.f32 %v6703, %v6711
  %v6714 = vmul.f32 %v6704, %v6711
  %v6715 = vmul.f32 %v6705, %v6711
  %v6716 = vmul.f32 %v6706, %v6711
  %v6718 = vlaneseq
  %v6719 = vshrl.u32 %v6718, 7
  %v6720 = vsub.s32 0, %v6719
  %v6721 = vrot.slane %v6654, %v6720
  %v6723 = vadd.f32 %v6713, %v6721
  %v6724 = vadd.f32 %v6714, %v6721
  %v6725 = vadd.f32 %v6715, %v6721
  %v6726 = vadd.f32 %v6716, %v6721
  %v6727 = vpack.c.bf16 %v6723, %v6723
  %v6728 = vpack.c.bf16 %v6724, %v6724
  %v6729 = vpack.c.bf16 %v6725, %v6725
  %v6730 = vpack.c.bf16 %v6726, %v6726
  %v6731 = vld [vmem:[%s16] sm:$0xf]
  %v6732 = vld [vmem:[%s16 + $0x4] sm:$0xf]
  %v6733 = vld [vmem:[%s16 + $0x8] sm:$0xf]
  %v6734 = vld [vmem:[%s16 + $0xc] sm:$0xf]
  %v6735 = vld [vmem:[%s17] sm:$0x1]
  %v6737 = vlaneseq
  %v6738 = vshrl.u32 %v6737, 7
  %v6739 = vsub.s32 0, %v6738
  %v6740 = vrot.slane %v6735, %v6739
  %v6746 = vunpack.c.l.b16 %v6727
  %v6747 = vunpack.c.l.b16 %v6728
  %v6748 = vunpack.c.l.b16 %v6729
  %v6749 = vunpack.c.l.b16 %v6730
  %v6750 = vrot.slane %v6747, 7
  %vm6751 = vcmask 1041409
  %v6752 = vsel %vm6751, %v6750, %v6746
  %v6753 = vrot.slane %v6748, 6
  %vm6754 = vcmask 1042434
  %v6755 = vsel %vm6754, %v6753, %v6752
  %v6756 = vrot.slane %v6749, 5
  %vm6757 = vcmask 1043459
  %v6758 = vsel %vm6757, %v6756, %v6755
  %v6759 = vpack.c.b16 %v6758, %v6758
  %v6764 = vunpack.c.l.b16 %v6731
  %v6765 = vunpack.c.l.b16 %v6732
  %v6766 = vunpack.c.l.b16 %v6733
  %v6767 = vunpack.c.l.b16 %v6734
  %v6768 = vpack.c.b16 %v6765, %v6764
  %v6769 = vpack.c.b16 %v6767, %v6766
  %v6773 = vsel %vm70, %v6759, 0
  %6775 = vmatprep.subr.bf16.mxu0 0
  %6776 = vmatpush1.bf16.msra.mxu0 0
  %6777 = vmatprep.subr.bf16.mxu0 0
  %6778 = vmatpush1.bf16.msra.mxu0 0
  %6779 = vmatprep.subr.bf16.mxu0 0
  %6780 = vmatpush1.bf16.msra.mxu0 0
  %6781 = vmatprep.subr.bf16.mxu0 0
  %6782 = vmatpush1.bf16.msra.mxu0 0
  %6783 = vmatprep.subr.bf16.mxu0 0
  %6784 = vmatpush1.bf16.msra.mxu0 0
  %6785 = vmatprep.subr.bf16.mxu0 0
  %6786 = vmatpush1.bf16.msra.mxu0 0
  %6787 = vmatprep.subr.bf16.mxu0 0
  %6788 = vmatpush1.bf16.msra.mxu0 %v6769
  %6789 = vmatprep.subr.bf16.mxu0 0
  %6790 = vmatpush1.bf16.msra.mxu0 %v6768
  %6791 = vmatprep.subr.bf16.mxu0 0
  %6792 = vmatpush2.bf16.msra.mxu0 0
  %6793 = vmatprep.subr.bf16.mxu0 0
  %6794 = vmatpush2.bf16.msra.mxu0 0
  %6795 = vmatprep.subr.bf16.mxu0 0
  %6796 = vmatpush2.bf16.msra.mxu0 0
  %6797 = vmatprep.subr.bf16.mxu0 0
  %6798 = vmatpush2.bf16.msra.mxu0 0
  %6799 = vmatprep.subr.bf16.mxu0 0
  %6800 = vmatpush2.bf16.msra.mxu0 0
  %6801 = vmatprep.subr.bf16.mxu0 0
  %6802 = vmatpush2.bf16.msra.mxu0 0
  %6803 = vmatprep.subr.bf16.mxu0 0
  %6804 = vmatpush2.bf16.msra.mxu0 0
  %6805 = vmatprep.subr.bf16.mxu0 0
  %6806 = vmatpush2.bf16.msra.mxu0 0
  %6807 = vmatprep.mubr.bf16.mxu0 0
  %6808 = vmatmul.mubr.bf16.gmra.mxu0 %v6773
  %v6809 = vpop.f32.mrf.mxu0
  %v6810 = vadd.f32 %v6740, %v6809
  %v6811 = vpop.f32.mrf.mxu0
  %v6812 = vpop.f32.mrf.mxu0
  %v6813 = vpop.f32.mrf.mxu0
  %6814 = vdwg.mxu0
  %v6815 = vtanh.pop %v6810
  %vm6816 = vcmask 257024
  %6817 = vst.msk [vmem:[%s18] sm:$0xf] %vm6816, %v6815
  // Predicated region
  $region74: #{twin_bert_forward.1} parent=0 // pred_check
    _
  $region75: #{twin_bert_forward.1} parent=0 // pred_check_branch
    %6819 = sbr.rel (0) target = $region77
  $region76: #{twin_bert_forward.1} parent=0 // pred_region
    _
  $region77: #{twin_bert_forward.1} parent=0 // pred_fallthru
    _
  // Predicated region
  $region78: #{twin_bert_forward.1} parent=0 // pred_check
    _
  $region79: #{twin_bert_forward.1} parent=0 // pred_check_branch
    %6821 = sbr.rel (0) target = $region81
  $region80: #{twin_bert_forward.1} parent=0 // pred_region
    _
  $region81: #{twin_bert_forward.1} parent=0 // pred_fallthru
    _

</llo_original>
